<compile_context>
chip_gen: v7x
topology: tpu7x:2x2x1
jax: 0.10.0
libtpu: 0.0.40
codegen_flags: <defaults>
</compile_context>

<pallas_src>
import functools

import jax
import jax.numpy as jnp
from jax import lax
from jax.experimental import pallas as pl
from jax.experimental.pallas import tpu as pltpu


_BN_EPS = 1e-5

# (cin, cout, kernel, has_bn, pool_after) -- cin=None means model input_dim.
_CONV_CFG = [
    (None, 32, 3, False, False),   # conv1_1
    (32, 32, 3, True, True),       # conv1_2 + bn1 + pool1
    (32, 64, 5, False, False),     # conv2_1
    (64, 64, 5, True, True),       # conv2_2 + bn2 + pool2
    (64, 128, 7, False, False),    # conv3_1
    (128, 128, 7, True, True),     # conv3_2 + bn3 + pool3
    (128, 256, 5, False, False),   # conv4_1
    (256, 256, 5, True, False),    # conv4_2 + bn4
]


# ----------------------------------------------------------------------------
# Fused kernel: 8 conv blocks + max pools + global-avg-pool + MLP head.
# ----------------------------------------------------------------------------
def _lidar_kernel(x_ref, *refs, cfg):
    n_conv = len(cfg)
    conv_refs = refs[: 2 * n_conv]
    w1_ref, b1_ref, w2_ref, b2_ref, w3_ref, b3_ref = refs[2 * n_conv: 2 * n_conv + 6]
    o_ref = refs[2 * n_conv + 6]

    L = x_ref.shape[0]                               # current sequence length
    Bc = x_ref.shape[1]                              # batch chunk (multiple of 8)

    act = x_ref[...].astype(jnp.bfloat16)            # (L, Bc, cin0)
    y3 = None
    for li, (cin, cout, K, pool) in enumerate(cfg):
        w_ref = conv_refs[2 * li]                    # (K, cin, cout) bf16, BN-folded
        b_ref = conv_refs[2 * li + 1]                # (1, cout)      f32, BN-folded
        p = (K - 1) // 2

        # 'same' padding: concat zero halos along the (untiled) length axis.
        if p > 0:
            halo = jnp.zeros((p, Bc, cin), jnp.bfloat16)
            padded = jnp.concatenate([halo, act, halo], axis=0)     # (L+2p, Bc, cin)
        else:
            padded = act
        pad2 = padded.reshape((L + 2 * p) * Bc, cin)                # tile-aligned merge

        # Conv1d == K shifted-slab MXU matmuls, bf16 operands, f32 accumulation.
        acc = jnp.zeros((L * Bc, cout), jnp.float32)
        for k in range(K):
            acc = acc + jnp.dot(pad2[k * Bc:(k + L) * Bc, :], w_ref[k],
                                preferred_element_type=jnp.float32)
        y = jnp.maximum(acc + b_ref[...], 0.0)                      # bias + ReLU (f32)

        if pool:
            # MaxPool1d(2): pairwise max of adjacent length positions.
            y4 = y.reshape(L // 2, 2, Bc, cout)
            y3 = jnp.maximum(y4[:, 0], y4[:, 1])                    # (L//2, Bc, cout)
            L = L // 2
        else:
            y3 = y.reshape(L, Bc, cout)
        act = y3.astype(jnp.bfloat16)

    # AdaptiveAvgPool1d(1): mean over the remaining length positions.
    feat = y3[0]
    for l in range(1, L):
        feat = feat + y3[l]
    feat = feat * (1.0 / L)                                         # (Bc, C_last) f32

    # Classifier head.  Dropout layers are eval-mode identity.
    h = jnp.maximum(jnp.dot(feat.astype(jnp.bfloat16), w1_ref[...],
                            preferred_element_type=jnp.float32) + b1_ref[...], 0.0)
    h = jnp.maximum(jnp.dot(h.astype(jnp.bfloat16), w2_ref[...],
                            preferred_element_type=jnp.float32) + b2_ref[...], 0.0)
    out = jnp.dot(h.astype(jnp.bfloat16), w3_ref[...],
                  preferred_element_type=jnp.float32) + b3_ref[...]
    o_ref[...] = out.astype(o_ref.dtype)
    # TODO(synk): training-mode Dropout / BatchNorm batch statistics have no
    # equivalent in this fused inference kernel (eval semantics only).


def _const_index_map(rank):
    return lambda i, _r=rank: (0,) * _r


# ----------------------------------------------------------------------------
# Wrapper: batch-chunk grid, VMEM-resident bf16 weights, padded batch.
# ----------------------------------------------------------------------------
def lidar_cnn_forward(x, conv_params, head_params, *, block_batch=64):
    x = jnp.asarray(x, jnp.float32)
    B, L0, cin0 = x.shape

    # Static layer config + bf16 weights / f32 biases (BN already folded).
    cfg, flat = [], []
    c_prev, L = cin0, L0
    for (w, b, pool) in conv_params:
        K, cin, cout = w.shape
        assert cin == c_prev, "channel chain mismatch"
        assert K % 2 == 1, "odd kernel size required for 'same' padding"
        if pool:
            assert L % 2 == 0, "MaxPool1d(2) needs an even length"
            L //= 2
        cfg.append((cin, cout, K, bool(pool)))
        flat.append(jnp.asarray(w, jnp.bfloat16))
        flat.append(jnp.asarray(b, jnp.float32).reshape(1, cout))
        c_prev = cout
    assert L >= 1, "sequence fully consumed by pooling"

    w1, b1, w2, b2, w3, b3 = head_params
    num_classes = w3.shape[1]
    head_flat = [
        jnp.asarray(w1, jnp.bfloat16), jnp.asarray(b1, jnp.float32).reshape(1, -1),
        jnp.asarray(w2, jnp.bfloat16), jnp.asarray(b2, jnp.float32).reshape(1, -1),
        jnp.asarray(w3, jnp.bfloat16), jnp.asarray(b3, jnp.float32).reshape(1, -1),
    ]

    # Batch chunking: pad batch to a multiple of the 8-aligned chunk size.
    Bc = int(block_batch)
    assert Bc % 8 == 0, "block_batch must be a multiple of 8 (sublane tile)"
    B_pad = ((B + Bc - 1) // Bc) * Bc
    x_t = jnp.transpose(x, (1, 0, 2))                               # (L0, B, cin0)
    if B_pad != B:
        x_t = jnp.pad(x_t, ((0, 0), (0, B_pad - B), (0, 0)))
    n_steps = B_pad // Bc

    # BlockSpecs: x / out are chunked over batch; parameters use a constant
    # block index so they are DMA'd once and stay VMEM-resident across steps.
    in_specs = [pl.BlockSpec((L0, Bc, cin0), lambda i: (0, i, 0))]
    in_specs += [pl.BlockSpec(a.shape, _const_index_map(a.ndim))
                 for a in flat + head_flat]
    out_spec = pl.BlockSpec((Bc, num_classes), lambda i: (i, 0))

    # Advisory cost estimate for XLA scheduling.
    flops, Lc = 0, L0
    for (cin, cout, K, pool) in cfg:
        flops += 2 * K * cin * cout * Lc
        if pool:
            Lc //= 2
    flops += 2 * (w1.shape[0] * w1.shape[1] + w2.shape[0] * w2.shape[1]
                  + w3.shape[0] * w3.shape[1])
    flops *= B_pad
    bytes_accessed = (x_t.size * 4 + B_pad * num_classes * 4
                      + sum(int(a.size) * a.dtype.itemsize for a in flat + head_flat))

    kernel = functools.partial(_lidar_kernel, cfg=tuple(cfg))
    out = pl.pallas_call(
        kernel,
        out_shape=jax.ShapeDtypeStruct((B_pad, num_classes), jnp.float32),
        grid=(n_steps,),
        in_specs=in_specs,
        out_specs=out_spec,
        compiler_params=pltpu.CompilerParams(
            dimension_semantics=("parallel",),
            vmem_limit_bytes=32 * 1024 * 1024),
        cost_estimate=pl.CostEstimate(flops=int(flops), transcendentals=0,
                                      bytes_accessed=int(bytes_accessed)),
    )(x_t, *flat, *head_flat)
    return out[:B]


# ----------------------------------------------------------------------------
# Parameter construction (PyTorch-default-style init) with BN folded on host.
# General eval fold: scale = gamma / sqrt(var + eps);
#                    w_eff = w * scale;  b_eff = (b - mean) * scale + beta.
# ----------------------------------------------------------------------------
def init_params(key, num_classes, input_dim=2):
    keys = jax.random.split(key, len(_CONV_CFG) + 3)
    conv_params = []
    for i, (cin, cout, K, has_bn, pool) in enumerate(_CONV_CFG):
        cin = input_dim if cin is None else cin
        k1, k2 = jax.random.split(keys[i])
        bound = 1.0 / float((cin * K) ** 0.5)
        w = jax.random.uniform(k1, (K, cin, cout), jnp.float32, -bound, bound)
        b = jax.random.uniform(k2, (cout,), jnp.float32, -bound, bound)
        if has_bn:
            gamma = jnp.ones((cout,), jnp.float32)
            beta = jnp.zeros((cout,), jnp.float32)
            mean = jnp.zeros((cout,), jnp.float32)
            var = jnp.ones((cout,), jnp.float32)
            scale = gamma / jnp.sqrt(var + _BN_EPS)
            w = w * scale[None, None, :]
            b = (b - mean) * scale + beta
        conv_params.append((w, b, pool))

    def lin(k, fin, fout):
        k1, k2 = jax.random.split(k)
        bound = 1.0 / float(fin ** 0.5)
        return (jax.random.uniform(k1, (fin, fout), jnp.float32, -bound, bound),
                jax.random.uniform(k2, (fout,), jnp.float32, -bound, bound))

    w1, b1 = lin(keys[-3], 256, 512)
    w2, b2 = lin(keys[-2], 512, 256)
    w3, b3 = lin(keys[-1], 256, num_classes)
    return conv_params, (w1, b1, w2, b2, w3, b3)


# ----------------------------------------------------------------------------
# Pure-JAX f32 reference for verification.
# ----------------------------------------------------------------------------
def lidar_cnn_reference(x, conv_params, head_params):
    h = jnp.asarray(x, jnp.float32)
    for w, b, pool in conv_params:
        K = w.shape[0]
        pad = (K - 1) // 2
        y = lax.conv_general_dilated(
            h, w, window_strides=(1,), padding=[(pad, pad)],
            dimension_numbers=("NWC", "WIO", "NWC"),
            precision=lax.Precision.HIGHEST)
        y = jnp.maximum(y + b, 0.0)
        if pool:
            Bq, Lq, Cq = y.shape
            y = jnp.max(y.reshape(Bq, Lq // 2, 2, Cq), axis=2)
        h = y
    feat = jnp.mean(h, axis=1)
    w1, b1, w2, b2, w3, b3 = head_params
    z = jnp.maximum(jnp.dot(feat, w1, precision=lax.Precision.HIGHEST) + b1, 0.0)
    z = jnp.maximum(jnp.dot(z, w2, precision=lax.Precision.HIGHEST) + b2, 0.0)
    return jnp.dot(z, w3, precision=lax.Precision.HIGHEST) + b3


if __name__ == "__main__":
    B, L, INPUT_DIM, NUM_CLASSES = 16, 16, 2, 5

    root = jax.random.PRNGKey(0)
    k_x, k_p = jax.random.split(root)
    x = jax.random.normal(k_x, (B, L, INPUT_DIM), jnp.float32)
    conv_params, head_params = init_params(k_p, NUM_CLASSES, INPUT_DIM)

    fwd = jax.jit(lambda xx: lidar_cnn_forward(xx, conv_params, head_params,
                                               block_batch=8))
    out = jax.block_until_ready(fwd(x))

    ref = jax.block_until_ready(lidar_cnn_reference(x, conv_params, head_params))
    assert out.shape == (B, NUM_CLASSES), out.shape
    assert jnp.allclose(out, ref, rtol=3e-2, atol=3e-2), (out, ref)

    print("KERNEL_OK")
</pallas_src>

<mosaic_0001>
module attributes {stable_mosaic.version = 11 : i64} {
  func.func @_lidar_kernel(%arg0: i32, %arg1: memref<16x8x2xf32, #tpu.memory_space<vmem>>, %arg2: memref<3x2x32xbf16, #tpu.memory_space<vmem>>, %arg3: memref<1x32xf32, #tpu.memory_space<vmem>>, %arg4: memref<3x32x32xbf16, #tpu.memory_space<vmem>>, %arg5: memref<1x32xf32, #tpu.memory_space<vmem>>, %arg6: memref<5x32x64xbf16, #tpu.memory_space<vmem>>, %arg7: memref<1x64xf32, #tpu.memory_space<vmem>>, %arg8: memref<5x64x64xbf16, #tpu.memory_space<vmem>>, %arg9: memref<1x64xf32, #tpu.memory_space<vmem>>, %arg10: memref<7x64x128xbf16, #tpu.memory_space<vmem>>, %arg11: memref<1x128xf32, #tpu.memory_space<vmem>>, %arg12: memref<7x128x128xbf16, #tpu.memory_space<vmem>>, %arg13: memref<1x128xf32, #tpu.memory_space<vmem>>, %arg14: memref<5x128x256xbf16, #tpu.memory_space<vmem>>, %arg15: memref<1x256xf32, #tpu.memory_space<vmem>>, %arg16: memref<5x256x256xbf16, #tpu.memory_space<vmem>>, %arg17: memref<1x256xf32, #tpu.memory_space<vmem>>, %arg18: memref<256x512xbf16, #tpu.memory_space<vmem>>, %arg19: memref<1x512xf32, #tpu.memory_space<vmem>>, %arg20: memref<512x256xbf16, #tpu.memory_space<vmem>>, %arg21: memref<1x256xf32, #tpu.memory_space<vmem>>, %arg22: memref<256x5xbf16, #tpu.memory_space<vmem>>, %arg23: memref<1x5xf32, #tpu.memory_space<vmem>>, %arg24: memref<8x5xf32, #tpu.memory_space<vmem>>) attributes {dimension_semantics = [#tpu.dimension_semantics<parallel>], iteration_bounds = array<i64: 2>, scalar_prefetch = 0 : i64, scratch_operands = 0 : i64, tpu.core_type = #tpu.core_type<tc>, window_params = [{transform_indices = @transform_0, window_bounds = array<i64: 16, 8, 2>}, {pipeline_mode = #tpu.pipeline_mode<synchronous>, transform_indices = @transform_1, window_bounds = array<i64: 3, 2, 32>}, {pipeline_mode = #tpu.pipeline_mode<synchronous>, transform_indices = @transform_2, window_bounds = array<i64: 1, 32>}, {pipeline_mode = #tpu.pipeline_mode<synchronous>, transform_indices = @transform_3, window_bounds = array<i64: 3, 32, 32>}, {pipeline_mode = #tpu.pipeline_mode<synchronous>, transform_indices = @transform_4, window_bounds = array<i64: 1, 32>}, {pipeline_mode = #tpu.pipeline_mode<synchronous>, transform_indices = @transform_5, window_bounds = array<i64: 5, 32, 64>}, {pipeline_mode = #tpu.pipeline_mode<synchronous>, transform_indices = @transform_6, window_bounds = array<i64: 1, 64>}, {pipeline_mode = #tpu.pipeline_mode<synchronous>, transform_indices = @transform_7, window_bounds = array<i64: 5, 64, 64>}, {pipeline_mode = #tpu.pipeline_mode<synchronous>, transform_indices = @transform_8, window_bounds = array<i64: 1, 64>}, {pipeline_mode = #tpu.pipeline_mode<synchronous>, transform_indices = @transform_9, window_bounds = array<i64: 7, 64, 128>}, {pipeline_mode = #tpu.pipeline_mode<synchronous>, transform_indices = @transform_10, window_bounds = array<i64: 1, 128>}, {pipeline_mode = #tpu.pipeline_mode<synchronous>, transform_indices = @transform_11, window_bounds = array<i64: 7, 128, 128>}, {pipeline_mode = #tpu.pipeline_mode<synchronous>, transform_indices = @transform_12, window_bounds = array<i64: 1, 128>}, {pipeline_mode = #tpu.pipeline_mode<synchronous>, transform_indices = @transform_13, window_bounds = array<i64: 5, 128, 256>}, {pipeline_mode = #tpu.pipeline_mode<synchronous>, transform_indices = @transform_14, window_bounds = array<i64: 1, 256>}, {pipeline_mode = #tpu.pipeline_mode<synchronous>, transform_indices = @transform_15, window_bounds = array<i64: 5, 256, 256>}, {pipeline_mode = #tpu.pipeline_mode<synchronous>, transform_indices = @transform_16, window_bounds = array<i64: 1, 256>}, {pipeline_mode = #tpu.pipeline_mode<synchronous>, transform_indices = @transform_17, window_bounds = array<i64: 256, 512>}, {pipeline_mode = #tpu.pipeline_mode<synchronous>, transform_indices = @transform_18, window_bounds = array<i64: 1, 512>}, {pipeline_mode = #tpu.pipeline_mode<synchronous>, transform_indices = @transform_19, window_bounds = array<i64: 512, 256>}, {pipeline_mode = #tpu.pipeline_mode<synchronous>, transform_indices = @transform_20, window_bounds = array<i64: 1, 256>}, {pipeline_mode = #tpu.pipeline_mode<synchronous>, transform_indices = @transform_21, window_bounds = array<i64: 256, 5>}, {pipeline_mode = #tpu.pipeline_mode<synchronous>, transform_indices = @transform_22, window_bounds = array<i64: 1, 5>}, {transform_indices = @transform_23, window_bounds = array<i64: 8, 5>}]} {
    %c0 = arith.constant 0 : index
    %c0_0 = arith.constant 0 : index
    %c0_1 = arith.constant 0 : index
    %0 = vector.load %arg1[%c0, %c0_0, %c0_1] : memref<16x8x2xf32, #tpu.memory_space<vmem>>, vector<16x8x2xf32>
    %1 = arith.truncf %0 : vector<16x8x2xf32> to vector<16x8x2xbf16>
    %cst = arith.constant 0.000000e+00 : bf16
    %2 = vector.broadcast %cst : bf16 to vector<1x8x2xbf16>
    %3 = tpu.concatenate %2, %1, %2 in 0 : vector<1x8x2xbf16>, vector<16x8x2xbf16>, vector<1x8x2xbf16> -> vector<18x8x2xbf16>
    %4 = vector.shape_cast %3 : vector<18x8x2xbf16> to vector<144x2xbf16>
    %cst_2 = arith.constant 0.000000e+00 : f32
    %5 = vector.broadcast %cst_2 : f32 to vector<128x32xf32>
    %6 = vector.extract_strided_slice %4 {offsets = [0, 0], sizes = [128, 2], strides = [1, 1]} : vector<144x2xbf16> to vector<128x2xbf16>
    %c0_3 = arith.constant 0 : index
    %c0_4 = arith.constant 0 : index
    %c0_5 = arith.constant 0 : index
    %7 = vector.load %arg2[%c0_3, %c0_4, %c0_5] : memref<3x2x32xbf16, #tpu.memory_space<vmem>>, vector<1x2x32xbf16>
    %8 = vector.shape_cast %7 : vector<1x2x32xbf16> to vector<2x32xbf16>
    %cst_6 = arith.constant dense<0.000000e+00> : vector<128x32xf32>
    %9 = tpu.matmul %6, %8, %cst_6 {dimension_numbers = #tpu.dot_dimension_numbers<[1], [0], [0], [1], [0, 0, 1, 1], [], []>} : vector<128x2xbf16>, vector<2x32xbf16>, vector<128x32xf32> -> vector<128x32xf32>
    %10 = arith.addf %5, %9 : vector<128x32xf32>
    %11 = vector.extract_strided_slice %4 {offsets = [8, 0], sizes = [128, 2], strides = [1, 1]} : vector<144x2xbf16> to vector<128x2xbf16>
    %c1 = arith.constant 1 : index
    %c0_7 = arith.constant 0 : index
    %c0_8 = arith.constant 0 : index
    %12 = vector.load %arg2[%c1, %c0_7, %c0_8] : memref<3x2x32xbf16, #tpu.memory_space<vmem>>, vector<1x2x32xbf16>
    %13 = vector.shape_cast %12 : vector<1x2x32xbf16> to vector<2x32xbf16>
    %cst_9 = arith.constant dense<0.000000e+00> : vector<128x32xf32>
    %14 = tpu.matmul %11, %13, %cst_9 {dimension_numbers = #tpu.dot_dimension_numbers<[1], [0], [0], [1], [0, 0, 1, 1], [], []>} : vector<128x2xbf16>, vector<2x32xbf16>, vector<128x32xf32> -> vector<128x32xf32>
    %15 = arith.addf %10, %14 : vector<128x32xf32>
    %16 = vector.extract_strided_slice %4 {offsets = [16, 0], sizes = [128, 2], strides = [1, 1]} : vector<144x2xbf16> to vector<128x2xbf16>
    %c2 = arith.constant 2 : index
    %c0_10 = arith.constant 0 : index
    %c0_11 = arith.constant 0 : index
    %17 = vector.load %arg2[%c2, %c0_10, %c0_11] : memref<3x2x32xbf16, #tpu.memory_space<vmem>>, vector<1x2x32xbf16>
    %18 = vector.shape_cast %17 : vector<1x2x32xbf16> to vector<2x32xbf16>
    %cst_12 = arith.constant dense<0.000000e+00> : vector<128x32xf32>
    %19 = tpu.matmul %16, %18, %cst_12 {dimension_numbers = #tpu.dot_dimension_numbers<[1], [0], [0], [1], [0, 0, 1, 1], [], []>} : vector<128x2xbf16>, vector<2x32xbf16>, vector<128x32xf32> -> vector<128x32xf32>
    %20 = arith.addf %15, %19 : vector<128x32xf32>
    %c0_13 = arith.constant 0 : index
    %c0_14 = arith.constant 0 : index
    %21 = vector.load %arg3[%c0_13, %c0_14] : memref<1x32xf32, #tpu.memory_space<vmem>>, vector<1x32xf32>
    %22 = vector.broadcast %21 : vector<1x32xf32> to vector<128x32xf32>
    %23 = arith.addf %20, %22 : vector<128x32xf32>
    %cst_15 = arith.constant 0.000000e+00 : f32
    %24 = vector.broadcast %cst_15 : f32 to vector<128x32xf32>
    %25 = arith.maximumf %23, %24 : vector<128x32xf32>
    %26 = vector.shape_cast %25 : vector<128x32xf32> to vector<16x8x32xf32>
    %27 = arith.truncf %26 : vector<16x8x32xf32> to vector<16x8x32xbf16>
    %cst_16 = arith.constant 0.000000e+00 : bf16
    %28 = vector.broadcast %cst_16 : bf16 to vector<1x8x32xbf16>
    %29 = tpu.concatenate %28, %27, %28 in 0 : vector<1x8x32xbf16>, vector<16x8x32xbf16>, vector<1x8x32xbf16> -> vector<18x8x32xbf16>
    %30 = vector.shape_cast %29 : vector<18x8x32xbf16> to vector<144x32xbf16>
    %cst_17 = arith.constant 0.000000e+00 : f32
    %31 = vector.broadcast %cst_17 : f32 to vector<128x32xf32>
    %32 = vector.extract_strided_slice %30 {offsets = [0, 0], sizes = [128, 32], strides = [1, 1]} : vector<144x32xbf16> to vector<128x32xbf16>
    %c0_18 = arith.constant 0 : index
    %c0_19 = arith.constant 0 : index
    %c0_20 = arith.constant 0 : index
    %33 = vector.load %arg4[%c0_18, %c0_19, %c0_20] : memref<3x32x32xbf16, #tpu.memory_space<vmem>>, vector<1x32x32xbf16>
    %34 = vector.shape_cast %33 : vector<1x32x32xbf16> to vector<32x32xbf16>
    %cst_21 = arith.constant dense<0.000000e+00> : vector<128x32xf32>
    %35 = tpu.matmul %32, %34, %cst_21 {dimension_numbers = #tpu.dot_dimension_numbers<[1], [0], [0], [1], [0, 0, 1, 1], [], []>} : vector<128x32xbf16>, vector<32x32xbf16>, vector<128x32xf32> -> vector<128x32xf32>
    %36 = arith.addf %31, %35 : vector<128x32xf32>
    %37 = vector.extract_strided_slice %30 {offsets = [8, 0], sizes = [128, 32], strides = [1, 1]} : vector<144x32xbf16> to vector<128x32xbf16>
    %c1_22 = arith.constant 1 : index
    %c0_23 = arith.constant 0 : index
    %c0_24 = arith.constant 0 : index
    %38 = vector.load %arg4[%c1_22, %c0_23, %c0_24] : memref<3x32x32xbf16, #tpu.memory_space<vmem>>, vector<1x32x32xbf16>
    %39 = vector.shape_cast %38 : vector<1x32x32xbf16> to vector<32x32xbf16>
    %cst_25 = arith.constant dense<0.000000e+00> : vector<128x32xf32>
    %40 = tpu.matmul %37, %39, %cst_25 {dimension_numbers = #tpu.dot_dimension_numbers<[1], [0], [0], [1], [0, 0, 1, 1], [], []>} : vector<128x32xbf16>, vector<32x32xbf16>, vector<128x32xf32> -> vector<128x32xf32>
    %41 = arith.addf %36, %40 : vector<128x32xf32>
    %42 = vector.extract_strided_slice %30 {offsets = [16, 0], sizes = [128, 32], strides = [1, 1]} : vector<144x32xbf16> to vector<128x32xbf16>
    %c2_26 = arith.constant 2 : index
    %c0_27 = arith.constant 0 : index
    %c0_28 = arith.constant 0 : index
    %43 = vector.load %arg4[%c2_26, %c0_27, %c0_28] : memref<3x32x32xbf16, #tpu.memory_space<vmem>>, vector<1x32x32xbf16>
    %44 = vector.shape_cast %43 : vector<1x32x32xbf16> to vector<32x32xbf16>
    %cst_29 = arith.constant dense<0.000000e+00> : vector<128x32xf32>
    %45 = tpu.matmul %42, %44, %cst_29 {dimension_numbers = #tpu.dot_dimension_numbers<[1], [0], [0], [1], [0, 0, 1, 1], [], []>} : vector<128x32xbf16>, vector<32x32xbf16>, vector<128x32xf32> -> vector<128x32xf32>
    %46 = arith.addf %41, %45 : vector<128x32xf32>
    %c0_30 = arith.constant 0 : index
    %c0_31 = arith.constant 0 : index
    %47 = vector.load %arg5[%c0_30, %c0_31] : memref<1x32xf32, #tpu.memory_space<vmem>>, vector<1x32xf32>
    %48 = vector.broadcast %47 : vector<1x32xf32> to vector<128x32xf32>
    %49 = arith.addf %46, %48 : vector<128x32xf32>
    %cst_32 = arith.constant 0.000000e+00 : f32
    %50 = vector.broadcast %cst_32 : f32 to vector<128x32xf32>
    %51 = arith.maximumf %49, %50 : vector<128x32xf32>
    %52 = vector.shape_cast %51 : vector<128x32xf32> to vector<8x2x8x32xf32>
    %53 = vector.extract_strided_slice %52 {offsets = [0, 0, 0, 0], sizes = [8, 1, 8, 32], strides = [1, 1, 1, 1]} : vector<8x2x8x32xf32> to vector<8x1x8x32xf32>
    %54 = vector.shape_cast %53 : vector<8x1x8x32xf32> to vector<8x8x32xf32>
    %55 = vector.extract_strided_slice %52 {offsets = [0, 1, 0, 0], sizes = [8, 1, 8, 32], strides = [1, 1, 1, 1]} : vector<8x2x8x32xf32> to vector<8x1x8x32xf32>
    %56 = vector.shape_cast %55 : vector<8x1x8x32xf32> to vector<8x8x32xf32>
    %57 = arith.maximumf %54, %56 : vector<8x8x32xf32>
    %58 = arith.truncf %57 : vector<8x8x32xf32> to vector<8x8x32xbf16>
    %cst_33 = arith.constant 0.000000e+00 : bf16
    %59 = vector.broadcast %cst_33 : bf16 to vector<2x8x32xbf16>
    %60 = tpu.concatenate %59, %58, %59 in 0 : vector<2x8x32xbf16>, vector<8x8x32xbf16>, vector<2x8x32xbf16> -> vector<12x8x32xbf16>
    %61 = vector.shape_cast %60 : vector<12x8x32xbf16> to vector<96x32xbf16>
    %cst_34 = arith.constant 0.000000e+00 : f32
    %62 = vector.broadcast %cst_34 : f32 to vector<64x64xf32>
    %63 = vector.extract_strided_slice %61 {offsets = [0, 0], sizes = [64, 32], strides = [1, 1]} : vector<96x32xbf16> to vector<64x32xbf16>
    %c0_35 = arith.constant 0 : index
    %c0_36 = arith.constant 0 : index
    %c0_37 = arith.constant 0 : index
    %64 = vector.load %arg6[%c0_35, %c0_36, %c0_37] : memref<5x32x64xbf16, #tpu.memory_space<vmem>>, vector<1x32x64xbf16>
    %65 = vector.shape_cast %64 : vector<1x32x64xbf16> to vector<32x64xbf16>
    %cst_38 = arith.constant dense<0.000000e+00> : vector<64x64xf32>
    %66 = tpu.matmul %63, %65, %cst_38 {dimension_numbers = #tpu.dot_dimension_numbers<[1], [0], [0], [1], [0, 0, 1, 1], [], []>} : vector<64x32xbf16>, vector<32x64xbf16>, vector<64x64xf32> -> vector<64x64xf32>
    %67 = arith.addf %62, %66 : vector<64x64xf32>
    %68 = vector.extract_strided_slice %61 {offsets = [8, 0], sizes = [64, 32], strides = [1, 1]} : vector<96x32xbf16> to vector<64x32xbf16>
    %c1_39 = arith.constant 1 : index
    %c0_40 = arith.constant 0 : index
    %c0_41 = arith.constant 0 : index
    %69 = vector.load %arg6[%c1_39, %c0_40, %c0_41] : memref<5x32x64xbf16, #tpu.memory_space<vmem>>, vector<1x32x64xbf16>
    %70 = vector.shape_cast %69 : vector<1x32x64xbf16> to vector<32x64xbf16>
    %cst_42 = arith.constant dense<0.000000e+00> : vector<64x64xf32>
    %71 = tpu.matmul %68, %70, %cst_42 {dimension_numbers = #tpu.dot_dimension_numbers<[1], [0], [0], [1], [0, 0, 1, 1], [], []>} : vector<64x32xbf16>, vector<32x64xbf16>, vector<64x64xf32> -> vector<64x64xf32>
    %72 = arith.addf %67, %71 : vector<64x64xf32>
    %73 = vector.extract_strided_slice %61 {offsets = [16, 0], sizes = [64, 32], strides = [1, 1]} : vector<96x32xbf16> to vector<64x32xbf16>
    %c2_43 = arith.constant 2 : index
    %c0_44 = arith.constant 0 : index
    %c0_45 = arith.constant 0 : index
    %74 = vector.load %arg6[%c2_43, %c0_44, %c0_45] : memref<5x32x64xbf16, #tpu.memory_space<vmem>>, vector<1x32x64xbf16>
    %75 = vector.shape_cast %74 : vector<1x32x64xbf16> to vector<32x64xbf16>
    %cst_46 = arith.constant dense<0.000000e+00> : vector<64x64xf32>
    %76 = tpu.matmul %73, %75, %cst_46 {dimension_numbers = #tpu.dot_dimension_numbers<[1], [0], [0], [1], [0, 0, 1, 1], [], []>} : vector<64x32xbf16>, vector<32x64xbf16>, vector<64x64xf32> -> vector<64x64xf32>
    %77 = arith.addf %72, %76 : vector<64x64xf32>
    %78 = vector.extract_strided_slice %61 {offsets = [24, 0], sizes = [64, 32], strides = [1, 1]} : vector<96x32xbf16> to vector<64x32xbf16>
    %c3 = arith.constant 3 : index
    %c0_47 = arith.constant 0 : index
    %c0_48 = arith.constant 0 : index
    %79 = vector.load %arg6[%c3, %c0_47, %c0_48] : memref<5x32x64xbf16, #tpu.memory_space<vmem>>, vector<1x32x64xbf16>
    %80 = vector.shape_cast %79 : vector<1x32x64xbf16> to vector<32x64xbf16>
    %cst_49 = arith.constant dense<0.000000e+00> : vector<64x64xf32>
    %81 = tpu.matmul %78, %80, %cst_49 {dimension_numbers = #tpu.dot_dimension_numbers<[1], [0], [0], [1], [0, 0, 1, 1], [], []>} : vector<64x32xbf16>, vector<32x64xbf16>, vector<64x64xf32> -> vector<64x64xf32>
    %82 = arith.addf %77, %81 : vector<64x64xf32>
    %83 = vector.extract_strided_slice %61 {offsets = [32, 0], sizes = [64, 32], strides = [1, 1]} : vector<96x32xbf16> to vector<64x32xbf16>
    %c4 = arith.constant 4 : index
    %c0_50 = arith.constant 0 : index
    %c0_51 = arith.constant 0 : index
    %84 = vector.load %arg6[%c4, %c0_50, %c0_51] : memref<5x32x64xbf16, #tpu.memory_space<vmem>>, vector<1x32x64xbf16>
    %85 = vector.shape_cast %84 : vector<1x32x64xbf16> to vector<32x64xbf16>
    %cst_52 = arith.constant dense<0.000000e+00> : vector<64x64xf32>
    %86 = tpu.matmul %83, %85, %cst_52 {dimension_numbers = #tpu.dot_dimension_numbers<[1], [0], [0], [1], [0, 0, 1, 1], [], []>} : vector<64x32xbf16>, vector<32x64xbf16>, vector<64x64xf32> -> vector<64x64xf32>
    %87 = arith.addf %82, %86 : vector<64x64xf32>
    %c0_53 = arith.constant 0 : index
    %c0_54 = arith.constant 0 : index
    %88 = vector.load %arg7[%c0_53, %c0_54] : memref<1x64xf32, #tpu.memory_space<vmem>>, vector<1x64xf32>
    %89 = vector.broadcast %88 : vector<1x64xf32> to vector<64x64xf32>
    %90 = arith.addf %87, %89 : vector<64x64xf32>
    %cst_55 = arith.constant 0.000000e+00 : f32
    %91 = vector.broadcast %cst_55 : f32 to vector<64x64xf32>
    %92 = arith.maximumf %90, %91 : vector<64x64xf32>
    %93 = vector.shape_cast %92 : vector<64x64xf32> to vector<8x8x64xf32>
    %94 = arith.truncf %93 : vector<8x8x64xf32> to vector<8x8x64xbf16>
    %cst_56 = arith.constant 0.000000e+00 : bf16
    %95 = vector.broadcast %cst_56 : bf16 to vector<2x8x64xbf16>
    %96 = tpu.concatenate %95, %94, %95 in 0 : vector<2x8x64xbf16>, vector<8x8x64xbf16>, vector<2x8x64xbf16> -> vector<12x8x64xbf16>
    %97 = vector.shape_cast %96 : vector<12x8x64xbf16> to vector<96x64xbf16>
    %cst_57 = arith.constant 0.000000e+00 : f32
    %98 = vector.broadcast %cst_57 : f32 to vector<64x64xf32>
    %99 = vector.extract_strided_slice %97 {offsets = [0, 0], sizes = [64, 64], strides = [1, 1]} : vector<96x64xbf16> to vector<64x64xbf16>
    %c0_58 = arith.constant 0 : index
    %c0_59 = arith.constant 0 : index
    %c0_60 = arith.constant 0 : index
    %100 = vector.load %arg8[%c0_58, %c0_59, %c0_60] : memref<5x64x64xbf16, #tpu.memory_space<vmem>>, vector<1x64x64xbf16>
    %101 = vector.shape_cast %100 : vector<1x64x64xbf16> to vector<64x64xbf16>
    %cst_61 = arith.constant dense<0.000000e+00> : vector<64x64xf32>
    %102 = tpu.matmul %99, %101, %cst_61 {dimension_numbers = #tpu.dot_dimension_numbers<[1], [0], [0], [1], [0, 0, 1, 1], [], []>} : vector<64x64xbf16>, vector<64x64xbf16>, vector<64x64xf32> -> vector<64x64xf32>
    %103 = arith.addf %98, %102 : vector<64x64xf32>
    %104 = vector.extract_strided_slice %97 {offsets = [8, 0], sizes = [64, 64], strides = [1, 1]} : vector<96x64xbf16> to vector<64x64xbf16>
    %c1_62 = arith.constant 1 : index
    %c0_63 = arith.constant 0 : index
    %c0_64 = arith.constant 0 : index
    %105 = vector.load %arg8[%c1_62, %c0_63, %c0_64] : memref<5x64x64xbf16, #tpu.memory_space<vmem>>, vector<1x64x64xbf16>
    %106 = vector.shape_cast %105 : vector<1x64x64xbf16> to vector<64x64xbf16>
    %cst_65 = arith.constant dense<0.000000e+00> : vector<64x64xf32>
    %107 = tpu.matmul %104, %106, %cst_65 {dimension_numbers = #tpu.dot_dimension_numbers<[1], [0], [0], [1], [0, 0, 1, 1], [], []>} : vector<64x64xbf16>, vector<64x64xbf16>, vector<64x64xf32> -> vector<64x64xf32>
    %108 = arith.addf %103, %107 : vector<64x64xf32>
    %109 = vector.extract_strided_slice %97 {offsets = [16, 0], sizes = [64, 64], strides = [1, 1]} : vector<96x64xbf16> to vector<64x64xbf16>
    %c2_66 = arith.constant 2 : index
    %c0_67 = arith.constant 0 : index
    %c0_68 = arith.constant 0 : index
    %110 = vector.load %arg8[%c2_66, %c0_67, %c0_68] : memref<5x64x64xbf16, #tpu.memory_space<vmem>>, vector<1x64x64xbf16>
    %111 = vector.shape_cast %110 : vector<1x64x64xbf16> to vector<64x64xbf16>
    %cst_69 = arith.constant dense<0.000000e+00> : vector<64x64xf32>
    %112 = tpu.matmul %109, %111, %cst_69 {dimension_numbers = #tpu.dot_dimension_numbers<[1], [0], [0], [1], [0, 0, 1, 1], [], []>} : vector<64x64xbf16>, vector<64x64xbf16>, vector<64x64xf32> -> vector<64x64xf32>
    %113 = arith.addf %108, %112 : vector<64x64xf32>
    %114 = vector.extract_strided_slice %97 {offsets = [24, 0], sizes = [64, 64], strides = [1, 1]} : vector<96x64xbf16> to vector<64x64xbf16>
    %c3_70 = arith.constant 3 : index
    %c0_71 = arith.constant 0 : index
    %c0_72 = arith.constant 0 : index
    %115 = vector.load %arg8[%c3_70, %c0_71, %c0_72] : memref<5x64x64xbf16, #tpu.memory_space<vmem>>, vector<1x64x64xbf16>
    %116 = vector.shape_cast %115 : vector<1x64x64xbf16> to vector<64x64xbf16>
    %cst_73 = arith.constant dense<0.000000e+00> : vector<64x64xf32>
    %117 = tpu.matmul %114, %116, %cst_73 {dimension_numbers = #tpu.dot_dimension_numbers<[1], [0], [0], [1], [0, 0, 1, 1], [], []>} : vector<64x64xbf16>, vector<64x64xbf16>, vector<64x64xf32> -> vector<64x64xf32>
    %118 = arith.addf %113, %117 : vector<64x64xf32>
    %119 = vector.extract_strided_slice %97 {offsets = [32, 0], sizes = [64, 64], strides = [1, 1]} : vector<96x64xbf16> to vector<64x64xbf16>
    %c4_74 = arith.constant 4 : index
    %c0_75 = arith.constant 0 : index
    %c0_76 = arith.constant 0 : index
    %120 = vector.load %arg8[%c4_74, %c0_75, %c0_76] : memref<5x64x64xbf16, #tpu.memory_space<vmem>>, vector<1x64x64xbf16>
    %121 = vector.shape_cast %120 : vector<1x64x64xbf16> to vector<64x64xbf16>
    %cst_77 = arith.constant dense<0.000000e+00> : vector<64x64xf32>
    %122 = tpu.matmul %119, %121, %cst_77 {dimension_numbers = #tpu.dot_dimension_numbers<[1], [0], [0], [1], [0, 0, 1, 1], [], []>} : vector<64x64xbf16>, vector<64x64xbf16>, vector<64x64xf32> -> vector<64x64xf32>
    %123 = arith.addf %118, %122 : vector<64x64xf32>
    %c0_78 = arith.constant 0 : index
    %c0_79 = arith.constant 0 : index
    %124 = vector.load %arg9[%c0_78, %c0_79] : memref<1x64xf32, #tpu.memory_space<vmem>>, vector<1x64xf32>
    %125 = vector.broadcast %124 : vector<1x64xf32> to vector<64x64xf32>
    %126 = arith.addf %123, %125 : vector<64x64xf32>
    %cst_80 = arith.constant 0.000000e+00 : f32
    %127 = vector.broadcast %cst_80 : f32 to vector<64x64xf32>
    %128 = arith.maximumf %126, %127 : vector<64x64xf32>
    %129 = vector.shape_cast %128 : vector<64x64xf32> to vector<4x2x8x64xf32>
    %130 = vector.extract_strided_slice %129 {offsets = [0, 0, 0, 0], sizes = [4, 1, 8, 64], strides = [1, 1, 1, 1]} : vector<4x2x8x64xf32> to vector<4x1x8x64xf32>
    %131 = vector.shape_cast %130 : vector<4x1x8x64xf32> to vector<4x8x64xf32>
    %132 = vector.extract_strided_slice %129 {offsets = [0, 1, 0, 0], sizes = [4, 1, 8, 64], strides = [1, 1, 1, 1]} : vector<4x2x8x64xf32> to vector<4x1x8x64xf32>
    %133 = vector.shape_cast %132 : vector<4x1x8x64xf32> to vector<4x8x64xf32>
    %134 = arith.maximumf %131, %133 : vector<4x8x64xf32>
    %135 = arith.truncf %134 : vector<4x8x64xf32> to vector<4x8x64xbf16>
    %cst_81 = arith.constant 0.000000e+00 : bf16
    %136 = vector.broadcast %cst_81 : bf16 to vector<3x8x64xbf16>
    %137 = tpu.concatenate %136, %135, %136 in 0 : vector<3x8x64xbf16>, vector<4x8x64xbf16>, vector<3x8x64xbf16> -> vector<10x8x64xbf16>
    %138 = vector.shape_cast %137 : vector<10x8x64xbf16> to vector<80x64xbf16>
    %cst_82 = arith.constant 0.000000e+00 : f32
    %139 = vector.broadcast %cst_82 : f32 to vector<32x128xf32>
    %140 = vector.extract_strided_slice %138 {offsets = [0, 0], sizes = [32, 64], strides = [1, 1]} : vector<80x64xbf16> to vector<32x64xbf16>
    %c0_83 = arith.constant 0 : index
    %c0_84 = arith.constant 0 : index
    %c0_85 = arith.constant 0 : index
    %141 = vector.load %arg10[%c0_83, %c0_84, %c0_85] : memref<7x64x128xbf16, #tpu.memory_space<vmem>>, vector<1x64x128xbf16>
    %142 = vector.shape_cast %141 : vector<1x64x128xbf16> to vector<64x128xbf16>
    %cst_86 = arith.constant dense<0.000000e+00> : vector<32x128xf32>
    %143 = tpu.matmul %140, %142, %cst_86 {dimension_numbers = #tpu.dot_dimension_numbers<[1], [0], [0], [1], [0, 0, 1, 1], [], []>} : vector<32x64xbf16>, vector<64x128xbf16>, vector<32x128xf32> -> vector<32x128xf32>
    %144 = arith.addf %139, %143 : vector<32x128xf32>
    %145 = vector.extract_strided_slice %138 {offsets = [8, 0], sizes = [32, 64], strides = [1, 1]} : vector<80x64xbf16> to vector<32x64xbf16>
    %c1_87 = arith.constant 1 : index
    %c0_88 = arith.constant 0 : index
    %c0_89 = arith.constant 0 : index
    %146 = vector.load %arg10[%c1_87, %c0_88, %c0_89] : memref<7x64x128xbf16, #tpu.memory_space<vmem>>, vector<1x64x128xbf16>
    %147 = vector.shape_cast %146 : vector<1x64x128xbf16> to vector<64x128xbf16>
    %cst_90 = arith.constant dense<0.000000e+00> : vector<32x128xf32>
    %148 = tpu.matmul %145, %147, %cst_90 {dimension_numbers = #tpu.dot_dimension_numbers<[1], [0], [0], [1], [0, 0, 1, 1], [], []>} : vector<32x64xbf16>, vector<64x128xbf16>, vector<32x128xf32> -> vector<32x128xf32>
    %149 = arith.addf %144, %148 : vector<32x128xf32>
    %150 = vector.extract_strided_slice %138 {offsets = [16, 0], sizes = [32, 64], strides = [1, 1]} : vector<80x64xbf16> to vector<32x64xbf16>
    %c2_91 = arith.constant 2 : index
    %c0_92 = arith.constant 0 : index
    %c0_93 = arith.constant 0 : index
    %151 = vector.load %arg10[%c2_91, %c0_92, %c0_93] : memref<7x64x128xbf16, #tpu.memory_space<vmem>>, vector<1x64x128xbf16>
    %152 = vector.shape_cast %151 : vector<1x64x128xbf16> to vector<64x128xbf16>
    %cst_94 = arith.constant dense<0.000000e+00> : vector<32x128xf32>
    %153 = tpu.matmul %150, %152, %cst_94 {dimension_numbers = #tpu.dot_dimension_numbers<[1], [0], [0], [1], [0, 0, 1, 1], [], []>} : vector<32x64xbf16>, vector<64x128xbf16>, vector<32x128xf32> -> vector<32x128xf32>
    %154 = arith.addf %149, %153 : vector<32x128xf32>
    %155 = vector.extract_strided_slice %138 {offsets = [24, 0], sizes = [32, 64], strides = [1, 1]} : vector<80x64xbf16> to vector<32x64xbf16>
    %c3_95 = arith.constant 3 : index
    %c0_96 = arith.constant 0 : index
    %c0_97 = arith.constant 0 : index
    %156 = vector.load %arg10[%c3_95, %c0_96, %c0_97] : memref<7x64x128xbf16, #tpu.memory_space<vmem>>, vector<1x64x128xbf16>
    %157 = vector.shape_cast %156 : vector<1x64x128xbf16> to vector<64x128xbf16>
    %cst_98 = arith.constant dense<0.000000e+00> : vector<32x128xf32>
    %158 = tpu.matmul %155, %157, %cst_98 {dimension_numbers = #tpu.dot_dimension_numbers<[1], [0], [0], [1], [0, 0, 1, 1], [], []>} : vector<32x64xbf16>, vector<64x128xbf16>, vector<32x128xf32> -> vector<32x128xf32>
    %159 = arith.addf %154, %158 : vector<32x128xf32>
    %160 = vector.extract_strided_slice %138 {offsets = [32, 0], sizes = [32, 64], strides = [1, 1]} : vector<80x64xbf16> to vector<32x64xbf16>
    %c4_99 = arith.constant 4 : index
    %c0_100 = arith.constant 0 : index
    %c0_101 = arith.constant 0 : index
    %161 = vector.load %arg10[%c4_99, %c0_100, %c0_101] : memref<7x64x128xbf16, #tpu.memory_space<vmem>>, vector<1x64x128xbf16>
    %162 = vector.shape_cast %161 : vector<1x64x128xbf16> to vector<64x128xbf16>
    %cst_102 = arith.constant dense<0.000000e+00> : vector<32x128xf32>
    %163 = tpu.matmul %160, %162, %cst_102 {dimension_numbers = #tpu.dot_dimension_numbers<[1], [0], [0], [1], [0, 0, 1, 1], [], []>} : vector<32x64xbf16>, vector<64x128xbf16>, vector<32x128xf32> -> vector<32x128xf32>
    %164 = arith.addf %159, %163 : vector<32x128xf32>
    %165 = vector.extract_strided_slice %138 {offsets = [40, 0], sizes = [32, 64], strides = [1, 1]} : vector<80x64xbf16> to vector<32x64xbf16>
    %c5 = arith.constant 5 : index
    %c0_103 = arith.constant 0 : index
    %c0_104 = arith.constant 0 : index
    %166 = vector.load %arg10[%c5, %c0_103, %c0_104] : memref<7x64x128xbf16, #tpu.memory_space<vmem>>, vector<1x64x128xbf16>
    %167 = vector.shape_cast %166 : vector<1x64x128xbf16> to vector<64x128xbf16>
    %cst_105 = arith.constant dense<0.000000e+00> : vector<32x128xf32>
    %168 = tpu.matmul %165, %167, %cst_105 {dimension_numbers = #tpu.dot_dimension_numbers<[1], [0], [0], [1], [0, 0, 1, 1], [], []>} : vector<32x64xbf16>, vector<64x128xbf16>, vector<32x128xf32> -> vector<32x128xf32>
    %169 = arith.addf %164, %168 : vector<32x128xf32>
    %170 = vector.extract_strided_slice %138 {offsets = [48, 0], sizes = [32, 64], strides = [1, 1]} : vector<80x64xbf16> to vector<32x64xbf16>
    %c6 = arith.constant 6 : index
    %c0_106 = arith.constant 0 : index
    %c0_107 = arith.constant 0 : index
    %171 = vector.load %arg10[%c6, %c0_106, %c0_107] : memref<7x64x128xbf16, #tpu.memory_space<vmem>>, vector<1x64x128xbf16>
    %172 = vector.shape_cast %171 : vector<1x64x128xbf16> to vector<64x128xbf16>
    %cst_108 = arith.constant dense<0.000000e+00> : vector<32x128xf32>
    %173 = tpu.matmul %170, %172, %cst_108 {dimension_numbers = #tpu.dot_dimension_numbers<[1], [0], [0], [1], [0, 0, 1, 1], [], []>} : vector<32x64xbf16>, vector<64x128xbf16>, vector<32x128xf32> -> vector<32x128xf32>
    %174 = arith.addf %169, %173 : vector<32x128xf32>
    %c0_109 = arith.constant 0 : index
    %c0_110 = arith.constant 0 : index
    %175 = vector.load %arg11[%c0_109, %c0_110] : memref<1x128xf32, #tpu.memory_space<vmem>>, vector<1x128xf32>
    %176 = vector.broadcast %175 : vector<1x128xf32> to vector<32x128xf32>
    %177 = arith.addf %174, %176 : vector<32x128xf32>
    %cst_111 = arith.constant 0.000000e+00 : f32
    %178 = vector.broadcast %cst_111 : f32 to vector<32x128xf32>
    %179 = arith.maximumf %177, %178 : vector<32x128xf32>
    %180 = vector.shape_cast %179 : vector<32x128xf32> to vector<4x8x128xf32>
    %181 = arith.truncf %180 : vector<4x8x128xf32> to vector<4x8x128xbf16>
    %cst_112 = arith.constant 0.000000e+00 : bf16
    %182 = vector.broadcast %cst_112 : bf16 to vector<3x8x128xbf16>
    %183 = tpu.concatenate %182, %181, %182 in 0 : vector<3x8x128xbf16>, vector<4x8x128xbf16>, vector<3x8x128xbf16> -> vector<10x8x128xbf16>
    %184 = vector.shape_cast %183 : vector<10x8x128xbf16> to vector<80x128xbf16>
    %cst_113 = arith.constant 0.000000e+00 : f32
    %185 = vector.broadcast %cst_113 : f32 to vector<32x128xf32>
    %186 = vector.extract_strided_slice %184 {offsets = [0, 0], sizes = [32, 128], strides = [1, 1]} : vector<80x128xbf16> to vector<32x128xbf16>
    %c0_114 = arith.constant 0 : index
    %c0_115 = arith.constant 0 : index
    %c0_116 = arith.constant 0 : index
    %187 = vector.load %arg12[%c0_114, %c0_115, %c0_116] : memref<7x128x128xbf16, #tpu.memory_space<vmem>>, vector<1x128x128xbf16>
    %188 = vector.shape_cast %187 : vector<1x128x128xbf16> to vector<128x128xbf16>
    %cst_117 = arith.constant dense<0.000000e+00> : vector<32x128xf32>
    %189 = tpu.matmul %186, %188, %cst_117 {dimension_numbers = #tpu.dot_dimension_numbers<[1], [0], [0], [1], [0, 0, 1, 1], [], []>} : vector<32x128xbf16>, vector<128x128xbf16>, vector<32x128xf32> -> vector<32x128xf32>
    %190 = arith.addf %185, %189 : vector<32x128xf32>
    %191 = vector.extract_strided_slice %184 {offsets = [8, 0], sizes = [32, 128], strides = [1, 1]} : vector<80x128xbf16> to vector<32x128xbf16>
    %c1_118 = arith.constant 1 : index
    %c0_119 = arith.constant 0 : index
    %c0_120 = arith.constant 0 : index
    %192 = vector.load %arg12[%c1_118, %c0_119, %c0_120] : memref<7x128x128xbf16, #tpu.memory_space<vmem>>, vector<1x128x128xbf16>
    %193 = vector.shape_cast %192 : vector<1x128x128xbf16> to vector<128x128xbf16>
    %cst_121 = arith.constant dense<0.000000e+00> : vector<32x128xf32>
    %194 = tpu.matmul %191, %193, %cst_121 {dimension_numbers = #tpu.dot_dimension_numbers<[1], [0], [0], [1], [0, 0, 1, 1], [], []>} : vector<32x128xbf16>, vector<128x128xbf16>, vector<32x128xf32> -> vector<32x128xf32>
    %195 = arith.addf %190, %194 : vector<32x128xf32>
    %196 = vector.extract_strided_slice %184 {offsets = [16, 0], sizes = [32, 128], strides = [1, 1]} : vector<80x128xbf16> to vector<32x128xbf16>
    %c2_122 = arith.constant 2 : index
    %c0_123 = arith.constant 0 : index
    %c0_124 = arith.constant 0 : index
    %197 = vector.load %arg12[%c2_122, %c0_123, %c0_124] : memref<7x128x128xbf16, #tpu.memory_space<vmem>>, vector<1x128x128xbf16>
    %198 = vector.shape_cast %197 : vector<1x128x128xbf16> to vector<128x128xbf16>
    %cst_125 = arith.constant dense<0.000000e+00> : vector<32x128xf32>
    %199 = tpu.matmul %196, %198, %cst_125 {dimension_numbers = #tpu.dot_dimension_numbers<[1], [0], [0], [1], [0, 0, 1, 1], [], []>} : vector<32x128xbf16>, vector<128x128xbf16>, vector<32x128xf32> -> vector<32x128xf32>
    %200 = arith.addf %195, %199 : vector<32x128xf32>
    %201 = vector.extract_strided_slice %184 {offsets = [24, 0], sizes = [32, 128], strides = [1, 1]} : vector<80x128xbf16> to vector<32x128xbf16>
    %c3_126 = arith.constant 3 : index
    %c0_127 = arith.constant 0 : index
    %c0_128 = arith.constant 0 : index
    %202 = vector.load %arg12[%c3_126, %c0_127, %c0_128] : memref<7x128x128xbf16, #tpu.memory_space<vmem>>, vector<1x128x128xbf16>
    %203 = vector.shape_cast %202 : vector<1x128x128xbf16> to vector<128x128xbf16>
    %cst_129 = arith.constant dense<0.000000e+00> : vector<32x128xf32>
    %204 = tpu.matmul %201, %203, %cst_129 {dimension_numbers = #tpu.dot_dimension_numbers<[1], [0], [0], [1], [0, 0, 1, 1], [], []>} : vector<32x128xbf16>, vector<128x128xbf16>, vector<32x128xf32> -> vector<32x128xf32>
    %205 = arith.addf %200, %204 : vector<32x128xf32>
    %206 = vector.extract_strided_slice %184 {offsets = [32, 0], sizes = [32, 128], strides = [1, 1]} : vector<80x128xbf16> to vector<32x128xbf16>
    %c4_130 = arith.constant 4 : index
    %c0_131 = arith.constant 0 : index
    %c0_132 = arith.constant 0 : index
    %207 = vector.load %arg12[%c4_130, %c0_131, %c0_132] : memref<7x128x128xbf16, #tpu.memory_space<vmem>>, vector<1x128x128xbf16>
    %208 = vector.shape_cast %207 : vector<1x128x128xbf16> to vector<128x128xbf16>
    %cst_133 = arith.constant dense<0.000000e+00> : vector<32x128xf32>
    %209 = tpu.matmul %206, %208, %cst_133 {dimension_numbers = #tpu.dot_dimension_numbers<[1], [0], [0], [1], [0, 0, 1, 1], [], []>} : vector<32x128xbf16>, vector<128x128xbf16>, vector<32x128xf32> -> vector<32x128xf32>
    %210 = arith.addf %205, %209 : vector<32x128xf32>
    %211 = vector.extract_strided_slice %184 {offsets = [40, 0], sizes = [32, 128], strides = [1, 1]} : vector<80x128xbf16> to vector<32x128xbf16>
    %c5_134 = arith.constant 5 : index
    %c0_135 = arith.constant 0 : index
    %c0_136 = arith.constant 0 : index
    %212 = vector.load %arg12[%c5_134, %c0_135, %c0_136] : memref<7x128x128xbf16, #tpu.memory_space<vmem>>, vector<1x128x128xbf16>
    %213 = vector.shape_cast %212 : vector<1x128x128xbf16> to vector<128x128xbf16>
    %cst_137 = arith.constant dense<0.000000e+00> : vector<32x128xf32>
    %214 = tpu.matmul %211, %213, %cst_137 {dimension_numbers = #tpu.dot_dimension_numbers<[1], [0], [0], [1], [0, 0, 1, 1], [], []>} : vector<32x128xbf16>, vector<128x128xbf16>, vector<32x128xf32> -> vector<32x128xf32>
    %215 = arith.addf %210, %214 : vector<32x128xf32>
    %216 = vector.extract_strided_slice %184 {offsets = [48, 0], sizes = [32, 128], strides = [1, 1]} : vector<80x128xbf16> to vector<32x128xbf16>
    %c6_138 = arith.constant 6 : index
    %c0_139 = arith.constant 0 : index
    %c0_140 = arith.constant 0 : index
    %217 = vector.load %arg12[%c6_138, %c0_139, %c0_140] : memref<7x128x128xbf16, #tpu.memory_space<vmem>>, vector<1x128x128xbf16>
    %218 = vector.shape_cast %217 : vector<1x128x128xbf16> to vector<128x128xbf16>
    %cst_141 = arith.constant dense<0.000000e+00> : vector<32x128xf32>
    %219 = tpu.matmul %216, %218, %cst_141 {dimension_numbers = #tpu.dot_dimension_numbers<[1], [0], [0], [1], [0, 0, 1, 1], [], []>} : vector<32x128xbf16>, vector<128x128xbf16>, vector<32x128xf32> -> vector<32x128xf32>
    %220 = arith.addf %215, %219 : vector<32x128xf32>
    %c0_142 = arith.constant 0 : index
    %c0_143 = arith.constant 0 : index
    %221 = vector.load %arg13[%c0_142, %c0_143] : memref<1x128xf32, #tpu.memory_space<vmem>>, vector<1x128xf32>
    %222 = vector.broadcast %221 : vector<1x128xf32> to vector<32x128xf32>
    %223 = arith.addf %220, %222 : vector<32x128xf32>
    %cst_144 = arith.constant 0.000000e+00 : f32
    %224 = vector.broadcast %cst_144 : f32 to vector<32x128xf32>
    %225 = arith.maximumf %223, %224 : vector<32x128xf32>
    %226 = vector.shape_cast %225 : vector<32x128xf32> to vector<2x2x8x128xf32>
    %227 = vector.extract_strided_slice %226 {offsets = [0, 0, 0, 0], sizes = [2, 1, 8, 128], strides = [1, 1, 1, 1]} : vector<2x2x8x128xf32> to vector<2x1x8x128xf32>
    %228 = vector.shape_cast %227 : vector<2x1x8x128xf32> to vector<2x8x128xf32>
    %229 = vector.extract_strided_slice %226 {offsets = [0, 1, 0, 0], sizes = [2, 1, 8, 128], strides = [1, 1, 1, 1]} : vector<2x2x8x128xf32> to vector<2x1x8x128xf32>
    %230 = vector.shape_cast %229 : vector<2x1x8x128xf32> to vector<2x8x128xf32>
    %231 = arith.maximumf %228, %230 : vector<2x8x128xf32>
    %232 = arith.truncf %231 : vector<2x8x128xf32> to vector<2x8x128xbf16>
    %cst_145 = arith.constant 0.000000e+00 : bf16
    %233 = vector.broadcast %cst_145 : bf16 to vector<2x8x128xbf16>
    %234 = tpu.concatenate %233, %232, %233 in 0 : vector<2x8x128xbf16>, vector<2x8x128xbf16>, vector<2x8x128xbf16> -> vector<6x8x128xbf16>
    %235 = vector.shape_cast %234 : vector<6x8x128xbf16> to vector<48x128xbf16>
    %cst_146 = arith.constant 0.000000e+00 : f32
    %236 = vector.broadcast %cst_146 : f32 to vector<16x256xf32>
    %237 = vector.extract_strided_slice %235 {offsets = [0, 0], sizes = [16, 128], strides = [1, 1]} : vector<48x128xbf16> to vector<16x128xbf16>
    %c0_147 = arith.constant 0 : index
    %c0_148 = arith.constant 0 : index
    %c0_149 = arith.constant 0 : index
    %238 = vector.load %arg14[%c0_147, %c0_148, %c0_149] : memref<5x128x256xbf16, #tpu.memory_space<vmem>>, vector<1x128x256xbf16>
    %239 = vector.shape_cast %238 : vector<1x128x256xbf16> to vector<128x256xbf16>
    %cst_150 = arith.constant dense<0.000000e+00> : vector<16x256xf32>
    %240 = tpu.matmul %237, %239, %cst_150 {dimension_numbers = #tpu.dot_dimension_numbers<[1], [0], [0], [1], [0, 0, 1, 1], [], []>} : vector<16x128xbf16>, vector<128x256xbf16>, vector<16x256xf32> -> vector<16x256xf32>
    %241 = arith.addf %236, %240 : vector<16x256xf32>
    %242 = vector.extract_strided_slice %235 {offsets = [8, 0], sizes = [16, 128], strides = [1, 1]} : vector<48x128xbf16> to vector<16x128xbf16>
    %c1_151 = arith.constant 1 : index
    %c0_152 = arith.constant 0 : index
    %c0_153 = arith.constant 0 : index
    %243 = vector.load %arg14[%c1_151, %c0_152, %c0_153] : memref<5x128x256xbf16, #tpu.memory_space<vmem>>, vector<1x128x256xbf16>
    %244 = vector.shape_cast %243 : vector<1x128x256xbf16> to vector<128x256xbf16>
    %cst_154 = arith.constant dense<0.000000e+00> : vector<16x256xf32>
    %245 = tpu.matmul %242, %244, %cst_154 {dimension_numbers = #tpu.dot_dimension_numbers<[1], [0], [0], [1], [0, 0, 1, 1], [], []>} : vector<16x128xbf16>, vector<128x256xbf16>, vector<16x256xf32> -> vector<16x256xf32>
    %246 = arith.addf %241, %245 : vector<16x256xf32>
    %247 = vector.extract_strided_slice %235 {offsets = [16, 0], sizes = [16, 128], strides = [1, 1]} : vector<48x128xbf16> to vector<16x128xbf16>
    %c2_155 = arith.constant 2 : index
    %c0_156 = arith.constant 0 : index
    %c0_157 = arith.constant 0 : index
    %248 = vector.load %arg14[%c2_155, %c0_156, %c0_157] : memref<5x128x256xbf16, #tpu.memory_space<vmem>>, vector<1x128x256xbf16>
    %249 = vector.shape_cast %248 : vector<1x128x256xbf16> to vector<128x256xbf16>
    %cst_158 = arith.constant dense<0.000000e+00> : vector<16x256xf32>
    %250 = tpu.matmul %247, %249, %cst_158 {dimension_numbers = #tpu.dot_dimension_numbers<[1], [0], [0], [1], [0, 0, 1, 1], [], []>} : vector<16x128xbf16>, vector<128x256xbf16>, vector<16x256xf32> -> vector<16x256xf32>
    %251 = arith.addf %246, %250 : vector<16x256xf32>
    %252 = vector.extract_strided_slice %235 {offsets = [24, 0], sizes = [16, 128], strides = [1, 1]} : vector<48x128xbf16> to vector<16x128xbf16>
    %c3_159 = arith.constant 3 : index
    %c0_160 = arith.constant 0 : index
    %c0_161 = arith.constant 0 : index
    %253 = vector.load %arg14[%c3_159, %c0_160, %c0_161] : memref<5x128x256xbf16, #tpu.memory_space<vmem>>, vector<1x128x256xbf16>
    %254 = vector.shape_cast %253 : vector<1x128x256xbf16> to vector<128x256xbf16>
    %cst_162 = arith.constant dense<0.000000e+00> : vector<16x256xf32>
    %255 = tpu.matmul %252, %254, %cst_162 {dimension_numbers = #tpu.dot_dimension_numbers<[1], [0], [0], [1], [0, 0, 1, 1], [], []>} : vector<16x128xbf16>, vector<128x256xbf16>, vector<16x256xf32> -> vector<16x256xf32>
    %256 = arith.addf %251, %255 : vector<16x256xf32>
    %257 = vector.extract_strided_slice %235 {offsets = [32, 0], sizes = [16, 128], strides = [1, 1]} : vector<48x128xbf16> to vector<16x128xbf16>
    %c4_163 = arith.constant 4 : index
    %c0_164 = arith.constant 0 : index
    %c0_165 = arith.constant 0 : index
    %258 = vector.load %arg14[%c4_163, %c0_164, %c0_165] : memref<5x128x256xbf16, #tpu.memory_space<vmem>>, vector<1x128x256xbf16>
    %259 = vector.shape_cast %258 : vector<1x128x256xbf16> to vector<128x256xbf16>
    %cst_166 = arith.constant dense<0.000000e+00> : vector<16x256xf32>
    %260 = tpu.matmul %257, %259, %cst_166 {dimension_numbers = #tpu.dot_dimension_numbers<[1], [0], [0], [1], [0, 0, 1, 1], [], []>} : vector<16x128xbf16>, vector<128x256xbf16>, vector<16x256xf32> -> vector<16x256xf32>
    %261 = arith.addf %256, %260 : vector<16x256xf32>
    %c0_167 = arith.constant 0 : index
    %c0_168 = arith.constant 0 : index
    %262 = vector.load %arg15[%c0_167, %c0_168] : memref<1x256xf32, #tpu.memory_space<vmem>>, vector<1x256xf32>
    %263 = vector.broadcast %262 : vector<1x256xf32> to vector<16x256xf32>
    %264 = arith.addf %261, %263 : vector<16x256xf32>
    %cst_169 = arith.constant 0.000000e+00 : f32
    %265 = vector.broadcast %cst_169 : f32 to vector<16x256xf32>
    %266 = arith.maximumf %264, %265 : vector<16x256xf32>
    %267 = vector.shape_cast %266 : vector<16x256xf32> to vector<2x8x256xf32>
    %268 = arith.truncf %267 : vector<2x8x256xf32> to vector<2x8x256xbf16>
    %cst_170 = arith.constant 0.000000e+00 : bf16
    %269 = vector.broadcast %cst_170 : bf16 to vector<2x8x256xbf16>
    %270 = tpu.concatenate %269, %268, %269 in 0 : vector<2x8x256xbf16>, vector<2x8x256xbf16>, vector<2x8x256xbf16> -> vector<6x8x256xbf16>
    %271 = vector.shape_cast %270 : vector<6x8x256xbf16> to vector<48x256xbf16>
    %cst_171 = arith.constant 0.000000e+00 : f32
    %272 = vector.broadcast %cst_171 : f32 to vector<16x256xf32>
    %273 = vector.extract_strided_slice %271 {offsets = [0, 0], sizes = [16, 256], strides = [1, 1]} : vector<48x256xbf16> to vector<16x256xbf16>
    %c0_172 = arith.constant 0 : index
    %c0_173 = arith.constant 0 : index
    %c0_174 = arith.constant 0 : index
    %274 = vector.load %arg16[%c0_172, %c0_173, %c0_174] : memref<5x256x256xbf16, #tpu.memory_space<vmem>>, vector<1x256x256xbf16>
    %275 = vector.shape_cast %274 : vector<1x256x256xbf16> to vector<256x256xbf16>
    %cst_175 = arith.constant dense<0.000000e+00> : vector<16x256xf32>
    %276 = tpu.matmul %273, %275, %cst_175 {dimension_numbers = #tpu.dot_dimension_numbers<[1], [0], [0], [1], [0, 0, 1, 1], [], []>} : vector<16x256xbf16>, vector<256x256xbf16>, vector<16x256xf32> -> vector<16x256xf32>
    %277 = arith.addf %272, %276 : vector<16x256xf32>
    %278 = vector.extract_strided_slice %271 {offsets = [8, 0], sizes = [16, 256], strides = [1, 1]} : vector<48x256xbf16> to vector<16x256xbf16>
    %c1_176 = arith.constant 1 : index
    %c0_177 = arith.constant 0 : index
    %c0_178 = arith.constant 0 : index
    %279 = vector.load %arg16[%c1_176, %c0_177, %c0_178] : memref<5x256x256xbf16, #tpu.memory_space<vmem>>, vector<1x256x256xbf16>
    %280 = vector.shape_cast %279 : vector<1x256x256xbf16> to vector<256x256xbf16>
    %cst_179 = arith.constant dense<0.000000e+00> : vector<16x256xf32>
    %281 = tpu.matmul %278, %280, %cst_179 {dimension_numbers = #tpu.dot_dimension_numbers<[1], [0], [0], [1], [0, 0, 1, 1], [], []>} : vector<16x256xbf16>, vector<256x256xbf16>, vector<16x256xf32> -> vector<16x256xf32>
    %282 = arith.addf %277, %281 : vector<16x256xf32>
    %283 = vector.extract_strided_slice %271 {offsets = [16, 0], sizes = [16, 256], strides = [1, 1]} : vector<48x256xbf16> to vector<16x256xbf16>
    %c2_180 = arith.constant 2 : index
    %c0_181 = arith.constant 0 : index
    %c0_182 = arith.constant 0 : index
    %284 = vector.load %arg16[%c2_180, %c0_181, %c0_182] : memref<5x256x256xbf16, #tpu.memory_space<vmem>>, vector<1x256x256xbf16>
    %285 = vector.shape_cast %284 : vector<1x256x256xbf16> to vector<256x256xbf16>
    %cst_183 = arith.constant dense<0.000000e+00> : vector<16x256xf32>
    %286 = tpu.matmul %283, %285, %cst_183 {dimension_numbers = #tpu.dot_dimension_numbers<[1], [0], [0], [1], [0, 0, 1, 1], [], []>} : vector<16x256xbf16>, vector<256x256xbf16>, vector<16x256xf32> -> vector<16x256xf32>
    %287 = arith.addf %282, %286 : vector<16x256xf32>
    %288 = vector.extract_strided_slice %271 {offsets = [24, 0], sizes = [16, 256], strides = [1, 1]} : vector<48x256xbf16> to vector<16x256xbf16>
    %c3_184 = arith.constant 3 : index
    %c0_185 = arith.constant 0 : index
    %c0_186 = arith.constant 0 : index
    %289 = vector.load %arg16[%c3_184, %c0_185, %c0_186] : memref<5x256x256xbf16, #tpu.memory_space<vmem>>, vector<1x256x256xbf16>
    %290 = vector.shape_cast %289 : vector<1x256x256xbf16> to vector<256x256xbf16>
    %cst_187 = arith.constant dense<0.000000e+00> : vector<16x256xf32>
    %291 = tpu.matmul %288, %290, %cst_187 {dimension_numbers = #tpu.dot_dimension_numbers<[1], [0], [0], [1], [0, 0, 1, 1], [], []>} : vector<16x256xbf16>, vector<256x256xbf16>, vector<16x256xf32> -> vector<16x256xf32>
    %292 = arith.addf %287, %291 : vector<16x256xf32>
    %293 = vector.extract_strided_slice %271 {offsets = [32, 0], sizes = [16, 256], strides = [1, 1]} : vector<48x256xbf16> to vector<16x256xbf16>
    %c4_188 = arith.constant 4 : index
    %c0_189 = arith.constant 0 : index
    %c0_190 = arith.constant 0 : index
    %294 = vector.load %arg16[%c4_188, %c0_189, %c0_190] : memref<5x256x256xbf16, #tpu.memory_space<vmem>>, vector<1x256x256xbf16>
    %295 = vector.shape_cast %294 : vector<1x256x256xbf16> to vector<256x256xbf16>
    %cst_191 = arith.constant dense<0.000000e+00> : vector<16x256xf32>
    %296 = tpu.matmul %293, %295, %cst_191 {dimension_numbers = #tpu.dot_dimension_numbers<[1], [0], [0], [1], [0, 0, 1, 1], [], []>} : vector<16x256xbf16>, vector<256x256xbf16>, vector<16x256xf32> -> vector<16x256xf32>
    %297 = arith.addf %292, %296 : vector<16x256xf32>
    %c0_192 = arith.constant 0 : index
    %c0_193 = arith.constant 0 : index
    %298 = vector.load %arg17[%c0_192, %c0_193] : memref<1x256xf32, #tpu.memory_space<vmem>>, vector<1x256xf32>
    %299 = vector.broadcast %298 : vector<1x256xf32> to vector<16x256xf32>
    %300 = arith.addf %297, %299 : vector<16x256xf32>
    %cst_194 = arith.constant 0.000000e+00 : f32
    %301 = vector.broadcast %cst_194 : f32 to vector<16x256xf32>
    %302 = arith.maximumf %300, %301 : vector<16x256xf32>
    %303 = vector.shape_cast %302 : vector<16x256xf32> to vector<2x8x256xf32>
    %304 = vector.extract_strided_slice %303 {offsets = [0, 0, 0], sizes = [1, 8, 256], strides = [1, 1, 1]} : vector<2x8x256xf32> to vector<1x8x256xf32>
    %305 = vector.shape_cast %304 : vector<1x8x256xf32> to vector<8x256xf32>
    %306 = vector.extract_strided_slice %303 {offsets = [1, 0, 0], sizes = [1, 8, 256], strides = [1, 1, 1]} : vector<2x8x256xf32> to vector<1x8x256xf32>
    %307 = vector.shape_cast %306 : vector<1x8x256xf32> to vector<8x256xf32>
    %308 = arith.addf %305, %307 : vector<8x256xf32>
    %cst_195 = arith.constant 5.000000e-01 : f32
    %309 = vector.broadcast %cst_195 : f32 to vector<8x256xf32>
    %310 = arith.mulf %308, %309 : vector<8x256xf32>
    %311 = arith.truncf %310 : vector<8x256xf32> to vector<8x256xbf16>
    %c0_196 = arith.constant 0 : index
    %c0_197 = arith.constant 0 : index
    %312 = vector.load %arg18[%c0_196, %c0_197] : memref<256x512xbf16, #tpu.memory_space<vmem>>, vector<256x512xbf16>
    %cst_198 = arith.constant dense<0.000000e+00> : vector<8x512xf32>
    %313 = tpu.matmul %311, %312, %cst_198 {dimension_numbers = #tpu.dot_dimension_numbers<[1], [0], [0], [1], [0, 0, 1, 1], [], []>} : vector<8x256xbf16>, vector<256x512xbf16>, vector<8x512xf32> -> vector<8x512xf32>
    %c0_199 = arith.constant 0 : index
    %c0_200 = arith.constant 0 : index
    %314 = vector.load %arg19[%c0_199, %c0_200] : memref<1x512xf32, #tpu.memory_space<vmem>>, vector<1x512xf32>
    %315 = vector.broadcast %314 : vector<1x512xf32> to vector<8x512xf32>
    %316 = arith.addf %313, %315 : vector<8x512xf32>
    %cst_201 = arith.constant 0.000000e+00 : f32
    %317 = vector.broadcast %cst_201 : f32 to vector<8x512xf32>
    %318 = arith.maximumf %316, %317 : vector<8x512xf32>
    %319 = arith.truncf %318 : vector<8x512xf32> to vector<8x512xbf16>
    %c0_202 = arith.constant 0 : index
    %c0_203 = arith.constant 0 : index
    %320 = vector.load %arg20[%c0_202, %c0_203] : memref<512x256xbf16, #tpu.memory_space<vmem>>, vector<512x256xbf16>
    %cst_204 = arith.constant dense<0.000000e+00> : vector<8x256xf32>
    %321 = tpu.matmul %319, %320, %cst_204 {dimension_numbers = #tpu.dot_dimension_numbers<[1], [0], [0], [1], [0, 0, 1, 1], [], []>} : vector<8x512xbf16>, vector<512x256xbf16>, vector<8x256xf32> -> vector<8x256xf32>
    %c0_205 = arith.constant 0 : index
    %c0_206 = arith.constant 0 : index
    %322 = vector.load %arg21[%c0_205, %c0_206] : memref<1x256xf32, #tpu.memory_space<vmem>>, vector<1x256xf32>
    %323 = vector.broadcast %322 : vector<1x256xf32> to vector<8x256xf32>
    %324 = arith.addf %321, %323 : vector<8x256xf32>
    %cst_207 = arith.constant 0.000000e+00 : f32
    %325 = vector.broadcast %cst_207 : f32 to vector<8x256xf32>
    %326 = arith.maximumf %324, %325 : vector<8x256xf32>
    %327 = arith.truncf %326 : vector<8x256xf32> to vector<8x256xbf16>
    %c0_208 = arith.constant 0 : index
    %c0_209 = arith.constant 0 : index
    %328 = vector.load %arg22[%c0_208, %c0_209] : memref<256x5xbf16, #tpu.memory_space<vmem>>, vector<256x5xbf16>
    %cst_210 = arith.constant dense<0.000000e+00> : vector<8x5xf32>
    %329 = tpu.matmul %327, %328, %cst_210 {dimension_numbers = #tpu.dot_dimension_numbers<[1], [0], [0], [1], [0, 0, 1, 1], [], []>} : vector<8x256xbf16>, vector<256x5xbf16>, vector<8x5xf32> -> vector<8x5xf32>
    %c0_211 = arith.constant 0 : index
    %c0_212 = arith.constant 0 : index
    %330 = vector.load %arg23[%c0_211, %c0_212] : memref<1x5xf32, #tpu.memory_space<vmem>>, vector<1x5xf32>
    %331 = vector.broadcast %330 : vector<1x5xf32> to vector<8x5xf32>
    %332 = arith.addf %329, %331 : vector<8x5xf32>
    %c0_213 = arith.constant 0 : index
    %c0_214 = arith.constant 0 : index
    %333 = vector.load %arg24[%c0_213, %c0_214] : memref<8x5xf32, #tpu.memory_space<vmem>>, vector<8x5xf32>
    tpu.vector_store %arg24[%c0_213, %c0_214], %332 {strides = array<i32>} : memref<8x5xf32, #tpu.memory_space<vmem>>, vector<8x5xf32>,
    return
  }
  func.func @transform_0(%arg0: i32) -> (i32, i32, i32) {
    %c0_i32 = arith.constant 0 : i32
    %c0_i32_0 = arith.constant 0 : i32
    %c0_i32_1 = arith.constant 0 : i32
    return %c0_i32, %arg0, %c0_i32_0 : i32, i32, i32
  }
  func.func @transform_1(%arg0: i32) -> (i32, i32, i32) {
    %c0_i32 = arith.constant 0 : i32
    %c0_i32_0 = arith.constant 0 : i32
    %c0_i32_1 = arith.constant 0 : i32
    %c0_i32_2 = arith.constant 0 : i32
    return %c0_i32, %c0_i32_0, %c0_i32_1 : i32, i32, i32
  }
  func.func @transform_2(%arg0: i32) -> (i32, i32) {
    %c0_i32 = arith.constant 0 : i32
    %c0_i32_0 = arith.constant 0 : i32
    %c0_i32_1 = arith.constant 0 : i32
    return %c0_i32, %c0_i32_0 : i32, i32
  }
  func.func @transform_3(%arg0: i32) -> (i32, i32, i32) {
    %c0_i32 = arith.constant 0 : i32
    %c0_i32_0 = arith.constant 0 : i32
    %c0_i32_1 = arith.constant 0 : i32
    %c0_i32_2 = arith.constant 0 : i32
    return %c0_i32, %c0_i32_0, %c0_i32_1 : i32, i32, i32
  }
  func.func @transform_4(%arg0: i32) -> (i32, i32) {
    %c0_i32 = arith.constant 0 : i32
    %c0_i32_0 = arith.constant 0 : i32
    %c0_i32_1 = arith.constant 0 : i32
    return %c0_i32, %c0_i32_0 : i32, i32
  }
  func.func @transform_5(%arg0: i32) -> (i32, i32, i32) {
    %c0_i32 = arith.constant 0 : i32
    %c0_i32_0 = arith.constant 0 : i32
    %c0_i32_1 = arith.constant 0 : i32
    %c0_i32_2 = arith.constant 0 : i32
    return %c0_i32, %c0_i32_0, %c0_i32_1 : i32, i32, i32
  }
  func.func @transform_6(%arg0: i32) -> (i32, i32) {
    %c0_i32 = arith.constant 0 : i32
    %c0_i32_0 = arith.constant 0 : i32
    %c0_i32_1 = arith.constant 0 : i32
    return %c0_i32, %c0_i32_0 : i32, i32
  }
  func.func @transform_7(%arg0: i32) -> (i32, i32, i32) {
    %c0_i32 = arith.constant 0 : i32
    %c0_i32_0 = arith.constant 0 : i32
    %c0_i32_1 = arith.constant 0 : i32
    %c0_i32_2 = arith.constant 0 : i32
    return %c0_i32, %c0_i32_0, %c0_i32_1 : i32, i32, i32
  }
  func.func @transform_8(%arg0: i32) -> (i32, i32) {
    %c0_i32 = arith.constant 0 : i32
    %c0_i32_0 = arith.constant 0 : i32
    %c0_i32_1 = arith.constant 0 : i32
    return %c0_i32, %c0_i32_0 : i32, i32
  }
  func.func @transform_9(%arg0: i32) -> (i32, i32, i32) {
    %c0_i32 = arith.constant 0 : i32
    %c0_i32_0 = arith.constant 0 : i32
    %c0_i32_1 = arith.constant 0 : i32
    %c0_i32_2 = arith.constant 0 : i32
    return %c0_i32, %c0_i32_0, %c0_i32_1 : i32, i32, i32
  }
  func.func @transform_10(%arg0: i32) -> (i32, i32) {
    %c0_i32 = arith.constant 0 : i32
    %c0_i32_0 = arith.constant 0 : i32
    %c0_i32_1 = arith.constant 0 : i32
    return %c0_i32, %c0_i32_0 : i32, i32
  }
  func.func @transform_11(%arg0: i32) -> (i32, i32, i32) {
    %c0_i32 = arith.constant 0 : i32
    %c0_i32_0 = arith.constant 0 : i32
    %c0_i32_1 = arith.constant 0 : i32
    %c0_i32_2 = arith.constant 0 : i32
    return %c0_i32, %c0_i32_0, %c0_i32_1 : i32, i32, i32
  }
  func.func @transform_12(%arg0: i32) -> (i32, i32) {
    %c0_i32 = arith.constant 0 : i32
    %c0_i32_0 = arith.constant 0 : i32
    %c0_i32_1 = arith.constant 0 : i32
    return %c0_i32, %c0_i32_0 : i32, i32
  }
  func.func @transform_13(%arg0: i32) -> (i32, i32, i32) {
    %c0_i32 = arith.constant 0 : i32
    %c0_i32_0 = arith.constant 0 : i32
    %c0_i32_1 = arith.constant 0 : i32
    %c0_i32_2 = arith.constant 0 : i32
    return %c0_i32, %c0_i32_0, %c0_i32_1 : i32, i32, i32
  }
  func.func @transform_14(%arg0: i32) -> (i32, i32) {
    %c0_i32 = arith.constant 0 : i32
    %c0_i32_0 = arith.constant 0 : i32
    %c0_i32_1 = arith.constant 0 : i32
    return %c0_i32, %c0_i32_0 : i32, i32
  }
  func.func @transform_15(%arg0: i32) -> (i32, i32, i32) {
    %c0_i32 = arith.constant 0 : i32
    %c0_i32_0 = arith.constant 0 : i32
    %c0_i32_1 = arith.constant 0 : i32
    %c0_i32_2 = arith.constant 0 : i32
    return %c0_i32, %c0_i32_0, %c0_i32_1 : i32, i32, i32
  }
  func.func @transform_16(%arg0: i32) -> (i32, i32) {
    %c0_i32 = arith.constant 0 : i32
    %c0_i32_0 = arith.constant 0 : i32
    %c0_i32_1 = arith.constant 0 : i32
    return %c0_i32, %c0_i32_0 : i32, i32
  }
  func.func @transform_17(%arg0: i32) -> (i32, i32) {
    %c0_i32 = arith.constant 0 : i32
    %c0_i32_0 = arith.constant 0 : i32
    %c0_i32_1 = arith.constant 0 : i32
    return %c0_i32, %c0_i32_0 : i32, i32
  }
  func.func @transform_18(%arg0: i32) -> (i32, i32) {
    %c0_i32 = arith.constant 0 : i32
    %c0_i32_0 = arith.constant 0 : i32
    %c0_i32_1 = arith.constant 0 : i32
    return %c0_i32, %c0_i32_0 : i32, i32
  }
  func.func @transform_19(%arg0: i32) -> (i32, i32) {
    %c0_i32 = arith.constant 0 : i32
    %c0_i32_0 = arith.constant 0 : i32
    %c0_i32_1 = arith.constant 0 : i32
    return %c0_i32, %c0_i32_0 : i32, i32
  }
  func.func @transform_20(%arg0: i32) -> (i32, i32) {
    %c0_i32 = arith.constant 0 : i32
    %c0_i32_0 = arith.constant 0 : i32
    %c0_i32_1 = arith.constant 0 : i32
    return %c0_i32, %c0_i32_0 : i32, i32
  }
  func.func @transform_21(%arg0: i32) -> (i32, i32) {
    %c0_i32 = arith.constant 0 : i32
    %c0_i32_0 = arith.constant 0 : i32
    %c0_i32_1 = arith.constant 0 : i32
    return %c0_i32, %c0_i32_0 : i32, i32
  }
  func.func @transform_22(%arg0: i32) -> (i32, i32) {
    %c0_i32 = arith.constant 0 : i32
    %c0_i32_0 = arith.constant 0 : i32
    %c0_i32_1 = arith.constant 0 : i32
    return %c0_i32, %c0_i32_0 : i32, i32
  }
  func.func @transform_23(%arg0: i32) -> (i32, i32) {
    %c0_i32 = arith.constant 0 : i32
    %c0_i32_0 = arith.constant 0 : i32
    return %arg0, %c0_i32 : i32, i32
  }
}

</mosaic_0001>

<llo_original>
// kernel: _lambda_.1
$region0: #{_lambda_.1}
  #allocation0 [shape = 'u32[]', space=smem, size = 0x4, offset = 0x4, fixed_abs, tag = 'smem constant byte address 0x4 - core index']
  #allocation1 [shape = 'u32[144,128]{1,0:T(1,128)}', space=vmem, size = 0x12000, scoped, tag = 'internal scratch']
  %s0 = inlined_call_operand.vmem [shape: f32[16,16,2], index: 0, kind: input, shape index: {}]
  %s1 = inlined_call_operand.vmem [shape: bf16[3,2,32], index: 1, kind: input, shape index: {}]
  %s2 = inlined_call_operand.vmem [shape: f32[1,32], index: 2, kind: input, shape index: {}]
  %s3 = inlined_call_operand.vmem [shape: bf16[3,32,32], index: 3, kind: input, shape index: {}]
  %s4 = inlined_call_operand.vmem [shape: f32[1,32], index: 4, kind: input, shape index: {}]
  %s5 = inlined_call_operand.vmem [shape: bf16[5,32,64], index: 5, kind: input, shape index: {}]
  %s6 = inlined_call_operand.vmem [shape: f32[1,64], index: 6, kind: input, shape index: {}]
  %s7 = inlined_call_operand.vmem [shape: bf16[5,64,64], index: 7, kind: input, shape index: {}]
  %s8 = inlined_call_operand.vmem [shape: f32[1,64], index: 8, kind: input, shape index: {}]
  %s9 = inlined_call_operand.vmem [shape: bf16[7,64,128], index: 9, kind: input, shape index: {}]
  %s10 = inlined_call_operand.vmem [shape: f32[1,128], index: 10, kind: input, shape index: {}]
  %s11 = inlined_call_operand.vmem [shape: bf16[7,128,128], index: 11, kind: input, shape index: {}]
  %s12 = inlined_call_operand.vmem [shape: f32[1,128], index: 12, kind: input, shape index: {}]
  %s13 = inlined_call_operand.vmem [shape: bf16[5,128,256], index: 13, kind: input, shape index: {}]
  %s14 = inlined_call_operand.vmem [shape: f32[1,256], index: 14, kind: input, shape index: {}]
  %s15 = inlined_call_operand.vmem [shape: bf16[5,256,256], index: 15, kind: input, shape index: {}]
  %s16 = inlined_call_operand.vmem [shape: f32[1,256], index: 16, kind: input, shape index: {}]
  %s17 = inlined_call_operand.vmem [shape: bf16[256,512], index: 17, kind: input, shape index: {}]
  %s18 = inlined_call_operand.vmem [shape: f32[1,512], index: 18, kind: input, shape index: {}]
  %s19 = inlined_call_operand.vmem [shape: bf16[512,256], index: 19, kind: input, shape index: {}]
  %s20 = inlined_call_operand.vmem [shape: f32[1,256], index: 20, kind: input, shape index: {}]
  %s21 = inlined_call_operand.vmem [shape: bf16[256,5], index: 21, kind: input, shape index: {}]
  %s22 = inlined_call_operand.vmem [shape: f32[1,5], index: 22, kind: input, shape index: {}]
  %s23 = inlined_call_operand.vmem [shape: f32[16,5], index: 23, kind: output, shape index: {}]
  %s24 = sld [smem:[#allocation0]]
  $region163: #{_lambda_.1} parent=0
    _
  %s26 = ssub.s32 1, %s24
  %s27 = scalar_select 0, %s26, %s24
  $region1: #{_lambda_.1} parent=0
    #allocation2 [shape = 'u8[131072]{0}', space=vmem, size = 0x20000, scoped, tag = 'input window, operand 0']
    loop: start=0, step=1, limit=4
    $region2: #{_lambda_.1} parent=1 // loop_pre_header
      _
    $region3: #{_lambda_.1} parent=1 // loop_header
      %s29 = sphi 0, %s33
      %p30 = scmp.ge.s32.totalorder %s29, 4
      %s39 = sphi 0, %s41
      %s42 = sphi 0, %s39
      %s43 = sphi 0, %s42
      %s59 = sphi 0, %s43
      %s63 = sphi 0, %s63
      %s65 = sphi 0, %s63
      %s66 = sphi 0, %s65
      %s80 = sphi 0, %s66
      %s84 = sphi 0, %s84
      %s86 = sphi 0, %s84
      %s87 = sphi 0, %s86
      %s101 = sphi 0, %s87
      %s105 = sphi 0, %s105
      %s107 = sphi 0, %s105
      %s108 = sphi 0, %s107
      %s122 = sphi 0, %s108
      %s126 = sphi 0, %s126
      %s128 = sphi 0, %s126
      %s129 = sphi 0, %s128
      %s143 = sphi 0, %s129
      %s147 = sphi 0, %s147
      %s149 = sphi 0, %s147
      %s150 = sphi 0, %s149
      %s164 = sphi 0, %s150
      %s168 = sphi 0, %s168
      %s170 = sphi 0, %s168
      %s171 = sphi 0, %s170
      %s185 = sphi 0, %s171
      %s189 = sphi 0, %s189
      %s191 = sphi 0, %s189
      %s192 = sphi 0, %s191
      %s206 = sphi 0, %s192
      %s210 = sphi 0, %s210
      %s212 = sphi 0, %s210
      %s213 = sphi 0, %s212
      %s227 = sphi 0, %s213
      %s231 = sphi 0, %s231
      %s233 = sphi 0, %s231
      %s234 = sphi 0, %s233
      %s248 = sphi 0, %s234
      %s252 = sphi 0, %s252
      %s254 = sphi 0, %s252
      %s255 = sphi 0, %s254
      %s269 = sphi 0, %s255
      %s273 = sphi 0, %s273
      %s275 = sphi 0, %s273
      %s276 = sphi 0, %s275
      %s290 = sphi 0, %s276
      %s294 = sphi 0, %s294
      %s296 = sphi 0, %s294
      %s297 = sphi 0, %s296
      %s311 = sphi 0, %s297
      %s315 = sphi 0, %s315
      %s317 = sphi 0, %s315
      %s318 = sphi 0, %s317
      %s332 = sphi 0, %s318
      %s336 = sphi 0, %s336
      %s338 = sphi 0, %s336
      %s339 = sphi 0, %s338
      %s353 = sphi 0, %s339
      %s357 = sphi 0, %s357
      %s359 = sphi 0, %s357
      %s360 = sphi 0, %s359
      %s374 = sphi 0, %s360
      %s378 = sphi 0, %s378
      %s380 = sphi 0, %s378
      %s381 = sphi 0, %s380
      %s395 = sphi 0, %s381
      %s399 = sphi 0, %s399
      %s401 = sphi 0, %s399
      %s402 = sphi 0, %s401
      %s416 = sphi 0, %s402
      %s420 = sphi 0, %s420
      %s422 = sphi 0, %s420
      %s423 = sphi 0, %s422
      %s437 = sphi 0, %s423
      %s441 = sphi 0, %s441
      %s443 = sphi 0, %s441
      %s444 = sphi 0, %s443
      %s458 = sphi 0, %s444
      %s462 = sphi 0, %s462
      %s464 = sphi 0, %s462
      %s465 = sphi 0, %s464
      %s479 = sphi 0, %s465
      %s483 = sphi 0, %s483
      %s485 = sphi 0, %s483
      %s486 = sphi 0, %s485
      %s500 = sphi 0, %s486
      %s504 = sphi 0, %s504
      %s506 = sphi 0, %s504
      %s507 = sphi 0, %s506
      %s521 = sphi 0, %s507
      %s527 = sphi 0, %s529
      %s530 = sphi 0, %s527
      %s531 = sphi 0, %s530
      %s547 = sphi 0, %s531
    $region4: #{_lambda_.1} parent=1 // loop_header_branch
      %32 = sbr.rel (%p30) target = $region8
    $region5: #{_lambda_.1} parent=1 // loop_body
      %s34 = ssub.s32 %s29, 1
      %s35 = ssub.s32 %s29, 2
      %s36 = sadd.s32 %s29, 1
      %s37 = ssub.s32 %s29, %s36
      %p38 = scmp.eq.s32.totalorder %s37, 0
      %s40 = sadd.s32 %s39, 1
      %s41 = scalar_select %p38, %s39, %s40
      %p44 = pneg %p38
      %p45 = scmp.eq.s32.totalorder %s29, 1
      %p46 = por %p44, %p45
      %p47 = scmp.ne.s32.totalorder %s39, %s42
      %p48 = scmp.eq.s32.totalorder %s29, 0
      %p49 = por %p47, %p48
      %p50 = scmp.ne.s32.totalorder %s39, %s42
      %p51 = scmp.eq.s32.totalorder %s34, 1
      %p52 = por %p50, %p51
      %p53 = scmp.ne.s32.totalorder %s42, %s43
      %p54 = scmp.eq.s32.totalorder %s34, 0
      %p55 = por %p53, %p54
      %p56 = scmp.ne.s32.totalorder %s42, %s43
      %p57 = scmp.eq.s32.totalorder %s35, 1
      %p58 = por %p56, %p57
      %p60 = scmp.ne.s32.totalorder %s43, %s59
      %p61 = scmp.eq.s32.totalorder %s35, 0
      %p62 = por %p60, %p61
      %s64 = sadd.s32 %s63, 1
      %p67 = scmp.eq.s32.totalorder %s29, 1
      %p68 = scmp.ne.s32.totalorder %s63, %s65
      %p69 = scmp.eq.s32.totalorder %s29, 0
      %p70 = por %p68, %p69
      %p71 = scmp.ne.s32.totalorder %s63, %s65
      %p72 = scmp.eq.s32.totalorder %s34, 1
      %p73 = por %p71, %p72
      %p74 = scmp.ne.s32.totalorder %s65, %s66
      %p75 = scmp.eq.s32.totalorder %s34, 0
      %p76 = por %p74, %p75
      %p77 = scmp.ne.s32.totalorder %s65, %s66
      %p78 = scmp.eq.s32.totalorder %s35, 1
      %p79 = por %p77, %p78
      %p81 = scmp.ne.s32.totalorder %s66, %s80
      %p82 = scmp.eq.s32.totalorder %s35, 0
      %p83 = por %p81, %p82
      %s85 = sadd.s32 %s84, 1
      %p88 = scmp.eq.s32.totalorder %s29, 1
      %p89 = scmp.ne.s32.totalorder %s84, %s86
      %p90 = scmp.eq.s32.totalorder %s29, 0
      %p91 = por %p89, %p90
      %p92 = scmp.ne.s32.totalorder %s84, %s86
      %p93 = scmp.eq.s32.totalorder %s34, 1
      %p94 = por %p92, %p93
      %p95 = scmp.ne.s32.totalorder %s86, %s87
      %p96 = scmp.eq.s32.totalorder %s34, 0
      %p97 = por %p95, %p96
      %p98 = scmp.ne.s32.totalorder %s86, %s87
      %p99 = scmp.eq.s32.totalorder %s35, 1
      %p100 = por %p98, %p99
      %p102 = scmp.ne.s32.totalorder %s87, %s101
      %p103 = scmp.eq.s32.totalorder %s35, 0
      %p104 = por %p102, %p103
      %s106 = sadd.s32 %s105, 1
      %p109 = scmp.eq.s32.totalorder %s29, 1
      %p110 = scmp.ne.s32.totalorder %s105, %s107
      %p111 = scmp.eq.s32.totalorder %s29, 0
      %p112 = por %p110, %p111
      %p113 = scmp.ne.s32.totalorder %s105, %s107
      %p114 = scmp.eq.s32.totalorder %s34, 1
      %p115 = por %p113, %p114
      %p116 = scmp.ne.s32.totalorder %s107, %s108
      %p117 = scmp.eq.s32.totalorder %s34, 0
      %p118 = por %p116, %p117
      %p119 = scmp.ne.s32.totalorder %s107, %s108
      %p120 = scmp.eq.s32.totalorder %s35, 1
      %p121 = por %p119, %p120
      %p123 = scmp.ne.s32.totalorder %s108, %s122
      %p124 = scmp.eq.s32.totalorder %s35, 0
      %p125 = por %p123, %p124
      %s127 = sadd.s32 %s126, 1
      %p130 = scmp.eq.s32.totalorder %s29, 1
      %p131 = scmp.ne.s32.totalorder %s126, %s128
      %p132 = scmp.eq.s32.totalorder %s29, 0
      %p133 = por %p131, %p132
      %p134 = scmp.ne.s32.totalorder %s126, %s128
      %p135 = scmp.eq.s32.totalorder %s34, 1
      %p136 = por %p134, %p135
      %p137 = scmp.ne.s32.totalorder %s128, %s129
      %p138 = scmp.eq.s32.totalorder %s34, 0
      %p139 = por %p137, %p138
      %p140 = scmp.ne.s32.totalorder %s128, %s129
      %p141 = scmp.eq.s32.totalorder %s35, 1
      %p142 = por %p140, %p141
      %p144 = scmp.ne.s32.totalorder %s129, %s143
      %p145 = scmp.eq.s32.totalorder %s35, 0
      %p146 = por %p144, %p145
      %s148 = sadd.s32 %s147, 1
      %p151 = scmp.eq.s32.totalorder %s29, 1
      %p152 = scmp.ne.s32.totalorder %s147, %s149
      %p153 = scmp.eq.s32.totalorder %s29, 0
      %p154 = por %p152, %p153
      %p155 = scmp.ne.s32.totalorder %s147, %s149
      %p156 = scmp.eq.s32.totalorder %s34, 1
      %p157 = por %p155, %p156
      %p158 = scmp.ne.s32.totalorder %s149, %s150
      %p159 = scmp.eq.s32.totalorder %s34, 0
      %p160 = por %p158, %p159
      %p161 = scmp.ne.s32.totalorder %s149, %s150
      %p162 = scmp.eq.s32.totalorder %s35, 1
      %p163 = por %p161, %p162
      %p165 = scmp.ne.s32.totalorder %s150, %s164
      %p166 = scmp.eq.s32.totalorder %s35, 0
      %p167 = por %p165, %p166
      %s169 = sadd.s32 %s168, 1
      %p172 = scmp.eq.s32.totalorder %s29, 1
      %p173 = scmp.ne.s32.totalorder %s168, %s170
      %p174 = scmp.eq.s32.totalorder %s29, 0
      %p175 = por %p173, %p174
      %p176 = scmp.ne.s32.totalorder %s168, %s170
      %p177 = scmp.eq.s32.totalorder %s34, 1
      %p178 = por %p176, %p177
      %p179 = scmp.ne.s32.totalorder %s170, %s171
      %p180 = scmp.eq.s32.totalorder %s34, 0
      %p181 = por %p179, %p180
      %p182 = scmp.ne.s32.totalorder %s170, %s171
      %p183 = scmp.eq.s32.totalorder %s35, 1
      %p184 = por %p182, %p183
      %p186 = scmp.ne.s32.totalorder %s171, %s185
      %p187 = scmp.eq.s32.totalorder %s35, 0
      %p188 = por %p186, %p187
      %s190 = sadd.s32 %s189, 1
      %p193 = scmp.eq.s32.totalorder %s29, 1
      %p194 = scmp.ne.s32.totalorder %s189, %s191
      %p195 = scmp.eq.s32.totalorder %s29, 0
      %p196 = por %p194, %p195
      %p197 = scmp.ne.s32.totalorder %s189, %s191
      %p198 = scmp.eq.s32.totalorder %s34, 1
      %p199 = por %p197, %p198
      %p200 = scmp.ne.s32.totalorder %s191, %s192
      %p201 = scmp.eq.s32.totalorder %s34, 0
      %p202 = por %p200, %p201
      %p203 = scmp.ne.s32.totalorder %s191, %s192
      %p204 = scmp.eq.s32.totalorder %s35, 1
      %p205 = por %p203, %p204
      %p207 = scmp.ne.s32.totalorder %s192, %s206
      %p208 = scmp.eq.s32.totalorder %s35, 0
      %p209 = por %p207, %p208
      %s211 = sadd.s32 %s210, 1
      %p214 = scmp.eq.s32.totalorder %s29, 1
      %p215 = scmp.ne.s32.totalorder %s210, %s212
      %p216 = scmp.eq.s32.totalorder %s29, 0
      %p217 = por %p215, %p216
      %p218 = scmp.ne.s32.totalorder %s210, %s212
      %p219 = scmp.eq.s32.totalorder %s34, 1
      %p220 = por %p218, %p219
      %p221 = scmp.ne.s32.totalorder %s212, %s213
      %p222 = scmp.eq.s32.totalorder %s34, 0
      %p223 = por %p221, %p222
      %p224 = scmp.ne.s32.totalorder %s212, %s213
      %p225 = scmp.eq.s32.totalorder %s35, 1
      %p226 = por %p224, %p225
      %p228 = scmp.ne.s32.totalorder %s213, %s227
      %p229 = scmp.eq.s32.totalorder %s35, 0
      %p230 = por %p228, %p229
      %s232 = sadd.s32 %s231, 1
      %p235 = scmp.eq.s32.totalorder %s29, 1
      %p236 = scmp.ne.s32.totalorder %s231, %s233
      %p237 = scmp.eq.s32.totalorder %s29, 0
      %p238 = por %p236, %p237
      %p239 = scmp.ne.s32.totalorder %s231, %s233
      %p240 = scmp.eq.s32.totalorder %s34, 1
      %p241 = por %p239, %p240
      %p242 = scmp.ne.s32.totalorder %s233, %s234
      %p243 = scmp.eq.s32.totalorder %s34, 0
      %p244 = por %p242, %p243
      %p245 = scmp.ne.s32.totalorder %s233, %s234
      %p246 = scmp.eq.s32.totalorder %s35, 1
      %p247 = por %p245, %p246
      %p249 = scmp.ne.s32.totalorder %s234, %s248
      %p250 = scmp.eq.s32.totalorder %s35, 0
      %p251 = por %p249, %p250
      %s253 = sadd.s32 %s252, 1
      %p256 = scmp.eq.s32.totalorder %s29, 1
      %p257 = scmp.ne.s32.totalorder %s252, %s254
      %p258 = scmp.eq.s32.totalorder %s29, 0
      %p259 = por %p257, %p258
      %p260 = scmp.ne.s32.totalorder %s252, %s254
      %p261 = scmp.eq.s32.totalorder %s34, 1
      %p262 = por %p260, %p261
      %p263 = scmp.ne.s32.totalorder %s254, %s255
      %p264 = scmp.eq.s32.totalorder %s34, 0
      %p265 = por %p263, %p264
      %p266 = scmp.ne.s32.totalorder %s254, %s255
      %p267 = scmp.eq.s32.totalorder %s35, 1
      %p268 = por %p266, %p267
      %p270 = scmp.ne.s32.totalorder %s255, %s269
      %p271 = scmp.eq.s32.totalorder %s35, 0
      %p272 = por %p270, %p271
      %s274 = sadd.s32 %s273, 1
      %p277 = scmp.eq.s32.totalorder %s29, 1
      %p278 = scmp.ne.s32.totalorder %s273, %s275
      %p279 = scmp.eq.s32.totalorder %s29, 0
      %p280 = por %p278, %p279
      %p281 = scmp.ne.s32.totalorder %s273, %s275
      %p282 = scmp.eq.s32.totalorder %s34, 1
      %p283 = por %p281, %p282
      %p284 = scmp.ne.s32.totalorder %s275, %s276
      %p285 = scmp.eq.s32.totalorder %s34, 0
      %p286 = por %p284, %p285
      %p287 = scmp.ne.s32.totalorder %s275, %s276
      %p288 = scmp.eq.s32.totalorder %s35, 1
      %p289 = por %p287, %p288
      %p291 = scmp.ne.s32.totalorder %s276, %s290
      %p292 = scmp.eq.s32.totalorder %s35, 0
      %p293 = por %p291, %p292
      %s295 = sadd.s32 %s294, 1
      %p298 = scmp.eq.s32.totalorder %s29, 1
      %p299 = scmp.ne.s32.totalorder %s294, %s296
      %p300 = scmp.eq.s32.totalorder %s29, 0
      %p301 = por %p299, %p300
      %p302 = scmp.ne.s32.totalorder %s294, %s296
      %p303 = scmp.eq.s32.totalorder %s34, 1
      %p304 = por %p302, %p303
      %p305 = scmp.ne.s32.totalorder %s296, %s297
      %p306 = scmp.eq.s32.totalorder %s34, 0
      %p307 = por %p305, %p306
      %p308 = scmp.ne.s32.totalorder %s296, %s297
      %p309 = scmp.eq.s32.totalorder %s35, 1
      %p310 = por %p308, %p309
      %p312 = scmp.ne.s32.totalorder %s297, %s311
      %p313 = scmp.eq.s32.totalorder %s35, 0
      %p314 = por %p312, %p313
      %s316 = sadd.s32 %s315, 1
      %p319 = scmp.eq.s32.totalorder %s29, 1
      %p320 = scmp.ne.s32.totalorder %s315, %s317
      %p321 = scmp.eq.s32.totalorder %s29, 0
      %p322 = por %p320, %p321
      %p323 = scmp.ne.s32.totalorder %s315, %s317
      %p324 = scmp.eq.s32.totalorder %s34, 1
      %p325 = por %p323, %p324
      %p326 = scmp.ne.s32.totalorder %s317, %s318
      %p327 = scmp.eq.s32.totalorder %s34, 0
      %p328 = por %p326, %p327
      %p329 = scmp.ne.s32.totalorder %s317, %s318
      %p330 = scmp.eq.s32.totalorder %s35, 1
      %p331 = por %p329, %p330
      %p333 = scmp.ne.s32.totalorder %s318, %s332
      %p334 = scmp.eq.s32.totalorder %s35, 0
      %p335 = por %p333, %p334
      %s337 = sadd.s32 %s336, 1
      %p340 = scmp.eq.s32.totalorder %s29, 1
      %p341 = scmp.ne.s32.totalorder %s336, %s338
      %p342 = scmp.eq.s32.totalorder %s29, 0
      %p343 = por %p341, %p342
      %p344 = scmp.ne.s32.totalorder %s336, %s338
      %p345 = scmp.eq.s32.totalorder %s34, 1
      %p346 = por %p344, %p345
      %p347 = scmp.ne.s32.totalorder %s338, %s339
      %p348 = scmp.eq.s32.totalorder %s34, 0
      %p349 = por %p347, %p348
      %p350 = scmp.ne.s32.totalorder %s338, %s339
      %p351 = scmp.eq.s32.totalorder %s35, 1
      %p352 = por %p350, %p351
      %p354 = scmp.ne.s32.totalorder %s339, %s353
      %p355 = scmp.eq.s32.totalorder %s35, 0
      %p356 = por %p354, %p355
      %s358 = sadd.s32 %s357, 1
      %p361 = scmp.eq.s32.totalorder %s29, 1
      %p362 = scmp.ne.s32.totalorder %s357, %s359
      %p363 = scmp.eq.s32.totalorder %s29, 0
      %p364 = por %p362, %p363
      %p365 = scmp.ne.s32.totalorder %s357, %s359
      %p366 = scmp.eq.s32.totalorder %s34, 1
      %p367 = por %p365, %p366
      %p368 = scmp.ne.s32.totalorder %s359, %s360
      %p369 = scmp.eq.s32.totalorder %s34, 0
      %p370 = por %p368, %p369
      %p371 = scmp.ne.s32.totalorder %s359, %s360
      %p372 = scmp.eq.s32.totalorder %s35, 1
      %p373 = por %p371, %p372
      %p375 = scmp.ne.s32.totalorder %s360, %s374
      %p376 = scmp.eq.s32.totalorder %s35, 0
      %p377 = por %p375, %p376
      %s379 = sadd.s32 %s378, 1
      %p382 = scmp.eq.s32.totalorder %s29, 1
      %p383 = scmp.ne.s32.totalorder %s378, %s380
      %p384 = scmp.eq.s32.totalorder %s29, 0
      %p385 = por %p383, %p384
      %p386 = scmp.ne.s32.totalorder %s378, %s380
      %p387 = scmp.eq.s32.totalorder %s34, 1
      %p388 = por %p386, %p387
      %p389 = scmp.ne.s32.totalorder %s380, %s381
      %p390 = scmp.eq.s32.totalorder %s34, 0
      %p391 = por %p389, %p390
      %p392 = scmp.ne.s32.totalorder %s380, %s381
      %p393 = scmp.eq.s32.totalorder %s35, 1
      %p394 = por %p392, %p393
      %p396 = scmp.ne.s32.totalorder %s381, %s395
      %p397 = scmp.eq.s32.totalorder %s35, 0
      %p398 = por %p396, %p397
      %s400 = sadd.s32 %s399, 1
      %p403 = scmp.eq.s32.totalorder %s29, 1
      %p404 = scmp.ne.s32.totalorder %s399, %s401
      %p405 = scmp.eq.s32.totalorder %s29, 0
      %p406 = por %p404, %p405
      %p407 = scmp.ne.s32.totalorder %s399, %s401
      %p408 = scmp.eq.s32.totalorder %s34, 1
      %p409 = por %p407, %p408
      %p410 = scmp.ne.s32.totalorder %s401, %s402
      %p411 = scmp.eq.s32.totalorder %s34, 0
      %p412 = por %p410, %p411
      %p413 = scmp.ne.s32.totalorder %s401, %s402
      %p414 = scmp.eq.s32.totalorder %s35, 1
      %p415 = por %p413, %p414
      %p417 = scmp.ne.s32.totalorder %s402, %s416
      %p418 = scmp.eq.s32.totalorder %s35, 0
      %p419 = por %p417, %p418
      %s421 = sadd.s32 %s420, 1
      %p424 = scmp.eq.s32.totalorder %s29, 1
      %p425 = scmp.ne.s32.totalorder %s420, %s422
      %p426 = scmp.eq.s32.totalorder %s29, 0
      %p427 = por %p425, %p426
      %p428 = scmp.ne.s32.totalorder %s420, %s422
      %p429 = scmp.eq.s32.totalorder %s34, 1
      %p430 = por %p428, %p429
      %p431 = scmp.ne.s32.totalorder %s422, %s423
      %p432 = scmp.eq.s32.totalorder %s34, 0
      %p433 = por %p431, %p432
      %p434 = scmp.ne.s32.totalorder %s422, %s423
      %p435 = scmp.eq.s32.totalorder %s35, 1
      %p436 = por %p434, %p435
      %p438 = scmp.ne.s32.totalorder %s423, %s437
      %p439 = scmp.eq.s32.totalorder %s35, 0
      %p440 = por %p438, %p439
      %s442 = sadd.s32 %s441, 1
      %p445 = scmp.eq.s32.totalorder %s29, 1
      %p446 = scmp.ne.s32.totalorder %s441, %s443
      %p447 = scmp.eq.s32.totalorder %s29, 0
      %p448 = por %p446, %p447
      %p449 = scmp.ne.s32.totalorder %s441, %s443
      %p450 = scmp.eq.s32.totalorder %s34, 1
      %p451 = por %p449, %p450
      %p452 = scmp.ne.s32.totalorder %s443, %s444
      %p453 = scmp.eq.s32.totalorder %s34, 0
      %p454 = por %p452, %p453
      %p455 = scmp.ne.s32.totalorder %s443, %s444
      %p456 = scmp.eq.s32.totalorder %s35, 1
      %p457 = por %p455, %p456
      %p459 = scmp.ne.s32.totalorder %s444, %s458
      %p460 = scmp.eq.s32.totalorder %s35, 0
      %p461 = por %p459, %p460
      %s463 = sadd.s32 %s462, 1
      %p466 = scmp.eq.s32.totalorder %s29, 1
      %p467 = scmp.ne.s32.totalorder %s462, %s464
      %p468 = scmp.eq.s32.totalorder %s29, 0
      %p469 = por %p467, %p468
      %p470 = scmp.ne.s32.totalorder %s462, %s464
      %p471 = scmp.eq.s32.totalorder %s34, 1
      %p472 = por %p470, %p471
      %p473 = scmp.ne.s32.totalorder %s464, %s465
      %p474 = scmp.eq.s32.totalorder %s34, 0
      %p475 = por %p473, %p474
      %p476 = scmp.ne.s32.totalorder %s464, %s465
      %p477 = scmp.eq.s32.totalorder %s35, 1
      %p478 = por %p476, %p477
      %p480 = scmp.ne.s32.totalorder %s465, %s479
      %p481 = scmp.eq.s32.totalorder %s35, 0
      %p482 = por %p480, %p481
      %s484 = sadd.s32 %s483, 1
      %p487 = scmp.eq.s32.totalorder %s29, 1
      %p488 = scmp.ne.s32.totalorder %s483, %s485
      %p489 = scmp.eq.s32.totalorder %s29, 0
      %p490 = por %p488, %p489
      %p491 = scmp.ne.s32.totalorder %s483, %s485
      %p492 = scmp.eq.s32.totalorder %s34, 1
      %p493 = por %p491, %p492
      %p494 = scmp.ne.s32.totalorder %s485, %s486
      %p495 = scmp.eq.s32.totalorder %s34, 0
      %p496 = por %p494, %p495
      %p497 = scmp.ne.s32.totalorder %s485, %s486
      %p498 = scmp.eq.s32.totalorder %s35, 1
      %p499 = por %p497, %p498
      %p501 = scmp.ne.s32.totalorder %s486, %s500
      %p502 = scmp.eq.s32.totalorder %s35, 0
      %p503 = por %p501, %p502
      %s505 = sadd.s32 %s504, 1
      %p508 = scmp.eq.s32.totalorder %s29, 1
      %p509 = scmp.ne.s32.totalorder %s504, %s506
      %p510 = scmp.eq.s32.totalorder %s29, 0
      %p511 = por %p509, %p510
      %p512 = scmp.ne.s32.totalorder %s504, %s506
      %p513 = scmp.eq.s32.totalorder %s34, 1
      %p514 = por %p512, %p513
      %p515 = scmp.ne.s32.totalorder %s506, %s507
      %p516 = scmp.eq.s32.totalorder %s34, 0
      %p517 = por %p515, %p516
      %p518 = scmp.ne.s32.totalorder %s506, %s507
      %p519 = scmp.eq.s32.totalorder %s35, 1
      %p520 = por %p518, %p519
      %p522 = scmp.ne.s32.totalorder %s507, %s521
      %p523 = scmp.eq.s32.totalorder %s35, 0
      %p524 = por %p522, %p523
      %s525 = ssub.s32 %s29, %s36
      %p526 = scmp.eq.s32.totalorder %s525, 0
      %s528 = sadd.s32 %s527, 1
      %s529 = scalar_select %p526, %s527, %s528
      %p532 = pneg %p526
      %p533 = scmp.eq.s32.totalorder %s29, 1
      %p534 = por %p532, %p533
      %p535 = scmp.ne.s32.totalorder %s527, %s530
      %p536 = scmp.eq.s32.totalorder %s29, 0
      %p537 = por %p535, %p536
      %p538 = scmp.ne.s32.totalorder %s527, %s530
      %p539 = scmp.eq.s32.totalorder %s34, 1
      %p540 = por %p538, %p539
      %p541 = scmp.ne.s32.totalorder %s530, %s531
      %p542 = scmp.eq.s32.totalorder %s34, 0
      %p543 = por %p541, %p542
      %p544 = scmp.ne.s32.totalorder %s530, %s531
      %p545 = scmp.eq.s32.totalorder %s35, 1
      %p546 = por %p544, %p545
      %p548 = scmp.ne.s32.totalorder %s531, %s547
      %p549 = scmp.eq.s32.totalorder %s35, 0
      %p550 = por %p548, %p549
      %p551 = scmp.le.s32.totalorder 1, %s29
      %p552 = scmp.lt.s32.totalorder %s29, 3
      %p553 = pnand %p551, %p552
      %p554 = pneg %p553
      // Predicated region
      $region9: #{_lambda_.1} parent=5 // pred_check
        _
      $region10: #{_lambda_.1} parent=5 // pred_check_branch
        %556 = sbr.rel (%p553) target = $region12
      $region11: #{_lambda_.1} parent=5 // pred_region
        %s557 = ssub.s32 %s29, 1
        // Predicated region
        $region13: #{_lambda_.1} parent=11 // pred_check
          %p558 = pneg %p76
        $region14: #{_lambda_.1} parent=11 // pred_check_branch
          %560 = sbr.rel (%p558) target = $region16
        $region15: #{_lambda_.1} parent=11 // pred_region
          _
        $region16: #{_lambda_.1} parent=11 // pred_fallthru
          _
        // Predicated region
        $region17: #{_lambda_.1} parent=11 // pred_check
          %p561 = pneg %p97
        $region18: #{_lambda_.1} parent=11 // pred_check_branch
          %563 = sbr.rel (%p561) target = $region20
        $region19: #{_lambda_.1} parent=11 // pred_region
          _
        $region20: #{_lambda_.1} parent=11 // pred_fallthru
          _
        // Predicated region
        $region21: #{_lambda_.1} parent=11 // pred_check
          %p564 = pneg %p118
        $region22: #{_lambda_.1} parent=11 // pred_check_branch
          %566 = sbr.rel (%p564) target = $region24
        $region23: #{_lambda_.1} parent=11 // pred_region
          _
        $region24: #{_lambda_.1} parent=11 // pred_fallthru
          _
        // Predicated region
        $region25: #{_lambda_.1} parent=11 // pred_check
          %p567 = pneg %p139
        $region26: #{_lambda_.1} parent=11 // pred_check_branch
          %569 = sbr.rel (%p567) target = $region28
        $region27: #{_lambda_.1} parent=11 // pred_region
          _
        $region28: #{_lambda_.1} parent=11 // pred_fallthru
          _
        // Predicated region
        $region29: #{_lambda_.1} parent=11 // pred_check
          %p570 = pneg %p160
        $region30: #{_lambda_.1} parent=11 // pred_check_branch
          %572 = sbr.rel (%p570) target = $region32
        $region31: #{_lambda_.1} parent=11 // pred_region
          _
        $region32: #{_lambda_.1} parent=11 // pred_fallthru
          _
        // Predicated region
        $region33: #{_lambda_.1} parent=11 // pred_check
          %p573 = pneg %p181
        $region34: #{_lambda_.1} parent=11 // pred_check_branch
          %575 = sbr.rel (%p573) target = $region36
        $region35: #{_lambda_.1} parent=11 // pred_region
          _
        $region36: #{_lambda_.1} parent=11 // pred_fallthru
          _
        // Predicated region
        $region37: #{_lambda_.1} parent=11 // pred_check
          %p576 = pneg %p202
        $region38: #{_lambda_.1} parent=11 // pred_check_branch
          %578 = sbr.rel (%p576) target = $region40
        $region39: #{_lambda_.1} parent=11 // pred_region
          _
        $region40: #{_lambda_.1} parent=11 // pred_fallthru
          _
        // Predicated region
        $region41: #{_lambda_.1} parent=11 // pred_check
          %p579 = pneg %p223
        $region42: #{_lambda_.1} parent=11 // pred_check_branch
          %581 = sbr.rel (%p579) target = $region44
        $region43: #{_lambda_.1} parent=11 // pred_region
          _
        $region44: #{_lambda_.1} parent=11 // pred_fallthru
          _
        // Predicated region
        $region45: #{_lambda_.1} parent=11 // pred_check
          %p582 = pneg %p244
        $region46: #{_lambda_.1} parent=11 // pred_check_branch
          %584 = sbr.rel (%p582) target = $region48
        $region47: #{_lambda_.1} parent=11 // pred_region
          _
        $region48: #{_lambda_.1} parent=11 // pred_fallthru
          _
        // Predicated region
        $region49: #{_lambda_.1} parent=11 // pred_check
          %p585 = pneg %p265
        $region50: #{_lambda_.1} parent=11 // pred_check_branch
          %587 = sbr.rel (%p585) target = $region52
        $region51: #{_lambda_.1} parent=11 // pred_region
          _
        $region52: #{_lambda_.1} parent=11 // pred_fallthru
          _
        // Predicated region
        $region53: #{_lambda_.1} parent=11 // pred_check
          %p588 = pneg %p286
        $region54: #{_lambda_.1} parent=11 // pred_check_branch
          %590 = sbr.rel (%p588) target = $region56
        $region55: #{_lambda_.1} parent=11 // pred_region
          _
        $region56: #{_lambda_.1} parent=11 // pred_fallthru
          _
        // Predicated region
        $region57: #{_lambda_.1} parent=11 // pred_check
          %p591 = pneg %p307
        $region58: #{_lambda_.1} parent=11 // pred_check_branch
          %593 = sbr.rel (%p591) target = $region60
        $region59: #{_lambda_.1} parent=11 // pred_region
          _
        $region60: #{_lambda_.1} parent=11 // pred_fallthru
          _
        // Predicated region
        $region61: #{_lambda_.1} parent=11 // pred_check
          %p594 = pneg %p328
        $region62: #{_lambda_.1} parent=11 // pred_check_branch
          %596 = sbr.rel (%p594) target = $region64
        $region63: #{_lambda_.1} parent=11 // pred_region
          _
        $region64: #{_lambda_.1} parent=11 // pred_fallthru
          _
        // Predicated region
        $region65: #{_lambda_.1} parent=11 // pred_check
          %p597 = pneg %p349
        $region66: #{_lambda_.1} parent=11 // pred_check_branch
          %599 = sbr.rel (%p597) target = $region68
        $region67: #{_lambda_.1} parent=11 // pred_region
          _
        $region68: #{_lambda_.1} parent=11 // pred_fallthru
          _
        // Predicated region
        $region69: #{_lambda_.1} parent=11 // pred_check
          %p600 = pneg %p370
        $region70: #{_lambda_.1} parent=11 // pred_check_branch
          %602 = sbr.rel (%p600) target = $region72
        $region71: #{_lambda_.1} parent=11 // pred_region
          _
        $region72: #{_lambda_.1} parent=11 // pred_fallthru
          _
        // Predicated region
        $region73: #{_lambda_.1} parent=11 // pred_check
          %p603 = pneg %p391
        $region74: #{_lambda_.1} parent=11 // pred_check_branch
          %605 = sbr.rel (%p603) target = $region76
        $region75: #{_lambda_.1} parent=11 // pred_region
          _
        $region76: #{_lambda_.1} parent=11 // pred_fallthru
          _
        // Predicated region
        $region77: #{_lambda_.1} parent=11 // pred_check
          %p606 = pneg %p412
        $region78: #{_lambda_.1} parent=11 // pred_check_branch
          %608 = sbr.rel (%p606) target = $region80
        $region79: #{_lambda_.1} parent=11 // pred_region
          _
        $region80: #{_lambda_.1} parent=11 // pred_fallthru
          _
        // Predicated region
        $region81: #{_lambda_.1} parent=11 // pred_check
          %p609 = pneg %p433
        $region82: #{_lambda_.1} parent=11 // pred_check_branch
          %611 = sbr.rel (%p609) target = $region84
        $region83: #{_lambda_.1} parent=11 // pred_region
          _
        $region84: #{_lambda_.1} parent=11 // pred_fallthru
          _
        // Predicated region
        $region85: #{_lambda_.1} parent=11 // pred_check
          %p612 = pneg %p454
        $region86: #{_lambda_.1} parent=11 // pred_check_branch
          %614 = sbr.rel (%p612) target = $region88
        $region87: #{_lambda_.1} parent=11 // pred_region
          _
        $region88: #{_lambda_.1} parent=11 // pred_fallthru
          _
        // Predicated region
        $region89: #{_lambda_.1} parent=11 // pred_check
          %p615 = pneg %p475
        $region90: #{_lambda_.1} parent=11 // pred_check_branch
          %617 = sbr.rel (%p615) target = $region92
        $region91: #{_lambda_.1} parent=11 // pred_region
          _
        $region92: #{_lambda_.1} parent=11 // pred_fallthru
          _
        // Predicated region
        $region93: #{_lambda_.1} parent=11 // pred_check
          %p618 = pneg %p496
        $region94: #{_lambda_.1} parent=11 // pred_check_branch
          %620 = sbr.rel (%p618) target = $region96
        $region95: #{_lambda_.1} parent=11 // pred_region
          _
        $region96: #{_lambda_.1} parent=11 // pred_fallthru
          _
        // Predicated region
        $region97: #{_lambda_.1} parent=11 // pred_check
          %p621 = pneg %p517
        $region98: #{_lambda_.1} parent=11 // pred_check_branch
          %623 = sbr.rel (%p621) target = $region100
        $region99: #{_lambda_.1} parent=11 // pred_region
          _
        $region100: #{_lambda_.1} parent=11 // pred_fallthru
          _
      $region12: #{_lambda_.1} parent=5 // pred_fallthru
        _
      %p624 = scmp.lt.s32.totalorder %s29, 2
      // Predicated region
      $region101: #{_lambda_.1} parent=5 // pred_check
        %p625 = pneg %p624
      $region102: #{_lambda_.1} parent=5 // pred_check_branch
        %627 = sbr.rel (%p625) target = $region104
      $region103: #{_lambda_.1} parent=5 // pred_region
        // Predicated region
        $region105: #{_lambda_.1} parent=103 // pred_check
          %p628 = pneg %p49
        $region106: #{_lambda_.1} parent=103 // pred_check_branch
          %630 = sbr.rel (%p628) target = $region108
        $region107: #{_lambda_.1} parent=103 // pred_region
          %s631 = sand.u32 %s39, 1
          %s632 = sand.u32 %s39, 1
          %s633 = smul.addr %s632, 128
          %s634 = scalar_lea.vmem [#allocation2], %s633
          %s635 = smul.addr %s29, 8
          %s636 = scalar_lea.vmem %s0, %s635
          // Predicated region
          $region109: #{_lambda_.1} parent=107 // pred_check
            _
          $region110: #{_lambda_.1} parent=107 // pred_check_branch
            %638 = sbr.rel (0) target = $region112
          $region111: #{_lambda_.1} parent=107 // pred_region
            // Predicated region
            $region113: #{_lambda_.1} parent=111 // pred_check
              _
            $region114: #{_lambda_.1} parent=111 // pred_check_branch
              %640 = sbr.rel (0) target = $region116
            $region115: #{_lambda_.1} parent=111 // pred_region
              // Predicated region
              $region128: #{_lambda_.1} parent=115 // pred_check
                _
              $region129: #{_lambda_.1} parent=115 // pred_check_branch
                %685 = sbr.rel (0) target = $region131
              $region130: #{_lambda_.1} parent=115 // pred_region
                loop: start=0, step=1, limit=1
                $region132: #{_lambda_.1} parent=130 // loop_pre_header
                  _
                $region133: #{_lambda_.1} parent=130 // loop_header
                  %s687 = sphi 0, %s691
                  %p688 = scmp.ge.s32.totalorder %s687, 1
                  %s692 = sphi %s636, %s636
                  %s693 = sphi %s634, %s634
                $region134: #{_lambda_.1} parent=130 // loop_header_branch
                  %690 = sbr.rel (%p688) target = $region138
                $region135: #{_lambda_.1} parent=130 // loop_body
                  %v694 = vld [vmem:[%s692] sm:$0xff]
                  %695 = vst [vmem:[%s693] sm:$0xff] %v694
                  %v696 = vld [vmem:[%s692 + $0x10] sm:$0xff]
                  %697 = vst [vmem:[%s693 + $0x8] sm:$0xff] %v696
                  %v698 = vld [vmem:[%s692 + $0x20] sm:$0xff]
                  %699 = vst [vmem:[%s693 + $0x10] sm:$0xff] %v698
                  %v700 = vld [vmem:[%s692 + $0x30] sm:$0xff]
                  %701 = vst [vmem:[%s693 + $0x18] sm:$0xff] %v700
                  %v702 = vld [vmem:[%s692 + $0x40] sm:$0xff]
                  %703 = vst [vmem:[%s693 + $0x20] sm:$0xff] %v702
                  %v704 = vld [vmem:[%s692 + $0x50] sm:$0xff]
                  %705 = vst [vmem:[%s693 + $0x28] sm:$0xff] %v704
                  %v706 = vld [vmem:[%s692 + $0x60] sm:$0xff]
                  %707 = vst [vmem:[%s693 + $0x30] sm:$0xff] %v706
                  %v708 = vld [vmem:[%s692 + $0x70] sm:$0xff]
                  %709 = vst [vmem:[%s693 + $0x38] sm:$0xff] %v708
                  %v710 = vld [vmem:[%s692 + $0x80] sm:$0xff]
                  %711 = vst [vmem:[%s693 + $0x40] sm:$0xff] %v710
                  %v712 = vld [vmem:[%s692 + $0x90] sm:$0xff]
                  %713 = vst [vmem:[%s693 + $0x48] sm:$0xff] %v712
                  %v714 = vld [vmem:[%s692 + $0xa0] sm:$0xff]
                  %715 = vst [vmem:[%s693 + $0x50] sm:$0xff] %v714
                  %v716 = vld [vmem:[%s692 + $0xb0] sm:$0xff]
                  %717 = vst [vmem:[%s693 + $0x58] sm:$0xff] %v716
                  %v718 = vld [vmem:[%s692 + $0xc0] sm:$0xff]
                  %719 = vst [vmem:[%s693 + $0x60] sm:$0xff] %v718
                  %v720 = vld [vmem:[%s692 + $0xd0] sm:$0xff]
                  %721 = vst [vmem:[%s693 + $0x68] sm:$0xff] %v720
                  %v722 = vld [vmem:[%s692 + $0xe0] sm:$0xff]
                  %723 = vst [vmem:[%s693 + $0x70] sm:$0xff] %v722
                  %v724 = vld [vmem:[%s692 + $0xf0] sm:$0xff]
                  %725 = vst [vmem:[%s693 + $0x78] sm:$0xff] %v724
                $region136: #{_lambda_.1} parent=130 // loop_footer
                  %s691 = sadd.s32 1, %s687
                $region137: #{_lambda_.1} parent=130 // loop_footer_branch
                  %686 = sbr.rel target = $region133
                $region138: #{_lambda_.1} parent=130 // loop_exit
                  _
              $region131: #{_lambda_.1} parent=115 // pred_fallthru
                _
              // Predicated region
              $region139: #{_lambda_.1} parent=115 // pred_check
                _
              $region140: #{_lambda_.1} parent=115 // pred_check_branch
                %727 = sbr.rel target = $region142
              $region141: #{_lambda_.1} parent=115 // pred_region
                _
              $region142: #{_lambda_.1} parent=115 // pred_fallthru
                _
            $region116: #{_lambda_.1} parent=111 // pred_fallthru
              _
            // Predicated region
            $region117: #{_lambda_.1} parent=111 // pred_check
              _
            $region118: #{_lambda_.1} parent=111 // pred_check_branch
              %642 = sbr.rel target = $region120
            $region119: #{_lambda_.1} parent=111 // pred_region
              loop: start=0, step=1, limit=1
              $region121: #{_lambda_.1} parent=119 // loop_pre_header
                _
              $region122: #{_lambda_.1} parent=119 // loop_header
                %s645 = sphi 0, %s649
                %p646 = scmp.ge.s32.totalorder %s645, 1
                %s650 = sphi %s636, %s636
                %s651 = sphi %s634, %s634
              $region123: #{_lambda_.1} parent=119 // loop_header_branch
                %648 = sbr.rel (%p646) target = $region127
              $region124: #{_lambda_.1} parent=119 // loop_body
                %v652 = vld [vmem:[%s650] sm:$0xff]
                %653 = vst [vmem:[%s651] sm:$0xff] %v652
                %v654 = vld [vmem:[%s650 + $0x10] sm:$0xff]
                %655 = vst [vmem:[%s651 + $0x8] sm:$0xff] %v654
                %v656 = vld [vmem:[%s650 + $0x20] sm:$0xff]
                %657 = vst [vmem:[%s651 + $0x10] sm:$0xff] %v656
                %v658 = vld [vmem:[%s650 + $0x30] sm:$0xff]
                %659 = vst [vmem:[%s651 + $0x18] sm:$0xff] %v658
                %v660 = vld [vmem:[%s650 + $0x40] sm:$0xff]
                %661 = vst [vmem:[%s651 + $0x20] sm:$0xff] %v660
                %v662 = vld [vmem:[%s650 + $0x50] sm:$0xff]
                %663 = vst [vmem:[%s651 + $0x28] sm:$0xff] %v662
                %v664 = vld [vmem:[%s650 + $0x60] sm:$0xff]
                %665 = vst [vmem:[%s651 + $0x30] sm:$0xff] %v664
                %v666 = vld [vmem:[%s650 + $0x70] sm:$0xff]
                %667 = vst [vmem:[%s651 + $0x38] sm:$0xff] %v666
                %v668 = vld [vmem:[%s650 + $0x80] sm:$0xff]
                %669 = vst [vmem:[%s651 + $0x40] sm:$0xff] %v668
                %v670 = vld [vmem:[%s650 + $0x90] sm:$0xff]
                %671 = vst [vmem:[%s651 + $0x48] sm:$0xff] %v670
                %v672 = vld [vmem:[%s650 + $0xa0] sm:$0xff]
                %673 = vst [vmem:[%s651 + $0x50] sm:$0xff] %v672
                %v674 = vld [vmem:[%s650 + $0xb0] sm:$0xff]
                %675 = vst [vmem:[%s651 + $0x58] sm:$0xff] %v674
                %v676 = vld [vmem:[%s650 + $0xc0] sm:$0xff]
                %677 = vst [vmem:[%s651 + $0x60] sm:$0xff] %v676
                %v678 = vld [vmem:[%s650 + $0xd0] sm:$0xff]
                %679 = vst [vmem:[%s651 + $0x68] sm:$0xff] %v678
                %v680 = vld [vmem:[%s650 + $0xe0] sm:$0xff]
                %681 = vst [vmem:[%s651 + $0x70] sm:$0xff] %v680
                %v682 = vld [vmem:[%s650 + $0xf0] sm:$0xff]
                %683 = vst [vmem:[%s651 + $0x78] sm:$0xff] %v682
              $region125: #{_lambda_.1} parent=119 // loop_footer
                %s649 = sadd.s32 1, %s645
              $region126: #{_lambda_.1} parent=119 // loop_footer_branch
                %644 = sbr.rel target = $region122
              $region127: #{_lambda_.1} parent=119 // loop_exit
                _
            $region120: #{_lambda_.1} parent=111 // pred_fallthru
              _
          $region112: #{_lambda_.1} parent=107 // pred_fallthru
            _
          %728 = vnop
        $region108: #{_lambda_.1} parent=103 // pred_fallthru
          _
      $region104: #{_lambda_.1} parent=5 // pred_fallthru
        _
      %p729 = scmp.le.s32.totalorder 1, %s29
      %p730 = scmp.lt.s32.totalorder %s29, 3
      %p731 = pnand %p729, %p730
      %p732 = pneg %p731
      // Predicated region
      $region143: #{_lambda_.1} parent=5 // pred_check
        _
      $region144: #{_lambda_.1} parent=5 // pred_check_branch
        %734 = sbr.rel (%p731) target = $region146
      $region145: #{_lambda_.1} parent=5 // pred_region
        %s735 = ssub.s32 %s29, 1
        %s736 = sand.u32 %s42, 1
        %s737 = sand.u32 %s42, 1
        %s738 = smul.addr %s737, 128
        %s739 = scalar_lea.vmem [#allocation2], %s738
        // Predicated region
        $region147: #{_lambda_.1} parent=145 // pred_check
          %p740 = pneg %p55
        $region148: #{_lambda_.1} parent=145 // pred_check_branch
          %742 = sbr.rel (%p740) target = $region150
        $region149: #{_lambda_.1} parent=145 // pred_region
          _
        $region150: #{_lambda_.1} parent=145 // pred_fallthru
          _
        %s743 = sand.u32 %s42, 1
        %s744 = sand.u32 %s42, 1
        %s745 = smul.addr %s744, 128
        %s746 = scalar_lea.vmem [#allocation2], %s745
        %p747 = pneg %p55
        %p748 = pneg %p52
        %p749 = pneg %p76
        %p750 = pneg %p73
        %p751 = pneg %p97
        %p752 = pneg %p94
        %p753 = pneg %p118
        %p754 = pneg %p115
        %p755 = pneg %p139
        %p756 = pneg %p136
        %p757 = pneg %p160
        %p758 = pneg %p157
        %p759 = pneg %p181
        %p760 = pneg %p178
        %p761 = pneg %p202
        %p762 = pneg %p199
        %p763 = pneg %p223
        %p764 = pneg %p220
        %p765 = pneg %p244
        %p766 = pneg %p241
        %p767 = pneg %p265
        %p768 = pneg %p262
        %p769 = pneg %p286
        %p770 = pneg %p283
        %p771 = pneg %p307
        %p772 = pneg %p304
        %p773 = pneg %p328
        %p774 = pneg %p325
        %p775 = pneg %p349
        %p776 = pneg %p346
        %p777 = pneg %p370
        %p778 = pneg %p367
        %p779 = pneg %p391
        %p780 = pneg %p388
        %p781 = pneg %p412
        %p782 = pneg %p409
        %p783 = pneg %p433
        %p784 = pneg %p430
        %p785 = pneg %p454
        %p786 = pneg %p451
        %p787 = pneg %p475
        %p788 = pneg %p472
        %p789 = pneg %p496
        %p790 = pneg %p493
        %p791 = pneg %p517
        %p792 = pneg %p514
        %p793 = pneg %p543
        %p794 = pneg %p540
        %p795 = scmp.lt.s32.totalorder %s34, 1
        %s796 = scalar_select %p795, %s34, 1
        %s797 = smul.addr %s796, 8
        %s798 = scalar_lea.vmem %s23, %s797
        %p799 = scmp.lt.s32.totalorder %s34, 1
        %s800 = scalar_select %p799, %s34, 1
        %s801 = smul.addr %s800, 8
        %s802 = scalar_lea.vmem %s23, %s801
        %v804 = vld [vmem:[%s739] sm:$0xff]
        %v805 = vld [vmem:[%s739 + $0x8] sm:$0xff]
        %v806 = vld [vmem:[%s739 + $0x10] sm:$0xff]
        %v807 = vld [vmem:[%s739 + $0x18] sm:$0xff]
        %v808 = vld [vmem:[%s739 + $0x20] sm:$0xff]
        %v809 = vld [vmem:[%s739 + $0x28] sm:$0xff]
        %v810 = vld [vmem:[%s739 + $0x30] sm:$0xff]
        %v811 = vld [vmem:[%s739 + $0x38] sm:$0xff]
        %v812 = vld [vmem:[%s739 + $0x40] sm:$0xff]
        %v813 = vld [vmem:[%s739 + $0x48] sm:$0xff]
        %v814 = vld [vmem:[%s739 + $0x50] sm:$0xff]
        %v815 = vld [vmem:[%s739 + $0x58] sm:$0xff]
        %v816 = vld [vmem:[%s739 + $0x60] sm:$0xff]
        %v817 = vld [vmem:[%s739 + $0x68] sm:$0xff]
        %v818 = vld [vmem:[%s739 + $0x70] sm:$0xff]
        %v819 = vld [vmem:[%s739 + $0x78] sm:$0xff]
        %v820 = vpack.c.bf16 %v804, %v804
        %v821 = vpack.c.bf16 %v805, %v805
        %v822 = vpack.c.bf16 %v806, %v806
        %v823 = vpack.c.bf16 %v807, %v807
        %v824 = vpack.c.bf16 %v808, %v808
        %v825 = vpack.c.bf16 %v809, %v809
        %v826 = vpack.c.bf16 %v810, %v810
        %v827 = vpack.c.bf16 %v811, %v811
        %v828 = vpack.c.bf16 %v812, %v812
        %v829 = vpack.c.bf16 %v813, %v813
        %v830 = vpack.c.bf16 %v814, %v814
        %v831 = vpack.c.bf16 %v815, %v815
        %v832 = vpack.c.bf16 %v816, %v816
        %v833 = vpack.c.bf16 %v817, %v817
        %v834 = vpack.c.bf16 %v818, %v818
        %v835 = vpack.c.bf16 %v819, %v819
        %v836 = vld [vmem:[%s1] sm:$0x1]
        %s837 = scalar_lea.vmem %s1, 1
        %v838 = vld [vmem:[%s837] sm:$0x1]
        %v855 = vunpack.c.l.b16 %v820
        %v856 = vunpack.c.l.b16 %v821
        %v857 = vunpack.c.l.b16 %v822
        %v858 = vunpack.c.l.b16 %v823
        %v859 = vunpack.c.l.b16 %v824
        %v860 = vunpack.c.l.b16 %v825
        %v861 = vunpack.c.l.b16 %v826
        %v862 = vunpack.c.l.b16 %v827
        %v863 = vunpack.c.l.b16 %v828
        %v864 = vunpack.c.l.b16 %v829
        %v865 = vunpack.c.l.b16 %v830
        %v866 = vunpack.c.l.b16 %v831
        %v867 = vunpack.c.l.b16 %v832
        %v868 = vunpack.c.l.b16 %v833
        %v869 = vunpack.c.l.b16 %v834
        %v870 = vunpack.c.l.b16 %v835
        %v871 = vpack.c.b16 %v856, %v855
        %v872 = vpack.c.b16 %v858, %v857
        %v873 = vpack.c.b16 %v860, %v859
        %v874 = vpack.c.b16 %v862, %v861
        %v875 = vpack.c.b16 %v864, %v863
        %v876 = vpack.c.b16 %v866, %v865
        %v877 = vpack.c.b16 %v868, %v867
        %v878 = vpack.c.b16 %v870, %v869
        %vm879 = vcmask 15360
        %v881 = vsel %vm879, %v871, 0
        %v884 = vsel %vm879, %v872, 0
        %v887 = vsel %vm879, %v873, 0
        %v890 = vsel %vm879, %v874, 0
        %v893 = vsel %vm879, %v875, 0
        %v896 = vsel %vm879, %v876, 0
        %v899 = vsel %vm879, %v877, 0
        %v902 = vsel %vm879, %v878, 0
        %vm904 = vcmask 1040384
        %v906 = vsel %vm904, %v838, 0
        %908 = vmatprep.subr.bf16.mxu0 0
        %909 = vmatpush1.bf16.msra.mxu0 %v906
        %910 = vmatprep.subr.bf16.mxu0 0
        %911 = vmatpush1.bf16.msra.mxu0 0
        %912 = vmatprep.subr.bf16.mxu0 0
        %913 = vmatpush1.bf16.msra.mxu0 0
        %914 = vmatprep.subr.bf16.mxu0 0
        %915 = vmatpush1.bf16.msra.mxu0 0
        %916 = vmatprep.subr.bf16.mxu0 0
        %917 = vmatpush1.bf16.msra.mxu0 0
        %918 = vmatprep.subr.bf16.mxu0 0
        %919 = vmatpush1.bf16.msra.mxu0 0
        %920 = vmatprep.subr.bf16.mxu0 0
        %921 = vmatpush1.bf16.msra.mxu0 0
        %922 = vmatprep.subr.bf16.mxu0 0
        %923 = vmatpush1.bf16.msra.mxu0 0
        %924 = vmatprep.subr.bf16.mxu0 0
        %925 = vmatpush1.bf16.msra.mxu0 0
        %926 = vmatprep.subr.bf16.mxu0 0
        %927 = vmatpush1.bf16.msra.mxu0 0
        %928 = vmatprep.subr.bf16.mxu0 0
        %929 = vmatpush1.bf16.msra.mxu0 0
        %930 = vmatprep.subr.bf16.mxu0 0
        %931 = vmatpush1.bf16.msra.mxu0 0
        %932 = vmatprep.subr.bf16.mxu0 0
        %933 = vmatpush1.bf16.msra.mxu0 0
        %934 = vmatprep.subr.bf16.mxu0 0
        %935 = vmatpush1.bf16.msra.mxu0 0
        %936 = vmatprep.subr.bf16.mxu0 0
        %937 = vmatpush1.bf16.msra.mxu0 0
        %938 = vmatprep.subr.bf16.mxu0 0
        %939 = vmatpush1.bf16.msra.mxu0 0
        %940 = vmatprep.mubr.bf16.mxu0 0
        %941 = vmatmul.mubr.bf16.gmra.mrb[0].mxu0 %v881
        %v942 = vpop.f32.mrb[0].mxu0
        %v943 = vadd.f32 0.0, %v942
        %v944 = vpop.f32.mrb[0].mxu0
        %v945 = vpop.f32.mrb[0].mxu0
        %v946 = vadd.f32 0.0, %v945
        %v947 = vpop.f32.mrb[0].mxu0
        %948 = vmatprep.mubr.bf16.mxu0 0
        %949 = vmatmul.mubr.bf16.gmra.mrb[0].mxu0 %v884
        %v950 = vpop.f32.mrb[0].mxu0
        %v951 = vadd.f32 0.0, %v950
        %v952 = vpop.f32.mrb[0].mxu0
        %v953 = vpop.f32.mrb[0].mxu0
        %v954 = vadd.f32 0.0, %v953
        %v955 = vpop.f32.mrb[0].mxu0
        %956 = vmatprep.mubr.bf16.mxu0 0
        %957 = vmatmul.mubr.bf16.gmra.mrb[0].mxu0 %v887
        %v958 = vpop.f32.mrb[0].mxu0
        %v959 = vadd.f32 0.0, %v958
        %v960 = vpop.f32.mrb[0].mxu0
        %v961 = vpop.f32.mrb[0].mxu0
        %v962 = vadd.f32 0.0, %v961
        %v963 = vpop.f32.mrb[0].mxu0
        %964 = vmatprep.mubr.bf16.mxu0 0
        %965 = vmatmul.mubr.bf16.gmra.mrb[0].mxu0 %v890
        %v966 = vpop.f32.mrb[0].mxu0
        %v967 = vadd.f32 0.0, %v966
        %v968 = vpop.f32.mrb[0].mxu0
        %v969 = vpop.f32.mrb[0].mxu0
        %v970 = vadd.f32 0.0, %v969
        %v971 = vpop.f32.mrb[0].mxu0
        %972 = vmatprep.mubr.bf16.mxu0 0
        %973 = vmatmul.mubr.bf16.gmra.mrb[0].mxu0 %v893
        %v974 = vpop.f32.mrb[0].mxu0
        %v975 = vadd.f32 0.0, %v974
        %v976 = vpop.f32.mrb[0].mxu0
        %v977 = vpop.f32.mrb[0].mxu0
        %v978 = vadd.f32 0.0, %v977
        %v979 = vpop.f32.mrb[0].mxu0
        %980 = vmatprep.mubr.bf16.mxu0 0
        %981 = vmatmul.mubr.bf16.gmra.mrb[0].mxu0 %v896
        %v982 = vpop.f32.mrb[0].mxu0
        %v983 = vadd.f32 0.0, %v982
        %v984 = vpop.f32.mrb[0].mxu0
        %v985 = vpop.f32.mrb[0].mxu0
        %v986 = vadd.f32 0.0, %v985
        %v987 = vpop.f32.mrb[0].mxu0
        %988 = vmatprep.mubr.bf16.mxu0 0
        %989 = vmatmul.mubr.bf16.gmra.mrb[0].mxu0 %v899
        %v990 = vpop.f32.mrb[0].mxu0
        %v991 = vadd.f32 0.0, %v990
        %v992 = vpop.f32.mrb[0].mxu0
        %v993 = vpop.f32.mrb[0].mxu0
        %v994 = vadd.f32 0.0, %v993
        %v995 = vpop.f32.mrb[0].mxu0
        %996 = vmatprep.mubr.bf16.mxu0 0
        %997 = vmatmul.mubr.bf16.gmra.mrb[0].mxu0 %v902
        %v998 = vpop.f32.mrb[0].mxu0
        %v999 = vadd.f32 0.0, %v998
        %v1000 = vpop.f32.mrb[0].mxu0
        %v1001 = vpop.f32.mrb[0].mxu0
        %v1002 = vadd.f32 0.0, %v1001
        %v1003 = vpop.f32.mrb[0].mxu0
        %1004 = vdwg.mxu0
        %v1006 = vunpack.c.l.b16 0
        %v1007 = vpack.c.b16 %v855, %v1006
        %v1008 = vpack.c.b16 %v857, %v856
        %v1009 = vpack.c.b16 %v859, %v858
        %v1010 = vpack.c.b16 %v861, %v860
        %v1011 = vpack.c.b16 %v863, %v862
        %v1012 = vpack.c.b16 %v865, %v864
        %v1013 = vpack.c.b16 %v867, %v866
        %v1014 = vpack.c.b16 %v869, %v868
        %v1016 = vsel %vm879, %v1007, 0
        %v1019 = vsel %vm879, %v1008, 0
        %v1022 = vsel %vm879, %v1009, 0
        %v1025 = vsel %vm879, %v1010, 0
        %v1028 = vsel %vm879, %v1011, 0
        %v1031 = vsel %vm879, %v1012, 0
        %v1034 = vsel %vm879, %v1013, 0
        %v1037 = vsel %vm879, %v1014, 0
        %v1040 = vsel %vm904, %v836, 0
        %1042 = vmatprep.subr.bf16.mxu0 0
        %1043 = vmatpush1.bf16.msra.mxu0 %v1040
        %1044 = vmatprep.subr.bf16.mxu0 0
        %1045 = vmatpush1.bf16.msra.mxu0 0
        %1046 = vmatprep.subr.bf16.mxu0 0
        %1047 = vmatpush1.bf16.msra.mxu0 0
        %1048 = vmatprep.subr.bf16.mxu0 0
        %1049 = vmatpush1.bf16.msra.mxu0 0
        %1050 = vmatprep.subr.bf16.mxu0 0
        %1051 = vmatpush1.bf16.msra.mxu0 0
        %1052 = vmatprep.subr.bf16.mxu0 0
        %1053 = vmatpush1.bf16.msra.mxu0 0
        %1054 = vmatprep.subr.bf16.mxu0 0
        %1055 = vmatpush1.bf16.msra.mxu0 0
        %1056 = vmatprep.subr.bf16.mxu0 0
        %1057 = vmatpush1.bf16.msra.mxu0 0
        %1058 = vmatprep.subr.bf16.mxu0 0
        %1059 = vmatpush1.bf16.msra.mxu0 0
        %1060 = vmatprep.subr.bf16.mxu0 0
        %1061 = vmatpush1.bf16.msra.mxu0 0
        %1062 = vmatprep.subr.bf16.mxu0 0
        %1063 = vmatpush1.bf16.msra.mxu0 0
        %1064 = vmatprep.subr.bf16.mxu0 0
        %1065 = vmatpush1.bf16.msra.mxu0 0
        %1066 = vmatprep.subr.bf16.mxu0 0
        %1067 = vmatpush1.bf16.msra.mxu0 0
        %1068 = vmatprep.subr.bf16.mxu0 0
        %1069 = vmatpush1.bf16.msra.mxu0 0
        %1070 = vmatprep.subr.bf16.mxu0 0
        %1071 = vmatpush1.bf16.msra.mxu0 0
        %1072 = vmatprep.subr.bf16.mxu0 0
        %1073 = vmatpush1.bf16.msra.mxu0 0
        %1074 = vmatprep.mubr.bf16.mxu0 0
        %1075 = vmatmul.mubr.bf16.gmra.mrb[0].mxu0 %v1016
        %v1076 = vpop.f32.mrb[0].mxu0
        %v1077 = vadd.f32 %v943, %v1076
        %v1078 = vpop.f32.mrb[0].mxu0
        %v1079 = vpop.f32.mrb[0].mxu0
        %v1080 = vadd.f32 %v946, %v1079
        %v1081 = vpop.f32.mrb[0].mxu0
        %1082 = vmatprep.mubr.bf16.mxu0 0
        %1083 = vmatmul.mubr.bf16.gmra.mrb[0].mxu0 %v1019
        %v1084 = vpop.f32.mrb[0].mxu0
        %v1085 = vadd.f32 %v951, %v1084
        %v1086 = vpop.f32.mrb[0].mxu0
        %v1087 = vpop.f32.mrb[0].mxu0
        %v1088 = vadd.f32 %v954, %v1087
        %v1089 = vpop.f32.mrb[0].mxu0
        %1090 = vmatprep.mubr.bf16.mxu0 0
        %1091 = vmatmul.mubr.bf16.gmra.mrb[0].mxu0 %v1022
        %v1092 = vpop.f32.mrb[0].mxu0
        %v1093 = vadd.f32 %v959, %v1092
        %v1094 = vpop.f32.mrb[0].mxu0
        %v1095 = vpop.f32.mrb[0].mxu0
        %v1096 = vadd.f32 %v962, %v1095
        %v1097 = vpop.f32.mrb[0].mxu0
        %1098 = vmatprep.mubr.bf16.mxu0 0
        %1099 = vmatmul.mubr.bf16.gmra.mrb[0].mxu0 %v1025
        %v1100 = vpop.f32.mrb[0].mxu0
        %v1101 = vadd.f32 %v967, %v1100
        %v1102 = vpop.f32.mrb[0].mxu0
        %v1103 = vpop.f32.mrb[0].mxu0
        %v1104 = vadd.f32 %v970, %v1103
        %v1105 = vpop.f32.mrb[0].mxu0
        %1106 = vmatprep.mubr.bf16.mxu0 0
        %1107 = vmatmul.mubr.bf16.gmra.mrb[0].mxu0 %v1028
        %v1108 = vpop.f32.mrb[0].mxu0
        %v1109 = vadd.f32 %v975, %v1108
        %v1110 = vpop.f32.mrb[0].mxu0
        %v1111 = vpop.f32.mrb[0].mxu0
        %v1112 = vadd.f32 %v978, %v1111
        %v1113 = vpop.f32.mrb[0].mxu0
        %1114 = vmatprep.mubr.bf16.mxu0 0
        %1115 = vmatmul.mubr.bf16.gmra.mrb[0].mxu0 %v1031
        %v1116 = vpop.f32.mrb[0].mxu0
        %v1117 = vadd.f32 %v983, %v1116
        %v1118 = vpop.f32.mrb[0].mxu0
        %v1119 = vpop.f32.mrb[0].mxu0
        %v1120 = vadd.f32 %v986, %v1119
        %v1121 = vpop.f32.mrb[0].mxu0
        %1122 = vmatprep.mubr.bf16.mxu0 0
        %1123 = vmatmul.mubr.bf16.gmra.mrb[0].mxu0 %v1034
        %v1124 = vpop.f32.mrb[0].mxu0
        %v1125 = vadd.f32 %v991, %v1124
        %v1126 = vpop.f32.mrb[0].mxu0
        %v1127 = vpop.f32.mrb[0].mxu0
        %v1128 = vadd.f32 %v994, %v1127
        %v1129 = vpop.f32.mrb[0].mxu0
        %1130 = vmatprep.mubr.bf16.mxu0 0
        %1131 = vmatmul.mubr.bf16.gmra.mrb[0].mxu0 %v1037
        %v1132 = vpop.f32.mrb[0].mxu0
        %v1133 = vadd.f32 %v999, %v1132
        %v1134 = vpop.f32.mrb[0].mxu0
        %v1135 = vpop.f32.mrb[0].mxu0
        %v1136 = vadd.f32 %v1002, %v1135
        %v1137 = vpop.f32.mrb[0].mxu0
        %1138 = vdwg.mxu0
        %s1139 = scalar_lea.vmem %s1, 2
        %v1140 = vld [vmem:[%s1139] sm:$0x1]
        %v1141 = vpack.c.b16 %v1006, %v870
        %v1143 = vsel %vm879, %v1141, 0
        %v1146 = vsel %vm904, %v1140, 0
        %1148 = vmatprep.subr.bf16.mxu0 0
        %1149 = vmatpush1.bf16.msra.mxu0 %v1146
        %1150 = vmatprep.subr.bf16.mxu0 0
        %1151 = vmatpush1.bf16.msra.mxu0 0
        %1152 = vmatprep.subr.bf16.mxu0 0
        %1153 = vmatpush1.bf16.msra.mxu0 0
        %1154 = vmatprep.subr.bf16.mxu0 0
        %1155 = vmatpush1.bf16.msra.mxu0 0
        %1156 = vmatprep.subr.bf16.mxu0 0
        %1157 = vmatpush1.bf16.msra.mxu0 0
        %1158 = vmatprep.subr.bf16.mxu0 0
        %1159 = vmatpush1.bf16.msra.mxu0 0
        %1160 = vmatprep.subr.bf16.mxu0 0
        %1161 = vmatpush1.bf16.msra.mxu0 0
        %1162 = vmatprep.subr.bf16.mxu0 0
        %1163 = vmatpush1.bf16.msra.mxu0 0
        %1164 = vmatprep.subr.bf16.mxu0 0
        %1165 = vmatpush1.bf16.msra.mxu0 0
        %1166 = vmatprep.subr.bf16.mxu0 0
        %1167 = vmatpush1.bf16.msra.mxu0 0
        %1168 = vmatprep.subr.bf16.mxu0 0
        %1169 = vmatpush1.bf16.msra.mxu0 0
        %1170 = vmatprep.subr.bf16.mxu0 0
        %1171 = vmatpush1.bf16.msra.mxu0 0
        %1172 = vmatprep.subr.bf16.mxu0 0
        %1173 = vmatpush1.bf16.msra.mxu0 0
        %1174 = vmatprep.subr.bf16.mxu0 0
        %1175 = vmatpush1.bf16.msra.mxu0 0
        %1176 = vmatprep.subr.bf16.mxu0 0
        %1177 = vmatpush1.bf16.msra.mxu0 0
        %1178 = vmatprep.subr.bf16.mxu0 0
        %1179 = vmatpush1.bf16.msra.mxu0 0
        %1180 = vmatprep.mubr.bf16.mxu0 0
        %1181 = vmatmul.mubr.bf16.gmra.mrb[0].mxu0 %v1019
        %v1182 = vpop.f32.mrb[0].mxu0
        %v1183 = vadd.f32 0.0, %v1182
        %v1184 = vpop.f32.mrb[0].mxu0
        %v1185 = vpop.f32.mrb[0].mxu0
        %v1186 = vadd.f32 0.0, %v1185
        %v1187 = vpop.f32.mrb[0].mxu0
        %1188 = vmatprep.mubr.bf16.mxu0 0
        %1189 = vmatmul.mubr.bf16.gmra.mrb[0].mxu0 %v1022
        %v1190 = vpop.f32.mrb[0].mxu0
        %v1191 = vadd.f32 0.0, %v1190
        %v1192 = vpop.f32.mrb[0].mxu0
        %v1193 = vpop.f32.mrb[0].mxu0
        %v1194 = vadd.f32 0.0, %v1193
        %v1195 = vpop.f32.mrb[0].mxu0
        %1196 = vmatprep.mubr.bf16.mxu0 0
        %1197 = vmatmul.mubr.bf16.gmra.mrb[0].mxu0 %v1025
        %v1198 = vpop.f32.mrb[0].mxu0
        %v1199 = vadd.f32 0.0, %v1198
        %v1200 = vpop.f32.mrb[0].mxu0
        %v1201 = vpop.f32.mrb[0].mxu0
        %v1202 = vadd.f32 0.0, %v1201
        %v1203 = vpop.f32.mrb[0].mxu0
        %1204 = vmatprep.mubr.bf16.mxu0 0
        %1205 = vmatmul.mubr.bf16.gmra.mrb[0].mxu0 %v1028
        %v1206 = vpop.f32.mrb[0].mxu0
        %v1207 = vadd.f32 0.0, %v1206
        %v1208 = vpop.f32.mrb[0].mxu0
        %v1209 = vpop.f32.mrb[0].mxu0
        %v1210 = vadd.f32 0.0, %v1209
        %v1211 = vpop.f32.mrb[0].mxu0
        %1212 = vmatprep.mubr.bf16.mxu0 0
        %1213 = vmatmul.mubr.bf16.gmra.mrb[0].mxu0 %v1031
        %v1214 = vpop.f32.mrb[0].mxu0
        %v1215 = vadd.f32 0.0, %v1214
        %v1216 = vpop.f32.mrb[0].mxu0
        %v1217 = vpop.f32.mrb[0].mxu0
        %v1218 = vadd.f32 0.0, %v1217
        %v1219 = vpop.f32.mrb[0].mxu0
        %1220 = vmatprep.mubr.bf16.mxu0 0
        %1221 = vmatmul.mubr.bf16.gmra.mrb[0].mxu0 %v1034
        %v1222 = vpop.f32.mrb[0].mxu0
        %v1223 = vadd.f32 0.0, %v1222
        %v1224 = vpop.f32.mrb[0].mxu0
        %v1225 = vpop.f32.mrb[0].mxu0
        %v1226 = vadd.f32 0.0, %v1225
        %v1227 = vpop.f32.mrb[0].mxu0
        %1228 = vmatprep.mubr.bf16.mxu0 0
        %1229 = vmatmul.mubr.bf16.gmra.mrb[0].mxu0 %v1037
        %v1230 = vpop.f32.mrb[0].mxu0
        %v1231 = vadd.f32 0.0, %v1230
        %v1232 = vpop.f32.mrb[0].mxu0
        %v1233 = vpop.f32.mrb[0].mxu0
        %v1234 = vadd.f32 0.0, %v1233
        %v1235 = vpop.f32.mrb[0].mxu0
        %1236 = vmatprep.mubr.bf16.mxu0 0
        %1237 = vmatmul.mubr.bf16.gmra.mrb[0].mxu0 %v1143
        %v1238 = vpop.f32.mrb[0].mxu0
        %v1239 = vadd.f32 0.0, %v1238
        %v1240 = vpop.f32.mrb[0].mxu0
        %v1241 = vpop.f32.mrb[0].mxu0
        %v1242 = vadd.f32 0.0, %v1241
        %v1243 = vpop.f32.mrb[0].mxu0
        %1244 = vdwg.mxu0
        %v1245 = vadd.f32 %v1077, %v1183
        %v1246 = vadd.f32 %v1080, %v1186
        %v1247 = vadd.f32 %v1085, %v1191
        %v1248 = vadd.f32 %v1088, %v1194
        %v1249 = vadd.f32 %v1093, %v1199
        %v1250 = vadd.f32 %v1096, %v1202
        %v1251 = vadd.f32 %v1101, %v1207
        %v1252 = vadd.f32 %v1104, %v1210
        %v1253 = vadd.f32 %v1109, %v1215
        %v1254 = vadd.f32 %v1112, %v1218
        %v1255 = vadd.f32 %v1117, %v1223
        %v1256 = vadd.f32 %v1120, %v1226
        %v1257 = vadd.f32 %v1125, %v1231
        %v1258 = vadd.f32 %v1128, %v1234
        %v1259 = vadd.f32 %v1133, %v1239
        %v1260 = vadd.f32 %v1136, %v1242
        %v1261 = vld [vmem:[%s2] sm:$0x1]
        %v1263 = vlaneseq
        %v1264 = vshrl.u32 %v1263, 7
        %v1265 = vsub.s32 0, %v1264
        %v1266 = vrot.slane %v1261, %v1265
        %v1268 = vadd.f32 %v1245, %v1266
        %v1269 = vadd.f32 %v1246, %v1266
        %v1270 = vadd.f32 %v1247, %v1266
        %v1271 = vadd.f32 %v1248, %v1266
        %v1272 = vadd.f32 %v1249, %v1266
        %v1273 = vadd.f32 %v1250, %v1266
        %v1274 = vadd.f32 %v1251, %v1266
        %v1275 = vadd.f32 %v1252, %v1266
        %v1276 = vadd.f32 %v1253, %v1266
        %v1277 = vadd.f32 %v1254, %v1266
        %v1278 = vadd.f32 %v1255, %v1266
        %v1279 = vadd.f32 %v1256, %v1266
        %v1280 = vadd.f32 %v1257, %v1266
        %v1281 = vadd.f32 %v1258, %v1266
        %v1282 = vadd.f32 %v1259, %v1266
        %v1283 = vadd.f32 %v1260, %v1266
        %v1284 = vmax.f32 %v1268, 0.0
        %v1285 = vmax.f32 %v1269, 0.0
        %v1286 = vmax.f32 %v1270, 0.0
        %v1287 = vmax.f32 %v1271, 0.0
        %v1288 = vmax.f32 %v1272, 0.0
        %v1289 = vmax.f32 %v1273, 0.0
        %v1290 = vmax.f32 %v1274, 0.0
        %v1291 = vmax.f32 %v1275, 0.0
        %v1292 = vmax.f32 %v1276, 0.0
        %v1293 = vmax.f32 %v1277, 0.0
        %v1294 = vmax.f32 %v1278, 0.0
        %v1295 = vmax.f32 %v1279, 0.0
        %v1296 = vmax.f32 %v1280, 0.0
        %v1297 = vmax.f32 %v1281, 0.0
        %v1298 = vmax.f32 %v1282, 0.0
        %v1299 = vmax.f32 %v1283, 0.0
        %v1300 = vpack.c.bf16 %v1284, %v1284
        %v1301 = vpack.c.bf16 %v1285, %v1285
        %v1302 = vpack.c.bf16 %v1286, %v1286
        %v1303 = vpack.c.bf16 %v1287, %v1287
        %v1304 = vpack.c.bf16 %v1288, %v1288
        %v1305 = vpack.c.bf16 %v1289, %v1289
        %v1306 = vpack.c.bf16 %v1290, %v1290
        %v1307 = vpack.c.bf16 %v1291, %v1291
        %v1308 = vpack.c.bf16 %v1292, %v1292
        %v1309 = vpack.c.bf16 %v1293, %v1293
        %v1310 = vpack.c.bf16 %v1294, %v1294
        %v1311 = vpack.c.bf16 %v1295, %v1295
        %v1312 = vpack.c.bf16 %v1296, %v1296
        %v1313 = vpack.c.bf16 %v1297, %v1297
        %v1314 = vpack.c.bf16 %v1298, %v1298
        %v1315 = vpack.c.bf16 %v1299, %v1299
        %v1316 = vld [vmem:[%s3] sm:$0xf]
        %v1317 = vld [vmem:[%s3 + $0x4] sm:$0xf]
        %v1318 = vld [vmem:[%s3 + $0x8] sm:$0xf]
        %v1319 = vld [vmem:[%s3 + $0xc] sm:$0xf]
        %s1320 = scalar_lea.vmem %s3, 16
        %v1321 = vld [vmem:[%s1320] sm:$0xf]
        %v1322 = vld [vmem:[%s1320 + $0x4] sm:$0xf]
        %v1323 = vld [vmem:[%s1320 + $0x8] sm:$0xf]
        %v1324 = vld [vmem:[%s1320 + $0xc] sm:$0xf]
        %v1341 = vunpack.c.l.b16 %v1300
        %v1342 = vunpack.c.l.b16 %v1301
        %v1343 = vunpack.c.l.b16 %v1302
        %v1344 = vunpack.c.l.b16 %v1303
        %v1345 = vunpack.c.l.b16 %v1304
        %v1346 = vunpack.c.l.b16 %v1305
        %v1347 = vunpack.c.l.b16 %v1306
        %v1348 = vunpack.c.l.b16 %v1307
        %v1349 = vunpack.c.l.b16 %v1308
        %v1350 = vunpack.c.l.b16 %v1309
        %v1351 = vunpack.c.l.b16 %v1310
        %v1352 = vunpack.c.l.b16 %v1311
        %v1353 = vunpack.c.l.b16 %v1312
        %v1354 = vunpack.c.l.b16 %v1313
        %v1355 = vunpack.c.l.b16 %v1314
        %v1356 = vunpack.c.l.b16 %v1315
        %v1357 = vpack.c.b16 %v1342, %v1341
        %v1358 = vpack.c.b16 %v1344, %v1343
        %v1359 = vpack.c.b16 %v1346, %v1345
        %v1360 = vpack.c.b16 %v1348, %v1347
        %v1361 = vpack.c.b16 %v1350, %v1349
        %v1362 = vpack.c.b16 %v1352, %v1351
        %v1363 = vpack.c.b16 %v1354, %v1353
        %v1364 = vpack.c.b16 %v1356, %v1355
        %v1369 = vunpack.c.l.b16 %v1321
        %v1370 = vunpack.c.l.b16 %v1322
        %v1371 = vunpack.c.l.b16 %v1323
        %v1372 = vunpack.c.l.b16 %v1324
        %v1373 = vpack.c.b16 %v1370, %v1369
        %v1374 = vpack.c.b16 %v1372, %v1371
        %vm1377 = vcmask 261120
        %v1379 = vsel %vm1377, %v1357, 0
        %v1382 = vsel %vm1377, %v1358, 0
        %v1385 = vsel %vm1377, %v1359, 0
        %v1388 = vsel %vm1377, %v1360, 0
        %v1391 = vsel %vm1377, %v1361, 0
        %v1394 = vsel %vm1377, %v1362, 0
        %v1397 = vsel %vm1377, %v1363, 0
        %v1400 = vsel %vm1377, %v1364, 0
        %1402 = vmatprep.subr.bf16.mxu0 0
        %1403 = vmatpush1.bf16.msra.mxu0 %v1373
        %1404 = vmatprep.subr.bf16.mxu0 0
        %1405 = vmatpush1.bf16.msra.mxu0 %v1374
        %1406 = vmatprep.subr.bf16.mxu0 0
        %1407 = vmatpush1.bf16.msra.mxu0 0
        %1408 = vmatprep.subr.bf16.mxu0 0
        %1409 = vmatpush1.bf16.msra.mxu0 0
        %1410 = vmatprep.subr.bf16.mxu0 0
        %1411 = vmatpush1.bf16.msra.mxu0 0
        %1412 = vmatprep.subr.bf16.mxu0 0
        %1413 = vmatpush1.bf16.msra.mxu0 0
        %1414 = vmatprep.subr.bf16.mxu0 0
        %1415 = vmatpush1.bf16.msra.mxu0 0
        %1416 = vmatprep.subr.bf16.mxu0 0
        %1417 = vmatpush1.bf16.msra.mxu0 0
        %1418 = vmatprep.subr.bf16.mxu0 0
        %1419 = vmatpush1.bf16.msra.mxu0 0
        %1420 = vmatprep.subr.bf16.mxu0 0
        %1421 = vmatpush1.bf16.msra.mxu0 0
        %1422 = vmatprep.subr.bf16.mxu0 0
        %1423 = vmatpush1.bf16.msra.mxu0 0
        %1424 = vmatprep.subr.bf16.mxu0 0
        %1425 = vmatpush1.bf16.msra.mxu0 0
        %1426 = vmatprep.subr.bf16.mxu0 0
        %1427 = vmatpush1.bf16.msra.mxu0 0
        %1428 = vmatprep.subr.bf16.mxu0 0
        %1429 = vmatpush1.bf16.msra.mxu0 0
        %1430 = vmatprep.subr.bf16.mxu0 0
        %1431 = vmatpush1.bf16.msra.mxu0 0
        %1432 = vmatprep.subr.bf16.mxu0 0
        %1433 = vmatpush1.bf16.msra.mxu0 0
        %1434 = vmatprep.mubr.bf16.mxu0 0
        %1435 = vmatmul.mubr.bf16.gmra.mrb[0].mxu0 %v1379
        %v1436 = vpop.f32.mrb[0].mxu0
        %v1437 = vadd.f32 0.0, %v1436
        %v1438 = vpop.f32.mrb[0].mxu0
        %v1439 = vpop.f32.mrb[0].mxu0
        %v1440 = vadd.f32 0.0, %v1439
        %v1441 = vpop.f32.mrb[0].mxu0
        %1442 = vmatprep.mubr.bf16.mxu0 0
        %1443 = vmatmul.mubr.bf16.gmra.mrb[0].mxu0 %v1382
        %v1444 = vpop.f32.mrb[0].mxu0
        %v1445 = vadd.f32 0.0, %v1444
        %v1446 = vpop.f32.mrb[0].mxu0
        %v1447 = vpop.f32.mrb[0].mxu0
        %v1448 = vadd.f32 0.0, %v1447
        %v1449 = vpop.f32.mrb[0].mxu0
        %1450 = vmatprep.mubr.bf16.mxu0 0
        %1451 = vmatmul.mubr.bf16.gmra.mrb[0].mxu0 %v1385
        %v1452 = vpop.f32.mrb[0].mxu0
        %v1453 = vadd.f32 0.0, %v1452
        %v1454 = vpop.f32.mrb[0].mxu0
        %v1455 = vpop.f32.mrb[0].mxu0
        %v1456 = vadd.f32 0.0, %v1455
        %v1457 = vpop.f32.mrb[0].mxu0
        %1458 = vmatprep.mubr.bf16.mxu0 0
        %1459 = vmatmul.mubr.bf16.gmra.mrb[0].mxu0 %v1388
        %v1460 = vpop.f32.mrb[0].mxu0
        %v1461 = vadd.f32 0.0, %v1460
        %v1462 = vpop.f32.mrb[0].mxu0
        %v1463 = vpop.f32.mrb[0].mxu0
        %v1464 = vadd.f32 0.0, %v1463
        %v1465 = vpop.f32.mrb[0].mxu0
        %1466 = vmatprep.mubr.bf16.mxu0 0
        %1467 = vmatmul.mubr.bf16.gmra.mrb[0].mxu0 %v1391
        %v1468 = vpop.f32.mrb[0].mxu0
        %v1469 = vadd.f32 0.0, %v1468
        %v1470 = vpop.f32.mrb[0].mxu0
        %v1471 = vpop.f32.mrb[0].mxu0
        %v1472 = vadd.f32 0.0, %v1471
        %v1473 = vpop.f32.mrb[0].mxu0
        %1474 = vmatprep.mubr.bf16.mxu0 0
        %1475 = vmatmul.mubr.bf16.gmra.mrb[0].mxu0 %v1394
        %v1476 = vpop.f32.mrb[0].mxu0
        %v1477 = vadd.f32 0.0, %v1476
        %v1478 = vpop.f32.mrb[0].mxu0
        %v1479 = vpop.f32.mrb[0].mxu0
        %v1480 = vadd.f32 0.0, %v1479
        %v1481 = vpop.f32.mrb[0].mxu0
        %1482 = vmatprep.mubr.bf16.mxu0 0
        %1483 = vmatmul.mubr.bf16.gmra.mrb[0].mxu0 %v1397
        %v1484 = vpop.f32.mrb[0].mxu0
        %v1485 = vadd.f32 0.0, %v1484
        %v1486 = vpop.f32.mrb[0].mxu0
        %v1487 = vpop.f32.mrb[0].mxu0
        %v1488 = vadd.f32 0.0, %v1487
        %v1489 = vpop.f32.mrb[0].mxu0
        %1490 = vmatprep.mubr.bf16.mxu0 0
        %1491 = vmatmul.mubr.bf16.gmra.mrb[0].mxu0 %v1400
        %v1492 = vpop.f32.mrb[0].mxu0
        %v1493 = vadd.f32 0.0, %v1492
        %v1494 = vpop.f32.mrb[0].mxu0
        %v1495 = vpop.f32.mrb[0].mxu0
        %v1496 = vadd.f32 0.0, %v1495
        %v1497 = vpop.f32.mrb[0].mxu0
        %1498 = vdwg.mxu0
        %v1499 = vpack.c.b16 %v1341, %v1006
        %v1500 = vpack.c.b16 %v1343, %v1342
        %v1501 = vpack.c.b16 %v1345, %v1344
        %v1502 = vpack.c.b16 %v1347, %v1346
        %v1503 = vpack.c.b16 %v1349, %v1348
        %v1504 = vpack.c.b16 %v1351, %v1350
        %v1505 = vpack.c.b16 %v1353, %v1352
        %v1506 = vpack.c.b16 %v1355, %v1354
        %v1511 = vunpack.c.l.b16 %v1316
        %v1512 = vunpack.c.l.b16 %v1317
        %v1513 = vunpack.c.l.b16 %v1318
        %v1514 = vunpack.c.l.b16 %v1319
        %v1515 = vpack.c.b16 %v1512, %v1511
        %v1516 = vpack.c.b16 %v1514, %v1513
        %v1520 = vsel %vm1377, %v1499, 0
        %v1523 = vsel %vm1377, %v1500, 0
        %v1526 = vsel %vm1377, %v1501, 0
        %v1529 = vsel %vm1377, %v1502, 0
        %v1532 = vsel %vm1377, %v1503, 0
        %v1535 = vsel %vm1377, %v1504, 0
        %v1538 = vsel %vm1377, %v1505, 0
        %v1541 = vsel %vm1377, %v1506, 0
        %1543 = vmatprep.subr.bf16.mxu0 0
        %1544 = vmatpush1.bf16.msra.mxu0 %v1515
        %1545 = vmatprep.subr.bf16.mxu0 0
        %1546 = vmatpush1.bf16.msra.mxu0 %v1516
        %1547 = vmatprep.subr.bf16.mxu0 0
        %1548 = vmatpush1.bf16.msra.mxu0 0
        %1549 = vmatprep.subr.bf16.mxu0 0
        %1550 = vmatpush1.bf16.msra.mxu0 0
        %1551 = vmatprep.subr.bf16.mxu0 0
        %1552 = vmatpush1.bf16.msra.mxu0 0
        %1553 = vmatprep.subr.bf16.mxu0 0
        %1554 = vmatpush1.bf16.msra.mxu0 0
        %1555 = vmatprep.subr.bf16.mxu0 0
        %1556 = vmatpush1.bf16.msra.mxu0 0
        %1557 = vmatprep.subr.bf16.mxu0 0
        %1558 = vmatpush1.bf16.msra.mxu0 0
        %1559 = vmatprep.subr.bf16.mxu0 0
        %1560 = vmatpush1.bf16.msra.mxu0 0
        %1561 = vmatprep.subr.bf16.mxu0 0
        %1562 = vmatpush1.bf16.msra.mxu0 0
        %1563 = vmatprep.subr.bf16.mxu0 0
        %1564 = vmatpush1.bf16.msra.mxu0 0
        %1565 = vmatprep.subr.bf16.mxu0 0
        %1566 = vmatpush1.bf16.msra.mxu0 0
        %1567 = vmatprep.subr.bf16.mxu0 0
        %1568 = vmatpush1.bf16.msra.mxu0 0
        %1569 = vmatprep.subr.bf16.mxu0 0
        %1570 = vmatpush1.bf16.msra.mxu0 0
        %1571 = vmatprep.subr.bf16.mxu0 0
        %1572 = vmatpush1.bf16.msra.mxu0 0
        %1573 = vmatprep.subr.bf16.mxu0 0
        %1574 = vmatpush1.bf16.msra.mxu0 0
        %1575 = vmatprep.mubr.bf16.mxu0 0
        %1576 = vmatmul.mubr.bf16.gmra.mrb[0].mxu0 %v1520
        %v1577 = vpop.f32.mrb[0].mxu0
        %v1578 = vadd.f32 %v1437, %v1577
        %v1579 = vpop.f32.mrb[0].mxu0
        %v1580 = vpop.f32.mrb[0].mxu0
        %v1581 = vadd.f32 %v1440, %v1580
        %v1582 = vpop.f32.mrb[0].mxu0
        %1583 = vmatprep.mubr.bf16.mxu0 0
        %1584 = vmatmul.mubr.bf16.gmra.mrb[0].mxu0 %v1523
        %v1585 = vpop.f32.mrb[0].mxu0
        %v1586 = vadd.f32 %v1445, %v1585
        %v1587 = vpop.f32.mrb[0].mxu0
        %v1588 = vpop.f32.mrb[0].mxu0
        %v1589 = vadd.f32 %v1448, %v1588
        %v1590 = vpop.f32.mrb[0].mxu0
        %1591 = vmatprep.mubr.bf16.mxu0 0
        %1592 = vmatmul.mubr.bf16.gmra.mrb[0].mxu0 %v1526
        %v1593 = vpop.f32.mrb[0].mxu0
        %v1594 = vadd.f32 %v1453, %v1593
        %v1595 = vpop.f32.mrb[0].mxu0
        %v1596 = vpop.f32.mrb[0].mxu0
        %v1597 = vadd.f32 %v1456, %v1596
        %v1598 = vpop.f32.mrb[0].mxu0
        %1599 = vmatprep.mubr.bf16.mxu0 0
        %1600 = vmatmul.mubr.bf16.gmra.mrb[0].mxu0 %v1529
        %v1601 = vpop.f32.mrb[0].mxu0
        %v1602 = vadd.f32 %v1461, %v1601
        %v1603 = vpop.f32.mrb[0].mxu0
        %v1604 = vpop.f32.mrb[0].mxu0
        %v1605 = vadd.f32 %v1464, %v1604
        %v1606 = vpop.f32.mrb[0].mxu0
        %1607 = vmatprep.mubr.bf16.mxu0 0
        %1608 = vmatmul.mubr.bf16.gmra.mrb[0].mxu0 %v1532
        %v1609 = vpop.f32.mrb[0].mxu0
        %v1610 = vadd.f32 %v1469, %v1609
        %v1611 = vpop.f32.mrb[0].mxu0
        %v1612 = vpop.f32.mrb[0].mxu0
        %v1613 = vadd.f32 %v1472, %v1612
        %v1614 = vpop.f32.mrb[0].mxu0
        %1615 = vmatprep.mubr.bf16.mxu0 0
        %1616 = vmatmul.mubr.bf16.gmra.mrb[0].mxu0 %v1535
        %v1617 = vpop.f32.mrb[0].mxu0
        %v1618 = vadd.f32 %v1477, %v1617
        %v1619 = vpop.f32.mrb[0].mxu0
        %v1620 = vpop.f32.mrb[0].mxu0
        %v1621 = vadd.f32 %v1480, %v1620
        %v1622 = vpop.f32.mrb[0].mxu0
        %1623 = vmatprep.mubr.bf16.mxu0 0
        %1624 = vmatmul.mubr.bf16.gmra.mrb[0].mxu0 %v1538
        %v1625 = vpop.f32.mrb[0].mxu0
        %v1626 = vadd.f32 %v1485, %v1625
        %v1627 = vpop.f32.mrb[0].mxu0
        %v1628 = vpop.f32.mrb[0].mxu0
        %v1629 = vadd.f32 %v1488, %v1628
        %v1630 = vpop.f32.mrb[0].mxu0
        %1631 = vmatprep.mubr.bf16.mxu0 0
        %1632 = vmatmul.mubr.bf16.gmra.mrb[0].mxu0 %v1541
        %v1633 = vpop.f32.mrb[0].mxu0
        %v1634 = vadd.f32 %v1493, %v1633
        %v1635 = vpop.f32.mrb[0].mxu0
        %v1636 = vpop.f32.mrb[0].mxu0
        %v1637 = vadd.f32 %v1496, %v1636
        %v1638 = vpop.f32.mrb[0].mxu0
        %1639 = vdwg.mxu0
        %s1640 = scalar_lea.vmem %s3, 32
        %v1641 = vld [vmem:[%s1640] sm:$0xf]
        %v1642 = vld [vmem:[%s1640 + $0x4] sm:$0xf]
        %v1643 = vld [vmem:[%s1640 + $0x8] sm:$0xf]
        %v1644 = vld [vmem:[%s1640 + $0xc] sm:$0xf]
        %v1645 = vpack.c.b16 %v1006, %v1356
        %v1650 = vunpack.c.l.b16 %v1641
        %v1651 = vunpack.c.l.b16 %v1642
        %v1652 = vunpack.c.l.b16 %v1643
        %v1653 = vunpack.c.l.b16 %v1644
        %v1654 = vpack.c.b16 %v1651, %v1650
        %v1655 = vpack.c.b16 %v1653, %v1652
        %v1659 = vsel %vm1377, %v1645, 0
        %1661 = vmatprep.subr.bf16.mxu0 0
        %1662 = vmatpush1.bf16.msra.mxu0 %v1654
        %1663 = vmatprep.subr.bf16.mxu0 0
        %1664 = vmatpush1.bf16.msra.mxu0 %v1655
        %1665 = vmatprep.subr.bf16.mxu0 0
        %1666 = vmatpush1.bf16.msra.mxu0 0
        %1667 = vmatprep.subr.bf16.mxu0 0
        %1668 = vmatpush1.bf16.msra.mxu0 0
        %1669 = vmatprep.subr.bf16.mxu0 0
        %1670 = vmatpush1.bf16.msra.mxu0 0
        %1671 = vmatprep.subr.bf16.mxu0 0
        %1672 = vmatpush1.bf16.msra.mxu0 0
        %1673 = vmatprep.subr.bf16.mxu0 0
        %1674 = vmatpush1.bf16.msra.mxu0 0
        %1675 = vmatprep.subr.bf16.mxu0 0
        %1676 = vmatpush1.bf16.msra.mxu0 0
        %1677 = vmatprep.subr.bf16.mxu0 0
        %1678 = vmatpush1.bf16.msra.mxu0 0
        %1679 = vmatprep.subr.bf16.mxu0 0
        %1680 = vmatpush1.bf16.msra.mxu0 0
        %1681 = vmatprep.subr.bf16.mxu0 0
        %1682 = vmatpush1.bf16.msra.mxu0 0
        %1683 = vmatprep.subr.bf16.mxu0 0
        %1684 = vmatpush1.bf16.msra.mxu0 0
        %1685 = vmatprep.subr.bf16.mxu0 0
        %1686 = vmatpush1.bf16.msra.mxu0 0
        %1687 = vmatprep.subr.bf16.mxu0 0
        %1688 = vmatpush1.bf16.msra.mxu0 0
        %1689 = vmatprep.subr.bf16.mxu0 0
        %1690 = vmatpush1.bf16.msra.mxu0 0
        %1691 = vmatprep.subr.bf16.mxu0 0
        %1692 = vmatpush1.bf16.msra.mxu0 0
        %1693 = vmatprep.mubr.bf16.mxu0 0
        %1694 = vmatmul.mubr.bf16.gmra.mrb[0].mxu0 %v1523
        %v1695 = vpop.f32.mrb[0].mxu0
        %v1696 = vadd.f32 0.0, %v1695
        %v1697 = vpop.f32.mrb[0].mxu0
        %v1698 = vpop.f32.mrb[0].mxu0
        %v1699 = vadd.f32 0.0, %v1698
        %v1700 = vpop.f32.mrb[0].mxu0
        %1701 = vmatprep.mubr.bf16.mxu0 0
        %1702 = vmatmul.mubr.bf16.gmra.mrb[0].mxu0 %v1526
        %v1703 = vpop.f32.mrb[0].mxu0
        %v1704 = vadd.f32 0.0, %v1703
        %v1705 = vpop.f32.mrb[0].mxu0
        %v1706 = vpop.f32.mrb[0].mxu0
        %v1707 = vadd.f32 0.0, %v1706
        %v1708 = vpop.f32.mrb[0].mxu0
        %1709 = vmatprep.mubr.bf16.mxu0 0
        %1710 = vmatmul.mubr.bf16.gmra.mrb[0].mxu0 %v1529
        %v1711 = vpop.f32.mrb[0].mxu0
        %v1712 = vadd.f32 0.0, %v1711
        %v1713 = vpop.f32.mrb[0].mxu0
        %v1714 = vpop.f32.mrb[0].mxu0
        %v1715 = vadd.f32 0.0, %v1714
        %v1716 = vpop.f32.mrb[0].mxu0
        %1717 = vmatprep.mubr.bf16.mxu0 0
        %1718 = vmatmul.mubr.bf16.gmra.mrb[0].mxu0 %v1532
        %v1719 = vpop.f32.mrb[0].mxu0
        %v1720 = vadd.f32 0.0, %v1719
        %v1721 = vpop.f32.mrb[0].mxu0
        %v1722 = vpop.f32.mrb[0].mxu0
        %v1723 = vadd.f32 0.0, %v1722
        %v1724 = vpop.f32.mrb[0].mxu0
        %1725 = vmatprep.mubr.bf16.mxu0 0
        %1726 = vmatmul.mubr.bf16.gmra.mrb[0].mxu0 %v1535
        %v1727 = vpop.f32.mrb[0].mxu0
        %v1728 = vadd.f32 0.0, %v1727
        %v1729 = vpop.f32.mrb[0].mxu0
        %v1730 = vpop.f32.mrb[0].mxu0
        %v1731 = vadd.f32 0.0, %v1730
        %v1732 = vpop.f32.mrb[0].mxu0
        %1733 = vmatprep.mubr.bf16.mxu0 0
        %1734 = vmatmul.mubr.bf16.gmra.mrb[0].mxu0 %v1538
        %v1735 = vpop.f32.mrb[0].mxu0
        %v1736 = vadd.f32 0.0, %v1735
        %v1737 = vpop.f32.mrb[0].mxu0
        %v1738 = vpop.f32.mrb[0].mxu0
        %v1739 = vadd.f32 0.0, %v1738
        %v1740 = vpop.f32.mrb[0].mxu0
        %1741 = vmatprep.mubr.bf16.mxu0 0
        %1742 = vmatmul.mubr.bf16.gmra.mrb[0].mxu0 %v1541
        %v1743 = vpop.f32.mrb[0].mxu0
        %v1744 = vadd.f32 0.0, %v1743
        %v1745 = vpop.f32.mrb[0].mxu0
        %v1746 = vpop.f32.mrb[0].mxu0
        %v1747 = vadd.f32 0.0, %v1746
        %v1748 = vpop.f32.mrb[0].mxu0
        %1749 = vmatprep.mubr.bf16.mxu0 0
        %1750 = vmatmul.mubr.bf16.gmra.mrb[0].mxu0 %v1659
        %v1751 = vpop.f32.mrb[0].mxu0
        %v1752 = vadd.f32 0.0, %v1751
        %v1753 = vpop.f32.mrb[0].mxu0
        %v1754 = vpop.f32.mrb[0].mxu0
        %v1755 = vadd.f32 0.0, %v1754
        %v1756 = vpop.f32.mrb[0].mxu0
        %1757 = vdwg.mxu0
        %v1758 = vadd.f32 %v1578, %v1696
        %v1759 = vadd.f32 %v1581, %v1699
        %v1760 = vadd.f32 %v1586, %v1704
        %v1761 = vadd.f32 %v1589, %v1707
        %v1762 = vadd.f32 %v1594, %v1712
        %v1763 = vadd.f32 %v1597, %v1715
        %v1764 = vadd.f32 %v1602, %v1720
        %v1765 = vadd.f32 %v1605, %v1723
        %v1766 = vadd.f32 %v1610, %v1728
        %v1767 = vadd.f32 %v1613, %v1731
        %v1768 = vadd.f32 %v1618, %v1736
        %v1769 = vadd.f32 %v1621, %v1739
        %v1770 = vadd.f32 %v1626, %v1744
        %v1771 = vadd.f32 %v1629, %v1747
        %v1772 = vadd.f32 %v1634, %v1752
        %v1773 = vadd.f32 %v1637, %v1755
        %v1774 = vld [vmem:[%s4] sm:$0x1]
        %v1776 = vlaneseq
        %v1777 = vshrl.u32 %v1776, 7
        %v1778 = vsub.s32 0, %v1777
        %v1779 = vrot.slane %v1774, %v1778
        %v1781 = vadd.f32 %v1758, %v1779
        %v1782 = vadd.f32 %v1759, %v1779
        %v1783 = vadd.f32 %v1760, %v1779
        %v1784 = vadd.f32 %v1761, %v1779
        %v1785 = vadd.f32 %v1762, %v1779
        %v1786 = vadd.f32 %v1763, %v1779
        %v1787 = vadd.f32 %v1764, %v1779
        %v1788 = vadd.f32 %v1765, %v1779
        %v1789 = vadd.f32 %v1766, %v1779
        %v1790 = vadd.f32 %v1767, %v1779
        %v1791 = vadd.f32 %v1768, %v1779
        %v1792 = vadd.f32 %v1769, %v1779
        %v1793 = vadd.f32 %v1770, %v1779
        %v1794 = vadd.f32 %v1771, %v1779
        %v1795 = vadd.f32 %v1772, %v1779
        %v1796 = vadd.f32 %v1773, %v1779
        %v1797 = vmax.f32 %v1781, 0.0
        %v1798 = vmax.f32 %v1782, 0.0
        %v1799 = vmax.f32 %v1783, 0.0
        %v1800 = vmax.f32 %v1784, 0.0
        %v1801 = vmax.f32 %v1785, 0.0
        %v1802 = vmax.f32 %v1786, 0.0
        %v1803 = vmax.f32 %v1787, 0.0
        %v1804 = vmax.f32 %v1788, 0.0
        %v1805 = vmax.f32 %v1789, 0.0
        %v1806 = vmax.f32 %v1790, 0.0
        %v1807 = vmax.f32 %v1791, 0.0
        %v1808 = vmax.f32 %v1792, 0.0
        %v1809 = vmax.f32 %v1793, 0.0
        %v1810 = vmax.f32 %v1794, 0.0
        %v1811 = vmax.f32 %v1795, 0.0
        %v1812 = vmax.f32 %v1796, 0.0
        %v1813 = vmax.f32 %v1797, %v1798
        %v1814 = vmax.f32 %v1799, %v1800
        %v1815 = vmax.f32 %v1801, %v1802
        %v1816 = vmax.f32 %v1803, %v1804
        %v1817 = vmax.f32 %v1805, %v1806
        %v1818 = vmax.f32 %v1807, %v1808
        %v1819 = vmax.f32 %v1809, %v1810
        %v1820 = vmax.f32 %v1811, %v1812
        %v1821 = vpack.c.bf16 %v1813, %v1813
        %v1822 = vpack.c.bf16 %v1814, %v1814
        %v1823 = vpack.c.bf16 %v1815, %v1815
        %v1824 = vpack.c.bf16 %v1816, %v1816
        %v1825 = vpack.c.bf16 %v1817, %v1817
        %v1826 = vpack.c.bf16 %v1818, %v1818
        %v1827 = vpack.c.bf16 %v1819, %v1819
        %v1828 = vpack.c.bf16 %v1820, %v1820
        %v1829 = vld [vmem:[%s5] sm:$0xf]
        %v1830 = vld [vmem:[%s5 + $0x4] sm:$0xf]
        %v1831 = vld [vmem:[%s5 + $0x8] sm:$0xf]
        %v1832 = vld [vmem:[%s5 + $0xc] sm:$0xf]
        %s1833 = scalar_lea.vmem %s5, 16
        %v1834 = vld [vmem:[%s1833] sm:$0xf]
        %v1835 = vld [vmem:[%s1833 + $0x4] sm:$0xf]
        %v1836 = vld [vmem:[%s1833 + $0x8] sm:$0xf]
        %v1837 = vld [vmem:[%s1833 + $0xc] sm:$0xf]
        %v1845 = vunpack.c.l.b16 %v1821
        %v1846 = vunpack.c.l.b16 %v1822
        %v1847 = vunpack.c.l.b16 %v1823
        %v1848 = vunpack.c.l.b16 %v1824
        %v1849 = vunpack.c.l.b16 %v1825
        %v1850 = vunpack.c.l.b16 %v1826
        %v1851 = vunpack.c.l.b16 %v1827
        %v1852 = vpack.c.b16 %v1845, %v1006
        %v1853 = vpack.c.b16 %v1847, %v1846
        %v1854 = vpack.c.b16 %v1849, %v1848
        %v1855 = vpack.c.b16 %v1851, %v1850
        %v1860 = vunpack.c.l.b16 %v1834
        %v1861 = vunpack.c.l.b16 %v1835
        %v1862 = vunpack.c.l.b16 %v1836
        %v1863 = vunpack.c.l.b16 %v1837
        %v1864 = vpack.c.b16 %v1861, %v1860
        %v1865 = vpack.c.b16 %v1863, %v1862
        %v1869 = vsel %vm1377, %v1852, 0
        %v1872 = vsel %vm1377, %v1853, 0
        %v1875 = vsel %vm1377, %v1854, 0
        %v1878 = vsel %vm1377, %v1855, 0
        %1880 = vmatprep.subr.bf16.mxu0 0
        %1881 = vmatpush1.bf16.msra.mxu0 %v1864
        %1882 = vmatprep.subr.bf16.mxu0 0
        %1883 = vmatpush1.bf16.msra.mxu0 %v1865
        %1884 = vmatprep.subr.bf16.mxu0 0
        %1885 = vmatpush1.bf16.msra.mxu0 0
        %1886 = vmatprep.subr.bf16.mxu0 0
        %1887 = vmatpush1.bf16.msra.mxu0 0
        %1888 = vmatprep.subr.bf16.mxu0 0
        %1889 = vmatpush1.bf16.msra.mxu0 0
        %1890 = vmatprep.subr.bf16.mxu0 0
        %1891 = vmatpush1.bf16.msra.mxu0 0
        %1892 = vmatprep.subr.bf16.mxu0 0
        %1893 = vmatpush1.bf16.msra.mxu0 0
        %1894 = vmatprep.subr.bf16.mxu0 0
        %1895 = vmatpush1.bf16.msra.mxu0 0
        %1896 = vmatprep.subr.bf16.mxu0 0
        %1897 = vmatpush1.bf16.msra.mxu0 0
        %1898 = vmatprep.subr.bf16.mxu0 0
        %1899 = vmatpush1.bf16.msra.mxu0 0
        %1900 = vmatprep.subr.bf16.mxu0 0
        %1901 = vmatpush1.bf16.msra.mxu0 0
        %1902 = vmatprep.subr.bf16.mxu0 0
        %1903 = vmatpush1.bf16.msra.mxu0 0
        %1904 = vmatprep.subr.bf16.mxu0 0
        %1905 = vmatpush1.bf16.msra.mxu0 0
        %1906 = vmatprep.subr.bf16.mxu0 0
        %1907 = vmatpush1.bf16.msra.mxu0 0
        %1908 = vmatprep.subr.bf16.mxu0 0
        %1909 = vmatpush1.bf16.msra.mxu0 0
        %1910 = vmatprep.subr.bf16.mxu0 0
        %1911 = vmatpush1.bf16.msra.mxu0 0
        %1912 = vmatprep.mubr.bf16.mxu0 0
        %1913 = vmatmul.mubr.bf16.gmra.mrb[0].mxu0 %v1869
        %v1914 = vpop.f32.mrb[0].mxu0
        %v1915 = vadd.f32 0.0, %v1914
        %v1916 = vpop.f32.mrb[0].mxu0
        %v1917 = vpop.f32.mrb[0].mxu0
        %v1918 = vadd.f32 0.0, %v1917
        %v1919 = vpop.f32.mrb[0].mxu0
        %1920 = vmatprep.mubr.bf16.mxu0 0
        %1921 = vmatmul.mubr.bf16.gmra.mrb[0].mxu0 %v1872
        %v1922 = vpop.f32.mrb[0].mxu0
        %v1923 = vadd.f32 0.0, %v1922
        %v1924 = vpop.f32.mrb[0].mxu0
        %v1925 = vpop.f32.mrb[0].mxu0
        %v1926 = vadd.f32 0.0, %v1925
        %v1927 = vpop.f32.mrb[0].mxu0
        %1928 = vmatprep.mubr.bf16.mxu0 0
        %1929 = vmatmul.mubr.bf16.gmra.mrb[0].mxu0 %v1875
        %v1930 = vpop.f32.mrb[0].mxu0
        %v1931 = vadd.f32 0.0, %v1930
        %v1932 = vpop.f32.mrb[0].mxu0
        %v1933 = vpop.f32.mrb[0].mxu0
        %v1934 = vadd.f32 0.0, %v1933
        %v1935 = vpop.f32.mrb[0].mxu0
        %1936 = vmatprep.mubr.bf16.mxu0 0
        %1937 = vmatmul.mubr.bf16.gmra.mrb[0].mxu0 %v1878
        %v1938 = vpop.f32.mrb[0].mxu0
        %v1939 = vadd.f32 0.0, %v1938
        %v1940 = vpop.f32.mrb[0].mxu0
        %v1941 = vpop.f32.mrb[0].mxu0
        %v1942 = vadd.f32 0.0, %v1941
        %v1943 = vpop.f32.mrb[0].mxu0
        %1944 = vdwg.mxu0
        %v1945 = vpack.c.b16 %v1006, %v1006
        %v1946 = vpack.c.b16 %v1846, %v1845
        %v1947 = vpack.c.b16 %v1848, %v1847
        %v1948 = vpack.c.b16 %v1850, %v1849
        %v1953 = vunpack.c.l.b16 %v1829
        %v1954 = vunpack.c.l.b16 %v1830
        %v1955 = vunpack.c.l.b16 %v1831
        %v1956 = vunpack.c.l.b16 %v1832
        %v1957 = vpack.c.b16 %v1954, %v1953
        %v1958 = vpack.c.b16 %v1956, %v1955
        %v1962 = vsel %vm1377, %v1945, 0
        %v1965 = vsel %vm1377, %v1946, 0
        %v1968 = vsel %vm1377, %v1947, 0
        %v1971 = vsel %vm1377, %v1948, 0
        %1973 = vmatprep.subr.bf16.mxu0 0
        %1974 = vmatpush1.bf16.msra.mxu0 %v1957
        %1975 = vmatprep.subr.bf16.mxu0 0
        %1976 = vmatpush1.bf16.msra.mxu0 %v1958
        %1977 = vmatprep.subr.bf16.mxu0 0
        %1978 = vmatpush1.bf16.msra.mxu0 0
        %1979 = vmatprep.subr.bf16.mxu0 0
        %1980 = vmatpush1.bf16.msra.mxu0 0
        %1981 = vmatprep.subr.bf16.mxu0 0
        %1982 = vmatpush1.bf16.msra.mxu0 0
        %1983 = vmatprep.subr.bf16.mxu0 0
        %1984 = vmatpush1.bf16.msra.mxu0 0
        %1985 = vmatprep.subr.bf16.mxu0 0
        %1986 = vmatpush1.bf16.msra.mxu0 0
        %1987 = vmatprep.subr.bf16.mxu0 0
        %1988 = vmatpush1.bf16.msra.mxu0 0
        %1989 = vmatprep.subr.bf16.mxu0 0
        %1990 = vmatpush1.bf16.msra.mxu0 0
        %1991 = vmatprep.subr.bf16.mxu0 0
        %1992 = vmatpush1.bf16.msra.mxu0 0
        %1993 = vmatprep.subr.bf16.mxu0 0
        %1994 = vmatpush1.bf16.msra.mxu0 0
        %1995 = vmatprep.subr.bf16.mxu0 0
        %1996 = vmatpush1.bf16.msra.mxu0 0
        %1997 = vmatprep.subr.bf16.mxu0 0
        %1998 = vmatpush1.bf16.msra.mxu0 0
        %1999 = vmatprep.subr.bf16.mxu0 0
        %2000 = vmatpush1.bf16.msra.mxu0 0
        %2001 = vmatprep.subr.bf16.mxu0 0
        %2002 = vmatpush1.bf16.msra.mxu0 0
        %2003 = vmatprep.subr.bf16.mxu0 0
        %2004 = vmatpush1.bf16.msra.mxu0 0
        %2005 = vmatprep.mubr.bf16.mxu0 0
        %2006 = vmatmul.mubr.bf16.gmra.mrb[0].mxu0 %v1962
        %v2007 = vpop.f32.mrb[0].mxu0
        %v2008 = vadd.f32 %v1915, %v2007
        %v2009 = vpop.f32.mrb[0].mxu0
        %v2010 = vpop.f32.mrb[0].mxu0
        %v2011 = vadd.f32 %v1918, %v2010
        %v2012 = vpop.f32.mrb[0].mxu0
        %2013 = vmatprep.mubr.bf16.mxu0 0
        %2014 = vmatmul.mubr.bf16.gmra.mrb[0].mxu0 %v1965
        %v2015 = vpop.f32.mrb[0].mxu0
        %v2016 = vadd.f32 %v1923, %v2015
        %v2017 = vpop.f32.mrb[0].mxu0
        %v2018 = vpop.f32.mrb[0].mxu0
        %v2019 = vadd.f32 %v1926, %v2018
        %v2020 = vpop.f32.mrb[0].mxu0
        %2021 = vmatprep.mubr.bf16.mxu0 0
        %2022 = vmatmul.mubr.bf16.gmra.mrb[0].mxu0 %v1968
        %v2023 = vpop.f32.mrb[0].mxu0
        %v2024 = vadd.f32 %v1931, %v2023
        %v2025 = vpop.f32.mrb[0].mxu0
        %v2026 = vpop.f32.mrb[0].mxu0
        %v2027 = vadd.f32 %v1934, %v2026
        %v2028 = vpop.f32.mrb[0].mxu0
        %2029 = vmatprep.mubr.bf16.mxu0 0
        %2030 = vmatmul.mubr.bf16.gmra.mrb[0].mxu0 %v1971
        %v2031 = vpop.f32.mrb[0].mxu0
        %v2032 = vadd.f32 %v1939, %v2031
        %v2033 = vpop.f32.mrb[0].mxu0
        %v2034 = vpop.f32.mrb[0].mxu0
        %v2035 = vadd.f32 %v1942, %v2034
        %v2036 = vpop.f32.mrb[0].mxu0
        %2037 = vdwg.mxu0
        %s2038 = scalar_lea.vmem %s5, 32
        %v2039 = vld [vmem:[%s2038] sm:$0xf]
        %v2040 = vld [vmem:[%s2038 + $0x4] sm:$0xf]
        %v2041 = vld [vmem:[%s2038 + $0x8] sm:$0xf]
        %v2042 = vld [vmem:[%s2038 + $0xc] sm:$0xf]
        %v2044 = vunpack.c.l.b16 %v1828
        %v2045 = vpack.c.b16 %v2044, %v1851
        %v2050 = vunpack.c.l.b16 %v2039
        %v2051 = vunpack.c.l.b16 %v2040
        %v2052 = vunpack.c.l.b16 %v2041
        %v2053 = vunpack.c.l.b16 %v2042
        %v2054 = vpack.c.b16 %v2051, %v2050
        %v2055 = vpack.c.b16 %v2053, %v2052
        %v2059 = vsel %vm1377, %v2045, 0
        %2061 = vmatprep.subr.bf16.mxu0 0
        %2062 = vmatpush1.bf16.msra.mxu0 %v2054
        %2063 = vmatprep.subr.bf16.mxu0 0
        %2064 = vmatpush1.bf16.msra.mxu0 %v2055
        %2065 = vmatprep.subr.bf16.mxu0 0
        %2066 = vmatpush1.bf16.msra.mxu0 0
        %2067 = vmatprep.subr.bf16.mxu0 0
        %2068 = vmatpush1.bf16.msra.mxu0 0
        %2069 = vmatprep.subr.bf16.mxu0 0
        %2070 = vmatpush1.bf16.msra.mxu0 0
        %2071 = vmatprep.subr.bf16.mxu0 0
        %2072 = vmatpush1.bf16.msra.mxu0 0
        %2073 = vmatprep.subr.bf16.mxu0 0
        %2074 = vmatpush1.bf16.msra.mxu0 0
        %2075 = vmatprep.subr.bf16.mxu0 0
        %2076 = vmatpush1.bf16.msra.mxu0 0
        %2077 = vmatprep.subr.bf16.mxu0 0
        %2078 = vmatpush1.bf16.msra.mxu0 0
        %2079 = vmatprep.subr.bf16.mxu0 0
        %2080 = vmatpush1.bf16.msra.mxu0 0
        %2081 = vmatprep.subr.bf16.mxu0 0
        %2082 = vmatpush1.bf16.msra.mxu0 0
        %2083 = vmatprep.subr.bf16.mxu0 0
        %2084 = vmatpush1.bf16.msra.mxu0 0
        %2085 = vmatprep.subr.bf16.mxu0 0
        %2086 = vmatpush1.bf16.msra.mxu0 0
        %2087 = vmatprep.subr.bf16.mxu0 0
        %2088 = vmatpush1.bf16.msra.mxu0 0
        %2089 = vmatprep.subr.bf16.mxu0 0
        %2090 = vmatpush1.bf16.msra.mxu0 0
        %2091 = vmatprep.subr.bf16.mxu0 0
        %2092 = vmatpush1.bf16.msra.mxu0 0
        %2093 = vmatprep.mubr.bf16.mxu0 0
        %2094 = vmatmul.mubr.bf16.gmra.mrb[0].mxu0 %v1965
        %v2095 = vpop.f32.mrb[0].mxu0
        %v2096 = vadd.f32 0.0, %v2095
        %v2097 = vpop.f32.mrb[0].mxu0
        %v2098 = vpop.f32.mrb[0].mxu0
        %v2099 = vadd.f32 0.0, %v2098
        %v2100 = vpop.f32.mrb[0].mxu0
        %2101 = vmatprep.mubr.bf16.mxu0 0
        %2102 = vmatmul.mubr.bf16.gmra.mrb[0].mxu0 %v1968
        %v2103 = vpop.f32.mrb[0].mxu0
        %v2104 = vadd.f32 0.0, %v2103
        %v2105 = vpop.f32.mrb[0].mxu0
        %v2106 = vpop.f32.mrb[0].mxu0
        %v2107 = vadd.f32 0.0, %v2106
        %v2108 = vpop.f32.mrb[0].mxu0
        %2109 = vmatprep.mubr.bf16.mxu0 0
        %2110 = vmatmul.mubr.bf16.gmra.mrb[0].mxu0 %v1971
        %v2111 = vpop.f32.mrb[0].mxu0
        %v2112 = vadd.f32 0.0, %v2111
        %v2113 = vpop.f32.mrb[0].mxu0
        %v2114 = vpop.f32.mrb[0].mxu0
        %v2115 = vadd.f32 0.0, %v2114
        %v2116 = vpop.f32.mrb[0].mxu0
        %2117 = vmatprep.mubr.bf16.mxu0 0
        %2118 = vmatmul.mubr.bf16.gmra.mrb[0].mxu0 %v2059
        %v2119 = vpop.f32.mrb[0].mxu0
        %v2120 = vadd.f32 0.0, %v2119
        %v2121 = vpop.f32.mrb[0].mxu0
        %v2122 = vpop.f32.mrb[0].mxu0
        %v2123 = vadd.f32 0.0, %v2122
        %v2124 = vpop.f32.mrb[0].mxu0
        %2125 = vdwg.mxu0
        %v2126 = vadd.f32 %v2008, %v2096
        %v2127 = vadd.f32 %v2011, %v2099
        %v2128 = vadd.f32 %v2016, %v2104
        %v2129 = vadd.f32 %v2019, %v2107
        %v2130 = vadd.f32 %v2024, %v2112
        %v2131 = vadd.f32 %v2027, %v2115
        %v2132 = vadd.f32 %v2032, %v2120
        %v2133 = vadd.f32 %v2035, %v2123
        %s2134 = scalar_lea.vmem %s5, 48
        %v2135 = vld [vmem:[%s2134] sm:$0xf]
        %v2136 = vld [vmem:[%s2134 + $0x4] sm:$0xf]
        %v2137 = vld [vmem:[%s2134 + $0x8] sm:$0xf]
        %v2138 = vld [vmem:[%s2134 + $0xc] sm:$0xf]
        %v2139 = vpack.c.b16 %v1006, %v2044
        %v2144 = vunpack.c.l.b16 %v2135
        %v2145 = vunpack.c.l.b16 %v2136
        %v2146 = vunpack.c.l.b16 %v2137
        %v2147 = vunpack.c.l.b16 %v2138
        %v2148 = vpack.c.b16 %v2145, %v2144
        %v2149 = vpack.c.b16 %v2147, %v2146
        %v2153 = vsel %vm1377, %v2139, 0
        %2155 = vmatprep.subr.bf16.mxu0 0
        %2156 = vmatpush1.bf16.msra.mxu0 %v2148
        %2157 = vmatprep.subr.bf16.mxu0 0
        %2158 = vmatpush1.bf16.msra.mxu0 %v2149
        %2159 = vmatprep.subr.bf16.mxu0 0
        %2160 = vmatpush1.bf16.msra.mxu0 0
        %2161 = vmatprep.subr.bf16.mxu0 0
        %2162 = vmatpush1.bf16.msra.mxu0 0
        %2163 = vmatprep.subr.bf16.mxu0 0
        %2164 = vmatpush1.bf16.msra.mxu0 0
        %2165 = vmatprep.subr.bf16.mxu0 0
        %2166 = vmatpush1.bf16.msra.mxu0 0
        %2167 = vmatprep.subr.bf16.mxu0 0
        %2168 = vmatpush1.bf16.msra.mxu0 0
        %2169 = vmatprep.subr.bf16.mxu0 0
        %2170 = vmatpush1.bf16.msra.mxu0 0
        %2171 = vmatprep.subr.bf16.mxu0 0
        %2172 = vmatpush1.bf16.msra.mxu0 0
        %2173 = vmatprep.subr.bf16.mxu0 0
        %2174 = vmatpush1.bf16.msra.mxu0 0
        %2175 = vmatprep.subr.bf16.mxu0 0
        %2176 = vmatpush1.bf16.msra.mxu0 0
        %2177 = vmatprep.subr.bf16.mxu0 0
        %2178 = vmatpush1.bf16.msra.mxu0 0
        %2179 = vmatprep.subr.bf16.mxu0 0
        %2180 = vmatpush1.bf16.msra.mxu0 0
        %2181 = vmatprep.subr.bf16.mxu0 0
        %2182 = vmatpush1.bf16.msra.mxu0 0
        %2183 = vmatprep.subr.bf16.mxu0 0
        %2184 = vmatpush1.bf16.msra.mxu0 0
        %2185 = vmatprep.subr.bf16.mxu0 0
        %2186 = vmatpush1.bf16.msra.mxu0 0
        %2187 = vmatprep.mubr.bf16.mxu0 0
        %2188 = vmatmul.mubr.bf16.gmra.mrb[0].mxu0 %v1872
        %v2189 = vpop.f32.mrb[0].mxu0
        %v2190 = vadd.f32 0.0, %v2189
        %v2191 = vpop.f32.mrb[0].mxu0
        %v2192 = vpop.f32.mrb[0].mxu0
        %v2193 = vadd.f32 0.0, %v2192
        %v2194 = vpop.f32.mrb[0].mxu0
        %2195 = vmatprep.mubr.bf16.mxu0 0
        %2196 = vmatmul.mubr.bf16.gmra.mrb[0].mxu0 %v1875
        %v2197 = vpop.f32.mrb[0].mxu0
        %v2198 = vadd.f32 0.0, %v2197
        %v2199 = vpop.f32.mrb[0].mxu0
        %v2200 = vpop.f32.mrb[0].mxu0
        %v2201 = vadd.f32 0.0, %v2200
        %v2202 = vpop.f32.mrb[0].mxu0
        %2203 = vmatprep.mubr.bf16.mxu0 0
        %2204 = vmatmul.mubr.bf16.gmra.mrb[0].mxu0 %v1878
        %v2205 = vpop.f32.mrb[0].mxu0
        %v2206 = vadd.f32 0.0, %v2205
        %v2207 = vpop.f32.mrb[0].mxu0
        %v2208 = vpop.f32.mrb[0].mxu0
        %v2209 = vadd.f32 0.0, %v2208
        %v2210 = vpop.f32.mrb[0].mxu0
        %2211 = vmatprep.mubr.bf16.mxu0 0
        %2212 = vmatmul.mubr.bf16.gmra.mrb[0].mxu0 %v2153
        %v2213 = vpop.f32.mrb[0].mxu0
        %v2214 = vadd.f32 0.0, %v2213
        %v2215 = vpop.f32.mrb[0].mxu0
        %v2216 = vpop.f32.mrb[0].mxu0
        %v2217 = vadd.f32 0.0, %v2216
        %v2218 = vpop.f32.mrb[0].mxu0
        %2219 = vdwg.mxu0
        %v2220 = vadd.f32 %v2126, %v2190
        %v2221 = vadd.f32 %v2127, %v2193
        %v2222 = vadd.f32 %v2128, %v2198
        %v2223 = vadd.f32 %v2129, %v2201
        %v2224 = vadd.f32 %v2130, %v2206
        %v2225 = vadd.f32 %v2131, %v2209
        %v2226 = vadd.f32 %v2132, %v2214
        %v2227 = vadd.f32 %v2133, %v2217
        %s2228 = scalar_lea.vmem %s5, 64
        %v2229 = vld [vmem:[%s2228] sm:$0xf]
        %v2230 = vld [vmem:[%s2228 + $0x4] sm:$0xf]
        %v2231 = vld [vmem:[%s2228 + $0x8] sm:$0xf]
        %v2232 = vld [vmem:[%s2228 + $0xc] sm:$0xf]
        %v2237 = vunpack.c.l.b16 %v2229
        %v2238 = vunpack.c.l.b16 %v2230
        %v2239 = vunpack.c.l.b16 %v2231
        %v2240 = vunpack.c.l.b16 %v2232
        %v2241 = vpack.c.b16 %v2238, %v2237
        %v2242 = vpack.c.b16 %v2240, %v2239
        %2245 = vmatprep.subr.bf16.mxu0 0
        %2246 = vmatpush1.bf16.msra.mxu0 %v2241
        %2247 = vmatprep.subr.bf16.mxu0 0
        %2248 = vmatpush1.bf16.msra.mxu0 %v2242
        %2249 = vmatprep.subr.bf16.mxu0 0
        %2250 = vmatpush1.bf16.msra.mxu0 0
        %2251 = vmatprep.subr.bf16.mxu0 0
        %2252 = vmatpush1.bf16.msra.mxu0 0
        %2253 = vmatprep.subr.bf16.mxu0 0
        %2254 = vmatpush1.bf16.msra.mxu0 0
        %2255 = vmatprep.subr.bf16.mxu0 0
        %2256 = vmatpush1.bf16.msra.mxu0 0
        %2257 = vmatprep.subr.bf16.mxu0 0
        %2258 = vmatpush1.bf16.msra.mxu0 0
        %2259 = vmatprep.subr.bf16.mxu0 0
        %2260 = vmatpush1.bf16.msra.mxu0 0
        %2261 = vmatprep.subr.bf16.mxu0 0
        %2262 = vmatpush1.bf16.msra.mxu0 0
        %2263 = vmatprep.subr.bf16.mxu0 0
        %2264 = vmatpush1.bf16.msra.mxu0 0
        %2265 = vmatprep.subr.bf16.mxu0 0
        %2266 = vmatpush1.bf16.msra.mxu0 0
        %2267 = vmatprep.subr.bf16.mxu0 0
        %2268 = vmatpush1.bf16.msra.mxu0 0
        %2269 = vmatprep.subr.bf16.mxu0 0
        %2270 = vmatpush1.bf16.msra.mxu0 0
        %2271 = vmatprep.subr.bf16.mxu0 0
        %2272 = vmatpush1.bf16.msra.mxu0 0
        %2273 = vmatprep.subr.bf16.mxu0 0
        %2274 = vmatpush1.bf16.msra.mxu0 0
        %2275 = vmatprep.subr.bf16.mxu0 0
        %2276 = vmatpush1.bf16.msra.mxu0 0
        %2277 = vmatprep.mubr.bf16.mxu0 0
        %2278 = vmatmul.mubr.bf16.gmra.mrb[0].mxu0 %v1968
        %v2279 = vpop.f32.mrb[0].mxu0
        %v2280 = vadd.f32 0.0, %v2279
        %v2281 = vpop.f32.mrb[0].mxu0
        %v2282 = vpop.f32.mrb[0].mxu0
        %v2283 = vadd.f32 0.0, %v2282
        %v2284 = vpop.f32.mrb[0].mxu0
        %2285 = vmatprep.mubr.bf16.mxu0 0
        %2286 = vmatmul.mubr.bf16.gmra.mrb[0].mxu0 %v1971
        %v2287 = vpop.f32.mrb[0].mxu0
        %v2288 = vadd.f32 0.0, %v2287
        %v2289 = vpop.f32.mrb[0].mxu0
        %v2290 = vpop.f32.mrb[0].mxu0
        %v2291 = vadd.f32 0.0, %v2290
        %v2292 = vpop.f32.mrb[0].mxu0
        %2293 = vmatprep.mubr.bf16.mxu0 0
        %2294 = vmatmul.mubr.bf16.gmra.mrb[0].mxu0 %v2059
        %v2295 = vpop.f32.mrb[0].mxu0
        %v2296 = vadd.f32 0.0, %v2295
        %v2297 = vpop.f32.mrb[0].mxu0
        %v2298 = vpop.f32.mrb[0].mxu0
        %v2299 = vadd.f32 0.0, %v2298
        %v2300 = vpop.f32.mrb[0].mxu0
        %2301 = vmatprep.mubr.bf16.mxu0 0
        %2302 = vmatmul.mubr.bf16.gmra.mrb[0].mxu0 %v1962
        %v2303 = vpop.f32.mrb[0].mxu0
        %v2304 = vadd.f32 0.0, %v2303
        %v2305 = vpop.f32.mrb[0].mxu0
        %v2306 = vpop.f32.mrb[0].mxu0
        %v2307 = vadd.f32 0.0, %v2306
        %v2308 = vpop.f32.mrb[0].mxu0
        %2309 = vdwg.mxu0
        %v2310 = vadd.f32 %v2220, %v2280
        %v2311 = vadd.f32 %v2221, %v2283
        %v2312 = vadd.f32 %v2222, %v2288
        %v2313 = vadd.f32 %v2223, %v2291
        %v2314 = vadd.f32 %v2224, %v2296
        %v2315 = vadd.f32 %v2225, %v2299
        %v2316 = vadd.f32 %v2226, %v2304
        %v2317 = vadd.f32 %v2227, %v2307
        %v2318 = vld [vmem:[%s6] sm:$0x1]
        %v2320 = vlaneseq
        %v2321 = vshrl.u32 %v2320, 7
        %v2322 = vsub.s32 0, %v2321
        %v2323 = vrot.slane %v2318, %v2322
        %v2325 = vadd.f32 %v2310, %v2323
        %v2326 = vadd.f32 %v2311, %v2323
        %v2327 = vadd.f32 %v2312, %v2323
        %v2328 = vadd.f32 %v2313, %v2323
        %v2329 = vadd.f32 %v2314, %v2323
        %v2330 = vadd.f32 %v2315, %v2323
        %v2331 = vadd.f32 %v2316, %v2323
        %v2332 = vadd.f32 %v2317, %v2323
        %v2333 = vmax.f32 %v2325, 0.0
        %v2334 = vmax.f32 %v2326, 0.0
        %v2335 = vmax.f32 %v2327, 0.0
        %v2336 = vmax.f32 %v2328, 0.0
        %v2337 = vmax.f32 %v2329, 0.0
        %v2338 = vmax.f32 %v2330, 0.0
        %v2339 = vmax.f32 %v2331, 0.0
        %v2340 = vmax.f32 %v2332, 0.0
        %v2341 = vpack.c.bf16 %v2333, %v2333
        %v2342 = vpack.c.bf16 %v2334, %v2334
        %v2343 = vpack.c.bf16 %v2335, %v2335
        %v2344 = vpack.c.bf16 %v2336, %v2336
        %v2345 = vpack.c.bf16 %v2337, %v2337
        %v2346 = vpack.c.bf16 %v2338, %v2338
        %v2347 = vpack.c.bf16 %v2339, %v2339
        %v2348 = vpack.c.bf16 %v2340, %v2340
        %v2349 = vld [vmem:[%s7] sm:$0xf]
        %v2350 = vld [vmem:[%s7 + $0x4] sm:$0xf]
        %v2351 = vld [vmem:[%s7 + $0x8] sm:$0xf]
        %v2352 = vld [vmem:[%s7 + $0xc] sm:$0xf]
        %v2353 = vld [vmem:[%s7 + $0x10] sm:$0xf]
        %v2354 = vld [vmem:[%s7 + $0x14] sm:$0xf]
        %v2355 = vld [vmem:[%s7 + $0x18] sm:$0xf]
        %v2356 = vld [vmem:[%s7 + $0x1c] sm:$0xf]
        %s2357 = scalar_lea.vmem %s7, 32
        %v2358 = vld [vmem:[%s2357] sm:$0xf]
        %v2359 = vld [vmem:[%s2357 + $0x4] sm:$0xf]
        %v2360 = vld [vmem:[%s2357 + $0x8] sm:$0xf]
        %v2361 = vld [vmem:[%s2357 + $0xc] sm:$0xf]
        %v2362 = vld [vmem:[%s2357 + $0x10] sm:$0xf]
        %v2363 = vld [vmem:[%s2357 + $0x14] sm:$0xf]
        %v2364 = vld [vmem:[%s2357 + $0x18] sm:$0xf]
        %v2365 = vld [vmem:[%s2357 + $0x1c] sm:$0xf]
        %v2373 = vunpack.c.l.b16 %v2341
        %v2374 = vunpack.c.l.b16 %v2342
        %v2375 = vunpack.c.l.b16 %v2343
        %v2376 = vunpack.c.l.b16 %v2344
        %v2377 = vunpack.c.l.b16 %v2345
        %v2378 = vunpack.c.l.b16 %v2346
        %v2379 = vunpack.c.l.b16 %v2347
        %v2380 = vpack.c.b16 %v2373, %v1006
        %v2381 = vpack.c.b16 %v2375, %v2374
        %v2382 = vpack.c.b16 %v2377, %v2376
        %v2383 = vpack.c.b16 %v2379, %v2378
        %v2392 = vunpack.c.l.b16 %v2358
        %v2393 = vunpack.c.l.b16 %v2359
        %v2394 = vunpack.c.l.b16 %v2360
        %v2395 = vunpack.c.l.b16 %v2361
        %v2396 = vunpack.c.l.b16 %v2362
        %v2397 = vunpack.c.l.b16 %v2363
        %v2398 = vunpack.c.l.b16 %v2364
        %v2399 = vunpack.c.l.b16 %v2365
        %v2400 = vpack.c.b16 %v2393, %v2392
        %v2401 = vpack.c.b16 %v2395, %v2394
        %v2402 = vpack.c.b16 %v2397, %v2396
        %v2403 = vpack.c.b16 %v2399, %v2398
        %vm2408 = vcmask 523264
        %v2410 = vsel %vm2408, %v2380, 0
        %v2413 = vsel %vm2408, %v2381, 0
        %v2416 = vsel %vm2408, %v2382, 0
        %v2419 = vsel %vm2408, %v2383, 0
        %2421 = vmatprep.subr.bf16.mxu0 0
        %2422 = vmatpush1.bf16.msra.mxu0 %v2400
        %2423 = vmatprep.subr.bf16.mxu0 0
        %2424 = vmatpush1.bf16.msra.mxu0 %v2401
        %2425 = vmatprep.subr.bf16.mxu0 0
        %2426 = vmatpush1.bf16.msra.mxu0 %v2402
        %2427 = vmatprep.subr.bf16.mxu0 0
        %2428 = vmatpush1.bf16.msra.mxu0 %v2403
        %2429 = vmatprep.subr.bf16.mxu0 0
        %2430 = vmatpush1.bf16.msra.mxu0 0
        %2431 = vmatprep.subr.bf16.mxu0 0
        %2432 = vmatpush1.bf16.msra.mxu0 0
        %2433 = vmatprep.subr.bf16.mxu0 0
        %2434 = vmatpush1.bf16.msra.mxu0 0
        %2435 = vmatprep.subr.bf16.mxu0 0
        %2436 = vmatpush1.bf16.msra.mxu0 0
        %2437 = vmatprep.subr.bf16.mxu0 0
        %2438 = vmatpush1.bf16.msra.mxu0 0
        %2439 = vmatprep.subr.bf16.mxu0 0
        %2440 = vmatpush1.bf16.msra.mxu0 0
        %2441 = vmatprep.subr.bf16.mxu0 0
        %2442 = vmatpush1.bf16.msra.mxu0 0
        %2443 = vmatprep.subr.bf16.mxu0 0
        %2444 = vmatpush1.bf16.msra.mxu0 0
        %2445 = vmatprep.subr.bf16.mxu0 0
        %2446 = vmatpush1.bf16.msra.mxu0 0
        %2447 = vmatprep.subr.bf16.mxu0 0
        %2448 = vmatpush1.bf16.msra.mxu0 0
        %2449 = vmatprep.subr.bf16.mxu0 0
        %2450 = vmatpush1.bf16.msra.mxu0 0
        %2451 = vmatprep.subr.bf16.mxu0 0
        %2452 = vmatpush1.bf16.msra.mxu0 0
        %2453 = vmatprep.mubr.bf16.mxu0 0
        %2454 = vmatmul.mubr.bf16.gmra.mrb[0].mxu0 %v2410
        %v2455 = vpop.f32.mrb[0].mxu0
        %v2456 = vadd.f32 0.0, %v2455
        %v2457 = vpop.f32.mrb[0].mxu0
        %v2458 = vpop.f32.mrb[0].mxu0
        %v2459 = vadd.f32 0.0, %v2458
        %v2460 = vpop.f32.mrb[0].mxu0
        %2461 = vmatprep.mubr.bf16.mxu0 0
        %2462 = vmatmul.mubr.bf16.gmra.mrb[0].mxu0 %v2413
        %v2463 = vpop.f32.mrb[0].mxu0
        %v2464 = vadd.f32 0.0, %v2463
        %v2465 = vpop.f32.mrb[0].mxu0
        %v2466 = vpop.f32.mrb[0].mxu0
        %v2467 = vadd.f32 0.0, %v2466
        %v2468 = vpop.f32.mrb[0].mxu0
        %2469 = vmatprep.mubr.bf16.mxu0 0
        %2470 = vmatmul.mubr.bf16.gmra.mrb[0].mxu0 %v2416
        %v2471 = vpop.f32.mrb[0].mxu0
        %v2472 = vadd.f32 0.0, %v2471
        %v2473 = vpop.f32.mrb[0].mxu0
        %v2474 = vpop.f32.mrb[0].mxu0
        %v2475 = vadd.f32 0.0, %v2474
        %v2476 = vpop.f32.mrb[0].mxu0
        %2477 = vmatprep.mubr.bf16.mxu0 0
        %2478 = vmatmul.mubr.bf16.gmra.mrb[0].mxu0 %v2419
        %v2479 = vpop.f32.mrb[0].mxu0
        %v2480 = vadd.f32 0.0, %v2479
        %v2481 = vpop.f32.mrb[0].mxu0
        %v2482 = vpop.f32.mrb[0].mxu0
        %v2483 = vadd.f32 0.0, %v2482
        %v2484 = vpop.f32.mrb[0].mxu0
        %2485 = vdwg.mxu0
        %v2486 = vpack.c.b16 %v2374, %v2373
        %v2487 = vpack.c.b16 %v2376, %v2375
        %v2488 = vpack.c.b16 %v2378, %v2377
        %v2497 = vunpack.c.l.b16 %v2349
        %v2498 = vunpack.c.l.b16 %v2350
        %v2499 = vunpack.c.l.b16 %v2351
        %v2500 = vunpack.c.l.b16 %v2352
        %v2501 = vunpack.c.l.b16 %v2353
        %v2502 = vunpack.c.l.b16 %v2354
        %v2503 = vunpack.c.l.b16 %v2355
        %v2504 = vunpack.c.l.b16 %v2356
        %v2505 = vpack.c.b16 %v2498, %v2497
        %v2506 = vpack.c.b16 %v2500, %v2499
        %v2507 = vpack.c.b16 %v2502, %v2501
        %v2508 = vpack.c.b16 %v2504, %v2503
        %v2513 = vsel %vm2408, %v1945, 0
        %v2516 = vsel %vm2408, %v2486, 0
        %v2519 = vsel %vm2408, %v2487, 0
        %v2522 = vsel %vm2408, %v2488, 0
        %2524 = vmatprep.subr.bf16.mxu0 0
        %2525 = vmatpush1.bf16.msra.mxu0 %v2505
        %2526 = vmatprep.subr.bf16.mxu0 0
        %2527 = vmatpush1.bf16.msra.mxu0 %v2506
        %2528 = vmatprep.subr.bf16.mxu0 0
        %2529 = vmatpush1.bf16.msra.mxu0 %v2507
        %2530 = vmatprep.subr.bf16.mxu0 0
        %2531 = vmatpush1.bf16.msra.mxu0 %v2508
        %2532 = vmatprep.subr.bf16.mxu0 0
        %2533 = vmatpush1.bf16.msra.mxu0 0
        %2534 = vmatprep.subr.bf16.mxu0 0
        %2535 = vmatpush1.bf16.msra.mxu0 0
        %2536 = vmatprep.subr.bf16.mxu0 0
        %2537 = vmatpush1.bf16.msra.mxu0 0
        %2538 = vmatprep.subr.bf16.mxu0 0
        %2539 = vmatpush1.bf16.msra.mxu0 0
        %2540 = vmatprep.subr.bf16.mxu0 0
        %2541 = vmatpush1.bf16.msra.mxu0 0
        %2542 = vmatprep.subr.bf16.mxu0 0
        %2543 = vmatpush1.bf16.msra.mxu0 0
        %2544 = vmatprep.subr.bf16.mxu0 0
        %2545 = vmatpush1.bf16.msra.mxu0 0
        %2546 = vmatprep.subr.bf16.mxu0 0
        %2547 = vmatpush1.bf16.msra.mxu0 0
        %2548 = vmatprep.subr.bf16.mxu0 0
        %2549 = vmatpush1.bf16.msra.mxu0 0
        %2550 = vmatprep.subr.bf16.mxu0 0
        %2551 = vmatpush1.bf16.msra.mxu0 0
        %2552 = vmatprep.subr.bf16.mxu0 0
        %2553 = vmatpush1.bf16.msra.mxu0 0
        %2554 = vmatprep.subr.bf16.mxu0 0
        %2555 = vmatpush1.bf16.msra.mxu0 0
        %2556 = vmatprep.mubr.bf16.mxu0 0
        %2557 = vmatmul.mubr.bf16.gmra.mrb[0].mxu0 %v2513
        %v2558 = vpop.f32.mrb[0].mxu0
        %v2559 = vadd.f32 %v2456, %v2558
        %v2560 = vpop.f32.mrb[0].mxu0
        %v2561 = vpop.f32.mrb[0].mxu0
        %v2562 = vadd.f32 %v2459, %v2561
        %v2563 = vpop.f32.mrb[0].mxu0
        %2564 = vmatprep.mubr.bf16.mxu0 0
        %2565 = vmatmul.mubr.bf16.gmra.mrb[0].mxu0 %v2516
        %v2566 = vpop.f32.mrb[0].mxu0
        %v2567 = vadd.f32 %v2464, %v2566
        %v2568 = vpop.f32.mrb[0].mxu0
        %v2569 = vpop.f32.mrb[0].mxu0
        %v2570 = vadd.f32 %v2467, %v2569
        %v2571 = vpop.f32.mrb[0].mxu0
        %2572 = vmatprep.mubr.bf16.mxu0 0
        %2573 = vmatmul.mubr.bf16.gmra.mrb[0].mxu0 %v2519
        %v2574 = vpop.f32.mrb[0].mxu0
        %v2575 = vadd.f32 %v2472, %v2574
        %v2576 = vpop.f32.mrb[0].mxu0
        %v2577 = vpop.f32.mrb[0].mxu0
        %v2578 = vadd.f32 %v2475, %v2577
        %v2579 = vpop.f32.mrb[0].mxu0
        %2580 = vmatprep.mubr.bf16.mxu0 0
        %2581 = vmatmul.mubr.bf16.gmra.mrb[0].mxu0 %v2522
        %v2582 = vpop.f32.mrb[0].mxu0
        %v2583 = vadd.f32 %v2480, %v2582
        %v2584 = vpop.f32.mrb[0].mxu0
        %v2585 = vpop.f32.mrb[0].mxu0
        %v2586 = vadd.f32 %v2483, %v2585
        %v2587 = vpop.f32.mrb[0].mxu0
        %2588 = vdwg.mxu0
        %s2589 = scalar_lea.vmem %s7, 64
        %v2590 = vld [vmem:[%s2589] sm:$0xf]
        %v2591 = vld [vmem:[%s2589 + $0x4] sm:$0xf]
        %v2592 = vld [vmem:[%s2589 + $0x8] sm:$0xf]
        %v2593 = vld [vmem:[%s2589 + $0xc] sm:$0xf]
        %v2594 = vld [vmem:[%s2589 + $0x10] sm:$0xf]
        %v2595 = vld [vmem:[%s2589 + $0x14] sm:$0xf]
        %v2596 = vld [vmem:[%s2589 + $0x18] sm:$0xf]
        %v2597 = vld [vmem:[%s2589 + $0x1c] sm:$0xf]
        %v2599 = vunpack.c.l.b16 %v2348
        %v2600 = vpack.c.b16 %v2599, %v2379
        %v2609 = vunpack.c.l.b16 %v2590
        %v2610 = vunpack.c.l.b16 %v2591
        %v2611 = vunpack.c.l.b16 %v2592
        %v2612 = vunpack.c.l.b16 %v2593
        %v2613 = vunpack.c.l.b16 %v2594
        %v2614 = vunpack.c.l.b16 %v2595
        %v2615 = vunpack.c.l.b16 %v2596
        %v2616 = vunpack.c.l.b16 %v2597
        %v2617 = vpack.c.b16 %v2610, %v2609
        %v2618 = vpack.c.b16 %v2612, %v2611
        %v2619 = vpack.c.b16 %v2614, %v2613
        %v2620 = vpack.c.b16 %v2616, %v2615
        %v2626 = vsel %vm2408, %v2600, 0
        %2628 = vmatprep.subr.bf16.mxu0 0
        %2629 = vmatpush1.bf16.msra.mxu0 %v2617
        %2630 = vmatprep.subr.bf16.mxu0 0
        %2631 = vmatpush1.bf16.msra.mxu0 %v2618
        %2632 = vmatprep.subr.bf16.mxu0 0
        %2633 = vmatpush1.bf16.msra.mxu0 %v2619
        %2634 = vmatprep.subr.bf16.mxu0 0
        %2635 = vmatpush1.bf16.msra.mxu0 %v2620
        %2636 = vmatprep.subr.bf16.mxu0 0
        %2637 = vmatpush1.bf16.msra.mxu0 0
        %2638 = vmatprep.subr.bf16.mxu0 0
        %2639 = vmatpush1.bf16.msra.mxu0 0
        %2640 = vmatprep.subr.bf16.mxu0 0
        %2641 = vmatpush1.bf16.msra.mxu0 0
        %2642 = vmatprep.subr.bf16.mxu0 0
        %2643 = vmatpush1.bf16.msra.mxu0 0
        %2644 = vmatprep.subr.bf16.mxu0 0
        %2645 = vmatpush1.bf16.msra.mxu0 0
        %2646 = vmatprep.subr.bf16.mxu0 0
        %2647 = vmatpush1.bf16.msra.mxu0 0
        %2648 = vmatprep.subr.bf16.mxu0 0
        %2649 = vmatpush1.bf16.msra.mxu0 0
        %2650 = vmatprep.subr.bf16.mxu0 0
        %2651 = vmatpush1.bf16.msra.mxu0 0
        %2652 = vmatprep.subr.bf16.mxu0 0
        %2653 = vmatpush1.bf16.msra.mxu0 0
        %2654 = vmatprep.subr.bf16.mxu0 0
        %2655 = vmatpush1.bf16.msra.mxu0 0
        %2656 = vmatprep.subr.bf16.mxu0 0
        %2657 = vmatpush1.bf16.msra.mxu0 0
        %2658 = vmatprep.subr.bf16.mxu0 0
        %2659 = vmatpush1.bf16.msra.mxu0 0
        %2660 = vmatprep.mubr.bf16.mxu0 0
        %2661 = vmatmul.mubr.bf16.gmra.mrb[0].mxu0 %v2516
        %v2662 = vpop.f32.mrb[0].mxu0
        %v2663 = vadd.f32 0.0, %v2662
        %v2664 = vpop.f32.mrb[0].mxu0
        %v2665 = vpop.f32.mrb[0].mxu0
        %v2666 = vadd.f32 0.0, %v2665
        %v2667 = vpop.f32.mrb[0].mxu0
        %2668 = vmatprep.mubr.bf16.mxu0 0
        %2669 = vmatmul.mubr.bf16.gmra.mrb[0].mxu0 %v2519
        %v2670 = vpop.f32.mrb[0].mxu0
        %v2671 = vadd.f32 0.0, %v2670
        %v2672 = vpop.f32.mrb[0].mxu0
        %v2673 = vpop.f32.mrb[0].mxu0
        %v2674 = vadd.f32 0.0, %v2673
        %v2675 = vpop.f32.mrb[0].mxu0
        %2676 = vmatprep.mubr.bf16.mxu0 0
        %2677 = vmatmul.mubr.bf16.gmra.mrb[0].mxu0 %v2522
        %v2678 = vpop.f32.mrb[0].mxu0
        %v2679 = vadd.f32 0.0, %v2678
        %v2680 = vpop.f32.mrb[0].mxu0
        %v2681 = vpop.f32.mrb[0].mxu0
        %v2682 = vadd.f32 0.0, %v2681
        %v2683 = vpop.f32.mrb[0].mxu0
        %2684 = vmatprep.mubr.bf16.mxu0 0
        %2685 = vmatmul.mubr.bf16.gmra.mrb[0].mxu0 %v2626
        %v2686 = vpop.f32.mrb[0].mxu0
        %v2687 = vadd.f32 0.0, %v2686
        %v2688 = vpop.f32.mrb[0].mxu0
        %v2689 = vpop.f32.mrb[0].mxu0
        %v2690 = vadd.f32 0.0, %v2689
        %v2691 = vpop.f32.mrb[0].mxu0
        %2692 = vdwg.mxu0
        %v2693 = vadd.f32 %v2559, %v2663
        %v2694 = vadd.f32 %v2562, %v2666
        %v2695 = vadd.f32 %v2567, %v2671
        %v2696 = vadd.f32 %v2570, %v2674
        %v2697 = vadd.f32 %v2575, %v2679
        %v2698 = vadd.f32 %v2578, %v2682
        %v2699 = vadd.f32 %v2583, %v2687
        %v2700 = vadd.f32 %v2586, %v2690
        %s2701 = scalar_lea.vmem %s7, 96
        %v2702 = vld [vmem:[%s2701] sm:$0xf]
        %v2703 = vld [vmem:[%s2701 + $0x4] sm:$0xf]
        %v2704 = vld [vmem:[%s2701 + $0x8] sm:$0xf]
        %v2705 = vld [vmem:[%s2701 + $0xc] sm:$0xf]
        %v2706 = vld [vmem:[%s2701 + $0x10] sm:$0xf]
        %v2707 = vld [vmem:[%s2701 + $0x14] sm:$0xf]
        %v2708 = vld [vmem:[%s2701 + $0x18] sm:$0xf]
        %v2709 = vld [vmem:[%s2701 + $0x1c] sm:$0xf]
        %v2710 = vpack.c.b16 %v1006, %v2599
        %v2719 = vunpack.c.l.b16 %v2702
        %v2720 = vunpack.c.l.b16 %v2703
        %v2721 = vunpack.c.l.b16 %v2704
        %v2722 = vunpack.c.l.b16 %v2705
        %v2723 = vunpack.c.l.b16 %v2706
        %v2724 = vunpack.c.l.b16 %v2707
        %v2725 = vunpack.c.l.b16 %v2708
        %v2726 = vunpack.c.l.b16 %v2709
        %v2727 = vpack.c.b16 %v2720, %v2719
        %v2728 = vpack.c.b16 %v2722, %v2721
        %v2729 = vpack.c.b16 %v2724, %v2723
        %v2730 = vpack.c.b16 %v2726, %v2725
        %v2736 = vsel %vm2408, %v2710, 0
        %2738 = vmatprep.subr.bf16.mxu0 0
        %2739 = vmatpush1.bf16.msra.mxu0 %v2727
        %2740 = vmatprep.subr.bf16.mxu0 0
        %2741 = vmatpush1.bf16.msra.mxu0 %v2728
        %2742 = vmatprep.subr.bf16.mxu0 0
        %2743 = vmatpush1.bf16.msra.mxu0 %v2729
        %2744 = vmatprep.subr.bf16.mxu0 0
        %2745 = vmatpush1.bf16.msra.mxu0 %v2730
        %2746 = vmatprep.subr.bf16.mxu0 0
        %2747 = vmatpush1.bf16.msra.mxu0 0
        %2748 = vmatprep.subr.bf16.mxu0 0
        %2749 = vmatpush1.bf16.msra.mxu0 0
        %2750 = vmatprep.subr.bf16.mxu0 0
        %2751 = vmatpush1.bf16.msra.mxu0 0
        %2752 = vmatprep.subr.bf16.mxu0 0
        %2753 = vmatpush1.bf16.msra.mxu0 0
        %2754 = vmatprep.subr.bf16.mxu0 0
        %2755 = vmatpush1.bf16.msra.mxu0 0
        %2756 = vmatprep.subr.bf16.mxu0 0
        %2757 = vmatpush1.bf16.msra.mxu0 0
        %2758 = vmatprep.subr.bf16.mxu0 0
        %2759 = vmatpush1.bf16.msra.mxu0 0
        %2760 = vmatprep.subr.bf16.mxu0 0
        %2761 = vmatpush1.bf16.msra.mxu0 0
        %2762 = vmatprep.subr.bf16.mxu0 0
        %2763 = vmatpush1.bf16.msra.mxu0 0
        %2764 = vmatprep.subr.bf16.mxu0 0
        %2765 = vmatpush1.bf16.msra.mxu0 0
        %2766 = vmatprep.subr.bf16.mxu0 0
        %2767 = vmatpush1.bf16.msra.mxu0 0
        %2768 = vmatprep.subr.bf16.mxu0 0
        %2769 = vmatpush1.bf16.msra.mxu0 0
        %2770 = vmatprep.mubr.bf16.mxu0 0
        %2771 = vmatmul.mubr.bf16.gmra.mrb[0].mxu0 %v2413
        %v2772 = vpop.f32.mrb[0].mxu0
        %v2773 = vadd.f32 0.0, %v2772
        %v2774 = vpop.f32.mrb[0].mxu0
        %v2775 = vpop.f32.mrb[0].mxu0
        %v2776 = vadd.f32 0.0, %v2775
        %v2777 = vpop.f32.mrb[0].mxu0
        %2778 = vmatprep.mubr.bf16.mxu0 0
        %2779 = vmatmul.mubr.bf16.gmra.mrb[0].mxu0 %v2416
        %v2780 = vpop.f32.mrb[0].mxu0
        %v2781 = vadd.f32 0.0, %v2780
        %v2782 = vpop.f32.mrb[0].mxu0
        %v2783 = vpop.f32.mrb[0].mxu0
        %v2784 = vadd.f32 0.0, %v2783
        %v2785 = vpop.f32.mrb[0].mxu0
        %2786 = vmatprep.mubr.bf16.mxu0 0
        %2787 = vmatmul.mubr.bf16.gmra.mrb[0].mxu0 %v2419
        %v2788 = vpop.f32.mrb[0].mxu0
        %v2789 = vadd.f32 0.0, %v2788
        %v2790 = vpop.f32.mrb[0].mxu0
        %v2791 = vpop.f32.mrb[0].mxu0
        %v2792 = vadd.f32 0.0, %v2791
        %v2793 = vpop.f32.mrb[0].mxu0
        %2794 = vmatprep.mubr.bf16.mxu0 0
        %2795 = vmatmul.mubr.bf16.gmra.mrb[0].mxu0 %v2736
        %v2796 = vpop.f32.mrb[0].mxu0
        %v2797 = vadd.f32 0.0, %v2796
        %v2798 = vpop.f32.mrb[0].mxu0
        %v2799 = vpop.f32.mrb[0].mxu0
        %v2800 = vadd.f32 0.0, %v2799
        %v2801 = vpop.f32.mrb[0].mxu0
        %2802 = vdwg.mxu0
        %v2803 = vadd.f32 %v2693, %v2773
        %v2804 = vadd.f32 %v2694, %v2776
        %v2805 = vadd.f32 %v2695, %v2781
        %v2806 = vadd.f32 %v2696, %v2784
        %v2807 = vadd.f32 %v2697, %v2789
        %v2808 = vadd.f32 %v2698, %v2792
        %v2809 = vadd.f32 %v2699, %v2797
        %v2810 = vadd.f32 %v2700, %v2800
        %s2811 = scalar_lea.vmem %s7, 128
        %v2812 = vld [vmem:[%s2811] sm:$0xf]
        %v2813 = vld [vmem:[%s2811 + $0x4] sm:$0xf]
        %v2814 = vld [vmem:[%s2811 + $0x8] sm:$0xf]
        %v2815 = vld [vmem:[%s2811 + $0xc] sm:$0xf]
        %v2816 = vld [vmem:[%s2811 + $0x10] sm:$0xf]
        %v2817 = vld [vmem:[%s2811 + $0x14] sm:$0xf]
        %v2818 = vld [vmem:[%s2811 + $0x18] sm:$0xf]
        %v2819 = vld [vmem:[%s2811 + $0x1c] sm:$0xf]
        %v2828 = vunpack.c.l.b16 %v2812
        %v2829 = vunpack.c.l.b16 %v2813
        %v2830 = vunpack.c.l.b16 %v2814
        %v2831 = vunpack.c.l.b16 %v2815
        %v2832 = vunpack.c.l.b16 %v2816
        %v2833 = vunpack.c.l.b16 %v2817
        %v2834 = vunpack.c.l.b16 %v2818
        %v2835 = vunpack.c.l.b16 %v2819
        %v2836 = vpack.c.b16 %v2829, %v2828
        %v2837 = vpack.c.b16 %v2831, %v2830
        %v2838 = vpack.c.b16 %v2833, %v2832
        %v2839 = vpack.c.b16 %v2835, %v2834
        %2844 = vmatprep.subr.bf16.mxu0 0
        %2845 = vmatpush1.bf16.msra.mxu0 %v2836
        %2846 = vmatprep.subr.bf16.mxu0 0
        %2847 = vmatpush1.bf16.msra.mxu0 %v2837
        %2848 = vmatprep.subr.bf16.mxu0 0
        %2849 = vmatpush1.bf16.msra.mxu0 %v2838
        %2850 = vmatprep.subr.bf16.mxu0 0
        %2851 = vmatpush1.bf16.msra.mxu0 %v2839
        %2852 = vmatprep.subr.bf16.mxu0 0
        %2853 = vmatpush1.bf16.msra.mxu0 0
        %2854 = vmatprep.subr.bf16.mxu0 0
        %2855 = vmatpush1.bf16.msra.mxu0 0
        %2856 = vmatprep.subr.bf16.mxu0 0
        %2857 = vmatpush1.bf16.msra.mxu0 0
        %2858 = vmatprep.subr.bf16.mxu0 0
        %2859 = vmatpush1.bf16.msra.mxu0 0
        %2860 = vmatprep.subr.bf16.mxu0 0
        %2861 = vmatpush1.bf16.msra.mxu0 0
        %2862 = vmatprep.subr.bf16.mxu0 0
        %2863 = vmatpush1.bf16.msra.mxu0 0
        %2864 = vmatprep.subr.bf16.mxu0 0
        %2865 = vmatpush1.bf16.msra.mxu0 0
        %2866 = vmatprep.subr.bf16.mxu0 0
        %2867 = vmatpush1.bf16.msra.mxu0 0
        %2868 = vmatprep.subr.bf16.mxu0 0
        %2869 = vmatpush1.bf16.msra.mxu0 0
        %2870 = vmatprep.subr.bf16.mxu0 0
        %2871 = vmatpush1.bf16.msra.mxu0 0
        %2872 = vmatprep.subr.bf16.mxu0 0
        %2873 = vmatpush1.bf16.msra.mxu0 0
        %2874 = vmatprep.subr.bf16.mxu0 0
        %2875 = vmatpush1.bf16.msra.mxu0 0
        %2876 = vmatprep.mubr.bf16.mxu0 0
        %2877 = vmatmul.mubr.bf16.gmra.mrb[0].mxu0 %v2519
        %v2878 = vpop.f32.mrb[0].mxu0
        %v2879 = vadd.f32 0.0, %v2878
        %v2880 = vpop.f32.mrb[0].mxu0
        %v2881 = vpop.f32.mrb[0].mxu0
        %v2882 = vadd.f32 0.0, %v2881
        %v2883 = vpop.f32.mrb[0].mxu0
        %2884 = vmatprep.mubr.bf16.mxu0 0
        %2885 = vmatmul.mubr.bf16.gmra.mrb[0].mxu0 %v2522
        %v2886 = vpop.f32.mrb[0].mxu0
        %v2887 = vadd.f32 0.0, %v2886
        %v2888 = vpop.f32.mrb[0].mxu0
        %v2889 = vpop.f32.mrb[0].mxu0
        %v2890 = vadd.f32 0.0, %v2889
        %v2891 = vpop.f32.mrb[0].mxu0
        %2892 = vmatprep.mubr.bf16.mxu0 0
        %2893 = vmatmul.mubr.bf16.gmra.mrb[0].mxu0 %v2626
        %v2894 = vpop.f32.mrb[0].mxu0
        %v2895 = vadd.f32 0.0, %v2894
        %v2896 = vpop.f32.mrb[0].mxu0
        %v2897 = vpop.f32.mrb[0].mxu0
        %v2898 = vadd.f32 0.0, %v2897
        %v2899 = vpop.f32.mrb[0].mxu0
        %2900 = vmatprep.mubr.bf16.mxu0 0
        %2901 = vmatmul.mubr.bf16.gmra.mrb[0].mxu0 %v2513
        %v2902 = vpop.f32.mrb[0].mxu0
        %v2903 = vadd.f32 0.0, %v2902
        %v2904 = vpop.f32.mrb[0].mxu0
        %v2905 = vpop.f32.mrb[0].mxu0
        %v2906 = vadd.f32 0.0, %v2905
        %v2907 = vpop.f32.mrb[0].mxu0
        %2908 = vdwg.mxu0
        %v2909 = vadd.f32 %v2803, %v2879
        %v2910 = vadd.f32 %v2804, %v2882
        %v2911 = vadd.f32 %v2805, %v2887
        %v2912 = vadd.f32 %v2806, %v2890
        %v2913 = vadd.f32 %v2807, %v2895
        %v2914 = vadd.f32 %v2808, %v2898
        %v2915 = vadd.f32 %v2809, %v2903
        %v2916 = vadd.f32 %v2810, %v2906
        %v2917 = vld [vmem:[%s8] sm:$0x1]
        %v2919 = vlaneseq
        %v2920 = vshrl.u32 %v2919, 7
        %v2921 = vsub.s32 0, %v2920
        %v2922 = vrot.slane %v2917, %v2921
        %v2924 = vadd.f32 %v2909, %v2922
        %v2925 = vadd.f32 %v2910, %v2922
        %v2926 = vadd.f32 %v2911, %v2922
        %v2927 = vadd.f32 %v2912, %v2922
        %v2928 = vadd.f32 %v2913, %v2922
        %v2929 = vadd.f32 %v2914, %v2922
        %v2930 = vadd.f32 %v2915, %v2922
        %v2931 = vadd.f32 %v2916, %v2922
        %v2932 = vmax.f32 %v2924, 0.0
        %v2933 = vmax.f32 %v2925, 0.0
        %v2934 = vmax.f32 %v2926, 0.0
        %v2935 = vmax.f32 %v2927, 0.0
        %v2936 = vmax.f32 %v2928, 0.0
        %v2937 = vmax.f32 %v2929, 0.0
        %v2938 = vmax.f32 %v2930, 0.0
        %v2939 = vmax.f32 %v2931, 0.0
        %v2940 = vmax.f32 %v2932, %v2933
        %v2941 = vmax.f32 %v2934, %v2935
        %v2942 = vmax.f32 %v2936, %v2937
        %v2943 = vmax.f32 %v2938, %v2939
        %v2944 = vpack.c.bf16 %v2940, %v2940
        %v2945 = vpack.c.bf16 %v2941, %v2941
        %v2946 = vpack.c.bf16 %v2942, %v2942
        %v2947 = vpack.c.bf16 %v2943, %v2943
        %v2948 = vld [vmem:[%s9] sm:$0xf]
        %v2949 = vld [vmem:[%s9 + $0x4] sm:$0xf]
        %v2950 = vld [vmem:[%s9 + $0x8] sm:$0xf]
        %v2951 = vld [vmem:[%s9 + $0xc] sm:$0xf]
        %v2952 = vld [vmem:[%s9 + $0x10] sm:$0xf]
        %v2953 = vld [vmem:[%s9 + $0x14] sm:$0xf]
        %v2954 = vld [vmem:[%s9 + $0x18] sm:$0xf]
        %v2955 = vld [vmem:[%s9 + $0x1c] sm:$0xf]
        %s2956 = scalar_lea.vmem %s9, 32
        %v2957 = vld [vmem:[%s2956] sm:$0xf]
        %v2958 = vld [vmem:[%s2956 + $0x4] sm:$0xf]
        %v2959 = vld [vmem:[%s2956 + $0x8] sm:$0xf]
        %v2960 = vld [vmem:[%s2956 + $0xc] sm:$0xf]
        %v2961 = vld [vmem:[%s2956 + $0x10] sm:$0xf]
        %v2962 = vld [vmem:[%s2956 + $0x14] sm:$0xf]
        %v2963 = vld [vmem:[%s2956 + $0x18] sm:$0xf]
        %v2964 = vld [vmem:[%s2956 + $0x1c] sm:$0xf]
        %v2967 = vunpack.c.l.b16 %v2944
        %v2968 = vunpack.c.l.b16 %v2945
        %v2969 = vpack.c.b16 %v2968, %v2967
        %v2978 = vunpack.c.l.b16 %v2957
        %v2979 = vunpack.c.l.b16 %v2958
        %v2980 = vunpack.c.l.b16 %v2959
        %v2981 = vunpack.c.l.b16 %v2960
        %v2982 = vunpack.c.l.b16 %v2961
        %v2983 = vunpack.c.l.b16 %v2962
        %v2984 = vunpack.c.l.b16 %v2963
        %v2985 = vunpack.c.l.b16 %v2964
        %v2986 = vpack.c.b16 %v2979, %v2978
        %v2987 = vpack.c.b16 %v2981, %v2980
        %v2988 = vpack.c.b16 %v2983, %v2982
        %v2989 = vpack.c.b16 %v2985, %v2984
        %v2995 = vsel %vm2408, %v2969, 0
        %2997 = vmatprep.subr.bf16.mxu0 0
        %2998 = vmatpush1.bf16.msra.mxu0 %v2986
        %2999 = vmatprep.subr.bf16.mxu0 0
        %3000 = vmatpush1.bf16.msra.mxu0 %v2987
        %3001 = vmatprep.subr.bf16.mxu0 0
        %3002 = vmatpush1.bf16.msra.mxu0 %v2988
        %3003 = vmatprep.subr.bf16.mxu0 0
        %3004 = vmatpush1.bf16.msra.mxu0 %v2989
        %3005 = vmatprep.subr.bf16.mxu0 0
        %3006 = vmatpush1.bf16.msra.mxu0 0
        %3007 = vmatprep.subr.bf16.mxu0 0
        %3008 = vmatpush1.bf16.msra.mxu0 0
        %3009 = vmatprep.subr.bf16.mxu0 0
        %3010 = vmatpush1.bf16.msra.mxu0 0
        %3011 = vmatprep.subr.bf16.mxu0 0
        %3012 = vmatpush1.bf16.msra.mxu0 0
        %3013 = vmatprep.subr.bf16.mxu0 0
        %3014 = vmatpush1.bf16.msra.mxu0 0
        %3015 = vmatprep.subr.bf16.mxu0 0
        %3016 = vmatpush1.bf16.msra.mxu0 0
        %3017 = vmatprep.subr.bf16.mxu0 0
        %3018 = vmatpush1.bf16.msra.mxu0 0
        %3019 = vmatprep.subr.bf16.mxu0 0
        %3020 = vmatpush1.bf16.msra.mxu0 0
        %3021 = vmatprep.subr.bf16.mxu0 0
        %3022 = vmatpush1.bf16.msra.mxu0 0
        %3023 = vmatprep.subr.bf16.mxu0 0
        %3024 = vmatpush1.bf16.msra.mxu0 0
        %3025 = vmatprep.subr.bf16.mxu0 0
        %3026 = vmatpush1.bf16.msra.mxu0 0
        %3027 = vmatprep.subr.bf16.mxu0 0
        %3028 = vmatpush1.bf16.msra.mxu0 0
        %3029 = vmatprep.mubr.bf16.mxu0 0
        %3030 = vmatmul.mubr.bf16.gmra.mrb[0].mxu0 %v2513
        %v3031 = vpop.f32.mrb[0].mxu0
        %v3032 = vadd.f32 0.0, %v3031
        %v3033 = vpop.f32.mrb[0].mxu0
        %v3034 = vpop.f32.mrb[0].mxu0
        %v3035 = vadd.f32 0.0, %v3034
        %v3036 = vpop.f32.mrb[0].mxu0
        %3037 = vmatprep.mubr.bf16.mxu0 0
        %3038 = vmatmul.mubr.bf16.gmra.mrb[0].mxu0 %v2995
        %v3039 = vpop.f32.mrb[0].mxu0
        %v3040 = vadd.f32 0.0, %v3039
        %v3041 = vpop.f32.mrb[0].mxu0
        %v3042 = vpop.f32.mrb[0].mxu0
        %v3043 = vadd.f32 0.0, %v3042
        %v3044 = vpop.f32.mrb[0].mxu0
        %3045 = vdwg.mxu0
        %v3046 = vpack.c.b16 %v2967, %v1006
        %v3055 = vunpack.c.l.b16 %v2948
        %v3056 = vunpack.c.l.b16 %v2949
        %v3057 = vunpack.c.l.b16 %v2950
        %v3058 = vunpack.c.l.b16 %v2951
        %v3059 = vunpack.c.l.b16 %v2952
        %v3060 = vunpack.c.l.b16 %v2953
        %v3061 = vunpack.c.l.b16 %v2954
        %v3062 = vunpack.c.l.b16 %v2955
        %v3063 = vpack.c.b16 %v3056, %v3055
        %v3064 = vpack.c.b16 %v3058, %v3057
        %v3065 = vpack.c.b16 %v3060, %v3059
        %v3066 = vpack.c.b16 %v3062, %v3061
        %v3072 = vsel %vm2408, %v3046, 0
        %3074 = vmatprep.subr.bf16.mxu0 0
        %3075 = vmatpush1.bf16.msra.mxu0 %v3063
        %3076 = vmatprep.subr.bf16.mxu0 0
        %3077 = vmatpush1.bf16.msra.mxu0 %v3064
        %3078 = vmatprep.subr.bf16.mxu0 0
        %3079 = vmatpush1.bf16.msra.mxu0 %v3065
        %3080 = vmatprep.subr.bf16.mxu0 0
        %3081 = vmatpush1.bf16.msra.mxu0 %v3066
        %3082 = vmatprep.subr.bf16.mxu0 0
        %3083 = vmatpush1.bf16.msra.mxu0 0
        %3084 = vmatprep.subr.bf16.mxu0 0
        %3085 = vmatpush1.bf16.msra.mxu0 0
        %3086 = vmatprep.subr.bf16.mxu0 0
        %3087 = vmatpush1.bf16.msra.mxu0 0
        %3088 = vmatprep.subr.bf16.mxu0 0
        %3089 = vmatpush1.bf16.msra.mxu0 0
        %3090 = vmatprep.subr.bf16.mxu0 0
        %3091 = vmatpush1.bf16.msra.mxu0 0
        %3092 = vmatprep.subr.bf16.mxu0 0
        %3093 = vmatpush1.bf16.msra.mxu0 0
        %3094 = vmatprep.subr.bf16.mxu0 0
        %3095 = vmatpush1.bf16.msra.mxu0 0
        %3096 = vmatprep.subr.bf16.mxu0 0
        %3097 = vmatpush1.bf16.msra.mxu0 0
        %3098 = vmatprep.subr.bf16.mxu0 0
        %3099 = vmatpush1.bf16.msra.mxu0 0
        %3100 = vmatprep.subr.bf16.mxu0 0
        %3101 = vmatpush1.bf16.msra.mxu0 0
        %3102 = vmatprep.subr.bf16.mxu0 0
        %3103 = vmatpush1.bf16.msra.mxu0 0
        %3104 = vmatprep.subr.bf16.mxu0 0
        %3105 = vmatpush1.bf16.msra.mxu0 0
        %3106 = vmatprep.mubr.bf16.mxu0 0
        %3107 = vmatmul.mubr.bf16.gmra.mrb[0].mxu0 %v2513
        %v3108 = vpop.f32.mrb[0].mxu0
        %v3109 = vadd.f32 %v3032, %v3108
        %v3110 = vpop.f32.mrb[0].mxu0
        %v3111 = vpop.f32.mrb[0].mxu0
        %v3112 = vadd.f32 %v3035, %v3111
        %v3113 = vpop.f32.mrb[0].mxu0
        %3114 = vmatprep.mubr.bf16.mxu0 0
        %3115 = vmatmul.mubr.bf16.gmra.mrb[0].mxu0 %v3072
        %v3116 = vpop.f32.mrb[0].mxu0
        %v3117 = vadd.f32 %v3040, %v3116
        %v3118 = vpop.f32.mrb[0].mxu0
        %v3119 = vpop.f32.mrb[0].mxu0
        %v3120 = vadd.f32 %v3043, %v3119
        %v3121 = vpop.f32.mrb[0].mxu0
        %3122 = vdwg.mxu0
        %s3123 = scalar_lea.vmem %s9, 64
        %v3124 = vld [vmem:[%s3123] sm:$0xf]
        %v3125 = vld [vmem:[%s3123 + $0x4] sm:$0xf]
        %v3126 = vld [vmem:[%s3123 + $0x8] sm:$0xf]
        %v3127 = vld [vmem:[%s3123 + $0xc] sm:$0xf]
        %v3128 = vld [vmem:[%s3123 + $0x10] sm:$0xf]
        %v3129 = vld [vmem:[%s3123 + $0x14] sm:$0xf]
        %v3130 = vld [vmem:[%s3123 + $0x18] sm:$0xf]
        %v3131 = vld [vmem:[%s3123 + $0x1c] sm:$0xf]
        %v3133 = vunpack.c.l.b16 %v2946
        %v3134 = vpack.c.b16 %v3133, %v2968
        %v3143 = vunpack.c.l.b16 %v3124
        %v3144 = vunpack.c.l.b16 %v3125
        %v3145 = vunpack.c.l.b16 %v3126
        %v3146 = vunpack.c.l.b16 %v3127
        %v3147 = vunpack.c.l.b16 %v3128
        %v3148 = vunpack.c.l.b16 %v3129
        %v3149 = vunpack.c.l.b16 %v3130
        %v3150 = vunpack.c.l.b16 %v3131
        %v3151 = vpack.c.b16 %v3144, %v3143
        %v3152 = vpack.c.b16 %v3146, %v3145
        %v3153 = vpack.c.b16 %v3148, %v3147
        %v3154 = vpack.c.b16 %v3150, %v3149
        %v3160 = vsel %vm2408, %v3134, 0
        %3162 = vmatprep.subr.bf16.mxu0 0
        %3163 = vmatpush1.bf16.msra.mxu0 %v3151
        %3164 = vmatprep.subr.bf16.mxu0 0
        %3165 = vmatpush1.bf16.msra.mxu0 %v3152
        %3166 = vmatprep.subr.bf16.mxu0 0
        %3167 = vmatpush1.bf16.msra.mxu0 %v3153
        %3168 = vmatprep.subr.bf16.mxu0 0
        %3169 = vmatpush1.bf16.msra.mxu0 %v3154
        %3170 = vmatprep.subr.bf16.mxu0 0
        %3171 = vmatpush1.bf16.msra.mxu0 0
        %3172 = vmatprep.subr.bf16.mxu0 0
        %3173 = vmatpush1.bf16.msra.mxu0 0
        %3174 = vmatprep.subr.bf16.mxu0 0
        %3175 = vmatpush1.bf16.msra.mxu0 0
        %3176 = vmatprep.subr.bf16.mxu0 0
        %3177 = vmatpush1.bf16.msra.mxu0 0
        %3178 = vmatprep.subr.bf16.mxu0 0
        %3179 = vmatpush1.bf16.msra.mxu0 0
        %3180 = vmatprep.subr.bf16.mxu0 0
        %3181 = vmatpush1.bf16.msra.mxu0 0
        %3182 = vmatprep.subr.bf16.mxu0 0
        %3183 = vmatpush1.bf16.msra.mxu0 0
        %3184 = vmatprep.subr.bf16.mxu0 0
        %3185 = vmatpush1.bf16.msra.mxu0 0
        %3186 = vmatprep.subr.bf16.mxu0 0
        %3187 = vmatpush1.bf16.msra.mxu0 0
        %3188 = vmatprep.subr.bf16.mxu0 0
        %3189 = vmatpush1.bf16.msra.mxu0 0
        %3190 = vmatprep.subr.bf16.mxu0 0
        %3191 = vmatpush1.bf16.msra.mxu0 0
        %3192 = vmatprep.subr.bf16.mxu0 0
        %3193 = vmatpush1.bf16.msra.mxu0 0
        %3194 = vmatprep.mubr.bf16.mxu0 0
        %3195 = vmatmul.mubr.bf16.gmra.mrb[0].mxu0 %v3072
        %v3196 = vpop.f32.mrb[0].mxu0
        %v3197 = vadd.f32 0.0, %v3196
        %v3198 = vpop.f32.mrb[0].mxu0
        %v3199 = vpop.f32.mrb[0].mxu0
        %v3200 = vadd.f32 0.0, %v3199
        %v3201 = vpop.f32.mrb[0].mxu0
        %3202 = vmatprep.mubr.bf16.mxu0 0
        %3203 = vmatmul.mubr.bf16.gmra.mrb[0].mxu0 %v3160
        %v3204 = vpop.f32.mrb[0].mxu0
        %v3205 = vadd.f32 0.0, %v3204
        %v3206 = vpop.f32.mrb[0].mxu0
        %v3207 = vpop.f32.mrb[0].mxu0
        %v3208 = vadd.f32 0.0, %v3207
        %v3209 = vpop.f32.mrb[0].mxu0
        %3210 = vdwg.mxu0
        %v3211 = vadd.f32 %v3109, %v3197
        %v3212 = vadd.f32 %v3112, %v3200
        %v3213 = vadd.f32 %v3117, %v3205
        %v3214 = vadd.f32 %v3120, %v3208
        %s3215 = scalar_lea.vmem %s9, 96
        %v3216 = vld [vmem:[%s3215] sm:$0xf]
        %v3217 = vld [vmem:[%s3215 + $0x4] sm:$0xf]
        %v3218 = vld [vmem:[%s3215 + $0x8] sm:$0xf]
        %v3219 = vld [vmem:[%s3215 + $0xc] sm:$0xf]
        %v3220 = vld [vmem:[%s3215 + $0x10] sm:$0xf]
        %v3221 = vld [vmem:[%s3215 + $0x14] sm:$0xf]
        %v3222 = vld [vmem:[%s3215 + $0x18] sm:$0xf]
        %v3223 = vld [vmem:[%s3215 + $0x1c] sm:$0xf]
        %v3225 = vunpack.c.l.b16 %v2947
        %v3226 = vpack.c.b16 %v3225, %v3133
        %v3235 = vunpack.c.l.b16 %v3216
        %v3236 = vunpack.c.l.b16 %v3217
        %v3237 = vunpack.c.l.b16 %v3218
        %v3238 = vunpack.c.l.b16 %v3219
        %v3239 = vunpack.c.l.b16 %v3220
        %v3240 = vunpack.c.l.b16 %v3221
        %v3241 = vunpack.c.l.b16 %v3222
        %v3242 = vunpack.c.l.b16 %v3223
        %v3243 = vpack.c.b16 %v3236, %v3235
        %v3244 = vpack.c.b16 %v3238, %v3237
        %v3245 = vpack.c.b16 %v3240, %v3239
        %v3246 = vpack.c.b16 %v3242, %v3241
        %v3252 = vsel %vm2408, %v3226, 0
        %3254 = vmatprep.subr.bf16.mxu0 0
        %3255 = vmatpush1.bf16.msra.mxu0 %v3243
        %3256 = vmatprep.subr.bf16.mxu0 0
        %3257 = vmatpush1.bf16.msra.mxu0 %v3244
        %3258 = vmatprep.subr.bf16.mxu0 0
        %3259 = vmatpush1.bf16.msra.mxu0 %v3245
        %3260 = vmatprep.subr.bf16.mxu0 0
        %3261 = vmatpush1.bf16.msra.mxu0 %v3246
        %3262 = vmatprep.subr.bf16.mxu0 0
        %3263 = vmatpush1.bf16.msra.mxu0 0
        %3264 = vmatprep.subr.bf16.mxu0 0
        %3265 = vmatpush1.bf16.msra.mxu0 0
        %3266 = vmatprep.subr.bf16.mxu0 0
        %3267 = vmatpush1.bf16.msra.mxu0 0
        %3268 = vmatprep.subr.bf16.mxu0 0
        %3269 = vmatpush1.bf16.msra.mxu0 0
        %3270 = vmatprep.subr.bf16.mxu0 0
        %3271 = vmatpush1.bf16.msra.mxu0 0
        %3272 = vmatprep.subr.bf16.mxu0 0
        %3273 = vmatpush1.bf16.msra.mxu0 0
        %3274 = vmatprep.subr.bf16.mxu0 0
        %3275 = vmatpush1.bf16.msra.mxu0 0
        %3276 = vmatprep.subr.bf16.mxu0 0
        %3277 = vmatpush1.bf16.msra.mxu0 0
        %3278 = vmatprep.subr.bf16.mxu0 0
        %3279 = vmatpush1.bf16.msra.mxu0 0
        %3280 = vmatprep.subr.bf16.mxu0 0
        %3281 = vmatpush1.bf16.msra.mxu0 0
        %3282 = vmatprep.subr.bf16.mxu0 0
        %3283 = vmatpush1.bf16.msra.mxu0 0
        %3284 = vmatprep.subr.bf16.mxu0 0
        %3285 = vmatpush1.bf16.msra.mxu0 0
        %3286 = vmatprep.mubr.bf16.mxu0 0
        %3287 = vmatmul.mubr.bf16.gmra.mrb[0].mxu0 %v2995
        %v3288 = vpop.f32.mrb[0].mxu0
        %v3289 = vadd.f32 0.0, %v3288
        %v3290 = vpop.f32.mrb[0].mxu0
        %v3291 = vpop.f32.mrb[0].mxu0
        %v3292 = vadd.f32 0.0, %v3291
        %v3293 = vpop.f32.mrb[0].mxu0
        %3294 = vmatprep.mubr.bf16.mxu0 0
        %3295 = vmatmul.mubr.bf16.gmra.mrb[0].mxu0 %v3252
        %v3296 = vpop.f32.mrb[0].mxu0
        %v3297 = vadd.f32 0.0, %v3296
        %v3298 = vpop.f32.mrb[0].mxu0
        %v3299 = vpop.f32.mrb[0].mxu0
        %v3300 = vadd.f32 0.0, %v3299
        %v3301 = vpop.f32.mrb[0].mxu0
        %3302 = vdwg.mxu0
        %v3303 = vadd.f32 %v3211, %v3289
        %v3304 = vadd.f32 %v3212, %v3292
        %v3305 = vadd.f32 %v3213, %v3297
        %v3306 = vadd.f32 %v3214, %v3300
        %s3307 = scalar_lea.vmem %s9, 128
        %v3308 = vld [vmem:[%s3307] sm:$0xf]
        %v3309 = vld [vmem:[%s3307 + $0x4] sm:$0xf]
        %v3310 = vld [vmem:[%s3307 + $0x8] sm:$0xf]
        %v3311 = vld [vmem:[%s3307 + $0xc] sm:$0xf]
        %v3312 = vld [vmem:[%s3307 + $0x10] sm:$0xf]
        %v3313 = vld [vmem:[%s3307 + $0x14] sm:$0xf]
        %v3314 = vld [vmem:[%s3307 + $0x18] sm:$0xf]
        %v3315 = vld [vmem:[%s3307 + $0x1c] sm:$0xf]
        %v3316 = vpack.c.b16 %v1006, %v3225
        %v3325 = vunpack.c.l.b16 %v3308
        %v3326 = vunpack.c.l.b16 %v3309
        %v3327 = vunpack.c.l.b16 %v3310
        %v3328 = vunpack.c.l.b16 %v3311
        %v3329 = vunpack.c.l.b16 %v3312
        %v3330 = vunpack.c.l.b16 %v3313
        %v3331 = vunpack.c.l.b16 %v3314
        %v3332 = vunpack.c.l.b16 %v3315
        %v3333 = vpack.c.b16 %v3326, %v3325
        %v3334 = vpack.c.b16 %v3328, %v3327
        %v3335 = vpack.c.b16 %v3330, %v3329
        %v3336 = vpack.c.b16 %v3332, %v3331
        %v3342 = vsel %vm2408, %v3316, 0
        %3344 = vmatprep.subr.bf16.mxu0 0
        %3345 = vmatpush1.bf16.msra.mxu0 %v3333
        %3346 = vmatprep.subr.bf16.mxu0 0
        %3347 = vmatpush1.bf16.msra.mxu0 %v3334
        %3348 = vmatprep.subr.bf16.mxu0 0
        %3349 = vmatpush1.bf16.msra.mxu0 %v3335
        %3350 = vmatprep.subr.bf16.mxu0 0
        %3351 = vmatpush1.bf16.msra.mxu0 %v3336
        %3352 = vmatprep.subr.bf16.mxu0 0
        %3353 = vmatpush1.bf16.msra.mxu0 0
        %3354 = vmatprep.subr.bf16.mxu0 0
        %3355 = vmatpush1.bf16.msra.mxu0 0
        %3356 = vmatprep.subr.bf16.mxu0 0
        %3357 = vmatpush1.bf16.msra.mxu0 0
        %3358 = vmatprep.subr.bf16.mxu0 0
        %3359 = vmatpush1.bf16.msra.mxu0 0
        %3360 = vmatprep.subr.bf16.mxu0 0
        %3361 = vmatpush1.bf16.msra.mxu0 0
        %3362 = vmatprep.subr.bf16.mxu0 0
        %3363 = vmatpush1.bf16.msra.mxu0 0
        %3364 = vmatprep.subr.bf16.mxu0 0
        %3365 = vmatpush1.bf16.msra.mxu0 0
        %3366 = vmatprep.subr.bf16.mxu0 0
        %3367 = vmatpush1.bf16.msra.mxu0 0
        %3368 = vmatprep.subr.bf16.mxu0 0
        %3369 = vmatpush1.bf16.msra.mxu0 0
        %3370 = vmatprep.subr.bf16.mxu0 0
        %3371 = vmatpush1.bf16.msra.mxu0 0
        %3372 = vmatprep.subr.bf16.mxu0 0
        %3373 = vmatpush1.bf16.msra.mxu0 0
        %3374 = vmatprep.subr.bf16.mxu0 0
        %3375 = vmatpush1.bf16.msra.mxu0 0
        %3376 = vmatprep.mubr.bf16.mxu0 0
        %3377 = vmatmul.mubr.bf16.gmra.mrb[0].mxu0 %v3160
        %v3378 = vpop.f32.mrb[0].mxu0
        %v3379 = vadd.f32 0.0, %v3378
        %v3380 = vpop.f32.mrb[0].mxu0
        %v3381 = vpop.f32.mrb[0].mxu0
        %v3382 = vadd.f32 0.0, %v3381
        %v3383 = vpop.f32.mrb[0].mxu0
        %3384 = vmatprep.mubr.bf16.mxu0 0
        %3385 = vmatmul.mubr.bf16.gmra.mrb[0].mxu0 %v3342
        %v3386 = vpop.f32.mrb[0].mxu0
        %v3387 = vadd.f32 0.0, %v3386
        %v3388 = vpop.f32.mrb[0].mxu0
        %v3389 = vpop.f32.mrb[0].mxu0
        %v3390 = vadd.f32 0.0, %v3389
        %v3391 = vpop.f32.mrb[0].mxu0
        %3392 = vdwg.mxu0
        %v3393 = vadd.f32 %v3303, %v3379
        %v3394 = vadd.f32 %v3304, %v3382
        %v3395 = vadd.f32 %v3305, %v3387
        %v3396 = vadd.f32 %v3306, %v3390
        %s3397 = scalar_lea.vmem %s9, 160
        %v3398 = vld [vmem:[%s3397] sm:$0xf]
        %v3399 = vld [vmem:[%s3397 + $0x4] sm:$0xf]
        %v3400 = vld [vmem:[%s3397 + $0x8] sm:$0xf]
        %v3401 = vld [vmem:[%s3397 + $0xc] sm:$0xf]
        %v3402 = vld [vmem:[%s3397 + $0x10] sm:$0xf]
        %v3403 = vld [vmem:[%s3397 + $0x14] sm:$0xf]
        %v3404 = vld [vmem:[%s3397 + $0x18] sm:$0xf]
        %v3405 = vld [vmem:[%s3397 + $0x1c] sm:$0xf]
        %v3414 = vunpack.c.l.b16 %v3398
        %v3415 = vunpack.c.l.b16 %v3399
        %v3416 = vunpack.c.l.b16 %v3400
        %v3417 = vunpack.c.l.b16 %v3401
        %v3418 = vunpack.c.l.b16 %v3402
        %v3419 = vunpack.c.l.b16 %v3403
        %v3420 = vunpack.c.l.b16 %v3404
        %v3421 = vunpack.c.l.b16 %v3405
        %v3422 = vpack.c.b16 %v3415, %v3414
        %v3423 = vpack.c.b16 %v3417, %v3416
        %v3424 = vpack.c.b16 %v3419, %v3418
        %v3425 = vpack.c.b16 %v3421, %v3420
        %3430 = vmatprep.subr.bf16.mxu0 0
        %3431 = vmatpush1.bf16.msra.mxu0 %v3422
        %3432 = vmatprep.subr.bf16.mxu0 0
        %3433 = vmatpush1.bf16.msra.mxu0 %v3423
        %3434 = vmatprep.subr.bf16.mxu0 0
        %3435 = vmatpush1.bf16.msra.mxu0 %v3424
        %3436 = vmatprep.subr.bf16.mxu0 0
        %3437 = vmatpush1.bf16.msra.mxu0 %v3425
        %3438 = vmatprep.subr.bf16.mxu0 0
        %3439 = vmatpush1.bf16.msra.mxu0 0
        %3440 = vmatprep.subr.bf16.mxu0 0
        %3441 = vmatpush1.bf16.msra.mxu0 0
        %3442 = vmatprep.subr.bf16.mxu0 0
        %3443 = vmatpush1.bf16.msra.mxu0 0
        %3444 = vmatprep.subr.bf16.mxu0 0
        %3445 = vmatpush1.bf16.msra.mxu0 0
        %3446 = vmatprep.subr.bf16.mxu0 0
        %3447 = vmatpush1.bf16.msra.mxu0 0
        %3448 = vmatprep.subr.bf16.mxu0 0
        %3449 = vmatpush1.bf16.msra.mxu0 0
        %3450 = vmatprep.subr.bf16.mxu0 0
        %3451 = vmatpush1.bf16.msra.mxu0 0
        %3452 = vmatprep.subr.bf16.mxu0 0
        %3453 = vmatpush1.bf16.msra.mxu0 0
        %3454 = vmatprep.subr.bf16.mxu0 0
        %3455 = vmatpush1.bf16.msra.mxu0 0
        %3456 = vmatprep.subr.bf16.mxu0 0
        %3457 = vmatpush1.bf16.msra.mxu0 0
        %3458 = vmatprep.subr.bf16.mxu0 0
        %3459 = vmatpush1.bf16.msra.mxu0 0
        %3460 = vmatprep.subr.bf16.mxu0 0
        %3461 = vmatpush1.bf16.msra.mxu0 0
        %3462 = vmatprep.mubr.bf16.mxu0 0
        %3463 = vmatmul.mubr.bf16.gmra.mrb[0].mxu0 %v3252
        %v3464 = vpop.f32.mrb[0].mxu0
        %v3465 = vadd.f32 0.0, %v3464
        %v3466 = vpop.f32.mrb[0].mxu0
        %v3467 = vpop.f32.mrb[0].mxu0
        %v3468 = vadd.f32 0.0, %v3467
        %v3469 = vpop.f32.mrb[0].mxu0
        %3470 = vmatprep.mubr.bf16.mxu0 0
        %3471 = vmatmul.mubr.bf16.gmra.mrb[0].mxu0 %v2513
        %v3472 = vpop.f32.mrb[0].mxu0
        %v3473 = vadd.f32 0.0, %v3472
        %v3474 = vpop.f32.mrb[0].mxu0
        %v3475 = vpop.f32.mrb[0].mxu0
        %v3476 = vadd.f32 0.0, %v3475
        %v3477 = vpop.f32.mrb[0].mxu0
        %3478 = vdwg.mxu0
        %v3479 = vadd.f32 %v3393, %v3465
        %v3480 = vadd.f32 %v3394, %v3468
        %v3481 = vadd.f32 %v3395, %v3473
        %v3482 = vadd.f32 %v3396, %v3476
        %s3483 = scalar_lea.vmem %s9, 192
        %v3484 = vld [vmem:[%s3483] sm:$0xf]
        %v3485 = vld [vmem:[%s3483 + $0x4] sm:$0xf]
        %v3486 = vld [vmem:[%s3483 + $0x8] sm:$0xf]
        %v3487 = vld [vmem:[%s3483 + $0xc] sm:$0xf]
        %v3488 = vld [vmem:[%s3483 + $0x10] sm:$0xf]
        %v3489 = vld [vmem:[%s3483 + $0x14] sm:$0xf]
        %v3490 = vld [vmem:[%s3483 + $0x18] sm:$0xf]
        %v3491 = vld [vmem:[%s3483 + $0x1c] sm:$0xf]
        %v3500 = vunpack.c.l.b16 %v3484
        %v3501 = vunpack.c.l.b16 %v3485
        %v3502 = vunpack.c.l.b16 %v3486
        %v3503 = vunpack.c.l.b16 %v3487
        %v3504 = vunpack.c.l.b16 %v3488
        %v3505 = vunpack.c.l.b16 %v3489
        %v3506 = vunpack.c.l.b16 %v3490
        %v3507 = vunpack.c.l.b16 %v3491
        %v3508 = vpack.c.b16 %v3501, %v3500
        %v3509 = vpack.c.b16 %v3503, %v3502
        %v3510 = vpack.c.b16 %v3505, %v3504
        %v3511 = vpack.c.b16 %v3507, %v3506
        %3516 = vmatprep.subr.bf16.mxu0 0
        %3517 = vmatpush1.bf16.msra.mxu0 %v3508
        %3518 = vmatprep.subr.bf16.mxu0 0
        %3519 = vmatpush1.bf16.msra.mxu0 %v3509
        %3520 = vmatprep.subr.bf16.mxu0 0
        %3521 = vmatpush1.bf16.msra.mxu0 %v3510
        %3522 = vmatprep.subr.bf16.mxu0 0
        %3523 = vmatpush1.bf16.msra.mxu0 %v3511
        %3524 = vmatprep.subr.bf16.mxu0 0
        %3525 = vmatpush1.bf16.msra.mxu0 0
        %3526 = vmatprep.subr.bf16.mxu0 0
        %3527 = vmatpush1.bf16.msra.mxu0 0
        %3528 = vmatprep.subr.bf16.mxu0 0
        %3529 = vmatpush1.bf16.msra.mxu0 0
        %3530 = vmatprep.subr.bf16.mxu0 0
        %3531 = vmatpush1.bf16.msra.mxu0 0
        %3532 = vmatprep.subr.bf16.mxu0 0
        %3533 = vmatpush1.bf16.msra.mxu0 0
        %3534 = vmatprep.subr.bf16.mxu0 0
        %3535 = vmatpush1.bf16.msra.mxu0 0
        %3536 = vmatprep.subr.bf16.mxu0 0
        %3537 = vmatpush1.bf16.msra.mxu0 0
        %3538 = vmatprep.subr.bf16.mxu0 0
        %3539 = vmatpush1.bf16.msra.mxu0 0
        %3540 = vmatprep.subr.bf16.mxu0 0
        %3541 = vmatpush1.bf16.msra.mxu0 0
        %3542 = vmatprep.subr.bf16.mxu0 0
        %3543 = vmatpush1.bf16.msra.mxu0 0
        %3544 = vmatprep.subr.bf16.mxu0 0
        %3545 = vmatpush1.bf16.msra.mxu0 0
        %3546 = vmatprep.subr.bf16.mxu0 0
        %3547 = vmatpush1.bf16.msra.mxu0 0
        %3548 = vmatprep.mubr.bf16.mxu0 0
        %3549 = vmatmul.mubr.bf16.gmra.mrb[0].mxu0 %v3342
        %v3550 = vpop.f32.mrb[0].mxu0
        %v3551 = vadd.f32 0.0, %v3550
        %v3552 = vpop.f32.mrb[0].mxu0
        %v3553 = vpop.f32.mrb[0].mxu0
        %v3554 = vadd.f32 0.0, %v3553
        %v3555 = vpop.f32.mrb[0].mxu0
        %3556 = vmatprep.mubr.bf16.mxu0 0
        %3557 = vmatmul.mubr.bf16.gmra.mrb[0].mxu0 %v2513
        %v3558 = vpop.f32.mrb[0].mxu0
        %v3559 = vadd.f32 0.0, %v3558
        %v3560 = vpop.f32.mrb[0].mxu0
        %v3561 = vpop.f32.mrb[0].mxu0
        %v3562 = vadd.f32 0.0, %v3561
        %v3563 = vpop.f32.mrb[0].mxu0
        %3564 = vdwg.mxu0
        %v3565 = vadd.f32 %v3479, %v3551
        %v3566 = vadd.f32 %v3480, %v3554
        %v3567 = vadd.f32 %v3481, %v3559
        %v3568 = vadd.f32 %v3482, %v3562
        %v3569 = vld [vmem:[%s10] sm:$0x1]
        %v3571 = vlaneseq
        %v3572 = vshrl.u32 %v3571, 7
        %v3573 = vsub.s32 0, %v3572
        %v3574 = vrot.slane %v3569, %v3573
        %v3576 = vadd.f32 %v3565, %v3574
        %v3577 = vadd.f32 %v3566, %v3574
        %v3578 = vadd.f32 %v3567, %v3574
        %v3579 = vadd.f32 %v3568, %v3574
        %v3580 = vmax.f32 %v3576, 0.0
        %v3581 = vmax.f32 %v3577, 0.0
        %v3582 = vmax.f32 %v3578, 0.0
        %v3583 = vmax.f32 %v3579, 0.0
        %v3584 = vpack.c.bf16 %v3580, %v3580
        %v3585 = vpack.c.bf16 %v3581, %v3581
        %v3586 = vpack.c.bf16 %v3582, %v3582
        %v3587 = vpack.c.bf16 %v3583, %v3583
        %v3588 = vld [vmem:[%s11] sm:$0xf]
        %v3589 = vld [vmem:[%s11 + $0x4] sm:$0xf]
        %v3590 = vld [vmem:[%s11 + $0x8] sm:$0xf]
        %v3591 = vld [vmem:[%s11 + $0xc] sm:$0xf]
        %v3592 = vld [vmem:[%s11 + $0x10] sm:$0xf]
        %v3593 = vld [vmem:[%s11 + $0x14] sm:$0xf]
        %v3594 = vld [vmem:[%s11 + $0x18] sm:$0xf]
        %v3595 = vld [vmem:[%s11 + $0x1c] sm:$0xf]
        %v3596 = vld [vmem:[%s11 + $0x20] sm:$0xf]
        %v3597 = vld [vmem:[%s11 + $0x24] sm:$0xf]
        %v3598 = vld [vmem:[%s11 + $0x28] sm:$0xf]
        %v3599 = vld [vmem:[%s11 + $0x2c] sm:$0xf]
        %v3600 = vld [vmem:[%s11 + $0x30] sm:$0xf]
        %v3601 = vld [vmem:[%s11 + $0x34] sm:$0xf]
        %v3602 = vld [vmem:[%s11 + $0x38] sm:$0xf]
        %v3603 = vld [vmem:[%s11 + $0x3c] sm:$0xf]
        %s3604 = scalar_lea.vmem %s11, 64
        %v3605 = vld [vmem:[%s3604] sm:$0xf]
        %v3606 = vld [vmem:[%s3604 + $0x4] sm:$0xf]
        %v3607 = vld [vmem:[%s3604 + $0x8] sm:$0xf]
        %v3608 = vld [vmem:[%s3604 + $0xc] sm:$0xf]
        %v3609 = vld [vmem:[%s3604 + $0x10] sm:$0xf]
        %v3610 = vld [vmem:[%s3604 + $0x14] sm:$0xf]
        %v3611 = vld [vmem:[%s3604 + $0x18] sm:$0xf]
        %v3612 = vld [vmem:[%s3604 + $0x1c] sm:$0xf]
        %v3613 = vld [vmem:[%s3604 + $0x20] sm:$0xf]
        %v3614 = vld [vmem:[%s3604 + $0x24] sm:$0xf]
        %v3615 = vld [vmem:[%s3604 + $0x28] sm:$0xf]
        %v3616 = vld [vmem:[%s3604 + $0x2c] sm:$0xf]
        %v3617 = vld [vmem:[%s3604 + $0x30] sm:$0xf]
        %v3618 = vld [vmem:[%s3604 + $0x34] sm:$0xf]
        %v3619 = vld [vmem:[%s3604 + $0x38] sm:$0xf]
        %v3620 = vld [vmem:[%s3604 + $0x3c] sm:$0xf]
        %v3623 = vunpack.c.l.b16 %v3584
        %v3624 = vunpack.c.l.b16 %v3585
        %v3625 = vpack.c.b16 %v3624, %v3623
        %v3644 = vunpack.c.l.b16 %v3605
        %v3645 = vunpack.c.l.b16 %v3606
        %v3646 = vunpack.c.l.b16 %v3607
        %v3647 = vunpack.c.l.b16 %v3608
        %v3648 = vunpack.c.l.b16 %v3609
        %v3649 = vunpack.c.l.b16 %v3610
        %v3650 = vunpack.c.l.b16 %v3611
        %v3651 = vunpack.c.l.b16 %v3612
        %v3652 = vunpack.c.l.b16 %v3613
        %v3653 = vunpack.c.l.b16 %v3614
        %v3654 = vunpack.c.l.b16 %v3615
        %v3655 = vunpack.c.l.b16 %v3616
        %v3656 = vunpack.c.l.b16 %v3617
        %v3657 = vunpack.c.l.b16 %v3618
        %v3658 = vunpack.c.l.b16 %v3619
        %v3659 = vunpack.c.l.b16 %v3620
        %v3660 = vpack.c.b16 %v3645, %v3644
        %v3661 = vpack.c.b16 %v3647, %v3646
        %v3662 = vpack.c.b16 %v3649, %v3648
        %v3663 = vpack.c.b16 %v3651, %v3650
        %v3664 = vpack.c.b16 %v3653, %v3652
        %v3665 = vpack.c.b16 %v3655, %v3654
        %v3666 = vpack.c.b16 %v3657, %v3656
        %v3667 = vpack.c.b16 %v3659, %v3658
        %3676 = vmatprep.subr.bf16.mxu0 0
        %3677 = vmatpush1.bf16.msra.mxu0 %v3660
        %3678 = vmatprep.subr.bf16.mxu0 0
        %3679 = vmatpush1.bf16.msra.mxu0 %v3661
        %3680 = vmatprep.subr.bf16.mxu0 0
        %3681 = vmatpush1.bf16.msra.mxu0 %v3662
        %3682 = vmatprep.subr.bf16.mxu0 0
        %3683 = vmatpush1.bf16.msra.mxu0 %v3663
        %3684 = vmatprep.subr.bf16.mxu0 0
        %3685 = vmatpush1.bf16.msra.mxu0 %v3664
        %3686 = vmatprep.subr.bf16.mxu0 0
        %3687 = vmatpush1.bf16.msra.mxu0 %v3665
        %3688 = vmatprep.subr.bf16.mxu0 0
        %3689 = vmatpush1.bf16.msra.mxu0 %v3666
        %3690 = vmatprep.subr.bf16.mxu0 0
        %3691 = vmatpush1.bf16.msra.mxu0 %v3667
        %3692 = vmatprep.subr.bf16.mxu0 0
        %3693 = vmatpush1.bf16.msra.mxu0 0
        %3694 = vmatprep.subr.bf16.mxu0 0
        %3695 = vmatpush1.bf16.msra.mxu0 0
        %3696 = vmatprep.subr.bf16.mxu0 0
        %3697 = vmatpush1.bf16.msra.mxu0 0
        %3698 = vmatprep.subr.bf16.mxu0 0
        %3699 = vmatpush1.bf16.msra.mxu0 0
        %3700 = vmatprep.subr.bf16.mxu0 0
        %3701 = vmatpush1.bf16.msra.mxu0 0
        %3702 = vmatprep.subr.bf16.mxu0 0
        %3703 = vmatpush1.bf16.msra.mxu0 0
        %3704 = vmatprep.subr.bf16.mxu0 0
        %3705 = vmatpush1.bf16.msra.mxu0 0
        %3706 = vmatprep.subr.bf16.mxu0 0
        %3707 = vmatpush1.bf16.msra.mxu0 0
        %3708 = vmatprep.mubr.bf16.mxu0 0
        %3709 = vmatmul.mubr.bf16.gmra.mrb[0].mxu0 %v1945
        %v3710 = vpop.f32.mrb[0].mxu0
        %v3711 = vadd.f32 0.0, %v3710
        %v3712 = vpop.f32.mrb[0].mxu0
        %v3713 = vpop.f32.mrb[0].mxu0
        %v3714 = vadd.f32 0.0, %v3713
        %v3715 = vpop.f32.mrb[0].mxu0
        %3716 = vmatprep.mubr.bf16.mxu0 0
        %3717 = vmatmul.mubr.bf16.gmra.mrb[0].mxu0 %v3625
        %v3718 = vpop.f32.mrb[0].mxu0
        %v3719 = vadd.f32 0.0, %v3718
        %v3720 = vpop.f32.mrb[0].mxu0
        %v3721 = vpop.f32.mrb[0].mxu0
        %v3722 = vadd.f32 0.0, %v3721
        %v3723 = vpop.f32.mrb[0].mxu0
        %3724 = vdwg.mxu0
        %v3725 = vpack.c.b16 %v3623, %v1006
        %v3743 = vunpack.c.l.b16 %v3588
        %v3744 = vunpack.c.l.b16 %v3589
        %v3745 = vunpack.c.l.b16 %v3590
        %v3746 = vunpack.c.l.b16 %v3591
        %v3747 = vunpack.c.l.b16 %v3592
        %v3748 = vunpack.c.l.b16 %v3593
        %v3749 = vunpack.c.l.b16 %v3594
        %v3750 = vunpack.c.l.b16 %v3595
        %v3751 = vunpack.c.l.b16 %v3596
        %v3752 = vunpack.c.l.b16 %v3597
        %v3753 = vunpack.c.l.b16 %v3598
        %v3754 = vunpack.c.l.b16 %v3599
        %v3755 = vunpack.c.l.b16 %v3600
        %v3756 = vunpack.c.l.b16 %v3601
        %v3757 = vunpack.c.l.b16 %v3602
        %v3758 = vunpack.c.l.b16 %v3603
        %v3759 = vpack.c.b16 %v3744, %v3743
        %v3760 = vpack.c.b16 %v3746, %v3745
        %v3761 = vpack.c.b16 %v3748, %v3747
        %v3762 = vpack.c.b16 %v3750, %v3749
        %v3763 = vpack.c.b16 %v3752, %v3751
        %v3764 = vpack.c.b16 %v3754, %v3753
        %v3765 = vpack.c.b16 %v3756, %v3755
        %v3766 = vpack.c.b16 %v3758, %v3757
        %3775 = vmatprep.subr.bf16.mxu0 0
        %3776 = vmatpush1.bf16.msra.mxu0 %v3759
        %3777 = vmatprep.subr.bf16.mxu0 0
        %3778 = vmatpush1.bf16.msra.mxu0 %v3760
        %3779 = vmatprep.subr.bf16.mxu0 0
        %3780 = vmatpush1.bf16.msra.mxu0 %v3761
        %3781 = vmatprep.subr.bf16.mxu0 0
        %3782 = vmatpush1.bf16.msra.mxu0 %v3762
        %3783 = vmatprep.subr.bf16.mxu0 0
        %3784 = vmatpush1.bf16.msra.mxu0 %v3763
        %3785 = vmatprep.subr.bf16.mxu0 0
        %3786 = vmatpush1.bf16.msra.mxu0 %v3764
        %3787 = vmatprep.subr.bf16.mxu0 0
        %3788 = vmatpush1.bf16.msra.mxu0 %v3765
        %3789 = vmatprep.subr.bf16.mxu0 0
        %3790 = vmatpush1.bf16.msra.mxu0 %v3766
        %3791 = vmatprep.subr.bf16.mxu0 0
        %3792 = vmatpush1.bf16.msra.mxu0 0
        %3793 = vmatprep.subr.bf16.mxu0 0
        %3794 = vmatpush1.bf16.msra.mxu0 0
        %3795 = vmatprep.subr.bf16.mxu0 0
        %3796 = vmatpush1.bf16.msra.mxu0 0
        %3797 = vmatprep.subr.bf16.mxu0 0
        %3798 = vmatpush1.bf16.msra.mxu0 0
        %3799 = vmatprep.subr.bf16.mxu0 0
        %3800 = vmatpush1.bf16.msra.mxu0 0
        %3801 = vmatprep.subr.bf16.mxu0 0
        %3802 = vmatpush1.bf16.msra.mxu0 0
        %3803 = vmatprep.subr.bf16.mxu0 0
        %3804 = vmatpush1.bf16.msra.mxu0 0
        %3805 = vmatprep.subr.bf16.mxu0 0
        %3806 = vmatpush1.bf16.msra.mxu0 0
        %3807 = vmatprep.mubr.bf16.mxu0 0
        %3808 = vmatmul.mubr.bf16.gmra.mrb[0].mxu0 %v1945
        %v3809 = vpop.f32.mrb[0].mxu0
        %v3810 = vadd.f32 %v3711, %v3809
        %v3811 = vpop.f32.mrb[0].mxu0
        %v3812 = vpop.f32.mrb[0].mxu0
        %v3813 = vadd.f32 %v3714, %v3812
        %v3814 = vpop.f32.mrb[0].mxu0
        %3815 = vmatprep.mubr.bf16.mxu0 0
        %3816 = vmatmul.mubr.bf16.gmra.mrb[0].mxu0 %v3725
        %v3817 = vpop.f32.mrb[0].mxu0
        %v3818 = vadd.f32 %v3719, %v3817
        %v3819 = vpop.f32.mrb[0].mxu0
        %v3820 = vpop.f32.mrb[0].mxu0
        %v3821 = vadd.f32 %v3722, %v3820
        %v3822 = vpop.f32.mrb[0].mxu0
        %3823 = vdwg.mxu0
        %s3824 = scalar_lea.vmem %s11, 128
        %v3825 = vld [vmem:[%s3824] sm:$0xf]
        %v3826 = vld [vmem:[%s3824 + $0x4] sm:$0xf]
        %v3827 = vld [vmem:[%s3824 + $0x8] sm:$0xf]
        %v3828 = vld [vmem:[%s3824 + $0xc] sm:$0xf]
        %v3829 = vld [vmem:[%s3824 + $0x10] sm:$0xf]
        %v3830 = vld [vmem:[%s3824 + $0x14] sm:$0xf]
        %v3831 = vld [vmem:[%s3824 + $0x18] sm:$0xf]
        %v3832 = vld [vmem:[%s3824 + $0x1c] sm:$0xf]
        %v3833 = vld [vmem:[%s3824 + $0x20] sm:$0xf]
        %v3834 = vld [vmem:[%s3824 + $0x24] sm:$0xf]
        %v3835 = vld [vmem:[%s3824 + $0x28] sm:$0xf]
        %v3836 = vld [vmem:[%s3824 + $0x2c] sm:$0xf]
        %v3837 = vld [vmem:[%s3824 + $0x30] sm:$0xf]
        %v3838 = vld [vmem:[%s3824 + $0x34] sm:$0xf]
        %v3839 = vld [vmem:[%s3824 + $0x38] sm:$0xf]
        %v3840 = vld [vmem:[%s3824 + $0x3c] sm:$0xf]
        %v3842 = vunpack.c.l.b16 %v3586
        %v3843 = vpack.c.b16 %v3842, %v3624
        %v3861 = vunpack.c.l.b16 %v3825
        %v3862 = vunpack.c.l.b16 %v3826
        %v3863 = vunpack.c.l.b16 %v3827
        %v3864 = vunpack.c.l.b16 %v3828
        %v3865 = vunpack.c.l.b16 %v3829
        %v3866 = vunpack.c.l.b16 %v3830
        %v3867 = vunpack.c.l.b16 %v3831
        %v3868 = vunpack.c.l.b16 %v3832
        %v3869 = vunpack.c.l.b16 %v3833
        %v3870 = vunpack.c.l.b16 %v3834
        %v3871 = vunpack.c.l.b16 %v3835
        %v3872 = vunpack.c.l.b16 %v3836
        %v3873 = vunpack.c.l.b16 %v3837
        %v3874 = vunpack.c.l.b16 %v3838
        %v3875 = vunpack.c.l.b16 %v3839
        %v3876 = vunpack.c.l.b16 %v3840
        %v3877 = vpack.c.b16 %v3862, %v3861
        %v3878 = vpack.c.b16 %v3864, %v3863
        %v3879 = vpack.c.b16 %v3866, %v3865
        %v3880 = vpack.c.b16 %v3868, %v3867
        %v3881 = vpack.c.b16 %v3870, %v3869
        %v3882 = vpack.c.b16 %v3872, %v3871
        %v3883 = vpack.c.b16 %v3874, %v3873
        %v3884 = vpack.c.b16 %v3876, %v3875
        %3893 = vmatprep.subr.bf16.mxu0 0
        %3894 = vmatpush1.bf16.msra.mxu0 %v3877
        %3895 = vmatprep.subr.bf16.mxu0 0
        %3896 = vmatpush1.bf16.msra.mxu0 %v3878
        %3897 = vmatprep.subr.bf16.mxu0 0
        %3898 = vmatpush1.bf16.msra.mxu0 %v3879
        %3899 = vmatprep.subr.bf16.mxu0 0
        %3900 = vmatpush1.bf16.msra.mxu0 %v3880
        %3901 = vmatprep.subr.bf16.mxu0 0
        %3902 = vmatpush1.bf16.msra.mxu0 %v3881
        %3903 = vmatprep.subr.bf16.mxu0 0
        %3904 = vmatpush1.bf16.msra.mxu0 %v3882
        %3905 = vmatprep.subr.bf16.mxu0 0
        %3906 = vmatpush1.bf16.msra.mxu0 %v3883
        %3907 = vmatprep.subr.bf16.mxu0 0
        %3908 = vmatpush1.bf16.msra.mxu0 %v3884
        %3909 = vmatprep.subr.bf16.mxu0 0
        %3910 = vmatpush1.bf16.msra.mxu0 0
        %3911 = vmatprep.subr.bf16.mxu0 0
        %3912 = vmatpush1.bf16.msra.mxu0 0
        %3913 = vmatprep.subr.bf16.mxu0 0
        %3914 = vmatpush1.bf16.msra.mxu0 0
        %3915 = vmatprep.subr.bf16.mxu0 0
        %3916 = vmatpush1.bf16.msra.mxu0 0
        %3917 = vmatprep.subr.bf16.mxu0 0
        %3918 = vmatpush1.bf16.msra.mxu0 0
        %3919 = vmatprep.subr.bf16.mxu0 0
        %3920 = vmatpush1.bf16.msra.mxu0 0
        %3921 = vmatprep.subr.bf16.mxu0 0
        %3922 = vmatpush1.bf16.msra.mxu0 0
        %3923 = vmatprep.subr.bf16.mxu0 0
        %3924 = vmatpush1.bf16.msra.mxu0 0
        %3925 = vmatprep.mubr.bf16.mxu0 0
        %3926 = vmatmul.mubr.bf16.gmra.mrb[0].mxu0 %v3725
        %v3927 = vpop.f32.mrb[0].mxu0
        %v3928 = vadd.f32 0.0, %v3927
        %v3929 = vpop.f32.mrb[0].mxu0
        %v3930 = vpop.f32.mrb[0].mxu0
        %v3931 = vadd.f32 0.0, %v3930
        %v3932 = vpop.f32.mrb[0].mxu0
        %3933 = vmatprep.mubr.bf16.mxu0 0
        %3934 = vmatmul.mubr.bf16.gmra.mrb[0].mxu0 %v3843
        %v3935 = vpop.f32.mrb[0].mxu0
        %v3936 = vadd.f32 0.0, %v3935
        %v3937 = vpop.f32.mrb[0].mxu0
        %v3938 = vpop.f32.mrb[0].mxu0
        %v3939 = vadd.f32 0.0, %v3938
        %v3940 = vpop.f32.mrb[0].mxu0
        %3941 = vdwg.mxu0
        %v3942 = vadd.f32 %v3810, %v3928
        %v3943 = vadd.f32 %v3813, %v3931
        %v3944 = vadd.f32 %v3818, %v3936
        %v3945 = vadd.f32 %v3821, %v3939
        %s3946 = scalar_lea.vmem %s11, 192
        %v3947 = vld [vmem:[%s3946] sm:$0xf]
        %v3948 = vld [vmem:[%s3946 + $0x4] sm:$0xf]
        %v3949 = vld [vmem:[%s3946 + $0x8] sm:$0xf]
        %v3950 = vld [vmem:[%s3946 + $0xc] sm:$0xf]
        %v3951 = vld [vmem:[%s3946 + $0x10] sm:$0xf]
        %v3952 = vld [vmem:[%s3946 + $0x14] sm:$0xf]
        %v3953 = vld [vmem:[%s3946 + $0x18] sm:$0xf]
        %v3954 = vld [vmem:[%s3946 + $0x1c] sm:$0xf]
        %v3955 = vld [vmem:[%s3946 + $0x20] sm:$0xf]
        %v3956 = vld [vmem:[%s3946 + $0x24] sm:$0xf]
        %v3957 = vld [vmem:[%s3946 + $0x28] sm:$0xf]
        %v3958 = vld [vmem:[%s3946 + $0x2c] sm:$0xf]
        %v3959 = vld [vmem:[%s3946 + $0x30] sm:$0xf]
        %v3960 = vld [vmem:[%s3946 + $0x34] sm:$0xf]
        %v3961 = vld [vmem:[%s3946 + $0x38] sm:$0xf]
        %v3962 = vld [vmem:[%s3946 + $0x3c] sm:$0xf]
        %v3964 = vunpack.c.l.b16 %v3587
        %v3965 = vpack.c.b16 %v3964, %v3842
        %v3983 = vunpack.c.l.b16 %v3947
        %v3984 = vunpack.c.l.b16 %v3948
        %v3985 = vunpack.c.l.b16 %v3949
        %v3986 = vunpack.c.l.b16 %v3950
        %v3987 = vunpack.c.l.b16 %v3951
        %v3988 = vunpack.c.l.b16 %v3952
        %v3989 = vunpack.c.l.b16 %v3953
        %v3990 = vunpack.c.l.b16 %v3954
        %v3991 = vunpack.c.l.b16 %v3955
        %v3992 = vunpack.c.l.b16 %v3956
        %v3993 = vunpack.c.l.b16 %v3957
        %v3994 = vunpack.c.l.b16 %v3958
        %v3995 = vunpack.c.l.b16 %v3959
        %v3996 = vunpack.c.l.b16 %v3960
        %v3997 = vunpack.c.l.b16 %v3961
        %v3998 = vunpack.c.l.b16 %v3962
        %v3999 = vpack.c.b16 %v3984, %v3983
        %v4000 = vpack.c.b16 %v3986, %v3985
        %v4001 = vpack.c.b16 %v3988, %v3987
        %v4002 = vpack.c.b16 %v3990, %v3989
        %v4003 = vpack.c.b16 %v3992, %v3991
        %v4004 = vpack.c.b16 %v3994, %v3993
        %v4005 = vpack.c.b16 %v3996, %v3995
        %v4006 = vpack.c.b16 %v3998, %v3997
        %4015 = vmatprep.subr.bf16.mxu0 0
        %4016 = vmatpush1.bf16.msra.mxu0 %v3999
        %4017 = vmatprep.subr.bf16.mxu0 0
        %4018 = vmatpush1.bf16.msra.mxu0 %v4000
        %4019 = vmatprep.subr.bf16.mxu0 0
        %4020 = vmatpush1.bf16.msra.mxu0 %v4001
        %4021 = vmatprep.subr.bf16.mxu0 0
        %4022 = vmatpush1.bf16.msra.mxu0 %v4002
        %4023 = vmatprep.subr.bf16.mxu0 0
        %4024 = vmatpush1.bf16.msra.mxu0 %v4003
        %4025 = vmatprep.subr.bf16.mxu0 0
        %4026 = vmatpush1.bf16.msra.mxu0 %v4004
        %4027 = vmatprep.subr.bf16.mxu0 0
        %4028 = vmatpush1.bf16.msra.mxu0 %v4005
        %4029 = vmatprep.subr.bf16.mxu0 0
        %4030 = vmatpush1.bf16.msra.mxu0 %v4006
        %4031 = vmatprep.subr.bf16.mxu0 0
        %4032 = vmatpush1.bf16.msra.mxu0 0
        %4033 = vmatprep.subr.bf16.mxu0 0
        %4034 = vmatpush1.bf16.msra.mxu0 0
        %4035 = vmatprep.subr.bf16.mxu0 0
        %4036 = vmatpush1.bf16.msra.mxu0 0
        %4037 = vmatprep.subr.bf16.mxu0 0
        %4038 = vmatpush1.bf16.msra.mxu0 0
        %4039 = vmatprep.subr.bf16.mxu0 0
        %4040 = vmatpush1.bf16.msra.mxu0 0
        %4041 = vmatprep.subr.bf16.mxu0 0
        %4042 = vmatpush1.bf16.msra.mxu0 0
        %4043 = vmatprep.subr.bf16.mxu0 0
        %4044 = vmatpush1.bf16.msra.mxu0 0
        %4045 = vmatprep.subr.bf16.mxu0 0
        %4046 = vmatpush1.bf16.msra.mxu0 0
        %4047 = vmatprep.mubr.bf16.mxu0 0
        %4048 = vmatmul.mubr.bf16.gmra.mrb[0].mxu0 %v3625
        %v4049 = vpop.f32.mrb[0].mxu0
        %v4050 = vadd.f32 0.0, %v4049
        %v4051 = vpop.f32.mrb[0].mxu0
        %v4052 = vpop.f32.mrb[0].mxu0
        %v4053 = vadd.f32 0.0, %v4052
        %v4054 = vpop.f32.mrb[0].mxu0
        %4055 = vmatprep.mubr.bf16.mxu0 0
        %4056 = vmatmul.mubr.bf16.gmra.mrb[0].mxu0 %v3965
        %v4057 = vpop.f32.mrb[0].mxu0
        %v4058 = vadd.f32 0.0, %v4057
        %v4059 = vpop.f32.mrb[0].mxu0
        %v4060 = vpop.f32.mrb[0].mxu0
        %v4061 = vadd.f32 0.0, %v4060
        %v4062 = vpop.f32.mrb[0].mxu0
        %4063 = vdwg.mxu0
        %v4064 = vadd.f32 %v3942, %v4050
        %v4065 = vadd.f32 %v3943, %v4053
        %v4066 = vadd.f32 %v3944, %v4058
        %v4067 = vadd.f32 %v3945, %v4061
        %s4068 = scalar_lea.vmem %s11, 256
        %v4069 = vld [vmem:[%s4068] sm:$0xf]
        %v4070 = vld [vmem:[%s4068 + $0x4] sm:$0xf]
        %v4071 = vld [vmem:[%s4068 + $0x8] sm:$0xf]
        %v4072 = vld [vmem:[%s4068 + $0xc] sm:$0xf]
        %v4073 = vld [vmem:[%s4068 + $0x10] sm:$0xf]
        %v4074 = vld [vmem:[%s4068 + $0x14] sm:$0xf]
        %v4075 = vld [vmem:[%s4068 + $0x18] sm:$0xf]
        %v4076 = vld [vmem:[%s4068 + $0x1c] sm:$0xf]
        %v4077 = vld [vmem:[%s4068 + $0x20] sm:$0xf]
        %v4078 = vld [vmem:[%s4068 + $0x24] sm:$0xf]
        %v4079 = vld [vmem:[%s4068 + $0x28] sm:$0xf]
        %v4080 = vld [vmem:[%s4068 + $0x2c] sm:$0xf]
        %v4081 = vld [vmem:[%s4068 + $0x30] sm:$0xf]
        %v4082 = vld [vmem:[%s4068 + $0x34] sm:$0xf]
        %v4083 = vld [vmem:[%s4068 + $0x38] sm:$0xf]
        %v4084 = vld [vmem:[%s4068 + $0x3c] sm:$0xf]
        %v4085 = vpack.c.b16 %v1006, %v3964
        %v4103 = vunpack.c.l.b16 %v4069
        %v4104 = vunpack.c.l.b16 %v4070
        %v4105 = vunpack.c.l.b16 %v4071
        %v4106 = vunpack.c.l.b16 %v4072
        %v4107 = vunpack.c.l.b16 %v4073
        %v4108 = vunpack.c.l.b16 %v4074
        %v4109 = vunpack.c.l.b16 %v4075
        %v4110 = vunpack.c.l.b16 %v4076
        %v4111 = vunpack.c.l.b16 %v4077
        %v4112 = vunpack.c.l.b16 %v4078
        %v4113 = vunpack.c.l.b16 %v4079
        %v4114 = vunpack.c.l.b16 %v4080
        %v4115 = vunpack.c.l.b16 %v4081
        %v4116 = vunpack.c.l.b16 %v4082
        %v4117 = vunpack.c.l.b16 %v4083
        %v4118 = vunpack.c.l.b16 %v4084
        %v4119 = vpack.c.b16 %v4104, %v4103
        %v4120 = vpack.c.b16 %v4106, %v4105
        %v4121 = vpack.c.b16 %v4108, %v4107
        %v4122 = vpack.c.b16 %v4110, %v4109
        %v4123 = vpack.c.b16 %v4112, %v4111
        %v4124 = vpack.c.b16 %v4114, %v4113
        %v4125 = vpack.c.b16 %v4116, %v4115
        %v4126 = vpack.c.b16 %v4118, %v4117
        %4135 = vmatprep.subr.bf16.mxu0 0
        %4136 = vmatpush1.bf16.msra.mxu0 %v4119
        %4137 = vmatprep.subr.bf16.mxu0 0
        %4138 = vmatpush1.bf16.msra.mxu0 %v4120
        %4139 = vmatprep.subr.bf16.mxu0 0
        %4140 = vmatpush1.bf16.msra.mxu0 %v4121
        %4141 = vmatprep.subr.bf16.mxu0 0
        %4142 = vmatpush1.bf16.msra.mxu0 %v4122
        %4143 = vmatprep.subr.bf16.mxu0 0
        %4144 = vmatpush1.bf16.msra.mxu0 %v4123
        %4145 = vmatprep.subr.bf16.mxu0 0
        %4146 = vmatpush1.bf16.msra.mxu0 %v4124
        %4147 = vmatprep.subr.bf16.mxu0 0
        %4148 = vmatpush1.bf16.msra.mxu0 %v4125
        %4149 = vmatprep.subr.bf16.mxu0 0
        %4150 = vmatpush1.bf16.msra.mxu0 %v4126
        %4151 = vmatprep.subr.bf16.mxu0 0
        %4152 = vmatpush1.bf16.msra.mxu0 0
        %4153 = vmatprep.subr.bf16.mxu0 0
        %4154 = vmatpush1.bf16.msra.mxu0 0
        %4155 = vmatprep.subr.bf16.mxu0 0
        %4156 = vmatpush1.bf16.msra.mxu0 0
        %4157 = vmatprep.subr.bf16.mxu0 0
        %4158 = vmatpush1.bf16.msra.mxu0 0
        %4159 = vmatprep.subr.bf16.mxu0 0
        %4160 = vmatpush1.bf16.msra.mxu0 0
        %4161 = vmatprep.subr.bf16.mxu0 0
        %4162 = vmatpush1.bf16.msra.mxu0 0
        %4163 = vmatprep.subr.bf16.mxu0 0
        %4164 = vmatpush1.bf16.msra.mxu0 0
        %4165 = vmatprep.subr.bf16.mxu0 0
        %4166 = vmatpush1.bf16.msra.mxu0 0
        %4167 = vmatprep.mubr.bf16.mxu0 0
        %4168 = vmatmul.mubr.bf16.gmra.mrb[0].mxu0 %v3843
        %v4169 = vpop.f32.mrb[0].mxu0
        %v4170 = vadd.f32 0.0, %v4169
        %v4171 = vpop.f32.mrb[0].mxu0
        %v4172 = vpop.f32.mrb[0].mxu0
        %v4173 = vadd.f32 0.0, %v4172
        %v4174 = vpop.f32.mrb[0].mxu0
        %4175 = vmatprep.mubr.bf16.mxu0 0
        %4176 = vmatmul.mubr.bf16.gmra.mrb[0].mxu0 %v4085
        %v4177 = vpop.f32.mrb[0].mxu0
        %v4178 = vadd.f32 0.0, %v4177
        %v4179 = vpop.f32.mrb[0].mxu0
        %v4180 = vpop.f32.mrb[0].mxu0
        %v4181 = vadd.f32 0.0, %v4180
        %v4182 = vpop.f32.mrb[0].mxu0
        %4183 = vdwg.mxu0
        %v4184 = vadd.f32 %v4064, %v4170
        %v4185 = vadd.f32 %v4065, %v4173
        %v4186 = vadd.f32 %v4066, %v4178
        %v4187 = vadd.f32 %v4067, %v4181
        %s4188 = scalar_lea.vmem %s11, 320
        %v4189 = vld [vmem:[%s4188] sm:$0xf]
        %v4190 = vld [vmem:[%s4188 + $0x4] sm:$0xf]
        %v4191 = vld [vmem:[%s4188 + $0x8] sm:$0xf]
        %v4192 = vld [vmem:[%s4188 + $0xc] sm:$0xf]
        %v4193 = vld [vmem:[%s4188 + $0x10] sm:$0xf]
        %v4194 = vld [vmem:[%s4188 + $0x14] sm:$0xf]
        %v4195 = vld [vmem:[%s4188 + $0x18] sm:$0xf]
        %v4196 = vld [vmem:[%s4188 + $0x1c] sm:$0xf]
        %v4197 = vld [vmem:[%s4188 + $0x20] sm:$0xf]
        %v4198 = vld [vmem:[%s4188 + $0x24] sm:$0xf]
        %v4199 = vld [vmem:[%s4188 + $0x28] sm:$0xf]
        %v4200 = vld [vmem:[%s4188 + $0x2c] sm:$0xf]
        %v4201 = vld [vmem:[%s4188 + $0x30] sm:$0xf]
        %v4202 = vld [vmem:[%s4188 + $0x34] sm:$0xf]
        %v4203 = vld [vmem:[%s4188 + $0x38] sm:$0xf]
        %v4204 = vld [vmem:[%s4188 + $0x3c] sm:$0xf]
        %v4221 = vunpack.c.l.b16 %v4189
        %v4222 = vunpack.c.l.b16 %v4190
        %v4223 = vunpack.c.l.b16 %v4191
        %v4224 = vunpack.c.l.b16 %v4192
        %v4225 = vunpack.c.l.b16 %v4193
        %v4226 = vunpack.c.l.b16 %v4194
        %v4227 = vunpack.c.l.b16 %v4195
        %v4228 = vunpack.c.l.b16 %v4196
        %v4229 = vunpack.c.l.b16 %v4197
        %v4230 = vunpack.c.l.b16 %v4198
        %v4231 = vunpack.c.l.b16 %v4199
        %v4232 = vunpack.c.l.b16 %v4200
        %v4233 = vunpack.c.l.b16 %v4201
        %v4234 = vunpack.c.l.b16 %v4202
        %v4235 = vunpack.c.l.b16 %v4203
        %v4236 = vunpack.c.l.b16 %v4204
        %v4237 = vpack.c.b16 %v4222, %v4221
        %v4238 = vpack.c.b16 %v4224, %v4223
        %v4239 = vpack.c.b16 %v4226, %v4225
        %v4240 = vpack.c.b16 %v4228, %v4227
        %v4241 = vpack.c.b16 %v4230, %v4229
        %v4242 = vpack.c.b16 %v4232, %v4231
        %v4243 = vpack.c.b16 %v4234, %v4233
        %v4244 = vpack.c.b16 %v4236, %v4235
        %4253 = vmatprep.subr.bf16.mxu0 0
        %4254 = vmatpush1.bf16.msra.mxu0 %v4237
        %4255 = vmatprep.subr.bf16.mxu0 0
        %4256 = vmatpush1.bf16.msra.mxu0 %v4238
        %4257 = vmatprep.subr.bf16.mxu0 0
        %4258 = vmatpush1.bf16.msra.mxu0 %v4239
        %4259 = vmatprep.subr.bf16.mxu0 0
        %4260 = vmatpush1.bf16.msra.mxu0 %v4240
        %4261 = vmatprep.subr.bf16.mxu0 0
        %4262 = vmatpush1.bf16.msra.mxu0 %v4241
        %4263 = vmatprep.subr.bf16.mxu0 0
        %4264 = vmatpush1.bf16.msra.mxu0 %v4242
        %4265 = vmatprep.subr.bf16.mxu0 0
        %4266 = vmatpush1.bf16.msra.mxu0 %v4243
        %4267 = vmatprep.subr.bf16.mxu0 0
        %4268 = vmatpush1.bf16.msra.mxu0 %v4244
        %4269 = vmatprep.subr.bf16.mxu0 0
        %4270 = vmatpush1.bf16.msra.mxu0 0
        %4271 = vmatprep.subr.bf16.mxu0 0
        %4272 = vmatpush1.bf16.msra.mxu0 0
        %4273 = vmatprep.subr.bf16.mxu0 0
        %4274 = vmatpush1.bf16.msra.mxu0 0
        %4275 = vmatprep.subr.bf16.mxu0 0
        %4276 = vmatpush1.bf16.msra.mxu0 0
        %4277 = vmatprep.subr.bf16.mxu0 0
        %4278 = vmatpush1.bf16.msra.mxu0 0
        %4279 = vmatprep.subr.bf16.mxu0 0
        %4280 = vmatpush1.bf16.msra.mxu0 0
        %4281 = vmatprep.subr.bf16.mxu0 0
        %4282 = vmatpush1.bf16.msra.mxu0 0
        %4283 = vmatprep.subr.bf16.mxu0 0
        %4284 = vmatpush1.bf16.msra.mxu0 0
        %4285 = vmatprep.mubr.bf16.mxu0 0
        %4286 = vmatmul.mubr.bf16.gmra.mrb[0].mxu0 %v3965
        %v4287 = vpop.f32.mrb[0].mxu0
        %v4288 = vadd.f32 0.0, %v4287
        %v4289 = vpop.f32.mrb[0].mxu0
        %v4290 = vpop.f32.mrb[0].mxu0
        %v4291 = vadd.f32 0.0, %v4290
        %v4292 = vpop.f32.mrb[0].mxu0
        %4293 = vmatprep.mubr.bf16.mxu0 0
        %4294 = vmatmul.mubr.bf16.gmra.mrb[0].mxu0 %v1945
        %v4295 = vpop.f32.mrb[0].mxu0
        %v4296 = vadd.f32 0.0, %v4295
        %v4297 = vpop.f32.mrb[0].mxu0
        %v4298 = vpop.f32.mrb[0].mxu0
        %v4299 = vadd.f32 0.0, %v4298
        %v4300 = vpop.f32.mrb[0].mxu0
        %4301 = vdwg.mxu0
        %v4302 = vadd.f32 %v4184, %v4288
        %v4303 = vadd.f32 %v4185, %v4291
        %v4304 = vadd.f32 %v4186, %v4296
        %v4305 = vadd.f32 %v4187, %v4299
        %s4306 = scalar_lea.vmem %s11, 384
        %v4307 = vld [vmem:[%s4306] sm:$0xf]
        %v4308 = vld [vmem:[%s4306 + $0x4] sm:$0xf]
        %v4309 = vld [vmem:[%s4306 + $0x8] sm:$0xf]
        %v4310 = vld [vmem:[%s4306 + $0xc] sm:$0xf]
        %v4311 = vld [vmem:[%s4306 + $0x10] sm:$0xf]
        %v4312 = vld [vmem:[%s4306 + $0x14] sm:$0xf]
        %v4313 = vld [vmem:[%s4306 + $0x18] sm:$0xf]
        %v4314 = vld [vmem:[%s4306 + $0x1c] sm:$0xf]
        %v4315 = vld [vmem:[%s4306 + $0x20] sm:$0xf]
        %v4316 = vld [vmem:[%s4306 + $0x24] sm:$0xf]
        %v4317 = vld [vmem:[%s4306 + $0x28] sm:$0xf]
        %v4318 = vld [vmem:[%s4306 + $0x2c] sm:$0xf]
        %v4319 = vld [vmem:[%s4306 + $0x30] sm:$0xf]
        %v4320 = vld [vmem:[%s4306 + $0x34] sm:$0xf]
        %v4321 = vld [vmem:[%s4306 + $0x38] sm:$0xf]
        %v4322 = vld [vmem:[%s4306 + $0x3c] sm:$0xf]
        %v4339 = vunpack.c.l.b16 %v4307
        %v4340 = vunpack.c.l.b16 %v4308
        %v4341 = vunpack.c.l.b16 %v4309
        %v4342 = vunpack.c.l.b16 %v4310
        %v4343 = vunpack.c.l.b16 %v4311
        %v4344 = vunpack.c.l.b16 %v4312
        %v4345 = vunpack.c.l.b16 %v4313
        %v4346 = vunpack.c.l.b16 %v4314
        %v4347 = vunpack.c.l.b16 %v4315
        %v4348 = vunpack.c.l.b16 %v4316
        %v4349 = vunpack.c.l.b16 %v4317
        %v4350 = vunpack.c.l.b16 %v4318
        %v4351 = vunpack.c.l.b16 %v4319
        %v4352 = vunpack.c.l.b16 %v4320
        %v4353 = vunpack.c.l.b16 %v4321
        %v4354 = vunpack.c.l.b16 %v4322
        %v4355 = vpack.c.b16 %v4340, %v4339
        %v4356 = vpack.c.b16 %v4342, %v4341
        %v4357 = vpack.c.b16 %v4344, %v4343
        %v4358 = vpack.c.b16 %v4346, %v4345
        %v4359 = vpack.c.b16 %v4348, %v4347
        %v4360 = vpack.c.b16 %v4350, %v4349
        %v4361 = vpack.c.b16 %v4352, %v4351
        %v4362 = vpack.c.b16 %v4354, %v4353
        %4371 = vmatprep.subr.bf16.mxu0 0
        %4372 = vmatpush1.bf16.msra.mxu0 %v4355
        %4373 = vmatprep.subr.bf16.mxu0 0
        %4374 = vmatpush1.bf16.msra.mxu0 %v4356
        %4375 = vmatprep.subr.bf16.mxu0 0
        %4376 = vmatpush1.bf16.msra.mxu0 %v4357
        %4377 = vmatprep.subr.bf16.mxu0 0
        %4378 = vmatpush1.bf16.msra.mxu0 %v4358
        %4379 = vmatprep.subr.bf16.mxu0 0
        %4380 = vmatpush1.bf16.msra.mxu0 %v4359
        %4381 = vmatprep.subr.bf16.mxu0 0
        %4382 = vmatpush1.bf16.msra.mxu0 %v4360
        %4383 = vmatprep.subr.bf16.mxu0 0
        %4384 = vmatpush1.bf16.msra.mxu0 %v4361
        %4385 = vmatprep.subr.bf16.mxu0 0
        %4386 = vmatpush1.bf16.msra.mxu0 %v4362
        %4387 = vmatprep.subr.bf16.mxu0 0
        %4388 = vmatpush1.bf16.msra.mxu0 0
        %4389 = vmatprep.subr.bf16.mxu0 0
        %4390 = vmatpush1.bf16.msra.mxu0 0
        %4391 = vmatprep.subr.bf16.mxu0 0
        %4392 = vmatpush1.bf16.msra.mxu0 0
        %4393 = vmatprep.subr.bf16.mxu0 0
        %4394 = vmatpush1.bf16.msra.mxu0 0
        %4395 = vmatprep.subr.bf16.mxu0 0
        %4396 = vmatpush1.bf16.msra.mxu0 0
        %4397 = vmatprep.subr.bf16.mxu0 0
        %4398 = vmatpush1.bf16.msra.mxu0 0
        %4399 = vmatprep.subr.bf16.mxu0 0
        %4400 = vmatpush1.bf16.msra.mxu0 0
        %4401 = vmatprep.subr.bf16.mxu0 0
        %4402 = vmatpush1.bf16.msra.mxu0 0
        %4403 = vmatprep.mubr.bf16.mxu0 0
        %4404 = vmatmul.mubr.bf16.gmra.mrb[0].mxu0 %v4085
        %v4405 = vpop.f32.mrb[0].mxu0
        %v4406 = vadd.f32 0.0, %v4405
        %v4407 = vpop.f32.mrb[0].mxu0
        %v4408 = vpop.f32.mrb[0].mxu0
        %v4409 = vadd.f32 0.0, %v4408
        %v4410 = vpop.f32.mrb[0].mxu0
        %4411 = vmatprep.mubr.bf16.mxu0 0
        %4412 = vmatmul.mubr.bf16.gmra.mrb[0].mxu0 %v1945
        %v4413 = vpop.f32.mrb[0].mxu0
        %v4414 = vadd.f32 0.0, %v4413
        %v4415 = vpop.f32.mrb[0].mxu0
        %v4416 = vpop.f32.mrb[0].mxu0
        %v4417 = vadd.f32 0.0, %v4416
        %v4418 = vpop.f32.mrb[0].mxu0
        %4419 = vdwg.mxu0
        %v4420 = vadd.f32 %v4302, %v4406
        %v4421 = vadd.f32 %v4303, %v4409
        %v4422 = vadd.f32 %v4304, %v4414
        %v4423 = vadd.f32 %v4305, %v4417
        %v4424 = vld [vmem:[%s12] sm:$0x1]
        %v4426 = vlaneseq
        %v4427 = vshrl.u32 %v4426, 7
        %v4428 = vsub.s32 0, %v4427
        %v4429 = vrot.slane %v4424, %v4428
        %v4431 = vadd.f32 %v4420, %v4429
        %v4432 = vadd.f32 %v4421, %v4429
        %v4433 = vadd.f32 %v4422, %v4429
        %v4434 = vadd.f32 %v4423, %v4429
        %v4435 = vmax.f32 %v4431, 0.0
        %v4436 = vmax.f32 %v4432, 0.0
        %v4437 = vmax.f32 %v4433, 0.0
        %v4438 = vmax.f32 %v4434, 0.0
        %v4439 = vmax.f32 %v4435, %v4436
        %v4440 = vmax.f32 %v4437, %v4438
        %v4441 = vpack.c.bf16 %v4439, %v4439
        %v4442 = vpack.c.bf16 %v4440, %v4440
        %v4443 = vld [vmem:[%s13] sm:$0xff]
        %v4444 = vld [vmem:[%s13 + $0x8] sm:$0xff]
        %v4445 = vld [vmem:[%s13 + $0x10] sm:$0xff]
        %v4446 = vld [vmem:[%s13 + $0x18] sm:$0xff]
        %v4447 = vld [vmem:[%s13 + $0x20] sm:$0xff]
        %v4448 = vld [vmem:[%s13 + $0x28] sm:$0xff]
        %v4449 = vld [vmem:[%s13 + $0x30] sm:$0xff]
        %v4450 = vld [vmem:[%s13 + $0x38] sm:$0xff]
        %v4451 = vld [vmem:[%s13 + $0x40] sm:$0xff]
        %v4452 = vld [vmem:[%s13 + $0x48] sm:$0xff]
        %v4453 = vld [vmem:[%s13 + $0x50] sm:$0xff]
        %v4454 = vld [vmem:[%s13 + $0x58] sm:$0xff]
        %v4455 = vld [vmem:[%s13 + $0x60] sm:$0xff]
        %v4456 = vld [vmem:[%s13 + $0x68] sm:$0xff]
        %v4457 = vld [vmem:[%s13 + $0x70] sm:$0xff]
        %v4458 = vld [vmem:[%s13 + $0x78] sm:$0xff]
        %s4459 = scalar_lea.vmem %s13, 128
        %v4460 = vld [vmem:[%s4459] sm:$0xff]
        %v4461 = vld [vmem:[%s4459 + $0x8] sm:$0xff]
        %v4462 = vld [vmem:[%s4459 + $0x10] sm:$0xff]
        %v4463 = vld [vmem:[%s4459 + $0x18] sm:$0xff]
        %v4464 = vld [vmem:[%s4459 + $0x20] sm:$0xff]
        %v4465 = vld [vmem:[%s4459 + $0x28] sm:$0xff]
        %v4466 = vld [vmem:[%s4459 + $0x30] sm:$0xff]
        %v4467 = vld [vmem:[%s4459 + $0x38] sm:$0xff]
        %v4468 = vld [vmem:[%s4459 + $0x40] sm:$0xff]
        %v4469 = vld [vmem:[%s4459 + $0x48] sm:$0xff]
        %v4470 = vld [vmem:[%s4459 + $0x50] sm:$0xff]
        %v4471 = vld [vmem:[%s4459 + $0x58] sm:$0xff]
        %v4472 = vld [vmem:[%s4459 + $0x60] sm:$0xff]
        %v4473 = vld [vmem:[%s4459 + $0x68] sm:$0xff]
        %v4474 = vld [vmem:[%s4459 + $0x70] sm:$0xff]
        %v4475 = vld [vmem:[%s4459 + $0x78] sm:$0xff]
        %v4477 = vunpack.c.l.b16 %v4441
        %v4478 = vpack.c.b16 %v4477, %v1006
        %v4496 = vunpack.c.l.b16 %v4460
        %v4497 = vunpack.c.h.b16 %v4460
        %v4498 = vunpack.c.l.b16 %v4461
        %v4499 = vunpack.c.h.b16 %v4461
        %v4500 = vunpack.c.l.b16 %v4462
        %v4501 = vunpack.c.h.b16 %v4462
        %v4502 = vunpack.c.l.b16 %v4463
        %v4503 = vunpack.c.h.b16 %v4463
        %v4504 = vunpack.c.l.b16 %v4464
        %v4505 = vunpack.c.h.b16 %v4464
        %v4506 = vunpack.c.l.b16 %v4465
        %v4507 = vunpack.c.h.b16 %v4465
        %v4508 = vunpack.c.l.b16 %v4466
        %v4509 = vunpack.c.h.b16 %v4466
        %v4510 = vunpack.c.l.b16 %v4467
        %v4511 = vunpack.c.h.b16 %v4467
        %v4512 = vunpack.c.l.b16 %v4468
        %v4513 = vunpack.c.h.b16 %v4468
        %v4514 = vunpack.c.l.b16 %v4469
        %v4515 = vunpack.c.h.b16 %v4469
        %v4516 = vunpack.c.l.b16 %v4470
        %v4517 = vunpack.c.h.b16 %v4470
        %v4518 = vunpack.c.l.b16 %v4471
        %v4519 = vunpack.c.h.b16 %v4471
        %v4520 = vunpack.c.l.b16 %v4472
        %v4521 = vunpack.c.h.b16 %v4472
        %v4522 = vunpack.c.l.b16 %v4473
        %v4523 = vunpack.c.h.b16 %v4473
        %v4524 = vunpack.c.l.b16 %v4474
        %v4525 = vunpack.c.h.b16 %v4474
        %v4526 = vunpack.c.l.b16 %v4475
        %v4527 = vunpack.c.h.b16 %v4475
        %v4528 = vpack.c.b16 %v4498, %v4496
        %v4529 = vpack.c.b16 %v4499, %v4497
        %v4530 = vpack.c.b16 %v4502, %v4500
        %v4531 = vpack.c.b16 %v4503, %v4501
        %v4532 = vpack.c.b16 %v4506, %v4504
        %v4533 = vpack.c.b16 %v4507, %v4505
        %v4534 = vpack.c.b16 %v4510, %v4508
        %v4535 = vpack.c.b16 %v4511, %v4509
        %v4536 = vpack.c.b16 %v4514, %v4512
        %v4537 = vpack.c.b16 %v4515, %v4513
        %v4538 = vpack.c.b16 %v4518, %v4516
        %v4539 = vpack.c.b16 %v4519, %v4517
        %v4540 = vpack.c.b16 %v4522, %v4520
        %v4541 = vpack.c.b16 %v4523, %v4521
        %v4542 = vpack.c.b16 %v4526, %v4524
        %v4543 = vpack.c.b16 %v4527, %v4525
        %4560 = vmatprep.subr.bf16.mxu0 %v4529
        %4561 = vmatpush1.bf16.msra.mxu0 %v4528
        %4562 = vmatprep.subr.bf16.mxu0 %v4531
        %4563 = vmatpush1.bf16.msra.mxu0 %v4530
        %4564 = vmatprep.subr.bf16.mxu0 %v4533
        %4565 = vmatpush1.bf16.msra.mxu0 %v4532
        %4566 = vmatprep.subr.bf16.mxu0 %v4535
        %4567 = vmatpush1.bf16.msra.mxu0 %v4534
        %4568 = vmatprep.subr.bf16.mxu0 %v4537
        %4569 = vmatpush1.bf16.msra.mxu0 %v4536
        %4570 = vmatprep.subr.bf16.mxu0 %v4539
        %4571 = vmatpush1.bf16.msra.mxu0 %v4538
        %4572 = vmatprep.subr.bf16.mxu0 %v4541
        %4573 = vmatpush1.bf16.msra.mxu0 %v4540
        %4574 = vmatprep.subr.bf16.mxu0 %v4543
        %4575 = vmatpush1.bf16.msra.mxu0 %v4542
        %4576 = vmatprep.subr.bf16.mxu0 0
        %4577 = vmatpush1.bf16.msra.mxu0 0
        %4578 = vmatprep.subr.bf16.mxu0 0
        %4579 = vmatpush1.bf16.msra.mxu0 0
        %4580 = vmatprep.subr.bf16.mxu0 0
        %4581 = vmatpush1.bf16.msra.mxu0 0
        %4582 = vmatprep.subr.bf16.mxu0 0
        %4583 = vmatpush1.bf16.msra.mxu0 0
        %4584 = vmatprep.subr.bf16.mxu0 0
        %4585 = vmatpush1.bf16.msra.mxu0 0
        %4586 = vmatprep.subr.bf16.mxu0 0
        %4587 = vmatpush1.bf16.msra.mxu0 0
        %4588 = vmatprep.subr.bf16.mxu0 0
        %4589 = vmatpush1.bf16.msra.mxu0 0
        %4590 = vmatprep.subr.bf16.mxu0 0
        %4591 = vmatpush1.bf16.msra.mxu0 0
        %4592 = vmatprep.mubr.bf16.mxu0 0
        %4593 = vmatmul.mubr.bf16.gmra.mrb[0].mxu0 %v4478
        %v4594 = vpop.f32.mrb[0].mxu0
        %v4595 = vadd.f32 0.0, %v4594
        %v4596 = vpop.f32.mrb[0].mxu0
        %v4597 = vadd.f32 0.0, %v4596
        %v4598 = vpop.f32.mrb[0].mxu0
        %v4599 = vadd.f32 0.0, %v4598
        %v4600 = vpop.f32.mrb[0].mxu0
        %v4601 = vadd.f32 0.0, %v4600
        %4602 = vdwg.mxu0
        %v4619 = vunpack.c.l.b16 %v4443
        %v4620 = vunpack.c.h.b16 %v4443
        %v4621 = vunpack.c.l.b16 %v4444
        %v4622 = vunpack.c.h.b16 %v4444
        %v4623 = vunpack.c.l.b16 %v4445
        %v4624 = vunpack.c.h.b16 %v4445
        %v4625 = vunpack.c.l.b16 %v4446
        %v4626 = vunpack.c.h.b16 %v4446
        %v4627 = vunpack.c.l.b16 %v4447
        %v4628 = vunpack.c.h.b16 %v4447
        %v4629 = vunpack.c.l.b16 %v4448
        %v4630 = vunpack.c.h.b16 %v4448
        %v4631 = vunpack.c.l.b16 %v4449
        %v4632 = vunpack.c.h.b16 %v4449
        %v4633 = vunpack.c.l.b16 %v4450
        %v4634 = vunpack.c.h.b16 %v4450
        %v4635 = vunpack.c.l.b16 %v4451
        %v4636 = vunpack.c.h.b16 %v4451
        %v4637 = vunpack.c.l.b16 %v4452
        %v4638 = vunpack.c.h.b16 %v4452
        %v4639 = vunpack.c.l.b16 %v4453
        %v4640 = vunpack.c.h.b16 %v4453
        %v4641 = vunpack.c.l.b16 %v4454
        %v4642 = vunpack.c.h.b16 %v4454
        %v4643 = vunpack.c.l.b16 %v4455
        %v4644 = vunpack.c.h.b16 %v4455
        %v4645 = vunpack.c.l.b16 %v4456
        %v4646 = vunpack.c.h.b16 %v4456
        %v4647 = vunpack.c.l.b16 %v4457
        %v4648 = vunpack.c.h.b16 %v4457
        %v4649 = vunpack.c.l.b16 %v4458
        %v4650 = vunpack.c.h.b16 %v4458
        %v4651 = vpack.c.b16 %v4621, %v4619
        %v4652 = vpack.c.b16 %v4622, %v4620
        %v4653 = vpack.c.b16 %v4625, %v4623
        %v4654 = vpack.c.b16 %v4626, %v4624
        %v4655 = vpack.c.b16 %v4629, %v4627
        %v4656 = vpack.c.b16 %v4630, %v4628
        %v4657 = vpack.c.b16 %v4633, %v4631
        %v4658 = vpack.c.b16 %v4634, %v4632
        %v4659 = vpack.c.b16 %v4637, %v4635
        %v4660 = vpack.c.b16 %v4638, %v4636
        %v4661 = vpack.c.b16 %v4641, %v4639
        %v4662 = vpack.c.b16 %v4642, %v4640
        %v4663 = vpack.c.b16 %v4645, %v4643
        %v4664 = vpack.c.b16 %v4646, %v4644
        %v4665 = vpack.c.b16 %v4649, %v4647
        %v4666 = vpack.c.b16 %v4650, %v4648
        %4683 = vmatprep.subr.bf16.mxu0 %v4652
        %4684 = vmatpush1.bf16.msra.mxu0 %v4651
        %4685 = vmatprep.subr.bf16.mxu0 %v4654
        %4686 = vmatpush1.bf16.msra.mxu0 %v4653
        %4687 = vmatprep.subr.bf16.mxu0 %v4656
        %4688 = vmatpush1.bf16.msra.mxu0 %v4655
        %4689 = vmatprep.subr.bf16.mxu0 %v4658
        %4690 = vmatpush1.bf16.msra.mxu0 %v4657
        %4691 = vmatprep.subr.bf16.mxu0 %v4660
        %4692 = vmatpush1.bf16.msra.mxu0 %v4659
        %4693 = vmatprep.subr.bf16.mxu0 %v4662
        %4694 = vmatpush1.bf16.msra.mxu0 %v4661
        %4695 = vmatprep.subr.bf16.mxu0 %v4664
        %4696 = vmatpush1.bf16.msra.mxu0 %v4663
        %4697 = vmatprep.subr.bf16.mxu0 %v4666
        %4698 = vmatpush1.bf16.msra.mxu0 %v4665
        %4699 = vmatprep.subr.bf16.mxu0 0
        %4700 = vmatpush1.bf16.msra.mxu0 0
        %4701 = vmatprep.subr.bf16.mxu0 0
        %4702 = vmatpush1.bf16.msra.mxu0 0
        %4703 = vmatprep.subr.bf16.mxu0 0
        %4704 = vmatpush1.bf16.msra.mxu0 0
        %4705 = vmatprep.subr.bf16.mxu0 0
        %4706 = vmatpush1.bf16.msra.mxu0 0
        %4707 = vmatprep.subr.bf16.mxu0 0
        %4708 = vmatpush1.bf16.msra.mxu0 0
        %4709 = vmatprep.subr.bf16.mxu0 0
        %4710 = vmatpush1.bf16.msra.mxu0 0
        %4711 = vmatprep.subr.bf16.mxu0 0
        %4712 = vmatpush1.bf16.msra.mxu0 0
        %4713 = vmatprep.subr.bf16.mxu0 0
        %4714 = vmatpush1.bf16.msra.mxu0 0
        %4715 = vmatprep.mubr.bf16.mxu0 0
        %4716 = vmatmul.mubr.bf16.gmra.mrb[0].mxu0 %v1945
        %v4717 = vpop.f32.mrb[0].mxu0
        %v4718 = vadd.f32 %v4595, %v4717
        %v4719 = vpop.f32.mrb[0].mxu0
        %v4720 = vadd.f32 %v4597, %v4719
        %v4721 = vpop.f32.mrb[0].mxu0
        %v4722 = vadd.f32 %v4599, %v4721
        %v4723 = vpop.f32.mrb[0].mxu0
        %v4724 = vadd.f32 %v4601, %v4723
        %4725 = vdwg.mxu0
        %s4726 = scalar_lea.vmem %s13, 256
        %v4727 = vld [vmem:[%s4726] sm:$0xff]
        %v4728 = vld [vmem:[%s4726 + $0x8] sm:$0xff]
        %v4729 = vld [vmem:[%s4726 + $0x10] sm:$0xff]
        %v4730 = vld [vmem:[%s4726 + $0x18] sm:$0xff]
        %v4731 = vld [vmem:[%s4726 + $0x20] sm:$0xff]
        %v4732 = vld [vmem:[%s4726 + $0x28] sm:$0xff]
        %v4733 = vld [vmem:[%s4726 + $0x30] sm:$0xff]
        %v4734 = vld [vmem:[%s4726 + $0x38] sm:$0xff]
        %v4735 = vld [vmem:[%s4726 + $0x40] sm:$0xff]
        %v4736 = vld [vmem:[%s4726 + $0x48] sm:$0xff]
        %v4737 = vld [vmem:[%s4726 + $0x50] sm:$0xff]
        %v4738 = vld [vmem:[%s4726 + $0x58] sm:$0xff]
        %v4739 = vld [vmem:[%s4726 + $0x60] sm:$0xff]
        %v4740 = vld [vmem:[%s4726 + $0x68] sm:$0xff]
        %v4741 = vld [vmem:[%s4726 + $0x70] sm:$0xff]
        %v4742 = vld [vmem:[%s4726 + $0x78] sm:$0xff]
        %v4744 = vunpack.c.l.b16 %v4442
        %v4745 = vpack.c.b16 %v4744, %v4477
        %v4763 = vunpack.c.l.b16 %v4727
        %v4764 = vunpack.c.h.b16 %v4727
        %v4765 = vunpack.c.l.b16 %v4728
        %v4766 = vunpack.c.h.b16 %v4728
        %v4767 = vunpack.c.l.b16 %v4729
        %v4768 = vunpack.c.h.b16 %v4729
        %v4769 = vunpack.c.l.b16 %v4730
        %v4770 = vunpack.c.h.b16 %v4730
        %v4771 = vunpack.c.l.b16 %v4731
        %v4772 = vunpack.c.h.b16 %v4731
        %v4773 = vunpack.c.l.b16 %v4732
        %v4774 = vunpack.c.h.b16 %v4732
        %v4775 = vunpack.c.l.b16 %v4733
        %v4776 = vunpack.c.h.b16 %v4733
        %v4777 = vunpack.c.l.b16 %v4734
        %v4778 = vunpack.c.h.b16 %v4734
        %v4779 = vunpack.c.l.b16 %v4735
        %v4780 = vunpack.c.h.b16 %v4735
        %v4781 = vunpack.c.l.b16 %v4736
        %v4782 = vunpack.c.h.b16 %v4736
        %v4783 = vunpack.c.l.b16 %v4737
        %v4784 = vunpack.c.h.b16 %v4737
        %v4785 = vunpack.c.l.b16 %v4738
        %v4786 = vunpack.c.h.b16 %v4738
        %v4787 = vunpack.c.l.b16 %v4739
        %v4788 = vunpack.c.h.b16 %v4739
        %v4789 = vunpack.c.l.b16 %v4740
        %v4790 = vunpack.c.h.b16 %v4740
        %v4791 = vunpack.c.l.b16 %v4741
        %v4792 = vunpack.c.h.b16 %v4741
        %v4793 = vunpack.c.l.b16 %v4742
        %v4794 = vunpack.c.h.b16 %v4742
        %v4795 = vpack.c.b16 %v4765, %v4763
        %v4796 = vpack.c.b16 %v4766, %v4764
        %v4797 = vpack.c.b16 %v4769, %v4767
        %v4798 = vpack.c.b16 %v4770, %v4768
        %v4799 = vpack.c.b16 %v4773, %v4771
        %v4800 = vpack.c.b16 %v4774, %v4772
        %v4801 = vpack.c.b16 %v4777, %v4775
        %v4802 = vpack.c.b16 %v4778, %v4776
        %v4803 = vpack.c.b16 %v4781, %v4779
        %v4804 = vpack.c.b16 %v4782, %v4780
        %v4805 = vpack.c.b16 %v4785, %v4783
        %v4806 = vpack.c.b16 %v4786, %v4784
        %v4807 = vpack.c.b16 %v4789, %v4787
        %v4808 = vpack.c.b16 %v4790, %v4788
        %v4809 = vpack.c.b16 %v4793, %v4791
        %v4810 = vpack.c.b16 %v4794, %v4792
        %4827 = vmatprep.subr.bf16.mxu0 %v4796
        %4828 = vmatpush1.bf16.msra.mxu0 %v4795
        %4829 = vmatprep.subr.bf16.mxu0 %v4798
        %4830 = vmatpush1.bf16.msra.mxu0 %v4797
        %4831 = vmatprep.subr.bf16.mxu0 %v4800
        %4832 = vmatpush1.bf16.msra.mxu0 %v4799
        %4833 = vmatprep.subr.bf16.mxu0 %v4802
        %4834 = vmatpush1.bf16.msra.mxu0 %v4801
        %4835 = vmatprep.subr.bf16.mxu0 %v4804
        %4836 = vmatpush1.bf16.msra.mxu0 %v4803
        %4837 = vmatprep.subr.bf16.mxu0 %v4806
        %4838 = vmatpush1.bf16.msra.mxu0 %v4805
        %4839 = vmatprep.subr.bf16.mxu0 %v4808
        %4840 = vmatpush1.bf16.msra.mxu0 %v4807
        %4841 = vmatprep.subr.bf16.mxu0 %v4810
        %4842 = vmatpush1.bf16.msra.mxu0 %v4809
        %4843 = vmatprep.subr.bf16.mxu0 0
        %4844 = vmatpush1.bf16.msra.mxu0 0
        %4845 = vmatprep.subr.bf16.mxu0 0
        %4846 = vmatpush1.bf16.msra.mxu0 0
        %4847 = vmatprep.subr.bf16.mxu0 0
        %4848 = vmatpush1.bf16.msra.mxu0 0
        %4849 = vmatprep.subr.bf16.mxu0 0
        %4850 = vmatpush1.bf16.msra.mxu0 0
        %4851 = vmatprep.subr.bf16.mxu0 0
        %4852 = vmatpush1.bf16.msra.mxu0 0
        %4853 = vmatprep.subr.bf16.mxu0 0
        %4854 = vmatpush1.bf16.msra.mxu0 0
        %4855 = vmatprep.subr.bf16.mxu0 0
        %4856 = vmatpush1.bf16.msra.mxu0 0
        %4857 = vmatprep.subr.bf16.mxu0 0
        %4858 = vmatpush1.bf16.msra.mxu0 0
        %4859 = vmatprep.mubr.bf16.mxu0 0
        %4860 = vmatmul.mubr.bf16.gmra.mrb[0].mxu0 %v4745
        %v4861 = vpop.f32.mrb[0].mxu0
        %v4862 = vadd.f32 0.0, %v4861
        %v4863 = vpop.f32.mrb[0].mxu0
        %v4864 = vadd.f32 0.0, %v4863
        %v4865 = vpop.f32.mrb[0].mxu0
        %v4866 = vadd.f32 0.0, %v4865
        %v4867 = vpop.f32.mrb[0].mxu0
        %v4868 = vadd.f32 0.0, %v4867
        %4869 = vdwg.mxu0
        %v4870 = vadd.f32 %v4718, %v4862
        %v4871 = vadd.f32 %v4720, %v4864
        %v4872 = vadd.f32 %v4722, %v4866
        %v4873 = vadd.f32 %v4724, %v4868
        %s4874 = scalar_lea.vmem %s13, 384
        %v4875 = vld [vmem:[%s4874] sm:$0xff]
        %v4876 = vld [vmem:[%s4874 + $0x8] sm:$0xff]
        %v4877 = vld [vmem:[%s4874 + $0x10] sm:$0xff]
        %v4878 = vld [vmem:[%s4874 + $0x18] sm:$0xff]
        %v4879 = vld [vmem:[%s4874 + $0x20] sm:$0xff]
        %v4880 = vld [vmem:[%s4874 + $0x28] sm:$0xff]
        %v4881 = vld [vmem:[%s4874 + $0x30] sm:$0xff]
        %v4882 = vld [vmem:[%s4874 + $0x38] sm:$0xff]
        %v4883 = vld [vmem:[%s4874 + $0x40] sm:$0xff]
        %v4884 = vld [vmem:[%s4874 + $0x48] sm:$0xff]
        %v4885 = vld [vmem:[%s4874 + $0x50] sm:$0xff]
        %v4886 = vld [vmem:[%s4874 + $0x58] sm:$0xff]
        %v4887 = vld [vmem:[%s4874 + $0x60] sm:$0xff]
        %v4888 = vld [vmem:[%s4874 + $0x68] sm:$0xff]
        %v4889 = vld [vmem:[%s4874 + $0x70] sm:$0xff]
        %v4890 = vld [vmem:[%s4874 + $0x78] sm:$0xff]
        %v4891 = vpack.c.b16 %v1006, %v4744
        %v4909 = vunpack.c.l.b16 %v4875
        %v4910 = vunpack.c.h.b16 %v4875
        %v4911 = vunpack.c.l.b16 %v4876
        %v4912 = vunpack.c.h.b16 %v4876
        %v4913 = vunpack.c.l.b16 %v4877
        %v4914 = vunpack.c.h.b16 %v4877
        %v4915 = vunpack.c.l.b16 %v4878
        %v4916 = vunpack.c.h.b16 %v4878
        %v4917 = vunpack.c.l.b16 %v4879
        %v4918 = vunpack.c.h.b16 %v4879
        %v4919 = vunpack.c.l.b16 %v4880
        %v4920 = vunpack.c.h.b16 %v4880
        %v4921 = vunpack.c.l.b16 %v4881
        %v4922 = vunpack.c.h.b16 %v4881
        %v4923 = vunpack.c.l.b16 %v4882
        %v4924 = vunpack.c.h.b16 %v4882
        %v4925 = vunpack.c.l.b16 %v4883
        %v4926 = vunpack.c.h.b16 %v4883
        %v4927 = vunpack.c.l.b16 %v4884
        %v4928 = vunpack.c.h.b16 %v4884
        %v4929 = vunpack.c.l.b16 %v4885
        %v4930 = vunpack.c.h.b16 %v4885
        %v4931 = vunpack.c.l.b16 %v4886
        %v4932 = vunpack.c.h.b16 %v4886
        %v4933 = vunpack.c.l.b16 %v4887
        %v4934 = vunpack.c.h.b16 %v4887
        %v4935 = vunpack.c.l.b16 %v4888
        %v4936 = vunpack.c.h.b16 %v4888
        %v4937 = vunpack.c.l.b16 %v4889
        %v4938 = vunpack.c.h.b16 %v4889
        %v4939 = vunpack.c.l.b16 %v4890
        %v4940 = vunpack.c.h.b16 %v4890
        %v4941 = vpack.c.b16 %v4911, %v4909
        %v4942 = vpack.c.b16 %v4912, %v4910
        %v4943 = vpack.c.b16 %v4915, %v4913
        %v4944 = vpack.c.b16 %v4916, %v4914
        %v4945 = vpack.c.b16 %v4919, %v4917
        %v4946 = vpack.c.b16 %v4920, %v4918
        %v4947 = vpack.c.b16 %v4923, %v4921
        %v4948 = vpack.c.b16 %v4924, %v4922
        %v4949 = vpack.c.b16 %v4927, %v4925
        %v4950 = vpack.c.b16 %v4928, %v4926
        %v4951 = vpack.c.b16 %v4931, %v4929
        %v4952 = vpack.c.b16 %v4932, %v4930
        %v4953 = vpack.c.b16 %v4935, %v4933
        %v4954 = vpack.c.b16 %v4936, %v4934
        %v4955 = vpack.c.b16 %v4939, %v4937
        %v4956 = vpack.c.b16 %v4940, %v4938
        %4973 = vmatprep.subr.bf16.mxu0 %v4942
        %4974 = vmatpush1.bf16.msra.mxu0 %v4941
        %4975 = vmatprep.subr.bf16.mxu0 %v4944
        %4976 = vmatpush1.bf16.msra.mxu0 %v4943
        %4977 = vmatprep.subr.bf16.mxu0 %v4946
        %4978 = vmatpush1.bf16.msra.mxu0 %v4945
        %4979 = vmatprep.subr.bf16.mxu0 %v4948
        %4980 = vmatpush1.bf16.msra.mxu0 %v4947
        %4981 = vmatprep.subr.bf16.mxu0 %v4950
        %4982 = vmatpush1.bf16.msra.mxu0 %v4949
        %4983 = vmatprep.subr.bf16.mxu0 %v4952
        %4984 = vmatpush1.bf16.msra.mxu0 %v4951
        %4985 = vmatprep.subr.bf16.mxu0 %v4954
        %4986 = vmatpush1.bf16.msra.mxu0 %v4953
        %4987 = vmatprep.subr.bf16.mxu0 %v4956
        %4988 = vmatpush1.bf16.msra.mxu0 %v4955
        %4989 = vmatprep.subr.bf16.mxu0 0
        %4990 = vmatpush1.bf16.msra.mxu0 0
        %4991 = vmatprep.subr.bf16.mxu0 0
        %4992 = vmatpush1.bf16.msra.mxu0 0
        %4993 = vmatprep.subr.bf16.mxu0 0
        %4994 = vmatpush1.bf16.msra.mxu0 0
        %4995 = vmatprep.subr.bf16.mxu0 0
        %4996 = vmatpush1.bf16.msra.mxu0 0
        %4997 = vmatprep.subr.bf16.mxu0 0
        %4998 = vmatpush1.bf16.msra.mxu0 0
        %4999 = vmatprep.subr.bf16.mxu0 0
        %5000 = vmatpush1.bf16.msra.mxu0 0
        %5001 = vmatprep.subr.bf16.mxu0 0
        %5002 = vmatpush1.bf16.msra.mxu0 0
        %5003 = vmatprep.subr.bf16.mxu0 0
        %5004 = vmatpush1.bf16.msra.mxu0 0
        %5005 = vmatprep.mubr.bf16.mxu0 0
        %5006 = vmatmul.mubr.bf16.gmra.mrb[0].mxu0 %v4891
        %v5007 = vpop.f32.mrb[0].mxu0
        %v5008 = vadd.f32 0.0, %v5007
        %v5009 = vpop.f32.mrb[0].mxu0
        %v5010 = vadd.f32 0.0, %v5009
        %v5011 = vpop.f32.mrb[0].mxu0
        %v5012 = vadd.f32 0.0, %v5011
        %v5013 = vpop.f32.mrb[0].mxu0
        %v5014 = vadd.f32 0.0, %v5013
        %5015 = vdwg.mxu0
        %v5016 = vadd.f32 %v4870, %v5008
        %v5017 = vadd.f32 %v4871, %v5010
        %v5018 = vadd.f32 %v4872, %v5012
        %v5019 = vadd.f32 %v4873, %v5014
        %s5020 = scalar_lea.vmem %s13, 512
        %v5021 = vld [vmem:[%s5020] sm:$0xff]
        %v5022 = vld [vmem:[%s5020 + $0x8] sm:$0xff]
        %v5023 = vld [vmem:[%s5020 + $0x10] sm:$0xff]
        %v5024 = vld [vmem:[%s5020 + $0x18] sm:$0xff]
        %v5025 = vld [vmem:[%s5020 + $0x20] sm:$0xff]
        %v5026 = vld [vmem:[%s5020 + $0x28] sm:$0xff]
        %v5027 = vld [vmem:[%s5020 + $0x30] sm:$0xff]
        %v5028 = vld [vmem:[%s5020 + $0x38] sm:$0xff]
        %v5029 = vld [vmem:[%s5020 + $0x40] sm:$0xff]
        %v5030 = vld [vmem:[%s5020 + $0x48] sm:$0xff]
        %v5031 = vld [vmem:[%s5020 + $0x50] sm:$0xff]
        %v5032 = vld [vmem:[%s5020 + $0x58] sm:$0xff]
        %v5033 = vld [vmem:[%s5020 + $0x60] sm:$0xff]
        %v5034 = vld [vmem:[%s5020 + $0x68] sm:$0xff]
        %v5035 = vld [vmem:[%s5020 + $0x70] sm:$0xff]
        %v5036 = vld [vmem:[%s5020 + $0x78] sm:$0xff]
        %v5053 = vunpack.c.l.b16 %v5021
        %v5054 = vunpack.c.h.b16 %v5021
        %v5055 = vunpack.c.l.b16 %v5022
        %v5056 = vunpack.c.h.b16 %v5022
        %v5057 = vunpack.c.l.b16 %v5023
        %v5058 = vunpack.c.h.b16 %v5023
        %v5059 = vunpack.c.l.b16 %v5024
        %v5060 = vunpack.c.h.b16 %v5024
        %v5061 = vunpack.c.l.b16 %v5025
        %v5062 = vunpack.c.h.b16 %v5025
        %v5063 = vunpack.c.l.b16 %v5026
        %v5064 = vunpack.c.h.b16 %v5026
        %v5065 = vunpack.c.l.b16 %v5027
        %v5066 = vunpack.c.h.b16 %v5027
        %v5067 = vunpack.c.l.b16 %v5028
        %v5068 = vunpack.c.h.b16 %v5028
        %v5069 = vunpack.c.l.b16 %v5029
        %v5070 = vunpack.c.h.b16 %v5029
        %v5071 = vunpack.c.l.b16 %v5030
        %v5072 = vunpack.c.h.b16 %v5030
        %v5073 = vunpack.c.l.b16 %v5031
        %v5074 = vunpack.c.h.b16 %v5031
        %v5075 = vunpack.c.l.b16 %v5032
        %v5076 = vunpack.c.h.b16 %v5032
        %v5077 = vunpack.c.l.b16 %v5033
        %v5078 = vunpack.c.h.b16 %v5033
        %v5079 = vunpack.c.l.b16 %v5034
        %v5080 = vunpack.c.h.b16 %v5034
        %v5081 = vunpack.c.l.b16 %v5035
        %v5082 = vunpack.c.h.b16 %v5035
        %v5083 = vunpack.c.l.b16 %v5036
        %v5084 = vunpack.c.h.b16 %v5036
        %v5085 = vpack.c.b16 %v5055, %v5053
        %v5086 = vpack.c.b16 %v5056, %v5054
        %v5087 = vpack.c.b16 %v5059, %v5057
        %v5088 = vpack.c.b16 %v5060, %v5058
        %v5089 = vpack.c.b16 %v5063, %v5061
        %v5090 = vpack.c.b16 %v5064, %v5062
        %v5091 = vpack.c.b16 %v5067, %v5065
        %v5092 = vpack.c.b16 %v5068, %v5066
        %v5093 = vpack.c.b16 %v5071, %v5069
        %v5094 = vpack.c.b16 %v5072, %v5070
        %v5095 = vpack.c.b16 %v5075, %v5073
        %v5096 = vpack.c.b16 %v5076, %v5074
        %v5097 = vpack.c.b16 %v5079, %v5077
        %v5098 = vpack.c.b16 %v5080, %v5078
        %v5099 = vpack.c.b16 %v5083, %v5081
        %v5100 = vpack.c.b16 %v5084, %v5082
        %5117 = vmatprep.subr.bf16.mxu0 %v5086
        %5118 = vmatpush1.bf16.msra.mxu0 %v5085
        %5119 = vmatprep.subr.bf16.mxu0 %v5088
        %5120 = vmatpush1.bf16.msra.mxu0 %v5087
        %5121 = vmatprep.subr.bf16.mxu0 %v5090
        %5122 = vmatpush1.bf16.msra.mxu0 %v5089
        %5123 = vmatprep.subr.bf16.mxu0 %v5092
        %5124 = vmatpush1.bf16.msra.mxu0 %v5091
        %5125 = vmatprep.subr.bf16.mxu0 %v5094
        %5126 = vmatpush1.bf16.msra.mxu0 %v5093
        %5127 = vmatprep.subr.bf16.mxu0 %v5096
        %5128 = vmatpush1.bf16.msra.mxu0 %v5095
        %5129 = vmatprep.subr.bf16.mxu0 %v5098
        %5130 = vmatpush1.bf16.msra.mxu0 %v5097
        %5131 = vmatprep.subr.bf16.mxu0 %v5100
        %5132 = vmatpush1.bf16.msra.mxu0 %v5099
        %5133 = vmatprep.subr.bf16.mxu0 0
        %5134 = vmatpush1.bf16.msra.mxu0 0
        %5135 = vmatprep.subr.bf16.mxu0 0
        %5136 = vmatpush1.bf16.msra.mxu0 0
        %5137 = vmatprep.subr.bf16.mxu0 0
        %5138 = vmatpush1.bf16.msra.mxu0 0
        %5139 = vmatprep.subr.bf16.mxu0 0
        %5140 = vmatpush1.bf16.msra.mxu0 0
        %5141 = vmatprep.subr.bf16.mxu0 0
        %5142 = vmatpush1.bf16.msra.mxu0 0
        %5143 = vmatprep.subr.bf16.mxu0 0
        %5144 = vmatpush1.bf16.msra.mxu0 0
        %5145 = vmatprep.subr.bf16.mxu0 0
        %5146 = vmatpush1.bf16.msra.mxu0 0
        %5147 = vmatprep.subr.bf16.mxu0 0
        %5148 = vmatpush1.bf16.msra.mxu0 0
        %5149 = vmatprep.mubr.bf16.mxu0 0
        %5150 = vmatmul.mubr.bf16.gmra.mrb[0].mxu0 %v1945
        %v5151 = vpop.f32.mrb[0].mxu0
        %v5152 = vadd.f32 0.0, %v5151
        %v5153 = vpop.f32.mrb[0].mxu0
        %v5154 = vadd.f32 0.0, %v5153
        %v5155 = vpop.f32.mrb[0].mxu0
        %v5156 = vadd.f32 0.0, %v5155
        %v5157 = vpop.f32.mrb[0].mxu0
        %v5158 = vadd.f32 0.0, %v5157
        %5159 = vdwg.mxu0
        %v5160 = vadd.f32 %v5016, %v5152
        %v5161 = vadd.f32 %v5017, %v5154
        %v5162 = vadd.f32 %v5018, %v5156
        %v5163 = vadd.f32 %v5019, %v5158
        %v5164 = vld [vmem:[%s14] sm:$0x3]
        %v5166 = vlaneseq
        %v5167 = vshrl.u32 %v5166, 7
        %v5168 = vsub.s32 0, %v5167
        %v5169 = vrot.slane %v5164, %v5168
        %v5170 = vlaneseq
        %v5171 = vshrl.u32 %v5170, 7
        %v5172 = vsub.s32 1, %v5171
        %v5173 = vrot.slane %v5164, %v5172
        %v5176 = vadd.f32 %v5160, %v5169
        %v5177 = vadd.f32 %v5161, %v5173
        %v5178 = vadd.f32 %v5162, %v5169
        %v5179 = vadd.f32 %v5163, %v5173
        %v5180 = vmax.f32 %v5176, 0.0
        %v5181 = vmax.f32 %v5177, 0.0
        %v5182 = vmax.f32 %v5178, 0.0
        %v5183 = vmax.f32 %v5179, 0.0
        %v5184 = vpack.c.bf16 %v5180, %v5180
        %v5185 = vpack.c.bf16 %v5181, %v5181
        %v5186 = vpack.c.bf16 %v5182, %v5182
        %v5187 = vpack.c.bf16 %v5183, %v5183
        %v5192 = vunpack.c.l.b16 %v5184
        %v5193 = vunpack.c.l.b16 %v5185
        %v5194 = vunpack.c.l.b16 %v5186
        %v5195 = vunpack.c.l.b16 %v5187
        %v5196 = vld [vmem:[%s15] sm:$0xff]
        %v5197 = vld [vmem:[%s15 + $0x8] sm:$0xff]
        %v5198 = vld [vmem:[%s15 + $0x10] sm:$0xff]
        %v5199 = vld [vmem:[%s15 + $0x18] sm:$0xff]
        %v5200 = vld [vmem:[%s15 + $0x20] sm:$0xff]
        %v5201 = vld [vmem:[%s15 + $0x28] sm:$0xff]
        %v5202 = vld [vmem:[%s15 + $0x30] sm:$0xff]
        %v5203 = vld [vmem:[%s15 + $0x38] sm:$0xff]
        %v5204 = vld [vmem:[%s15 + $0x40] sm:$0xff]
        %v5205 = vld [vmem:[%s15 + $0x48] sm:$0xff]
        %v5206 = vld [vmem:[%s15 + $0x50] sm:$0xff]
        %v5207 = vld [vmem:[%s15 + $0x58] sm:$0xff]
        %v5208 = vld [vmem:[%s15 + $0x60] sm:$0xff]
        %v5209 = vld [vmem:[%s15 + $0x68] sm:$0xff]
        %v5210 = vld [vmem:[%s15 + $0x70] sm:$0xff]
        %v5211 = vld [vmem:[%s15 + $0x78] sm:$0xff]
        %v5212 = vld [vmem:[%s15 + $0x80] sm:$0xff]
        %v5213 = vld [vmem:[%s15 + $0x88] sm:$0xff]
        %v5214 = vld [vmem:[%s15 + $0x90] sm:$0xff]
        %v5215 = vld [vmem:[%s15 + $0x98] sm:$0xff]
        %v5216 = vld [vmem:[%s15 + $0xa0] sm:$0xff]
        %v5217 = vld [vmem:[%s15 + $0xa8] sm:$0xff]
        %v5218 = vld [vmem:[%s15 + $0xb0] sm:$0xff]
        %v5219 = vld [vmem:[%s15 + $0xb8] sm:$0xff]
        %v5220 = vld [vmem:[%s15 + $0xc0] sm:$0xff]
        %v5221 = vld [vmem:[%s15 + $0xc8] sm:$0xff]
        %v5222 = vld [vmem:[%s15 + $0xd0] sm:$0xff]
        %v5223 = vld [vmem:[%s15 + $0xd8] sm:$0xff]
        %v5224 = vld [vmem:[%s15 + $0xe0] sm:$0xff]
        %v5225 = vld [vmem:[%s15 + $0xe8] sm:$0xff]
        %v5226 = vld [vmem:[%s15 + $0xf0] sm:$0xff]
        %v5227 = vld [vmem:[%s15 + $0xf8] sm:$0xff]
        %s5228 = scalar_lea.vmem %s15, 256
        %v5229 = vld [vmem:[%s5228] sm:$0xff]
        %v5230 = vld [vmem:[%s5228 + $0x8] sm:$0xff]
        %v5231 = vld [vmem:[%s5228 + $0x10] sm:$0xff]
        %v5232 = vld [vmem:[%s5228 + $0x18] sm:$0xff]
        %v5233 = vld [vmem:[%s5228 + $0x20] sm:$0xff]
        %v5234 = vld [vmem:[%s5228 + $0x28] sm:$0xff]
        %v5235 = vld [vmem:[%s5228 + $0x30] sm:$0xff]
        %v5236 = vld [vmem:[%s5228 + $0x38] sm:$0xff]
        %v5237 = vld [vmem:[%s5228 + $0x40] sm:$0xff]
        %v5238 = vld [vmem:[%s5228 + $0x48] sm:$0xff]
        %v5239 = vld [vmem:[%s5228 + $0x50] sm:$0xff]
        %v5240 = vld [vmem:[%s5228 + $0x58] sm:$0xff]
        %v5241 = vld [vmem:[%s5228 + $0x60] sm:$0xff]
        %v5242 = vld [vmem:[%s5228 + $0x68] sm:$0xff]
        %v5243 = vld [vmem:[%s5228 + $0x70] sm:$0xff]
        %v5244 = vld [vmem:[%s5228 + $0x78] sm:$0xff]
        %v5245 = vld [vmem:[%s5228 + $0x80] sm:$0xff]
        %v5246 = vld [vmem:[%s5228 + $0x88] sm:$0xff]
        %v5247 = vld [vmem:[%s5228 + $0x90] sm:$0xff]
        %v5248 = vld [vmem:[%s5228 + $0x98] sm:$0xff]
        %v5249 = vld [vmem:[%s5228 + $0xa0] sm:$0xff]
        %v5250 = vld [vmem:[%s5228 + $0xa8] sm:$0xff]
        %v5251 = vld [vmem:[%s5228 + $0xb0] sm:$0xff]
        %v5252 = vld [vmem:[%s5228 + $0xb8] sm:$0xff]
        %v5253 = vld [vmem:[%s5228 + $0xc0] sm:$0xff]
        %v5254 = vld [vmem:[%s5228 + $0xc8] sm:$0xff]
        %v5255 = vld [vmem:[%s5228 + $0xd0] sm:$0xff]
        %v5256 = vld [vmem:[%s5228 + $0xd8] sm:$0xff]
        %v5257 = vld [vmem:[%s5228 + $0xe0] sm:$0xff]
        %v5258 = vld [vmem:[%s5228 + $0xe8] sm:$0xff]
        %v5259 = vld [vmem:[%s5228 + $0xf0] sm:$0xff]
        %v5260 = vld [vmem:[%s5228 + $0xf8] sm:$0xff]
        %v5261 = vpack.c.b16 %v5192, %v1006
        %v5262 = vpack.c.b16 %v5193, %v1006
        %v5297 = vunpack.c.l.b16 %v5229
        %v5298 = vunpack.c.h.b16 %v5229
        %v5299 = vunpack.c.l.b16 %v5230
        %v5300 = vunpack.c.h.b16 %v5230
        %v5301 = vunpack.c.l.b16 %v5231
        %v5302 = vunpack.c.h.b16 %v5231
        %v5303 = vunpack.c.l.b16 %v5232
        %v5304 = vunpack.c.h.b16 %v5232
        %v5305 = vunpack.c.l.b16 %v5233
        %v5306 = vunpack.c.h.b16 %v5233
        %v5307 = vunpack.c.l.b16 %v5234
        %v5308 = vunpack.c.h.b16 %v5234
        %v5309 = vunpack.c.l.b16 %v5235
        %v5310 = vunpack.c.h.b16 %v5235
        %v5311 = vunpack.c.l.b16 %v5236
        %v5312 = vunpack.c.h.b16 %v5236
        %v5313 = vunpack.c.l.b16 %v5237
        %v5314 = vunpack.c.h.b16 %v5237
        %v5315 = vunpack.c.l.b16 %v5238
        %v5316 = vunpack.c.h.b16 %v5238
        %v5317 = vunpack.c.l.b16 %v5239
        %v5318 = vunpack.c.h.b16 %v5239
        %v5319 = vunpack.c.l.b16 %v5240
        %v5320 = vunpack.c.h.b16 %v5240
        %v5321 = vunpack.c.l.b16 %v5241
        %v5322 = vunpack.c.h.b16 %v5241
        %v5323 = vunpack.c.l.b16 %v5242
        %v5324 = vunpack.c.h.b16 %v5242
        %v5325 = vunpack.c.l.b16 %v5243
        %v5326 = vunpack.c.h.b16 %v5243
        %v5327 = vunpack.c.l.b16 %v5244
        %v5328 = vunpack.c.h.b16 %v5244
        %v5329 = vunpack.c.l.b16 %v5245
        %v5330 = vunpack.c.h.b16 %v5245
        %v5331 = vunpack.c.l.b16 %v5246
        %v5332 = vunpack.c.h.b16 %v5246
        %v5333 = vunpack.c.l.b16 %v5247
        %v5334 = vunpack.c.h.b16 %v5247
        %v5335 = vunpack.c.l.b16 %v5248
        %v5336 = vunpack.c.h.b16 %v5248
        %v5337 = vunpack.c.l.b16 %v5249
        %v5338 = vunpack.c.h.b16 %v5249
        %v5339 = vunpack.c.l.b16 %v5250
        %v5340 = vunpack.c.h.b16 %v5250
        %v5341 = vunpack.c.l.b16 %v5251
        %v5342 = vunpack.c.h.b16 %v5251
        %v5343 = vunpack.c.l.b16 %v5252
        %v5344 = vunpack.c.h.b16 %v5252
        %v5345 = vunpack.c.l.b16 %v5253
        %v5346 = vunpack.c.h.b16 %v5253
        %v5347 = vunpack.c.l.b16 %v5254
        %v5348 = vunpack.c.h.b16 %v5254
        %v5349 = vunpack.c.l.b16 %v5255
        %v5350 = vunpack.c.h.b16 %v5255
        %v5351 = vunpack.c.l.b16 %v5256
        %v5352 = vunpack.c.h.b16 %v5256
        %v5353 = vunpack.c.l.b16 %v5257
        %v5354 = vunpack.c.h.b16 %v5257
        %v5355 = vunpack.c.l.b16 %v5258
        %v5356 = vunpack.c.h.b16 %v5258
        %v5357 = vunpack.c.l.b16 %v5259
        %v5358 = vunpack.c.h.b16 %v5259
        %v5359 = vunpack.c.l.b16 %v5260
        %v5360 = vunpack.c.h.b16 %v5260
        %v5361 = vpack.c.b16 %v5299, %v5297
        %v5362 = vpack.c.b16 %v5300, %v5298
        %v5363 = vpack.c.b16 %v5303, %v5301
        %v5364 = vpack.c.b16 %v5304, %v5302
        %v5365 = vpack.c.b16 %v5307, %v5305
        %v5366 = vpack.c.b16 %v5308, %v5306
        %v5367 = vpack.c.b16 %v5311, %v5309
        %v5368 = vpack.c.b16 %v5312, %v5310
        %v5369 = vpack.c.b16 %v5315, %v5313
        %v5370 = vpack.c.b16 %v5316, %v5314
        %v5371 = vpack.c.b16 %v5319, %v5317
        %v5372 = vpack.c.b16 %v5320, %v5318
        %v5373 = vpack.c.b16 %v5323, %v5321
        %v5374 = vpack.c.b16 %v5324, %v5322
        %v5375 = vpack.c.b16 %v5327, %v5325
        %v5376 = vpack.c.b16 %v5328, %v5326
        %v5377 = vpack.c.b16 %v5331, %v5329
        %v5378 = vpack.c.b16 %v5332, %v5330
        %v5379 = vpack.c.b16 %v5335, %v5333
        %v5380 = vpack.c.b16 %v5336, %v5334
        %v5381 = vpack.c.b16 %v5339, %v5337
        %v5382 = vpack.c.b16 %v5340, %v5338
        %v5383 = vpack.c.b16 %v5343, %v5341
        %v5384 = vpack.c.b16 %v5344, %v5342
        %v5385 = vpack.c.b16 %v5347, %v5345
        %v5386 = vpack.c.b16 %v5348, %v5346
        %v5387 = vpack.c.b16 %v5351, %v5349
        %v5388 = vpack.c.b16 %v5352, %v5350
        %v5389 = vpack.c.b16 %v5355, %v5353
        %v5390 = vpack.c.b16 %v5356, %v5354
        %v5391 = vpack.c.b16 %v5359, %v5357
        %v5392 = vpack.c.b16 %v5360, %v5358
        %5425 = vmatprep.subr.bf16.mxu0 %v5362
        %5426 = vmatpush1.bf16.msra.mxu0 %v5361
        %5427 = vmatprep.subr.bf16.mxu0 %v5364
        %5428 = vmatpush1.bf16.msra.mxu0 %v5363
        %5429 = vmatprep.subr.bf16.mxu0 %v5366
        %5430 = vmatpush1.bf16.msra.mxu0 %v5365
        %5431 = vmatprep.subr.bf16.mxu0 %v5368
        %5432 = vmatpush1.bf16.msra.mxu0 %v5367
        %5433 = vmatprep.subr.bf16.mxu0 %v5370
        %5434 = vmatpush1.bf16.msra.mxu0 %v5369
        %5435 = vmatprep.subr.bf16.mxu0 %v5372
        %5436 = vmatpush1.bf16.msra.mxu0 %v5371
        %5437 = vmatprep.subr.bf16.mxu0 %v5374
        %5438 = vmatpush1.bf16.msra.mxu0 %v5373
        %5439 = vmatprep.subr.bf16.mxu0 %v5376
        %5440 = vmatpush1.bf16.msra.mxu0 %v5375
        %5441 = vmatprep.subr.bf16.mxu0 %v5378
        %5442 = vmatpush1.bf16.msra.mxu0 %v5377
        %5443 = vmatprep.subr.bf16.mxu0 %v5380
        %5444 = vmatpush1.bf16.msra.mxu0 %v5379
        %5445 = vmatprep.subr.bf16.mxu0 %v5382
        %5446 = vmatpush1.bf16.msra.mxu0 %v5381
        %5447 = vmatprep.subr.bf16.mxu0 %v5384
        %5448 = vmatpush1.bf16.msra.mxu0 %v5383
        %5449 = vmatprep.subr.bf16.mxu0 %v5386
        %5450 = vmatpush1.bf16.msra.mxu0 %v5385
        %5451 = vmatprep.subr.bf16.mxu0 %v5388
        %5452 = vmatpush1.bf16.msra.mxu0 %v5387
        %5453 = vmatprep.subr.bf16.mxu0 %v5390
        %5454 = vmatpush1.bf16.msra.mxu0 %v5389
        %5455 = vmatprep.subr.bf16.mxu0 %v5392
        %5456 = vmatpush1.bf16.msra.mxu0 %v5391
        %5457 = vmatprep.mubr.bf16.mxu0 %v5262
        %5458 = vmatmul.mubr.bf16.gmra.mrb[0].mxu0 %v5261
        %v5459 = vpop.f32.mrb[0].mxu0
        %v5460 = vadd.f32 0.0, %v5459
        %v5461 = vpop.f32.mrb[0].mxu0
        %v5462 = vadd.f32 0.0, %v5461
        %v5463 = vpop.f32.mrb[0].mxu0
        %v5464 = vadd.f32 0.0, %v5463
        %v5465 = vpop.f32.mrb[0].mxu0
        %v5466 = vadd.f32 0.0, %v5465
        %5467 = vdwg.mxu0
        %v5500 = vunpack.c.l.b16 %v5196
        %v5501 = vunpack.c.h.b16 %v5196
        %v5502 = vunpack.c.l.b16 %v5197
        %v5503 = vunpack.c.h.b16 %v5197
        %v5504 = vunpack.c.l.b16 %v5198
        %v5505 = vunpack.c.h.b16 %v5198
        %v5506 = vunpack.c.l.b16 %v5199
        %v5507 = vunpack.c.h.b16 %v5199
        %v5508 = vunpack.c.l.b16 %v5200
        %v5509 = vunpack.c.h.b16 %v5200
        %v5510 = vunpack.c.l.b16 %v5201
        %v5511 = vunpack.c.h.b16 %v5201
        %v5512 = vunpack.c.l.b16 %v5202
        %v5513 = vunpack.c.h.b16 %v5202
        %v5514 = vunpack.c.l.b16 %v5203
        %v5515 = vunpack.c.h.b16 %v5203
        %v5516 = vunpack.c.l.b16 %v5204
        %v5517 = vunpack.c.h.b16 %v5204
        %v5518 = vunpack.c.l.b16 %v5205
        %v5519 = vunpack.c.h.b16 %v5205
        %v5520 = vunpack.c.l.b16 %v5206
        %v5521 = vunpack.c.h.b16 %v5206
        %v5522 = vunpack.c.l.b16 %v5207
        %v5523 = vunpack.c.h.b16 %v5207
        %v5524 = vunpack.c.l.b16 %v5208
        %v5525 = vunpack.c.h.b16 %v5208
        %v5526 = vunpack.c.l.b16 %v5209
        %v5527 = vunpack.c.h.b16 %v5209
        %v5528 = vunpack.c.l.b16 %v5210
        %v5529 = vunpack.c.h.b16 %v5210
        %v5530 = vunpack.c.l.b16 %v5211
        %v5531 = vunpack.c.h.b16 %v5211
        %v5532 = vunpack.c.l.b16 %v5212
        %v5533 = vunpack.c.h.b16 %v5212
        %v5534 = vunpack.c.l.b16 %v5213
        %v5535 = vunpack.c.h.b16 %v5213
        %v5536 = vunpack.c.l.b16 %v5214
        %v5537 = vunpack.c.h.b16 %v5214
        %v5538 = vunpack.c.l.b16 %v5215
        %v5539 = vunpack.c.h.b16 %v5215
        %v5540 = vunpack.c.l.b16 %v5216
        %v5541 = vunpack.c.h.b16 %v5216
        %v5542 = vunpack.c.l.b16 %v5217
        %v5543 = vunpack.c.h.b16 %v5217
        %v5544 = vunpack.c.l.b16 %v5218
        %v5545 = vunpack.c.h.b16 %v5218
        %v5546 = vunpack.c.l.b16 %v5219
        %v5547 = vunpack.c.h.b16 %v5219
        %v5548 = vunpack.c.l.b16 %v5220
        %v5549 = vunpack.c.h.b16 %v5220
        %v5550 = vunpack.c.l.b16 %v5221
        %v5551 = vunpack.c.h.b16 %v5221
        %v5552 = vunpack.c.l.b16 %v5222
        %v5553 = vunpack.c.h.b16 %v5222
        %v5554 = vunpack.c.l.b16 %v5223
        %v5555 = vunpack.c.h.b16 %v5223
        %v5556 = vunpack.c.l.b16 %v5224
        %v5557 = vunpack.c.h.b16 %v5224
        %v5558 = vunpack.c.l.b16 %v5225
        %v5559 = vunpack.c.h.b16 %v5225
        %v5560 = vunpack.c.l.b16 %v5226
        %v5561 = vunpack.c.h.b16 %v5226
        %v5562 = vunpack.c.l.b16 %v5227
        %v5563 = vunpack.c.h.b16 %v5227
        %v5564 = vpack.c.b16 %v5502, %v5500
        %v5565 = vpack.c.b16 %v5503, %v5501
        %v5566 = vpack.c.b16 %v5506, %v5504
        %v5567 = vpack.c.b16 %v5507, %v5505
        %v5568 = vpack.c.b16 %v5510, %v5508
        %v5569 = vpack.c.b16 %v5511, %v5509
        %v5570 = vpack.c.b16 %v5514, %v5512
        %v5571 = vpack.c.b16 %v5515, %v5513
        %v5572 = vpack.c.b16 %v5518, %v5516
        %v5573 = vpack.c.b16 %v5519, %v5517
        %v5574 = vpack.c.b16 %v5522, %v5520
        %v5575 = vpack.c.b16 %v5523, %v5521
        %v5576 = vpack.c.b16 %v5526, %v5524
        %v5577 = vpack.c.b16 %v5527, %v5525
        %v5578 = vpack.c.b16 %v5530, %v5528
        %v5579 = vpack.c.b16 %v5531, %v5529
        %v5580 = vpack.c.b16 %v5534, %v5532
        %v5581 = vpack.c.b16 %v5535, %v5533
        %v5582 = vpack.c.b16 %v5538, %v5536
        %v5583 = vpack.c.b16 %v5539, %v5537
        %v5584 = vpack.c.b16 %v5542, %v5540
        %v5585 = vpack.c.b16 %v5543, %v5541
        %v5586 = vpack.c.b16 %v5546, %v5544
        %v5587 = vpack.c.b16 %v5547, %v5545
        %v5588 = vpack.c.b16 %v5550, %v5548
        %v5589 = vpack.c.b16 %v5551, %v5549
        %v5590 = vpack.c.b16 %v5554, %v5552
        %v5591 = vpack.c.b16 %v5555, %v5553
        %v5592 = vpack.c.b16 %v5558, %v5556
        %v5593 = vpack.c.b16 %v5559, %v5557
        %v5594 = vpack.c.b16 %v5562, %v5560
        %v5595 = vpack.c.b16 %v5563, %v5561
        %5628 = vmatprep.subr.bf16.mxu0 %v5565
        %5629 = vmatpush1.bf16.msra.mxu0 %v5564
        %5630 = vmatprep.subr.bf16.mxu0 %v5567
        %5631 = vmatpush1.bf16.msra.mxu0 %v5566
        %5632 = vmatprep.subr.bf16.mxu0 %v5569
        %5633 = vmatpush1.bf16.msra.mxu0 %v5568
        %5634 = vmatprep.subr.bf16.mxu0 %v5571
        %5635 = vmatpush1.bf16.msra.mxu0 %v5570
        %5636 = vmatprep.subr.bf16.mxu0 %v5573
        %5637 = vmatpush1.bf16.msra.mxu0 %v5572
        %5638 = vmatprep.subr.bf16.mxu0 %v5575
        %5639 = vmatpush1.bf16.msra.mxu0 %v5574
        %5640 = vmatprep.subr.bf16.mxu0 %v5577
        %5641 = vmatpush1.bf16.msra.mxu0 %v5576
        %5642 = vmatprep.subr.bf16.mxu0 %v5579
        %5643 = vmatpush1.bf16.msra.mxu0 %v5578
        %5644 = vmatprep.subr.bf16.mxu0 %v5581
        %5645 = vmatpush1.bf16.msra.mxu0 %v5580
        %5646 = vmatprep.subr.bf16.mxu0 %v5583
        %5647 = vmatpush1.bf16.msra.mxu0 %v5582
        %5648 = vmatprep.subr.bf16.mxu0 %v5585
        %5649 = vmatpush1.bf16.msra.mxu0 %v5584
        %5650 = vmatprep.subr.bf16.mxu0 %v5587
        %5651 = vmatpush1.bf16.msra.mxu0 %v5586
        %5652 = vmatprep.subr.bf16.mxu0 %v5589
        %5653 = vmatpush1.bf16.msra.mxu0 %v5588
        %5654 = vmatprep.subr.bf16.mxu0 %v5591
        %5655 = vmatpush1.bf16.msra.mxu0 %v5590
        %5656 = vmatprep.subr.bf16.mxu0 %v5593
        %5657 = vmatpush1.bf16.msra.mxu0 %v5592
        %5658 = vmatprep.subr.bf16.mxu0 %v5595
        %5659 = vmatpush1.bf16.msra.mxu0 %v5594
        %5660 = vmatprep.mubr.bf16.mxu0 %v1945
        %5661 = vmatmul.mubr.bf16.gmra.mrb[0].mxu0 %v1945
        %v5662 = vpop.f32.mrb[0].mxu0
        %v5663 = vadd.f32 %v5460, %v5662
        %v5664 = vpop.f32.mrb[0].mxu0
        %v5665 = vadd.f32 %v5462, %v5664
        %v5666 = vpop.f32.mrb[0].mxu0
        %v5667 = vadd.f32 %v5464, %v5666
        %v5668 = vpop.f32.mrb[0].mxu0
        %v5669 = vadd.f32 %v5466, %v5668
        %5670 = vdwg.mxu0
        %s5671 = scalar_lea.vmem %s15, 512
        %v5672 = vld [vmem:[%s5671] sm:$0xff]
        %v5673 = vld [vmem:[%s5671 + $0x8] sm:$0xff]
        %v5674 = vld [vmem:[%s5671 + $0x10] sm:$0xff]
        %v5675 = vld [vmem:[%s5671 + $0x18] sm:$0xff]
        %v5676 = vld [vmem:[%s5671 + $0x20] sm:$0xff]
        %v5677 = vld [vmem:[%s5671 + $0x28] sm:$0xff]
        %v5678 = vld [vmem:[%s5671 + $0x30] sm:$0xff]
        %v5679 = vld [vmem:[%s5671 + $0x38] sm:$0xff]
        %v5680 = vld [vmem:[%s5671 + $0x40] sm:$0xff]
        %v5681 = vld [vmem:[%s5671 + $0x48] sm:$0xff]
        %v5682 = vld [vmem:[%s5671 + $0x50] sm:$0xff]
        %v5683 = vld [vmem:[%s5671 + $0x58] sm:$0xff]
        %v5684 = vld [vmem:[%s5671 + $0x60] sm:$0xff]
        %v5685 = vld [vmem:[%s5671 + $0x68] sm:$0xff]
        %v5686 = vld [vmem:[%s5671 + $0x70] sm:$0xff]
        %v5687 = vld [vmem:[%s5671 + $0x78] sm:$0xff]
        %v5688 = vld [vmem:[%s5671 + $0x80] sm:$0xff]
        %v5689 = vld [vmem:[%s5671 + $0x88] sm:$0xff]
        %v5690 = vld [vmem:[%s5671 + $0x90] sm:$0xff]
        %v5691 = vld [vmem:[%s5671 + $0x98] sm:$0xff]
        %v5692 = vld [vmem:[%s5671 + $0xa0] sm:$0xff]
        %v5693 = vld [vmem:[%s5671 + $0xa8] sm:$0xff]
        %v5694 = vld [vmem:[%s5671 + $0xb0] sm:$0xff]
        %v5695 = vld [vmem:[%s5671 + $0xb8] sm:$0xff]
        %v5696 = vld [vmem:[%s5671 + $0xc0] sm:$0xff]
        %v5697 = vld [vmem:[%s5671 + $0xc8] sm:$0xff]
        %v5698 = vld [vmem:[%s5671 + $0xd0] sm:$0xff]
        %v5699 = vld [vmem:[%s5671 + $0xd8] sm:$0xff]
        %v5700 = vld [vmem:[%s5671 + $0xe0] sm:$0xff]
        %v5701 = vld [vmem:[%s5671 + $0xe8] sm:$0xff]
        %v5702 = vld [vmem:[%s5671 + $0xf0] sm:$0xff]
        %v5703 = vld [vmem:[%s5671 + $0xf8] sm:$0xff]
        %v5704 = vpack.c.b16 %v5194, %v5192
        %v5705 = vpack.c.b16 %v5195, %v5193
        %v5740 = vunpack.c.l.b16 %v5672
        %v5741 = vunpack.c.h.b16 %v5672
        %v5742 = vunpack.c.l.b16 %v5673
        %v5743 = vunpack.c.h.b16 %v5673
        %v5744 = vunpack.c.l.b16 %v5674
        %v5745 = vunpack.c.h.b16 %v5674
        %v5746 = vunpack.c.l.b16 %v5675
        %v5747 = vunpack.c.h.b16 %v5675
        %v5748 = vunpack.c.l.b16 %v5676
        %v5749 = vunpack.c.h.b16 %v5676
        %v5750 = vunpack.c.l.b16 %v5677
        %v5751 = vunpack.c.h.b16 %v5677
        %v5752 = vunpack.c.l.b16 %v5678
        %v5753 = vunpack.c.h.b16 %v5678
        %v5754 = vunpack.c.l.b16 %v5679
        %v5755 = vunpack.c.h.b16 %v5679
        %v5756 = vunpack.c.l.b16 %v5680
        %v5757 = vunpack.c.h.b16 %v5680
        %v5758 = vunpack.c.l.b16 %v5681
        %v5759 = vunpack.c.h.b16 %v5681
        %v5760 = vunpack.c.l.b16 %v5682
        %v5761 = vunpack.c.h.b16 %v5682
        %v5762 = vunpack.c.l.b16 %v5683
        %v5763 = vunpack.c.h.b16 %v5683
        %v5764 = vunpack.c.l.b16 %v5684
        %v5765 = vunpack.c.h.b16 %v5684
        %v5766 = vunpack.c.l.b16 %v5685
        %v5767 = vunpack.c.h.b16 %v5685
        %v5768 = vunpack.c.l.b16 %v5686
        %v5769 = vunpack.c.h.b16 %v5686
        %v5770 = vunpack.c.l.b16 %v5687
        %v5771 = vunpack.c.h.b16 %v5687
        %v5772 = vunpack.c.l.b16 %v5688
        %v5773 = vunpack.c.h.b16 %v5688
        %v5774 = vunpack.c.l.b16 %v5689
        %v5775 = vunpack.c.h.b16 %v5689
        %v5776 = vunpack.c.l.b16 %v5690
        %v5777 = vunpack.c.h.b16 %v5690
        %v5778 = vunpack.c.l.b16 %v5691
        %v5779 = vunpack.c.h.b16 %v5691
        %v5780 = vunpack.c.l.b16 %v5692
        %v5781 = vunpack.c.h.b16 %v5692
        %v5782 = vunpack.c.l.b16 %v5693
        %v5783 = vunpack.c.h.b16 %v5693
        %v5784 = vunpack.c.l.b16 %v5694
        %v5785 = vunpack.c.h.b16 %v5694
        %v5786 = vunpack.c.l.b16 %v5695
        %v5787 = vunpack.c.h.b16 %v5695
        %v5788 = vunpack.c.l.b16 %v5696
        %v5789 = vunpack.c.h.b16 %v5696
        %v5790 = vunpack.c.l.b16 %v5697
        %v5791 = vunpack.c.h.b16 %v5697
        %v5792 = vunpack.c.l.b16 %v5698
        %v5793 = vunpack.c.h.b16 %v5698
        %v5794 = vunpack.c.l.b16 %v5699
        %v5795 = vunpack.c.h.b16 %v5699
        %v5796 = vunpack.c.l.b16 %v5700
        %v5797 = vunpack.c.h.b16 %v5700
        %v5798 = vunpack.c.l.b16 %v5701
        %v5799 = vunpack.c.h.b16 %v5701
        %v5800 = vunpack.c.l.b16 %v5702
        %v5801 = vunpack.c.h.b16 %v5702
        %v5802 = vunpack.c.l.b16 %v5703
        %v5803 = vunpack.c.h.b16 %v5703
        %v5804 = vpack.c.b16 %v5742, %v5740
        %v5805 = vpack.c.b16 %v5743, %v5741
        %v5806 = vpack.c.b16 %v5746, %v5744
        %v5807 = vpack.c.b16 %v5747, %v5745
        %v5808 = vpack.c.b16 %v5750, %v5748
        %v5809 = vpack.c.b16 %v5751, %v5749
        %v5810 = vpack.c.b16 %v5754, %v5752
        %v5811 = vpack.c.b16 %v5755, %v5753
        %v5812 = vpack.c.b16 %v5758, %v5756
        %v5813 = vpack.c.b16 %v5759, %v5757
        %v5814 = vpack.c.b16 %v5762, %v5760
        %v5815 = vpack.c.b16 %v5763, %v5761
        %v5816 = vpack.c.b16 %v5766, %v5764
        %v5817 = vpack.c.b16 %v5767, %v5765
        %v5818 = vpack.c.b16 %v5770, %v5768
        %v5819 = vpack.c.b16 %v5771, %v5769
        %v5820 = vpack.c.b16 %v5774, %v5772
        %v5821 = vpack.c.b16 %v5775, %v5773
        %v5822 = vpack.c.b16 %v5778, %v5776
        %v5823 = vpack.c.b16 %v5779, %v5777
        %v5824 = vpack.c.b16 %v5782, %v5780
        %v5825 = vpack.c.b16 %v5783, %v5781
        %v5826 = vpack.c.b16 %v5786, %v5784
        %v5827 = vpack.c.b16 %v5787, %v5785
        %v5828 = vpack.c.b16 %v5790, %v5788
        %v5829 = vpack.c.b16 %v5791, %v5789
        %v5830 = vpack.c.b16 %v5794, %v5792
        %v5831 = vpack.c.b16 %v5795, %v5793
        %v5832 = vpack.c.b16 %v5798, %v5796
        %v5833 = vpack.c.b16 %v5799, %v5797
        %v5834 = vpack.c.b16 %v5802, %v5800
        %v5835 = vpack.c.b16 %v5803, %v5801
        %5868 = vmatprep.subr.bf16.mxu0 %v5805
        %5869 = vmatpush1.bf16.msra.mxu0 %v5804
        %5870 = vmatprep.subr.bf16.mxu0 %v5807
        %5871 = vmatpush1.bf16.msra.mxu0 %v5806
        %5872 = vmatprep.subr.bf16.mxu0 %v5809
        %5873 = vmatpush1.bf16.msra.mxu0 %v5808
        %5874 = vmatprep.subr.bf16.mxu0 %v5811
        %5875 = vmatpush1.bf16.msra.mxu0 %v5810
        %5876 = vmatprep.subr.bf16.mxu0 %v5813
        %5877 = vmatpush1.bf16.msra.mxu0 %v5812
        %5878 = vmatprep.subr.bf16.mxu0 %v5815
        %5879 = vmatpush1.bf16.msra.mxu0 %v5814
        %5880 = vmatprep.subr.bf16.mxu0 %v5817
        %5881 = vmatpush1.bf16.msra.mxu0 %v5816
        %5882 = vmatprep.subr.bf16.mxu0 %v5819
        %5883 = vmatpush1.bf16.msra.mxu0 %v5818
        %5884 = vmatprep.subr.bf16.mxu0 %v5821
        %5885 = vmatpush1.bf16.msra.mxu0 %v5820
        %5886 = vmatprep.subr.bf16.mxu0 %v5823
        %5887 = vmatpush1.bf16.msra.mxu0 %v5822
        %5888 = vmatprep.subr.bf16.mxu0 %v5825
        %5889 = vmatpush1.bf16.msra.mxu0 %v5824
        %5890 = vmatprep.subr.bf16.mxu0 %v5827
        %5891 = vmatpush1.bf16.msra.mxu0 %v5826
        %5892 = vmatprep.subr.bf16.mxu0 %v5829
        %5893 = vmatpush1.bf16.msra.mxu0 %v5828
        %5894 = vmatprep.subr.bf16.mxu0 %v5831
        %5895 = vmatpush1.bf16.msra.mxu0 %v5830
        %5896 = vmatprep.subr.bf16.mxu0 %v5833
        %5897 = vmatpush1.bf16.msra.mxu0 %v5832
        %5898 = vmatprep.subr.bf16.mxu0 %v5835
        %5899 = vmatpush1.bf16.msra.mxu0 %v5834
        %5900 = vmatprep.mubr.bf16.mxu0 %v5705
        %5901 = vmatmul.mubr.bf16.gmra.mrb[0].mxu0 %v5704
        %v5902 = vpop.f32.mrb[0].mxu0
        %v5903 = vadd.f32 0.0, %v5902
        %v5904 = vpop.f32.mrb[0].mxu0
        %v5905 = vadd.f32 0.0, %v5904
        %v5906 = vpop.f32.mrb[0].mxu0
        %v5907 = vadd.f32 0.0, %v5906
        %v5908 = vpop.f32.mrb[0].mxu0
        %v5909 = vadd.f32 0.0, %v5908
        %5910 = vdwg.mxu0
        %v5911 = vadd.f32 %v5663, %v5903
        %v5912 = vadd.f32 %v5665, %v5905
        %v5913 = vadd.f32 %v5667, %v5907
        %v5914 = vadd.f32 %v5669, %v5909
        %s5915 = scalar_lea.vmem %s15, 768
        %v5916 = vld [vmem:[%s5915] sm:$0xff]
        %v5917 = vld [vmem:[%s5915 + $0x8] sm:$0xff]
        %v5918 = vld [vmem:[%s5915 + $0x10] sm:$0xff]
        %v5919 = vld [vmem:[%s5915 + $0x18] sm:$0xff]
        %v5920 = vld [vmem:[%s5915 + $0x20] sm:$0xff]
        %v5921 = vld [vmem:[%s5915 + $0x28] sm:$0xff]
        %v5922 = vld [vmem:[%s5915 + $0x30] sm:$0xff]
        %v5923 = vld [vmem:[%s5915 + $0x38] sm:$0xff]
        %v5924 = vld [vmem:[%s5915 + $0x40] sm:$0xff]
        %v5925 = vld [vmem:[%s5915 + $0x48] sm:$0xff]
        %v5926 = vld [vmem:[%s5915 + $0x50] sm:$0xff]
        %v5927 = vld [vmem:[%s5915 + $0x58] sm:$0xff]
        %v5928 = vld [vmem:[%s5915 + $0x60] sm:$0xff]
        %v5929 = vld [vmem:[%s5915 + $0x68] sm:$0xff]
        %v5930 = vld [vmem:[%s5915 + $0x70] sm:$0xff]
        %v5931 = vld [vmem:[%s5915 + $0x78] sm:$0xff]
        %v5932 = vld [vmem:[%s5915 + $0x80] sm:$0xff]
        %v5933 = vld [vmem:[%s5915 + $0x88] sm:$0xff]
        %v5934 = vld [vmem:[%s5915 + $0x90] sm:$0xff]
        %v5935 = vld [vmem:[%s5915 + $0x98] sm:$0xff]
        %v5936 = vld [vmem:[%s5915 + $0xa0] sm:$0xff]
        %v5937 = vld [vmem:[%s5915 + $0xa8] sm:$0xff]
        %v5938 = vld [vmem:[%s5915 + $0xb0] sm:$0xff]
        %v5939 = vld [vmem:[%s5915 + $0xb8] sm:$0xff]
        %v5940 = vld [vmem:[%s5915 + $0xc0] sm:$0xff]
        %v5941 = vld [vmem:[%s5915 + $0xc8] sm:$0xff]
        %v5942 = vld [vmem:[%s5915 + $0xd0] sm:$0xff]
        %v5943 = vld [vmem:[%s5915 + $0xd8] sm:$0xff]
        %v5944 = vld [vmem:[%s5915 + $0xe0] sm:$0xff]
        %v5945 = vld [vmem:[%s5915 + $0xe8] sm:$0xff]
        %v5946 = vld [vmem:[%s5915 + $0xf0] sm:$0xff]
        %v5947 = vld [vmem:[%s5915 + $0xf8] sm:$0xff]
        %v5948 = vpack.c.b16 %v1006, %v5194
        %v5949 = vpack.c.b16 %v1006, %v5195
        %v5984 = vunpack.c.l.b16 %v5916
        %v5985 = vunpack.c.h.b16 %v5916
        %v5986 = vunpack.c.l.b16 %v5917
        %v5987 = vunpack.c.h.b16 %v5917
        %v5988 = vunpack.c.l.b16 %v5918
        %v5989 = vunpack.c.h.b16 %v5918
        %v5990 = vunpack.c.l.b16 %v5919
        %v5991 = vunpack.c.h.b16 %v5919
        %v5992 = vunpack.c.l.b16 %v5920
        %v5993 = vunpack.c.h.b16 %v5920
        %v5994 = vunpack.c.l.b16 %v5921
        %v5995 = vunpack.c.h.b16 %v5921
        %v5996 = vunpack.c.l.b16 %v5922
        %v5997 = vunpack.c.h.b16 %v5922
        %v5998 = vunpack.c.l.b16 %v5923
        %v5999 = vunpack.c.h.b16 %v5923
        %v6000 = vunpack.c.l.b16 %v5924
        %v6001 = vunpack.c.h.b16 %v5924
        %v6002 = vunpack.c.l.b16 %v5925
        %v6003 = vunpack.c.h.b16 %v5925
        %v6004 = vunpack.c.l.b16 %v5926
        %v6005 = vunpack.c.h.b16 %v5926
        %v6006 = vunpack.c.l.b16 %v5927
        %v6007 = vunpack.c.h.b16 %v5927
        %v6008 = vunpack.c.l.b16 %v5928
        %v6009 = vunpack.c.h.b16 %v5928
        %v6010 = vunpack.c.l.b16 %v5929
        %v6011 = vunpack.c.h.b16 %v5929
        %v6012 = vunpack.c.l.b16 %v5930
        %v6013 = vunpack.c.h.b16 %v5930
        %v6014 = vunpack.c.l.b16 %v5931
        %v6015 = vunpack.c.h.b16 %v5931
        %v6016 = vunpack.c.l.b16 %v5932
        %v6017 = vunpack.c.h.b16 %v5932
        %v6018 = vunpack.c.l.b16 %v5933
        %v6019 = vunpack.c.h.b16 %v5933
        %v6020 = vunpack.c.l.b16 %v5934
        %v6021 = vunpack.c.h.b16 %v5934
        %v6022 = vunpack.c.l.b16 %v5935
        %v6023 = vunpack.c.h.b16 %v5935
        %v6024 = vunpack.c.l.b16 %v5936
        %v6025 = vunpack.c.h.b16 %v5936
        %v6026 = vunpack.c.l.b16 %v5937
        %v6027 = vunpack.c.h.b16 %v5937
        %v6028 = vunpack.c.l.b16 %v5938
        %v6029 = vunpack.c.h.b16 %v5938
        %v6030 = vunpack.c.l.b16 %v5939
        %v6031 = vunpack.c.h.b16 %v5939
        %v6032 = vunpack.c.l.b16 %v5940
        %v6033 = vunpack.c.h.b16 %v5940
        %v6034 = vunpack.c.l.b16 %v5941
        %v6035 = vunpack.c.h.b16 %v5941
        %v6036 = vunpack.c.l.b16 %v5942
        %v6037 = vunpack.c.h.b16 %v5942
        %v6038 = vunpack.c.l.b16 %v5943
        %v6039 = vunpack.c.h.b16 %v5943
        %v6040 = vunpack.c.l.b16 %v5944
        %v6041 = vunpack.c.h.b16 %v5944
        %v6042 = vunpack.c.l.b16 %v5945
        %v6043 = vunpack.c.h.b16 %v5945
        %v6044 = vunpack.c.l.b16 %v5946
        %v6045 = vunpack.c.h.b16 %v5946
        %v6046 = vunpack.c.l.b16 %v5947
        %v6047 = vunpack.c.h.b16 %v5947
        %v6048 = vpack.c.b16 %v5986, %v5984
        %v6049 = vpack.c.b16 %v5987, %v5985
        %v6050 = vpack.c.b16 %v5990, %v5988
        %v6051 = vpack.c.b16 %v5991, %v5989
        %v6052 = vpack.c.b16 %v5994, %v5992
        %v6053 = vpack.c.b16 %v5995, %v5993
        %v6054 = vpack.c.b16 %v5998, %v5996
        %v6055 = vpack.c.b16 %v5999, %v5997
        %v6056 = vpack.c.b16 %v6002, %v6000
        %v6057 = vpack.c.b16 %v6003, %v6001
        %v6058 = vpack.c.b16 %v6006, %v6004
        %v6059 = vpack.c.b16 %v6007, %v6005
        %v6060 = vpack.c.b16 %v6010, %v6008
        %v6061 = vpack.c.b16 %v6011, %v6009
        %v6062 = vpack.c.b16 %v6014, %v6012
        %v6063 = vpack.c.b16 %v6015, %v6013
        %v6064 = vpack.c.b16 %v6018, %v6016
        %v6065 = vpack.c.b16 %v6019, %v6017
        %v6066 = vpack.c.b16 %v6022, %v6020
        %v6067 = vpack.c.b16 %v6023, %v6021
        %v6068 = vpack.c.b16 %v6026, %v6024
        %v6069 = vpack.c.b16 %v6027, %v6025
        %v6070 = vpack.c.b16 %v6030, %v6028
        %v6071 = vpack.c.b16 %v6031, %v6029
        %v6072 = vpack.c.b16 %v6034, %v6032
        %v6073 = vpack.c.b16 %v6035, %v6033
        %v6074 = vpack.c.b16 %v6038, %v6036
        %v6075 = vpack.c.b16 %v6039, %v6037
        %v6076 = vpack.c.b16 %v6042, %v6040
        %v6077 = vpack.c.b16 %v6043, %v6041
        %v6078 = vpack.c.b16 %v6046, %v6044
        %v6079 = vpack.c.b16 %v6047, %v6045
        %6112 = vmatprep.subr.bf16.mxu0 %v6049
        %6113 = vmatpush1.bf16.msra.mxu0 %v6048
        %6114 = vmatprep.subr.bf16.mxu0 %v6051
        %6115 = vmatpush1.bf16.msra.mxu0 %v6050
        %6116 = vmatprep.subr.bf16.mxu0 %v6053
        %6117 = vmatpush1.bf16.msra.mxu0 %v6052
        %6118 = vmatprep.subr.bf16.mxu0 %v6055
        %6119 = vmatpush1.bf16.msra.mxu0 %v6054
        %6120 = vmatprep.subr.bf16.mxu0 %v6057
        %6121 = vmatpush1.bf16.msra.mxu0 %v6056
        %6122 = vmatprep.subr.bf16.mxu0 %v6059
        %6123 = vmatpush1.bf16.msra.mxu0 %v6058
        %6124 = vmatprep.subr.bf16.mxu0 %v6061
        %6125 = vmatpush1.bf16.msra.mxu0 %v6060
        %6126 = vmatprep.subr.bf16.mxu0 %v6063
        %6127 = vmatpush1.bf16.msra.mxu0 %v6062
        %6128 = vmatprep.subr.bf16.mxu0 %v6065
        %6129 = vmatpush1.bf16.msra.mxu0 %v6064
        %6130 = vmatprep.subr.bf16.mxu0 %v6067
        %6131 = vmatpush1.bf16.msra.mxu0 %v6066
        %6132 = vmatprep.subr.bf16.mxu0 %v6069
        %6133 = vmatpush1.bf16.msra.mxu0 %v6068
        %6134 = vmatprep.subr.bf16.mxu0 %v6071
        %6135 = vmatpush1.bf16.msra.mxu0 %v6070
        %6136 = vmatprep.subr.bf16.mxu0 %v6073
        %6137 = vmatpush1.bf16.msra.mxu0 %v6072
        %6138 = vmatprep.subr.bf16.mxu0 %v6075
        %6139 = vmatpush1.bf16.msra.mxu0 %v6074
        %6140 = vmatprep.subr.bf16.mxu0 %v6077
        %6141 = vmatpush1.bf16.msra.mxu0 %v6076
        %6142 = vmatprep.subr.bf16.mxu0 %v6079
        %6143 = vmatpush1.bf16.msra.mxu0 %v6078
        %6144 = vmatprep.mubr.bf16.mxu0 %v5949
        %6145 = vmatmul.mubr.bf16.gmra.mrb[0].mxu0 %v5948
        %v6146 = vpop.f32.mrb[0].mxu0
        %v6147 = vadd.f32 0.0, %v6146
        %v6148 = vpop.f32.mrb[0].mxu0
        %v6149 = vadd.f32 0.0, %v6148
        %v6150 = vpop.f32.mrb[0].mxu0
        %v6151 = vadd.f32 0.0, %v6150
        %v6152 = vpop.f32.mrb[0].mxu0
        %v6153 = vadd.f32 0.0, %v6152
        %6154 = vdwg.mxu0
        %v6155 = vadd.f32 %v5911, %v6147
        %v6156 = vadd.f32 %v5912, %v6149
        %v6157 = vadd.f32 %v5913, %v6151
        %v6158 = vadd.f32 %v5914, %v6153
        %s6159 = scalar_lea.vmem %s15, 1024
        %v6160 = vld [vmem:[%s6159] sm:$0xff]
        %v6161 = vld [vmem:[%s6159 + $0x8] sm:$0xff]
        %v6162 = vld [vmem:[%s6159 + $0x10] sm:$0xff]
        %v6163 = vld [vmem:[%s6159 + $0x18] sm:$0xff]
        %v6164 = vld [vmem:[%s6159 + $0x20] sm:$0xff]
        %v6165 = vld [vmem:[%s6159 + $0x28] sm:$0xff]
        %v6166 = vld [vmem:[%s6159 + $0x30] sm:$0xff]
        %v6167 = vld [vmem:[%s6159 + $0x38] sm:$0xff]
        %v6168 = vld [vmem:[%s6159 + $0x40] sm:$0xff]
        %v6169 = vld [vmem:[%s6159 + $0x48] sm:$0xff]
        %v6170 = vld [vmem:[%s6159 + $0x50] sm:$0xff]
        %v6171 = vld [vmem:[%s6159 + $0x58] sm:$0xff]
        %v6172 = vld [vmem:[%s6159 + $0x60] sm:$0xff]
        %v6173 = vld [vmem:[%s6159 + $0x68] sm:$0xff]
        %v6174 = vld [vmem:[%s6159 + $0x70] sm:$0xff]
        %v6175 = vld [vmem:[%s6159 + $0x78] sm:$0xff]
        %v6176 = vld [vmem:[%s6159 + $0x80] sm:$0xff]
        %v6177 = vld [vmem:[%s6159 + $0x88] sm:$0xff]
        %v6178 = vld [vmem:[%s6159 + $0x90] sm:$0xff]
        %v6179 = vld [vmem:[%s6159 + $0x98] sm:$0xff]
        %v6180 = vld [vmem:[%s6159 + $0xa0] sm:$0xff]
        %v6181 = vld [vmem:[%s6159 + $0xa8] sm:$0xff]
        %v6182 = vld [vmem:[%s6159 + $0xb0] sm:$0xff]
        %v6183 = vld [vmem:[%s6159 + $0xb8] sm:$0xff]
        %v6184 = vld [vmem:[%s6159 + $0xc0] sm:$0xff]
        %v6185 = vld [vmem:[%s6159 + $0xc8] sm:$0xff]
        %v6186 = vld [vmem:[%s6159 + $0xd0] sm:$0xff]
        %v6187 = vld [vmem:[%s6159 + $0xd8] sm:$0xff]
        %v6188 = vld [vmem:[%s6159 + $0xe0] sm:$0xff]
        %v6189 = vld [vmem:[%s6159 + $0xe8] sm:$0xff]
        %v6190 = vld [vmem:[%s6159 + $0xf0] sm:$0xff]
        %v6191 = vld [vmem:[%s6159 + $0xf8] sm:$0xff]
        %v6224 = vunpack.c.l.b16 %v6160
        %v6225 = vunpack.c.h.b16 %v6160
        %v6226 = vunpack.c.l.b16 %v6161
        %v6227 = vunpack.c.h.b16 %v6161
        %v6228 = vunpack.c.l.b16 %v6162
        %v6229 = vunpack.c.h.b16 %v6162
        %v6230 = vunpack.c.l.b16 %v6163
        %v6231 = vunpack.c.h.b16 %v6163
        %v6232 = vunpack.c.l.b16 %v6164
        %v6233 = vunpack.c.h.b16 %v6164
        %v6234 = vunpack.c.l.b16 %v6165
        %v6235 = vunpack.c.h.b16 %v6165
        %v6236 = vunpack.c.l.b16 %v6166
        %v6237 = vunpack.c.h.b16 %v6166
        %v6238 = vunpack.c.l.b16 %v6167
        %v6239 = vunpack.c.h.b16 %v6167
        %v6240 = vunpack.c.l.b16 %v6168
        %v6241 = vunpack.c.h.b16 %v6168
        %v6242 = vunpack.c.l.b16 %v6169
        %v6243 = vunpack.c.h.b16 %v6169
        %v6244 = vunpack.c.l.b16 %v6170
        %v6245 = vunpack.c.h.b16 %v6170
        %v6246 = vunpack.c.l.b16 %v6171
        %v6247 = vunpack.c.h.b16 %v6171
        %v6248 = vunpack.c.l.b16 %v6172
        %v6249 = vunpack.c.h.b16 %v6172
        %v6250 = vunpack.c.l.b16 %v6173
        %v6251 = vunpack.c.h.b16 %v6173
        %v6252 = vunpack.c.l.b16 %v6174
        %v6253 = vunpack.c.h.b16 %v6174
        %v6254 = vunpack.c.l.b16 %v6175
        %v6255 = vunpack.c.h.b16 %v6175
        %v6256 = vunpack.c.l.b16 %v6176
        %v6257 = vunpack.c.h.b16 %v6176
        %v6258 = vunpack.c.l.b16 %v6177
        %v6259 = vunpack.c.h.b16 %v6177
        %v6260 = vunpack.c.l.b16 %v6178
        %v6261 = vunpack.c.h.b16 %v6178
        %v6262 = vunpack.c.l.b16 %v6179
        %v6263 = vunpack.c.h.b16 %v6179
        %v6264 = vunpack.c.l.b16 %v6180
        %v6265 = vunpack.c.h.b16 %v6180
        %v6266 = vunpack.c.l.b16 %v6181
        %v6267 = vunpack.c.h.b16 %v6181
        %v6268 = vunpack.c.l.b16 %v6182
        %v6269 = vunpack.c.h.b16 %v6182
        %v6270 = vunpack.c.l.b16 %v6183
        %v6271 = vunpack.c.h.b16 %v6183
        %v6272 = vunpack.c.l.b16 %v6184
        %v6273 = vunpack.c.h.b16 %v6184
        %v6274 = vunpack.c.l.b16 %v6185
        %v6275 = vunpack.c.h.b16 %v6185
        %v6276 = vunpack.c.l.b16 %v6186
        %v6277 = vunpack.c.h.b16 %v6186
        %v6278 = vunpack.c.l.b16 %v6187
        %v6279 = vunpack.c.h.b16 %v6187
        %v6280 = vunpack.c.l.b16 %v6188
        %v6281 = vunpack.c.h.b16 %v6188
        %v6282 = vunpack.c.l.b16 %v6189
        %v6283 = vunpack.c.h.b16 %v6189
        %v6284 = vunpack.c.l.b16 %v6190
        %v6285 = vunpack.c.h.b16 %v6190
        %v6286 = vunpack.c.l.b16 %v6191
        %v6287 = vunpack.c.h.b16 %v6191
        %v6288 = vpack.c.b16 %v6226, %v6224
        %v6289 = vpack.c.b16 %v6227, %v6225
        %v6290 = vpack.c.b16 %v6230, %v6228
        %v6291 = vpack.c.b16 %v6231, %v6229
        %v6292 = vpack.c.b16 %v6234, %v6232
        %v6293 = vpack.c.b16 %v6235, %v6233
        %v6294 = vpack.c.b16 %v6238, %v6236
        %v6295 = vpack.c.b16 %v6239, %v6237
        %v6296 = vpack.c.b16 %v6242, %v6240
        %v6297 = vpack.c.b16 %v6243, %v6241
        %v6298 = vpack.c.b16 %v6246, %v6244
        %v6299 = vpack.c.b16 %v6247, %v6245
        %v6300 = vpack.c.b16 %v6250, %v6248
        %v6301 = vpack.c.b16 %v6251, %v6249
        %v6302 = vpack.c.b16 %v6254, %v6252
        %v6303 = vpack.c.b16 %v6255, %v6253
        %v6304 = vpack.c.b16 %v6258, %v6256
        %v6305 = vpack.c.b16 %v6259, %v6257
        %v6306 = vpack.c.b16 %v6262, %v6260
        %v6307 = vpack.c.b16 %v6263, %v6261
        %v6308 = vpack.c.b16 %v6266, %v6264
        %v6309 = vpack.c.b16 %v6267, %v6265
        %v6310 = vpack.c.b16 %v6270, %v6268
        %v6311 = vpack.c.b16 %v6271, %v6269
        %v6312 = vpack.c.b16 %v6274, %v6272
        %v6313 = vpack.c.b16 %v6275, %v6273
        %v6314 = vpack.c.b16 %v6278, %v6276
        %v6315 = vpack.c.b16 %v6279, %v6277
        %v6316 = vpack.c.b16 %v6282, %v6280
        %v6317 = vpack.c.b16 %v6283, %v6281
        %v6318 = vpack.c.b16 %v6286, %v6284
        %v6319 = vpack.c.b16 %v6287, %v6285
        %6352 = vmatprep.subr.bf16.mxu0 %v6289
        %6353 = vmatpush1.bf16.msra.mxu0 %v6288
        %6354 = vmatprep.subr.bf16.mxu0 %v6291
        %6355 = vmatpush1.bf16.msra.mxu0 %v6290
        %6356 = vmatprep.subr.bf16.mxu0 %v6293
        %6357 = vmatpush1.bf16.msra.mxu0 %v6292
        %6358 = vmatprep.subr.bf16.mxu0 %v6295
        %6359 = vmatpush1.bf16.msra.mxu0 %v6294
        %6360 = vmatprep.subr.bf16.mxu0 %v6297
        %6361 = vmatpush1.bf16.msra.mxu0 %v6296
        %6362 = vmatprep.subr.bf16.mxu0 %v6299
        %6363 = vmatpush1.bf16.msra.mxu0 %v6298
        %6364 = vmatprep.subr.bf16.mxu0 %v6301
        %6365 = vmatpush1.bf16.msra.mxu0 %v6300
        %6366 = vmatprep.subr.bf16.mxu0 %v6303
        %6367 = vmatpush1.bf16.msra.mxu0 %v6302
        %6368 = vmatprep.subr.bf16.mxu0 %v6305
        %6369 = vmatpush1.bf16.msra.mxu0 %v6304
        %6370 = vmatprep.subr.bf16.mxu0 %v6307
        %6371 = vmatpush1.bf16.msra.mxu0 %v6306
        %6372 = vmatprep.subr.bf16.mxu0 %v6309
        %6373 = vmatpush1.bf16.msra.mxu0 %v6308
        %6374 = vmatprep.subr.bf16.mxu0 %v6311
        %6375 = vmatpush1.bf16.msra.mxu0 %v6310
        %6376 = vmatprep.subr.bf16.mxu0 %v6313
        %6377 = vmatpush1.bf16.msra.mxu0 %v6312
        %6378 = vmatprep.subr.bf16.mxu0 %v6315
        %6379 = vmatpush1.bf16.msra.mxu0 %v6314
        %6380 = vmatprep.subr.bf16.mxu0 %v6317
        %6381 = vmatpush1.bf16.msra.mxu0 %v6316
        %6382 = vmatprep.subr.bf16.mxu0 %v6319
        %6383 = vmatpush1.bf16.msra.mxu0 %v6318
        %6384 = vmatprep.mubr.bf16.mxu0 %v1945
        %6385 = vmatmul.mubr.bf16.gmra.mrb[0].mxu0 %v1945
        %v6386 = vpop.f32.mrb[0].mxu0
        %v6387 = vadd.f32 0.0, %v6386
        %v6388 = vpop.f32.mrb[0].mxu0
        %v6389 = vadd.f32 0.0, %v6388
        %v6390 = vpop.f32.mrb[0].mxu0
        %v6391 = vadd.f32 0.0, %v6390
        %v6392 = vpop.f32.mrb[0].mxu0
        %v6393 = vadd.f32 0.0, %v6392
        %6394 = vdwg.mxu0
        %v6395 = vadd.f32 %v6155, %v6387
        %v6396 = vadd.f32 %v6156, %v6389
        %v6397 = vadd.f32 %v6157, %v6391
        %v6398 = vadd.f32 %v6158, %v6393
        %v6399 = vld [vmem:[%s16] sm:$0x3]
        %v6401 = vlaneseq
        %v6402 = vshrl.u32 %v6401, 7
        %v6403 = vsub.s32 0, %v6402
        %v6404 = vrot.slane %v6399, %v6403
        %v6405 = vlaneseq
        %v6406 = vshrl.u32 %v6405, 7
        %v6407 = vsub.s32 1, %v6406
        %v6408 = vrot.slane %v6399, %v6407
        %v6411 = vadd.f32 %v6395, %v6404
        %v6412 = vadd.f32 %v6396, %v6408
        %v6413 = vadd.f32 %v6397, %v6404
        %v6414 = vadd.f32 %v6398, %v6408
        %v6415 = vmax.f32 %v6411, 0.0
        %v6416 = vmax.f32 %v6412, 0.0
        %v6417 = vmax.f32 %v6413, 0.0
        %v6418 = vmax.f32 %v6414, 0.0
        %v6419 = vadd.f32 %v6415, %v6417
        %v6420 = vadd.f32 %v6416, %v6418
        %v6421 = vmul.f32 %v6419, 0.5
        %v6422 = vmul.f32 %v6420, 0.5
        %v6423 = vpack.c.bf16 %v6421, %v6421
        %v6424 = vpack.c.bf16 %v6422, %v6422
        %v6425 = vld [vmem:[%s17] sm:$0xff]
        %v6426 = vld [vmem:[%s17 + $0x8] sm:$0xff]
        %v6427 = vld [vmem:[%s17 + $0x10] sm:$0xff]
        %v6428 = vld [vmem:[%s17 + $0x18] sm:$0xff]
        %v6429 = vld [vmem:[%s17 + $0x20] sm:$0xff]
        %v6430 = vld [vmem:[%s17 + $0x28] sm:$0xff]
        %v6431 = vld [vmem:[%s17 + $0x30] sm:$0xff]
        %v6432 = vld [vmem:[%s17 + $0x38] sm:$0xff]
        %v6433 = vld [vmem:[%s17 + $0x40] sm:$0xff]
        %v6434 = vld [vmem:[%s17 + $0x48] sm:$0xff]
        %v6435 = vld [vmem:[%s17 + $0x50] sm:$0xff]
        %v6436 = vld [vmem:[%s17 + $0x58] sm:$0xff]
        %v6437 = vld [vmem:[%s17 + $0x60] sm:$0xff]
        %v6438 = vld [vmem:[%s17 + $0x68] sm:$0xff]
        %v6439 = vld [vmem:[%s17 + $0x70] sm:$0xff]
        %v6440 = vld [vmem:[%s17 + $0x78] sm:$0xff]
        %v6441 = vld [vmem:[%s17 + $0x80] sm:$0xff]
        %v6442 = vld [vmem:[%s17 + $0x88] sm:$0xff]
        %v6443 = vld [vmem:[%s17 + $0x90] sm:$0xff]
        %v6444 = vld [vmem:[%s17 + $0x98] sm:$0xff]
        %v6445 = vld [vmem:[%s17 + $0xa0] sm:$0xff]
        %v6446 = vld [vmem:[%s17 + $0xa8] sm:$0xff]
        %v6447 = vld [vmem:[%s17 + $0xb0] sm:$0xff]
        %v6448 = vld [vmem:[%s17 + $0xb8] sm:$0xff]
        %v6449 = vld [vmem:[%s17 + $0xc0] sm:$0xff]
        %v6450 = vld [vmem:[%s17 + $0xc8] sm:$0xff]
        %v6451 = vld [vmem:[%s17 + $0xd0] sm:$0xff]
        %v6452 = vld [vmem:[%s17 + $0xd8] sm:$0xff]
        %v6453 = vld [vmem:[%s17 + $0xe0] sm:$0xff]
        %v6454 = vld [vmem:[%s17 + $0xe8] sm:$0xff]
        %v6455 = vld [vmem:[%s17 + $0xf0] sm:$0xff]
        %v6456 = vld [vmem:[%s17 + $0xf8] sm:$0xff]
        %v6457 = vld [vmem:[%s17 + $0x100] sm:$0xff]
        %v6458 = vld [vmem:[%s17 + $0x108] sm:$0xff]
        %v6459 = vld [vmem:[%s17 + $0x110] sm:$0xff]
        %v6460 = vld [vmem:[%s17 + $0x118] sm:$0xff]
        %v6461 = vld [vmem:[%s17 + $0x120] sm:$0xff]
        %v6462 = vld [vmem:[%s17 + $0x128] sm:$0xff]
        %v6463 = vld [vmem:[%s17 + $0x130] sm:$0xff]
        %v6464 = vld [vmem:[%s17 + $0x138] sm:$0xff]
        %v6465 = vld [vmem:[%s17 + $0x140] sm:$0xff]
        %v6466 = vld [vmem:[%s17 + $0x148] sm:$0xff]
        %v6467 = vld [vmem:[%s17 + $0x150] sm:$0xff]
        %v6468 = vld [vmem:[%s17 + $0x158] sm:$0xff]
        %v6469 = vld [vmem:[%s17 + $0x160] sm:$0xff]
        %v6470 = vld [vmem:[%s17 + $0x168] sm:$0xff]
        %v6471 = vld [vmem:[%s17 + $0x170] sm:$0xff]
        %v6472 = vld [vmem:[%s17 + $0x178] sm:$0xff]
        %v6473 = vld [vmem:[%s17 + $0x180] sm:$0xff]
        %v6474 = vld [vmem:[%s17 + $0x188] sm:$0xff]
        %v6475 = vld [vmem:[%s17 + $0x190] sm:$0xff]
        %v6476 = vld [vmem:[%s17 + $0x198] sm:$0xff]
        %v6477 = vld [vmem:[%s17 + $0x1a0] sm:$0xff]
        %v6478 = vld [vmem:[%s17 + $0x1a8] sm:$0xff]
        %v6479 = vld [vmem:[%s17 + $0x1b0] sm:$0xff]
        %v6480 = vld [vmem:[%s17 + $0x1b8] sm:$0xff]
        %v6481 = vld [vmem:[%s17 + $0x1c0] sm:$0xff]
        %v6482 = vld [vmem:[%s17 + $0x1c8] sm:$0xff]
        %v6483 = vld [vmem:[%s17 + $0x1d0] sm:$0xff]
        %v6484 = vld [vmem:[%s17 + $0x1d8] sm:$0xff]
        %v6485 = vld [vmem:[%s17 + $0x1e0] sm:$0xff]
        %v6486 = vld [vmem:[%s17 + $0x1e8] sm:$0xff]
        %v6487 = vld [vmem:[%s17 + $0x1f0] sm:$0xff]
        %v6488 = vld [vmem:[%s17 + $0x1f8] sm:$0xff]
        %v6489 = vld [vmem:[%s18] sm:$0xf]
        %v6491 = vlaneseq
        %v6492 = vshrl.u32 %v6491, 7
        %v6493 = vsub.s32 0, %v6492
        %v6494 = vrot.slane %v6489, %v6493
        %v6495 = vlaneseq
        %v6496 = vshrl.u32 %v6495, 7
        %v6497 = vsub.s32 1, %v6496
        %v6498 = vrot.slane %v6489, %v6497
        %v6499 = vlaneseq
        %v6500 = vshrl.u32 %v6499, 7
        %v6501 = vsub.s32 2, %v6500
        %v6502 = vrot.slane %v6489, %v6501
        %v6503 = vlaneseq
        %v6504 = vshrl.u32 %v6503, 7
        %v6505 = vsub.s32 3, %v6504
        %v6506 = vrot.slane %v6489, %v6505
        %v6575 = vunpack.c.l.b16 %v6425
        %v6576 = vunpack.c.h.b16 %v6425
        %v6577 = vunpack.c.l.b16 %v6426
        %v6578 = vunpack.c.h.b16 %v6426
        %v6579 = vunpack.c.l.b16 %v6427
        %v6580 = vunpack.c.h.b16 %v6427
        %v6581 = vunpack.c.l.b16 %v6428
        %v6582 = vunpack.c.h.b16 %v6428
        %v6583 = vunpack.c.l.b16 %v6429
        %v6584 = vunpack.c.h.b16 %v6429
        %v6585 = vunpack.c.l.b16 %v6430
        %v6586 = vunpack.c.h.b16 %v6430
        %v6587 = vunpack.c.l.b16 %v6431
        %v6588 = vunpack.c.h.b16 %v6431
        %v6589 = vunpack.c.l.b16 %v6432
        %v6590 = vunpack.c.h.b16 %v6432
        %v6591 = vunpack.c.l.b16 %v6433
        %v6592 = vunpack.c.h.b16 %v6433
        %v6593 = vunpack.c.l.b16 %v6434
        %v6594 = vunpack.c.h.b16 %v6434
        %v6595 = vunpack.c.l.b16 %v6435
        %v6596 = vunpack.c.h.b16 %v6435
        %v6597 = vunpack.c.l.b16 %v6436
        %v6598 = vunpack.c.h.b16 %v6436
        %v6599 = vunpack.c.l.b16 %v6437
        %v6600 = vunpack.c.h.b16 %v6437
        %v6601 = vunpack.c.l.b16 %v6438
        %v6602 = vunpack.c.h.b16 %v6438
        %v6603 = vunpack.c.l.b16 %v6439
        %v6604 = vunpack.c.h.b16 %v6439
        %v6605 = vunpack.c.l.b16 %v6440
        %v6606 = vunpack.c.h.b16 %v6440
        %v6607 = vunpack.c.l.b16 %v6441
        %v6608 = vunpack.c.h.b16 %v6441
        %v6609 = vunpack.c.l.b16 %v6442
        %v6610 = vunpack.c.h.b16 %v6442
        %v6611 = vunpack.c.l.b16 %v6443
        %v6612 = vunpack.c.h.b16 %v6443
        %v6613 = vunpack.c.l.b16 %v6444
        %v6614 = vunpack.c.h.b16 %v6444
        %v6615 = vunpack.c.l.b16 %v6445
        %v6616 = vunpack.c.h.b16 %v6445
        %v6617 = vunpack.c.l.b16 %v6446
        %v6618 = vunpack.c.h.b16 %v6446
        %v6619 = vunpack.c.l.b16 %v6447
        %v6620 = vunpack.c.h.b16 %v6447
        %v6621 = vunpack.c.l.b16 %v6448
        %v6622 = vunpack.c.h.b16 %v6448
        %v6623 = vunpack.c.l.b16 %v6449
        %v6624 = vunpack.c.h.b16 %v6449
        %v6625 = vunpack.c.l.b16 %v6450
        %v6626 = vunpack.c.h.b16 %v6450
        %v6627 = vunpack.c.l.b16 %v6451
        %v6628 = vunpack.c.h.b16 %v6451
        %v6629 = vunpack.c.l.b16 %v6452
        %v6630 = vunpack.c.h.b16 %v6452
        %v6631 = vunpack.c.l.b16 %v6453
        %v6632 = vunpack.c.h.b16 %v6453
        %v6633 = vunpack.c.l.b16 %v6454
        %v6634 = vunpack.c.h.b16 %v6454
        %v6635 = vunpack.c.l.b16 %v6455
        %v6636 = vunpack.c.h.b16 %v6455
        %v6637 = vunpack.c.l.b16 %v6456
        %v6638 = vunpack.c.h.b16 %v6456
        %v6639 = vunpack.c.l.b16 %v6457
        %v6640 = vunpack.c.h.b16 %v6457
        %v6641 = vunpack.c.l.b16 %v6458
        %v6642 = vunpack.c.h.b16 %v6458
        %v6643 = vunpack.c.l.b16 %v6459
        %v6644 = vunpack.c.h.b16 %v6459
        %v6645 = vunpack.c.l.b16 %v6460
        %v6646 = vunpack.c.h.b16 %v6460
        %v6647 = vunpack.c.l.b16 %v6461
        %v6648 = vunpack.c.h.b16 %v6461
        %v6649 = vunpack.c.l.b16 %v6462
        %v6650 = vunpack.c.h.b16 %v6462
        %v6651 = vunpack.c.l.b16 %v6463
        %v6652 = vunpack.c.h.b16 %v6463
        %v6653 = vunpack.c.l.b16 %v6464
        %v6654 = vunpack.c.h.b16 %v6464
        %v6655 = vunpack.c.l.b16 %v6465
        %v6656 = vunpack.c.h.b16 %v6465
        %v6657 = vunpack.c.l.b16 %v6466
        %v6658 = vunpack.c.h.b16 %v6466
        %v6659 = vunpack.c.l.b16 %v6467
        %v6660 = vunpack.c.h.b16 %v6467
        %v6661 = vunpack.c.l.b16 %v6468
        %v6662 = vunpack.c.h.b16 %v6468
        %v6663 = vunpack.c.l.b16 %v6469
        %v6664 = vunpack.c.h.b16 %v6469
        %v6665 = vunpack.c.l.b16 %v6470
        %v6666 = vunpack.c.h.b16 %v6470
        %v6667 = vunpack.c.l.b16 %v6471
        %v6668 = vunpack.c.h.b16 %v6471
        %v6669 = vunpack.c.l.b16 %v6472
        %v6670 = vunpack.c.h.b16 %v6472
        %v6671 = vunpack.c.l.b16 %v6473
        %v6672 = vunpack.c.h.b16 %v6473
        %v6673 = vunpack.c.l.b16 %v6474
        %v6674 = vunpack.c.h.b16 %v6474
        %v6675 = vunpack.c.l.b16 %v6475
        %v6676 = vunpack.c.h.b16 %v6475
        %v6677 = vunpack.c.l.b16 %v6476
        %v6678 = vunpack.c.h.b16 %v6476
        %v6679 = vunpack.c.l.b16 %v6477
        %v6680 = vunpack.c.h.b16 %v6477
        %v6681 = vunpack.c.l.b16 %v6478
        %v6682 = vunpack.c.h.b16 %v6478
        %v6683 = vunpack.c.l.b16 %v6479
        %v6684 = vunpack.c.h.b16 %v6479
        %v6685 = vunpack.c.l.b16 %v6480
        %v6686 = vunpack.c.h.b16 %v6480
        %v6687 = vunpack.c.l.b16 %v6481
        %v6688 = vunpack.c.h.b16 %v6481
        %v6689 = vunpack.c.l.b16 %v6482
        %v6690 = vunpack.c.h.b16 %v6482
        %v6691 = vunpack.c.l.b16 %v6483
        %v6692 = vunpack.c.h.b16 %v6483
        %v6693 = vunpack.c.l.b16 %v6484
        %v6694 = vunpack.c.h.b16 %v6484
        %v6695 = vunpack.c.l.b16 %v6485
        %v6696 = vunpack.c.h.b16 %v6485
        %v6697 = vunpack.c.l.b16 %v6486
        %v6698 = vunpack.c.h.b16 %v6486
        %v6699 = vunpack.c.l.b16 %v6487
        %v6700 = vunpack.c.h.b16 %v6487
        %v6701 = vunpack.c.l.b16 %v6488
        %v6702 = vunpack.c.h.b16 %v6488
        %v6703 = vpack.c.b16 %v6579, %v6575
        %v6704 = vpack.c.b16 %v6580, %v6576
        %v6705 = vpack.c.b16 %v6581, %v6577
        %v6706 = vpack.c.b16 %v6582, %v6578
        %v6707 = vpack.c.b16 %v6587, %v6583
        %v6708 = vpack.c.b16 %v6588, %v6584
        %v6709 = vpack.c.b16 %v6589, %v6585
        %v6710 = vpack.c.b16 %v6590, %v6586
        %v6711 = vpack.c.b16 %v6595, %v6591
        %v6712 = vpack.c.b16 %v6596, %v6592
        %v6713 = vpack.c.b16 %v6597, %v6593
        %v6714 = vpack.c.b16 %v6598, %v6594
        %v6715 = vpack.c.b16 %v6603, %v6599
        %v6716 = vpack.c.b16 %v6604, %v6600
        %v6717 = vpack.c.b16 %v6605, %v6601
        %v6718 = vpack.c.b16 %v6606, %v6602
        %v6719 = vpack.c.b16 %v6611, %v6607
        %v6720 = vpack.c.b16 %v6612, %v6608
        %v6721 = vpack.c.b16 %v6613, %v6609
        %v6722 = vpack.c.b16 %v6614, %v6610
        %v6723 = vpack.c.b16 %v6619, %v6615
        %v6724 = vpack.c.b16 %v6620, %v6616
        %v6725 = vpack.c.b16 %v6621, %v6617
        %v6726 = vpack.c.b16 %v6622, %v6618
        %v6727 = vpack.c.b16 %v6627, %v6623
        %v6728 = vpack.c.b16 %v6628, %v6624
        %v6729 = vpack.c.b16 %v6629, %v6625
        %v6730 = vpack.c.b16 %v6630, %v6626
        %v6731 = vpack.c.b16 %v6635, %v6631
        %v6732 = vpack.c.b16 %v6636, %v6632
        %v6733 = vpack.c.b16 %v6637, %v6633
        %v6734 = vpack.c.b16 %v6638, %v6634
        %v6735 = vpack.c.b16 %v6643, %v6639
        %v6736 = vpack.c.b16 %v6644, %v6640
        %v6737 = vpack.c.b16 %v6645, %v6641
        %v6738 = vpack.c.b16 %v6646, %v6642
        %v6739 = vpack.c.b16 %v6651, %v6647
        %v6740 = vpack.c.b16 %v6652, %v6648
        %v6741 = vpack.c.b16 %v6653, %v6649
        %v6742 = vpack.c.b16 %v6654, %v6650
        %v6743 = vpack.c.b16 %v6659, %v6655
        %v6744 = vpack.c.b16 %v6660, %v6656
        %v6745 = vpack.c.b16 %v6661, %v6657
        %v6746 = vpack.c.b16 %v6662, %v6658
        %v6747 = vpack.c.b16 %v6667, %v6663
        %v6748 = vpack.c.b16 %v6668, %v6664
        %v6749 = vpack.c.b16 %v6669, %v6665
        %v6750 = vpack.c.b16 %v6670, %v6666
        %v6751 = vpack.c.b16 %v6675, %v6671
        %v6752 = vpack.c.b16 %v6676, %v6672
        %v6753 = vpack.c.b16 %v6677, %v6673
        %v6754 = vpack.c.b16 %v6678, %v6674
        %v6755 = vpack.c.b16 %v6683, %v6679
        %v6756 = vpack.c.b16 %v6684, %v6680
        %v6757 = vpack.c.b16 %v6685, %v6681
        %v6758 = vpack.c.b16 %v6686, %v6682
        %v6759 = vpack.c.b16 %v6691, %v6687
        %v6760 = vpack.c.b16 %v6692, %v6688
        %v6761 = vpack.c.b16 %v6693, %v6689
        %v6762 = vpack.c.b16 %v6694, %v6690
        %v6763 = vpack.c.b16 %v6699, %v6695
        %v6764 = vpack.c.b16 %v6700, %v6696
        %v6765 = vpack.c.b16 %v6701, %v6697
        %v6766 = vpack.c.b16 %v6702, %v6698
        %6831 = vmatprep.subr.bf16.mxu0 %v6704
        %6832 = vmatpush1.bf16.msra.mxu0 %v6703
        %6833 = vmatprep.subr.bf16.mxu0 %v6708
        %6834 = vmatpush1.bf16.msra.mxu0 %v6707
        %6835 = vmatprep.subr.bf16.mxu0 %v6712
        %6836 = vmatpush1.bf16.msra.mxu0 %v6711
        %6837 = vmatprep.subr.bf16.mxu0 %v6716
        %6838 = vmatpush1.bf16.msra.mxu0 %v6715
        %6839 = vmatprep.subr.bf16.mxu0 %v6720
        %6840 = vmatpush1.bf16.msra.mxu0 %v6719
        %6841 = vmatprep.subr.bf16.mxu0 %v6724
        %6842 = vmatpush1.bf16.msra.mxu0 %v6723
        %6843 = vmatprep.subr.bf16.mxu0 %v6728
        %6844 = vmatpush1.bf16.msra.mxu0 %v6727
        %6845 = vmatprep.subr.bf16.mxu0 %v6732
        %6846 = vmatpush1.bf16.msra.mxu0 %v6731
        %6847 = vmatprep.subr.bf16.mxu0 %v6736
        %6848 = vmatpush1.bf16.msra.mxu0 %v6735
        %6849 = vmatprep.subr.bf16.mxu0 %v6740
        %6850 = vmatpush1.bf16.msra.mxu0 %v6739
        %6851 = vmatprep.subr.bf16.mxu0 %v6744
        %6852 = vmatpush1.bf16.msra.mxu0 %v6743
        %6853 = vmatprep.subr.bf16.mxu0 %v6748
        %6854 = vmatpush1.bf16.msra.mxu0 %v6747
        %6855 = vmatprep.subr.bf16.mxu0 %v6752
        %6856 = vmatpush1.bf16.msra.mxu0 %v6751
        %6857 = vmatprep.subr.bf16.mxu0 %v6756
        %6858 = vmatpush1.bf16.msra.mxu0 %v6755
        %6859 = vmatprep.subr.bf16.mxu0 %v6760
        %6860 = vmatpush1.bf16.msra.mxu0 %v6759
        %6861 = vmatprep.subr.bf16.mxu0 %v6764
        %6862 = vmatpush1.bf16.msra.mxu0 %v6763
        %6863 = vmatprep.mubr.bf16.mxu0 %v6424
        %6864 = vmatmul.mubr.bf16.gmra.mrb[0].mxu0 %v6423
        %v6865 = vpop.f32.mrb[0].mxu0
        %v6866 = vadd.f32 %v6494, %v6865
        %v6867 = vpop.f32.mrb[0].mxu0
        %v6868 = vadd.f32 %v6498, %v6867
        %v6869 = vpop.f32.mrb[0].mxu0
        %v6870 = vpop.f32.mrb[0].mxu0
        %6871 = vdwg.mxu0
        %6872 = vmatprep.subr.bf16.mxu0 %v6706
        %6873 = vmatpush1.bf16.msra.mxu0 %v6705
        %6874 = vmatprep.subr.bf16.mxu0 %v6710
        %6875 = vmatpush1.bf16.msra.mxu0 %v6709
        %6876 = vmatprep.subr.bf16.mxu0 %v6714
        %6877 = vmatpush1.bf16.msra.mxu0 %v6713
        %6878 = vmatprep.subr.bf16.mxu0 %v6718
        %6879 = vmatpush1.bf16.msra.mxu0 %v6717
        %6880 = vmatprep.subr.bf16.mxu0 %v6722
        %6881 = vmatpush1.bf16.msra.mxu0 %v6721
        %6882 = vmatprep.subr.bf16.mxu0 %v6726
        %6883 = vmatpush1.bf16.msra.mxu0 %v6725
        %6884 = vmatprep.subr.bf16.mxu0 %v6730
        %6885 = vmatpush1.bf16.msra.mxu0 %v6729
        %6886 = vmatprep.subr.bf16.mxu0 %v6734
        %6887 = vmatpush1.bf16.msra.mxu0 %v6733
        %6888 = vmatprep.subr.bf16.mxu0 %v6738
        %6889 = vmatpush1.bf16.msra.mxu0 %v6737
        %6890 = vmatprep.subr.bf16.mxu0 %v6742
        %6891 = vmatpush1.bf16.msra.mxu0 %v6741
        %6892 = vmatprep.subr.bf16.mxu0 %v6746
        %6893 = vmatpush1.bf16.msra.mxu0 %v6745
        %6894 = vmatprep.subr.bf16.mxu0 %v6750
        %6895 = vmatpush1.bf16.msra.mxu0 %v6749
        %6896 = vmatprep.subr.bf16.mxu0 %v6754
        %6897 = vmatpush1.bf16.msra.mxu0 %v6753
        %6898 = vmatprep.subr.bf16.mxu0 %v6758
        %6899 = vmatpush1.bf16.msra.mxu0 %v6757
        %6900 = vmatprep.subr.bf16.mxu0 %v6762
        %6901 = vmatpush1.bf16.msra.mxu0 %v6761
        %6902 = vmatprep.subr.bf16.mxu0 %v6766
        %6903 = vmatpush1.bf16.msra.mxu0 %v6765
        %6904 = vmatprep.mubr.bf16.mxu0 %v6424
        %6905 = vmatmul.mubr.bf16.gmra.mrb[0].mxu0 %v6423
        %v6906 = vpop.f32.mrb[0].mxu0
        %v6907 = vadd.f32 %v6502, %v6906
        %v6908 = vpop.f32.mrb[0].mxu0
        %v6909 = vadd.f32 %v6506, %v6908
        %v6910 = vpop.f32.mrb[0].mxu0
        %v6911 = vpop.f32.mrb[0].mxu0
        %6912 = vdwg.mxu0
        %v6913 = vmax.f32 %v6866, 0.0
        %v6914 = vmax.f32 %v6868, 0.0
        %v6915 = vmax.f32 %v6907, 0.0
        %v6916 = vmax.f32 %v6909, 0.0
        %v6917 = vpack.c.bf16 %v6913, %v6913
        %v6918 = vpack.c.bf16 %v6914, %v6914
        %v6919 = vpack.c.bf16 %v6915, %v6915
        %v6920 = vpack.c.bf16 %v6916, %v6916
        %v6921 = vld [vmem:[%s19] sm:$0xff]
        %v6922 = vld [vmem:[%s19 + $0x8] sm:$0xff]
        %v6923 = vld [vmem:[%s19 + $0x10] sm:$0xff]
        %v6924 = vld [vmem:[%s19 + $0x18] sm:$0xff]
        %v6925 = vld [vmem:[%s19 + $0x20] sm:$0xff]
        %v6926 = vld [vmem:[%s19 + $0x28] sm:$0xff]
        %v6927 = vld [vmem:[%s19 + $0x30] sm:$0xff]
        %v6928 = vld [vmem:[%s19 + $0x38] sm:$0xff]
        %v6929 = vld [vmem:[%s19 + $0x40] sm:$0xff]
        %v6930 = vld [vmem:[%s19 + $0x48] sm:$0xff]
        %v6931 = vld [vmem:[%s19 + $0x50] sm:$0xff]
        %v6932 = vld [vmem:[%s19 + $0x58] sm:$0xff]
        %v6933 = vld [vmem:[%s19 + $0x60] sm:$0xff]
        %v6934 = vld [vmem:[%s19 + $0x68] sm:$0xff]
        %v6935 = vld [vmem:[%s19 + $0x70] sm:$0xff]
        %v6936 = vld [vmem:[%s19 + $0x78] sm:$0xff]
        %v6937 = vld [vmem:[%s19 + $0x80] sm:$0xff]
        %v6938 = vld [vmem:[%s19 + $0x88] sm:$0xff]
        %v6939 = vld [vmem:[%s19 + $0x90] sm:$0xff]
        %v6940 = vld [vmem:[%s19 + $0x98] sm:$0xff]
        %v6941 = vld [vmem:[%s19 + $0xa0] sm:$0xff]
        %v6942 = vld [vmem:[%s19 + $0xa8] sm:$0xff]
        %v6943 = vld [vmem:[%s19 + $0xb0] sm:$0xff]
        %v6944 = vld [vmem:[%s19 + $0xb8] sm:$0xff]
        %v6945 = vld [vmem:[%s19 + $0xc0] sm:$0xff]
        %v6946 = vld [vmem:[%s19 + $0xc8] sm:$0xff]
        %v6947 = vld [vmem:[%s19 + $0xd0] sm:$0xff]
        %v6948 = vld [vmem:[%s19 + $0xd8] sm:$0xff]
        %v6949 = vld [vmem:[%s19 + $0xe0] sm:$0xff]
        %v6950 = vld [vmem:[%s19 + $0xe8] sm:$0xff]
        %v6951 = vld [vmem:[%s19 + $0xf0] sm:$0xff]
        %v6952 = vld [vmem:[%s19 + $0xf8] sm:$0xff]
        %v6953 = vld [vmem:[%s19 + $0x100] sm:$0xff]
        %v6954 = vld [vmem:[%s19 + $0x108] sm:$0xff]
        %v6955 = vld [vmem:[%s19 + $0x110] sm:$0xff]
        %v6956 = vld [vmem:[%s19 + $0x118] sm:$0xff]
        %v6957 = vld [vmem:[%s19 + $0x120] sm:$0xff]
        %v6958 = vld [vmem:[%s19 + $0x128] sm:$0xff]
        %v6959 = vld [vmem:[%s19 + $0x130] sm:$0xff]
        %v6960 = vld [vmem:[%s19 + $0x138] sm:$0xff]
        %v6961 = vld [vmem:[%s19 + $0x140] sm:$0xff]
        %v6962 = vld [vmem:[%s19 + $0x148] sm:$0xff]
        %v6963 = vld [vmem:[%s19 + $0x150] sm:$0xff]
        %v6964 = vld [vmem:[%s19 + $0x158] sm:$0xff]
        %v6965 = vld [vmem:[%s19 + $0x160] sm:$0xff]
        %v6966 = vld [vmem:[%s19 + $0x168] sm:$0xff]
        %v6967 = vld [vmem:[%s19 + $0x170] sm:$0xff]
        %v6968 = vld [vmem:[%s19 + $0x178] sm:$0xff]
        %v6969 = vld [vmem:[%s19 + $0x180] sm:$0xff]
        %v6970 = vld [vmem:[%s19 + $0x188] sm:$0xff]
        %v6971 = vld [vmem:[%s19 + $0x190] sm:$0xff]
        %v6972 = vld [vmem:[%s19 + $0x198] sm:$0xff]
        %v6973 = vld [vmem:[%s19 + $0x1a0] sm:$0xff]
        %v6974 = vld [vmem:[%s19 + $0x1a8] sm:$0xff]
        %v6975 = vld [vmem:[%s19 + $0x1b0] sm:$0xff]
        %v6976 = vld [vmem:[%s19 + $0x1b8] sm:$0xff]
        %v6977 = vld [vmem:[%s19 + $0x1c0] sm:$0xff]
        %v6978 = vld [vmem:[%s19 + $0x1c8] sm:$0xff]
        %v6979 = vld [vmem:[%s19 + $0x1d0] sm:$0xff]
        %v6980 = vld [vmem:[%s19 + $0x1d8] sm:$0xff]
        %v6981 = vld [vmem:[%s19 + $0x1e0] sm:$0xff]
        %v6982 = vld [vmem:[%s19 + $0x1e8] sm:$0xff]
        %v6983 = vld [vmem:[%s19 + $0x1f0] sm:$0xff]
        %v6984 = vld [vmem:[%s19 + $0x1f8] sm:$0xff]
        %v6985 = vld [vmem:[%s20] sm:$0x3]
        %v6987 = vlaneseq
        %v6988 = vshrl.u32 %v6987, 7
        %v6989 = vsub.s32 0, %v6988
        %v6990 = vrot.slane %v6985, %v6989
        %v6991 = vlaneseq
        %v6992 = vshrl.u32 %v6991, 7
        %v6993 = vsub.s32 1, %v6992
        %v6994 = vrot.slane %v6985, %v6993
        %v7061 = vunpack.c.l.b16 %v6921
        %v7062 = vunpack.c.h.b16 %v6921
        %v7063 = vunpack.c.l.b16 %v6922
        %v7064 = vunpack.c.h.b16 %v6922
        %v7065 = vunpack.c.l.b16 %v6923
        %v7066 = vunpack.c.h.b16 %v6923
        %v7067 = vunpack.c.l.b16 %v6924
        %v7068 = vunpack.c.h.b16 %v6924
        %v7069 = vunpack.c.l.b16 %v6925
        %v7070 = vunpack.c.h.b16 %v6925
        %v7071 = vunpack.c.l.b16 %v6926
        %v7072 = vunpack.c.h.b16 %v6926
        %v7073 = vunpack.c.l.b16 %v6927
        %v7074 = vunpack.c.h.b16 %v6927
        %v7075 = vunpack.c.l.b16 %v6928
        %v7076 = vunpack.c.h.b16 %v6928
        %v7077 = vunpack.c.l.b16 %v6929
        %v7078 = vunpack.c.h.b16 %v6929
        %v7079 = vunpack.c.l.b16 %v6930
        %v7080 = vunpack.c.h.b16 %v6930
        %v7081 = vunpack.c.l.b16 %v6931
        %v7082 = vunpack.c.h.b16 %v6931
        %v7083 = vunpack.c.l.b16 %v6932
        %v7084 = vunpack.c.h.b16 %v6932
        %v7085 = vunpack.c.l.b16 %v6933
        %v7086 = vunpack.c.h.b16 %v6933
        %v7087 = vunpack.c.l.b16 %v6934
        %v7088 = vunpack.c.h.b16 %v6934
        %v7089 = vunpack.c.l.b16 %v6935
        %v7090 = vunpack.c.h.b16 %v6935
        %v7091 = vunpack.c.l.b16 %v6936
        %v7092 = vunpack.c.h.b16 %v6936
        %v7093 = vunpack.c.l.b16 %v6937
        %v7094 = vunpack.c.h.b16 %v6937
        %v7095 = vunpack.c.l.b16 %v6938
        %v7096 = vunpack.c.h.b16 %v6938
        %v7097 = vunpack.c.l.b16 %v6939
        %v7098 = vunpack.c.h.b16 %v6939
        %v7099 = vunpack.c.l.b16 %v6940
        %v7100 = vunpack.c.h.b16 %v6940
        %v7101 = vunpack.c.l.b16 %v6941
        %v7102 = vunpack.c.h.b16 %v6941
        %v7103 = vunpack.c.l.b16 %v6942
        %v7104 = vunpack.c.h.b16 %v6942
        %v7105 = vunpack.c.l.b16 %v6943
        %v7106 = vunpack.c.h.b16 %v6943
        %v7107 = vunpack.c.l.b16 %v6944
        %v7108 = vunpack.c.h.b16 %v6944
        %v7109 = vunpack.c.l.b16 %v6945
        %v7110 = vunpack.c.h.b16 %v6945
        %v7111 = vunpack.c.l.b16 %v6946
        %v7112 = vunpack.c.h.b16 %v6946
        %v7113 = vunpack.c.l.b16 %v6947
        %v7114 = vunpack.c.h.b16 %v6947
        %v7115 = vunpack.c.l.b16 %v6948
        %v7116 = vunpack.c.h.b16 %v6948
        %v7117 = vunpack.c.l.b16 %v6949
        %v7118 = vunpack.c.h.b16 %v6949
        %v7119 = vunpack.c.l.b16 %v6950
        %v7120 = vunpack.c.h.b16 %v6950
        %v7121 = vunpack.c.l.b16 %v6951
        %v7122 = vunpack.c.h.b16 %v6951
        %v7123 = vunpack.c.l.b16 %v6952
        %v7124 = vunpack.c.h.b16 %v6952
        %v7125 = vunpack.c.l.b16 %v6953
        %v7126 = vunpack.c.h.b16 %v6953
        %v7127 = vunpack.c.l.b16 %v6954
        %v7128 = vunpack.c.h.b16 %v6954
        %v7129 = vunpack.c.l.b16 %v6955
        %v7130 = vunpack.c.h.b16 %v6955
        %v7131 = vunpack.c.l.b16 %v6956
        %v7132 = vunpack.c.h.b16 %v6956
        %v7133 = vunpack.c.l.b16 %v6957
        %v7134 = vunpack.c.h.b16 %v6957
        %v7135 = vunpack.c.l.b16 %v6958
        %v7136 = vunpack.c.h.b16 %v6958
        %v7137 = vunpack.c.l.b16 %v6959
        %v7138 = vunpack.c.h.b16 %v6959
        %v7139 = vunpack.c.l.b16 %v6960
        %v7140 = vunpack.c.h.b16 %v6960
        %v7141 = vunpack.c.l.b16 %v6961
        %v7142 = vunpack.c.h.b16 %v6961
        %v7143 = vunpack.c.l.b16 %v6962
        %v7144 = vunpack.c.h.b16 %v6962
        %v7145 = vunpack.c.l.b16 %v6963
        %v7146 = vunpack.c.h.b16 %v6963
        %v7147 = vunpack.c.l.b16 %v6964
        %v7148 = vunpack.c.h.b16 %v6964
        %v7149 = vunpack.c.l.b16 %v6965
        %v7150 = vunpack.c.h.b16 %v6965
        %v7151 = vunpack.c.l.b16 %v6966
        %v7152 = vunpack.c.h.b16 %v6966
        %v7153 = vunpack.c.l.b16 %v6967
        %v7154 = vunpack.c.h.b16 %v6967
        %v7155 = vunpack.c.l.b16 %v6968
        %v7156 = vunpack.c.h.b16 %v6968
        %v7157 = vunpack.c.l.b16 %v6969
        %v7158 = vunpack.c.h.b16 %v6969
        %v7159 = vunpack.c.l.b16 %v6970
        %v7160 = vunpack.c.h.b16 %v6970
        %v7161 = vunpack.c.l.b16 %v6971
        %v7162 = vunpack.c.h.b16 %v6971
        %v7163 = vunpack.c.l.b16 %v6972
        %v7164 = vunpack.c.h.b16 %v6972
        %v7165 = vunpack.c.l.b16 %v6973
        %v7166 = vunpack.c.h.b16 %v6973
        %v7167 = vunpack.c.l.b16 %v6974
        %v7168 = vunpack.c.h.b16 %v6974
        %v7169 = vunpack.c.l.b16 %v6975
        %v7170 = vunpack.c.h.b16 %v6975
        %v7171 = vunpack.c.l.b16 %v6976
        %v7172 = vunpack.c.h.b16 %v6976
        %v7173 = vunpack.c.l.b16 %v6977
        %v7174 = vunpack.c.h.b16 %v6977
        %v7175 = vunpack.c.l.b16 %v6978
        %v7176 = vunpack.c.h.b16 %v6978
        %v7177 = vunpack.c.l.b16 %v6979
        %v7178 = vunpack.c.h.b16 %v6979
        %v7179 = vunpack.c.l.b16 %v6980
        %v7180 = vunpack.c.h.b16 %v6980
        %v7181 = vunpack.c.l.b16 %v6981
        %v7182 = vunpack.c.h.b16 %v6981
        %v7183 = vunpack.c.l.b16 %v6982
        %v7184 = vunpack.c.h.b16 %v6982
        %v7185 = vunpack.c.l.b16 %v6983
        %v7186 = vunpack.c.h.b16 %v6983
        %v7187 = vunpack.c.l.b16 %v6984
        %v7188 = vunpack.c.h.b16 %v6984
        %v7189 = vpack.c.b16 %v7063, %v7061
        %v7190 = vpack.c.b16 %v7064, %v7062
        %v7191 = vpack.c.b16 %v7067, %v7065
        %v7192 = vpack.c.b16 %v7068, %v7066
        %v7193 = vpack.c.b16 %v7071, %v7069
        %v7194 = vpack.c.b16 %v7072, %v7070
        %v7195 = vpack.c.b16 %v7075, %v7073
        %v7196 = vpack.c.b16 %v7076, %v7074
        %v7197 = vpack.c.b16 %v7079, %v7077
        %v7198 = vpack.c.b16 %v7080, %v7078
        %v7199 = vpack.c.b16 %v7083, %v7081
        %v7200 = vpack.c.b16 %v7084, %v7082
        %v7201 = vpack.c.b16 %v7087, %v7085
        %v7202 = vpack.c.b16 %v7088, %v7086
        %v7203 = vpack.c.b16 %v7091, %v7089
        %v7204 = vpack.c.b16 %v7092, %v7090
        %v7205 = vpack.c.b16 %v7095, %v7093
        %v7206 = vpack.c.b16 %v7096, %v7094
        %v7207 = vpack.c.b16 %v7099, %v7097
        %v7208 = vpack.c.b16 %v7100, %v7098
        %v7209 = vpack.c.b16 %v7103, %v7101
        %v7210 = vpack.c.b16 %v7104, %v7102
        %v7211 = vpack.c.b16 %v7107, %v7105
        %v7212 = vpack.c.b16 %v7108, %v7106
        %v7213 = vpack.c.b16 %v7111, %v7109
        %v7214 = vpack.c.b16 %v7112, %v7110
        %v7215 = vpack.c.b16 %v7115, %v7113
        %v7216 = vpack.c.b16 %v7116, %v7114
        %v7217 = vpack.c.b16 %v7119, %v7117
        %v7218 = vpack.c.b16 %v7120, %v7118
        %v7219 = vpack.c.b16 %v7123, %v7121
        %v7220 = vpack.c.b16 %v7124, %v7122
        %v7221 = vpack.c.b16 %v7127, %v7125
        %v7222 = vpack.c.b16 %v7128, %v7126
        %v7223 = vpack.c.b16 %v7131, %v7129
        %v7224 = vpack.c.b16 %v7132, %v7130
        %v7225 = vpack.c.b16 %v7135, %v7133
        %v7226 = vpack.c.b16 %v7136, %v7134
        %v7227 = vpack.c.b16 %v7139, %v7137
        %v7228 = vpack.c.b16 %v7140, %v7138
        %v7229 = vpack.c.b16 %v7143, %v7141
        %v7230 = vpack.c.b16 %v7144, %v7142
        %v7231 = vpack.c.b16 %v7147, %v7145
        %v7232 = vpack.c.b16 %v7148, %v7146
        %v7233 = vpack.c.b16 %v7151, %v7149
        %v7234 = vpack.c.b16 %v7152, %v7150
        %v7235 = vpack.c.b16 %v7155, %v7153
        %v7236 = vpack.c.b16 %v7156, %v7154
        %v7237 = vpack.c.b16 %v7159, %v7157
        %v7238 = vpack.c.b16 %v7160, %v7158
        %v7239 = vpack.c.b16 %v7163, %v7161
        %v7240 = vpack.c.b16 %v7164, %v7162
        %v7241 = vpack.c.b16 %v7167, %v7165
        %v7242 = vpack.c.b16 %v7168, %v7166
        %v7243 = vpack.c.b16 %v7171, %v7169
        %v7244 = vpack.c.b16 %v7172, %v7170
        %v7245 = vpack.c.b16 %v7175, %v7173
        %v7246 = vpack.c.b16 %v7176, %v7174
        %v7247 = vpack.c.b16 %v7179, %v7177
        %v7248 = vpack.c.b16 %v7180, %v7178
        %v7249 = vpack.c.b16 %v7183, %v7181
        %v7250 = vpack.c.b16 %v7184, %v7182
        %v7251 = vpack.c.b16 %v7187, %v7185
        %v7252 = vpack.c.b16 %v7188, %v7186
        %7317 = vmatprep.subr.bf16.mxu0 %v7190
        %7318 = vmatpush1.bf16.msra.mxu0 %v7189
        %7319 = vmatprep.subr.bf16.mxu0 %v7192
        %7320 = vmatpush1.bf16.msra.mxu0 %v7191
        %7321 = vmatprep.subr.bf16.mxu0 %v7194
        %7322 = vmatpush1.bf16.msra.mxu0 %v7193
        %7323 = vmatprep.subr.bf16.mxu0 %v7196
        %7324 = vmatpush1.bf16.msra.mxu0 %v7195
        %7325 = vmatprep.subr.bf16.mxu0 %v7198
        %7326 = vmatpush1.bf16.msra.mxu0 %v7197
        %7327 = vmatprep.subr.bf16.mxu0 %v7200
        %7328 = vmatpush1.bf16.msra.mxu0 %v7199
        %7329 = vmatprep.subr.bf16.mxu0 %v7202
        %7330 = vmatpush1.bf16.msra.mxu0 %v7201
        %7331 = vmatprep.subr.bf16.mxu0 %v7204
        %7332 = vmatpush1.bf16.msra.mxu0 %v7203
        %7333 = vmatprep.subr.bf16.mxu0 %v7206
        %7334 = vmatpush1.bf16.msra.mxu0 %v7205
        %7335 = vmatprep.subr.bf16.mxu0 %v7208
        %7336 = vmatpush1.bf16.msra.mxu0 %v7207
        %7337 = vmatprep.subr.bf16.mxu0 %v7210
        %7338 = vmatpush1.bf16.msra.mxu0 %v7209
        %7339 = vmatprep.subr.bf16.mxu0 %v7212
        %7340 = vmatpush1.bf16.msra.mxu0 %v7211
        %7341 = vmatprep.subr.bf16.mxu0 %v7214
        %7342 = vmatpush1.bf16.msra.mxu0 %v7213
        %7343 = vmatprep.subr.bf16.mxu0 %v7216
        %7344 = vmatpush1.bf16.msra.mxu0 %v7215
        %7345 = vmatprep.subr.bf16.mxu0 %v7218
        %7346 = vmatpush1.bf16.msra.mxu0 %v7217
        %7347 = vmatprep.subr.bf16.mxu0 %v7220
        %7348 = vmatpush1.bf16.msra.mxu0 %v7219
        %7349 = vmatprep.mubr.bf16.mxu0 %v6918
        %7350 = vmatmul.mubr.bf16.gmra.mrb[0].mxu0 %v6917
        %v7351 = vpop.f32.mrb[0].mxu0
        %v7352 = vadd.f32 %v6990, %v7351
        %v7353 = vpop.f32.mrb[0].mxu0
        %v7354 = vadd.f32 %v6994, %v7353
        %v7355 = vpop.f32.mrb[0].mxu0
        %v7356 = vpop.f32.mrb[0].mxu0
        %7357 = vdwg.mxu0
        %7358 = vmatprep.subr.bf16.mxu0 %v7222
        %7359 = vmatpush1.bf16.msra.mxu0 %v7221
        %7360 = vmatprep.subr.bf16.mxu0 %v7224
        %7361 = vmatpush1.bf16.msra.mxu0 %v7223
        %7362 = vmatprep.subr.bf16.mxu0 %v7226
        %7363 = vmatpush1.bf16.msra.mxu0 %v7225
        %7364 = vmatprep.subr.bf16.mxu0 %v7228
        %7365 = vmatpush1.bf16.msra.mxu0 %v7227
        %7366 = vmatprep.subr.bf16.mxu0 %v7230
        %7367 = vmatpush1.bf16.msra.mxu0 %v7229
        %7368 = vmatprep.subr.bf16.mxu0 %v7232
        %7369 = vmatpush1.bf16.msra.mxu0 %v7231
        %7370 = vmatprep.subr.bf16.mxu0 %v7234
        %7371 = vmatpush1.bf16.msra.mxu0 %v7233
        %7372 = vmatprep.subr.bf16.mxu0 %v7236
        %7373 = vmatpush1.bf16.msra.mxu0 %v7235
        %7374 = vmatprep.subr.bf16.mxu0 %v7238
        %7375 = vmatpush1.bf16.msra.mxu0 %v7237
        %7376 = vmatprep.subr.bf16.mxu0 %v7240
        %7377 = vmatpush1.bf16.msra.mxu0 %v7239
        %7378 = vmatprep.subr.bf16.mxu0 %v7242
        %7379 = vmatpush1.bf16.msra.mxu0 %v7241
        %7380 = vmatprep.subr.bf16.mxu0 %v7244
        %7381 = vmatpush1.bf16.msra.mxu0 %v7243
        %7382 = vmatprep.subr.bf16.mxu0 %v7246
        %7383 = vmatpush1.bf16.msra.mxu0 %v7245
        %7384 = vmatprep.subr.bf16.mxu0 %v7248
        %7385 = vmatpush1.bf16.msra.mxu0 %v7247
        %7386 = vmatprep.subr.bf16.mxu0 %v7250
        %7387 = vmatpush1.bf16.msra.mxu0 %v7249
        %7388 = vmatprep.subr.bf16.mxu0 %v7252
        %7389 = vmatpush1.bf16.msra.mxu0 %v7251
        %7390 = vmatprep.mubr.bf16.mxu0 %v6920
        %7391 = vmatmul.mubr.bf16.gmra.mrb[0].mxu0 %v6919
        %v7392 = vpop.f32.mrb[0].mxu0
        %v7393 = vadd.f32 %v7352, %v7392
        %v7394 = vpop.f32.mrb[0].mxu0
        %v7395 = vadd.f32 %v7354, %v7394
        %v7396 = vpop.f32.mrb[0].mxu0
        %v7397 = vpop.f32.mrb[0].mxu0
        %7398 = vdwg.mxu0
        %v7399 = vmax.f32 %v7393, 0.0
        %v7400 = vmax.f32 %v7395, 0.0
        %v7401 = vpack.c.bf16 %v7399, %v7399
        %v7402 = vpack.c.bf16 %v7400, %v7400
        %v7403 = vld [vmem:[%s21] sm:$0xf]
        %v7404 = vld [vmem:[%s21 + $0x4] sm:$0xf]
        %v7405 = vld [vmem:[%s21 + $0x8] sm:$0xf]
        %v7406 = vld [vmem:[%s21 + $0xc] sm:$0xf]
        %v7407 = vld [vmem:[%s21 + $0x10] sm:$0xf]
        %v7408 = vld [vmem:[%s21 + $0x14] sm:$0xf]
        %v7409 = vld [vmem:[%s21 + $0x18] sm:$0xf]
        %v7410 = vld [vmem:[%s21 + $0x1c] sm:$0xf]
        %v7411 = vld [vmem:[%s21 + $0x20] sm:$0xf]
        %v7412 = vld [vmem:[%s21 + $0x24] sm:$0xf]
        %v7413 = vld [vmem:[%s21 + $0x28] sm:$0xf]
        %v7414 = vld [vmem:[%s21 + $0x2c] sm:$0xf]
        %v7415 = vld [vmem:[%s21 + $0x30] sm:$0xf]
        %v7416 = vld [vmem:[%s21 + $0x34] sm:$0xf]
        %v7417 = vld [vmem:[%s21 + $0x38] sm:$0xf]
        %v7418 = vld [vmem:[%s21 + $0x3c] sm:$0xf]
        %v7419 = vld [vmem:[%s21 + $0x40] sm:$0xf]
        %v7420 = vld [vmem:[%s21 + $0x44] sm:$0xf]
        %v7421 = vld [vmem:[%s21 + $0x48] sm:$0xf]
        %v7422 = vld [vmem:[%s21 + $0x4c] sm:$0xf]
        %v7423 = vld [vmem:[%s21 + $0x50] sm:$0xf]
        %v7424 = vld [vmem:[%s21 + $0x54] sm:$0xf]
        %v7425 = vld [vmem:[%s21 + $0x58] sm:$0xf]
        %v7426 = vld [vmem:[%s21 + $0x5c] sm:$0xf]
        %v7427 = vld [vmem:[%s21 + $0x60] sm:$0xf]
        %v7428 = vld [vmem:[%s21 + $0x64] sm:$0xf]
        %v7429 = vld [vmem:[%s21 + $0x68] sm:$0xf]
        %v7430 = vld [vmem:[%s21 + $0x6c] sm:$0xf]
        %v7431 = vld [vmem:[%s21 + $0x70] sm:$0xf]
        %v7432 = vld [vmem:[%s21 + $0x74] sm:$0xf]
        %v7433 = vld [vmem:[%s21 + $0x78] sm:$0xf]
        %v7434 = vld [vmem:[%s21 + $0x7c] sm:$0xf]
        %v7435 = vld [vmem:[%s22] sm:$0x1]
        %v7437 = vlaneseq
        %v7438 = vshrl.u32 %v7437, 7
        %v7439 = vsub.s32 0, %v7438
        %v7440 = vrot.slane %v7435, %v7439
        %v7474 = vunpack.c.l.b16 %v7403
        %v7475 = vunpack.c.l.b16 %v7404
        %v7476 = vunpack.c.l.b16 %v7405
        %v7477 = vunpack.c.l.b16 %v7406
        %v7478 = vunpack.c.l.b16 %v7407
        %v7479 = vunpack.c.l.b16 %v7408
        %v7480 = vunpack.c.l.b16 %v7409
        %v7481 = vunpack.c.l.b16 %v7410
        %v7482 = vunpack.c.l.b16 %v7411
        %v7483 = vunpack.c.l.b16 %v7412
        %v7484 = vunpack.c.l.b16 %v7413
        %v7485 = vunpack.c.l.b16 %v7414
        %v7486 = vunpack.c.l.b16 %v7415
        %v7487 = vunpack.c.l.b16 %v7416
        %v7488 = vunpack.c.l.b16 %v7417
        %v7489 = vunpack.c.l.b16 %v7418
        %v7490 = vunpack.c.l.b16 %v7419
        %v7491 = vunpack.c.l.b16 %v7420
        %v7492 = vunpack.c.l.b16 %v7421
        %v7493 = vunpack.c.l.b16 %v7422
        %v7494 = vunpack.c.l.b16 %v7423
        %v7495 = vunpack.c.l.b16 %v7424
        %v7496 = vunpack.c.l.b16 %v7425
        %v7497 = vunpack.c.l.b16 %v7426
        %v7498 = vunpack.c.l.b16 %v7427
        %v7499 = vunpack.c.l.b16 %v7428
        %v7500 = vunpack.c.l.b16 %v7429
        %v7501 = vunpack.c.l.b16 %v7430
        %v7502 = vunpack.c.l.b16 %v7431
        %v7503 = vunpack.c.l.b16 %v7432
        %v7504 = vunpack.c.l.b16 %v7433
        %v7505 = vunpack.c.l.b16 %v7434
        %v7506 = vpack.c.b16 %v7475, %v7474
        %v7507 = vpack.c.b16 %v7477, %v7476
        %v7508 = vpack.c.b16 %v7479, %v7478
        %v7509 = vpack.c.b16 %v7481, %v7480
        %v7510 = vpack.c.b16 %v7483, %v7482
        %v7511 = vpack.c.b16 %v7485, %v7484
        %v7512 = vpack.c.b16 %v7487, %v7486
        %v7513 = vpack.c.b16 %v7489, %v7488
        %v7514 = vpack.c.b16 %v7491, %v7490
        %v7515 = vpack.c.b16 %v7493, %v7492
        %v7516 = vpack.c.b16 %v7495, %v7494
        %v7517 = vpack.c.b16 %v7497, %v7496
        %v7518 = vpack.c.b16 %v7499, %v7498
        %v7519 = vpack.c.b16 %v7501, %v7500
        %v7520 = vpack.c.b16 %v7503, %v7502
        %v7521 = vpack.c.b16 %v7505, %v7504
        %7538 = vmatprep.subr.bf16.mxu0 0
        %7539 = vmatpush1.bf16.msra.mxu0 %v7506
        %7540 = vmatprep.subr.bf16.mxu0 0
        %7541 = vmatpush1.bf16.msra.mxu0 %v7507
        %7542 = vmatprep.subr.bf16.mxu0 0
        %7543 = vmatpush1.bf16.msra.mxu0 %v7508
        %7544 = vmatprep.subr.bf16.mxu0 0
        %7545 = vmatpush1.bf16.msra.mxu0 %v7509
        %7546 = vmatprep.subr.bf16.mxu0 0
        %7547 = vmatpush1.bf16.msra.mxu0 %v7510
        %7548 = vmatprep.subr.bf16.mxu0 0
        %7549 = vmatpush1.bf16.msra.mxu0 %v7511
        %7550 = vmatprep.subr.bf16.mxu0 0
        %7551 = vmatpush1.bf16.msra.mxu0 %v7512
        %7552 = vmatprep.subr.bf16.mxu0 0
        %7553 = vmatpush1.bf16.msra.mxu0 %v7513
        %7554 = vmatprep.subr.bf16.mxu0 0
        %7555 = vmatpush1.bf16.msra.mxu0 %v7514
        %7556 = vmatprep.subr.bf16.mxu0 0
        %7557 = vmatpush1.bf16.msra.mxu0 %v7515
        %7558 = vmatprep.subr.bf16.mxu0 0
        %7559 = vmatpush1.bf16.msra.mxu0 %v7516
        %7560 = vmatprep.subr.bf16.mxu0 0
        %7561 = vmatpush1.bf16.msra.mxu0 %v7517
        %7562 = vmatprep.subr.bf16.mxu0 0
        %7563 = vmatpush1.bf16.msra.mxu0 %v7518
        %7564 = vmatprep.subr.bf16.mxu0 0
        %7565 = vmatpush1.bf16.msra.mxu0 %v7519
        %7566 = vmatprep.subr.bf16.mxu0 0
        %7567 = vmatpush1.bf16.msra.mxu0 %v7520
        %7568 = vmatprep.subr.bf16.mxu0 0
        %7569 = vmatpush1.bf16.msra.mxu0 %v7521
        %7570 = vmatprep.mubr.bf16.mxu0 %v7402
        %7571 = vmatmul.mubr.bf16.gmra.mrb[0].mxu0 %v7401
        %v7572 = vpop.f32.mrb[0].mxu0
        %v7573 = vadd.f32 %v7440, %v7572
        %v7574 = vpop.f32.mrb[0].mxu0
        %v7575 = vpop.f32.mrb[0].mxu0
        %v7576 = vpop.f32.mrb[0].mxu0
        %7577 = vdwg.mxu0
        %vm7578 = vcmask 39936
        %7579 = vst.msk [vmem:[%s802] sm:$0xff] %vm7578, %v7573
        %p7580 = scmp.lt.s32.totalorder %s34, 1
        %s7581 = scalar_select %p7580, %s34, 1
        %s7582 = smul.addr %s7581, 8
        %s7583 = scalar_lea.vmem %s23, %s7582
        // Predicated region
        $region151: #{_lambda_.1} parent=145 // pred_check
          %p7584 = pneg %p540
        $region152: #{_lambda_.1} parent=145 // pred_check_branch
          %7586 = sbr.rel (%p7584) target = $region154
        $region153: #{_lambda_.1} parent=145 // pred_region
          _
        $region154: #{_lambda_.1} parent=145 // pred_fallthru
          _
      $region146: #{_lambda_.1} parent=5 // pred_fallthru
        _
      %p7587 = scmp.le.s32.totalorder 2, %s29
      // Predicated region
      $region155: #{_lambda_.1} parent=5 // pred_check
        %p7588 = pneg %p7587
      $region156: #{_lambda_.1} parent=5 // pred_check_branch
        %7590 = sbr.rel (%p7588) target = $region158
      $region157: #{_lambda_.1} parent=5 // pred_region
        %s7591 = ssub.s32 %s29, 2
        // Predicated region
        $region159: #{_lambda_.1} parent=157 // pred_check
          %p7592 = pneg %p546
        $region160: #{_lambda_.1} parent=157 // pred_check_branch
          %7594 = sbr.rel (%p7592) target = $region162
        $region161: #{_lambda_.1} parent=157 // pred_region
          %p7595 = scmp.lt.s32.totalorder %s35, 1
          %s7596 = scalar_select %p7595, %s35, 1
          %s7597 = smul.addr %s7596, 8
          %s7598 = scalar_lea.vmem %s23, %s7597
        $region162: #{_lambda_.1} parent=157 // pred_fallthru
          _
      $region158: #{_lambda_.1} parent=5 // pred_fallthru
        _
    $region6: #{_lambda_.1} parent=1 // loop_footer
      %s33 = sadd.s32 1, %s29
    $region7: #{_lambda_.1} parent=1 // loop_footer_branch
      %28 = sbr.rel target = $region3
    $region8: #{_lambda_.1} parent=1 // loop_exit
      _

</llo_original>
